<compile_context>
chip_gen: v6e
topology: v6e:2x2x1
jax: 0.10.0
libtpu: 0.0.40
codegen_flags: <defaults>
</compile_context>

<pallas_src>
import jax
import jax.numpy as jnp
from jax import lax
from jax.experimental import pallas as pl
from jax.experimental.pallas import tpu as pltpu


def _round_up(n, m):
    return (n + m - 1) // m * m


# ------------------------- fused multi-layer LSTM kernel -------------------------
def _lstm_stack_kernel(x_ref, w_ref, b_ref, hseq_ref, h_sc, c_sc, xh_sc):
    """Runs all LSTM layers for a chunk of TS timesteps.

    x_ref   : (TS, B, D)            padded inputs for this time-chunk
    w_ref   : (L, D + H, 4H)        per-layer fused [W_ih ; W_hh] (zero-padded)
    b_ref   : (L, 1, 4H)            per-layer b_ih + b_hh (zero-padded)
    hseq_ref: (TS, B, H)            top-layer hidden states (output)
    h_sc/c_sc: (L, B, H) VMEM       recurrent state, persists across grid steps
    xh_sc   : (B, D + H) VMEM       staging slab for the fused [x | h] matmul operand
    """
    @pl.when(pl.program_id(0) == 0)
    def _():
        h_sc[...] = jnp.zeros_like(h_sc)
        c_sc[...] = jnp.zeros_like(c_sc)

    L = h_sc.shape[0]
    H = h_sc.shape[-1]          # H_pad (multiple of 128)
    D = x_ref.shape[-1]         # D_pad (multiple of 128)
    TS = x_ref.shape[0]

    def step(ts, carry):
        # Layer-0 input occupies the first D lanes of the fused operand.
        xh_sc[:, :D] = x_ref[ts]
        h = None
        for l in range(L):      # static unroll over layers
            xh_sc[:, D:] = h_sc[l]
            # One fused MXU matmul per (timestep, layer). Gate order: i, f, g, o.
            gates = (
                jnp.dot(xh_sc[...], w_ref[l], preferred_element_type=jnp.float32)
                + b_ref[l]
            )  # (B, 4H)
            i = jax.nn.sigmoid(gates[:, 0 * H:1 * H])
            f = jax.nn.sigmoid(gates[:, 1 * H:2 * H])
            g = jnp.tanh(gates[:, 2 * H:3 * H])
            o = jax.nn.sigmoid(gates[:, 3 * H:4 * H])
            c = f * c_sc[l] + i * g
            h = o * jnp.tanh(c)
            c_sc[l] = c
            h_sc[l] = h
            if l + 1 < L:
                # Next layer's input. Any stale data left in xh_sc[:, H:D] is
                # multiplied by zero-padded weight rows, so it contributes 0.
                xh_sc[:, :H] = h
        hseq_ref[ts] = h        # lane-dense (B, H_pad) store
        return carry

    lax.fori_loop(0, TS, step, 0, unroll=True)


def lstm_stack(x_p, w_packed, b_packed, *, ts_chunk):
    """x_p: (T_pad, B_pad, D_pad); returns (T_pad, B_pad, H_pad)."""
    T_pad, B_pad, D_pad = x_p.shape
    L, DH, H4 = w_packed.shape
    H_pad = H4 // 4
    assert T_pad % ts_chunk == 0

    return pl.pallas_call(
        _lstm_stack_kernel,
        out_shape=jax.ShapeDtypeStruct((T_pad, B_pad, H_pad), jnp.float32),
        grid_spec=pltpu.PrefetchScalarGridSpec(
            num_scalar_prefetch=0,
            grid=(T_pad // ts_chunk,),
            in_specs=[
                pl.BlockSpec((ts_chunk, B_pad, D_pad), lambda t: (t, 0, 0)),
                pl.BlockSpec((L, DH, H4), lambda t: (0, 0, 0)),   # weights resident
                pl.BlockSpec((L, 1, H4), lambda t: (0, 0, 0)),    # bias resident
            ],
            out_specs=pl.BlockSpec((ts_chunk, B_pad, H_pad), lambda t: (t, 0, 0)),
            scratch_shapes=[
                pltpu.VMEM((L, B_pad, H_pad), jnp.float32),       # h state
                pltpu.VMEM((L, B_pad, H_pad), jnp.float32),       # c state
                pltpu.VMEM((B_pad, D_pad + H_pad), jnp.float32),  # [x | h] slab
            ],
        ),
        compiler_params=pltpu.CompilerParams(
            dimension_semantics=("arbitrary",),   # time recurrence is sequential
            vmem_limit_bytes=64 * 1024 * 1024,
        ),
    )(x_p, w_packed, b_packed)


# -------------------------------- Linear kernel ----------------------------------
def _linear_kernel(x_ref, w_ref, b_ref, o_ref):
    o_ref[...] = (
        jnp.dot(x_ref[...], w_ref[...], preferred_element_type=jnp.float32)
        + b_ref[...]
    )


def linear(x2d, w_t, b, *, tn=256, tv=1024):
    """x2d: (N, Hp), w_t: (Hp, Vp), b: (1, Vp) -> (N, Vp). Tiled over rows x vocab."""
    N, Hp = x2d.shape
    Vp = w_t.shape[1]
    tn = min(tn, _round_up(N, 8))
    tv = min(tv, Vp)
    Np = _round_up(N, tn)
    Vt = _round_up(Vp, tv)
    if Np != N:
        x2d = jnp.zeros((Np, Hp), x2d.dtype).at[:N].set(x2d)
    if Vt != Vp:
        w_t = jnp.zeros((Hp, Vt), w_t.dtype).at[:, :Vp].set(w_t)
        b = jnp.zeros((1, Vt), b.dtype).at[:, :Vp].set(b)

    out = pl.pallas_call(
        _linear_kernel,
        out_shape=jax.ShapeDtypeStruct((Np, Vt), jnp.float32),
        grid_spec=pltpu.PrefetchScalarGridSpec(
            num_scalar_prefetch=0,
            grid=(Np // tn, Vt // tv),
            in_specs=[
                pl.BlockSpec((tn, Hp), lambda i, j: (i, 0)),
                pl.BlockSpec((Hp, tv), lambda i, j: (0, j)),
                pl.BlockSpec((1, tv), lambda i, j: (0, j)),
            ],
            out_specs=pl.BlockSpec((tn, tv), lambda i, j: (i, j)),
        ),
        compiler_params=pltpu.CompilerParams(
            dimension_semantics=("parallel", "parallel"),  # both axes megacore-shardable
            vmem_limit_bytes=64 * 1024 * 1024,
        ),
    )(x2d, w_t, b)
    return out[:N, :Vp]


# ------------------------------ parameter packing ---------------------------------
def _pack_lstm(lstm_raw, H, H_pad, D_pad):
    """Build per-layer fused, zero-padded [W_ih ; W_hh] of shape (L, D_pad+H_pad, 4*H_pad)."""
    L = len(lstm_raw)
    W = jnp.zeros((L, D_pad + H_pad, 4 * H_pad), jnp.float32)
    bias = jnp.zeros((L, 1, 4 * H_pad), jnp.float32)
    for l, (w_ih, w_hh, b_ih, b_hh) in enumerate(lstm_raw):
        in_dim = w_ih.shape[1]
        for g in range(4):  # PyTorch gate order: i, f, g, o
            W = W.at[l, :in_dim, g * H_pad:g * H_pad + H].set(
                jnp.transpose(w_ih[g * H:(g + 1) * H, :]))
            W = W.at[l, D_pad:D_pad + H, g * H_pad:g * H_pad + H].set(
                jnp.transpose(w_hh[g * H:(g + 1) * H, :]))
            bias = bias.at[l, 0, g * H_pad:g * H_pad + H].set(
                b_ih[g * H:(g + 1) * H] + b_hh[g * H:(g + 1) * H])
    return W, bias


class DecoderRNNParams:
    def __init__(self, key, embed_size, hidden_size, vocab_size, num_layers):
        self.embed_size = E = embed_size
        self.hidden_size = H = hidden_size
        self.vocab_size = V = vocab_size
        self.num_layers = L = num_layers

        keys = jax.random.split(key, 2 + num_layers)
        scale = 0.1
        self.embed_w = scale * jax.random.normal(keys[0], (V, E), jnp.float32)

        self.lstm_raw = []  # PyTorch layout: (w_ih (4H,in), w_hh (4H,H), b_ih (4H,), b_hh (4H,))
        for l in range(L):
            in_dim = E if l == 0 else H
            k_ih, k_hh, k_bih, k_bhh = jax.random.split(keys[2 + l], 4)
            w_ih = scale * jax.random.normal(k_ih, (4 * H, in_dim), jnp.float32)
            w_hh = scale * jax.random.normal(k_hh, (4 * H, H), jnp.float32)
            b_ih = scale * jax.random.normal(k_bih, (4 * H,), jnp.float32)
            b_hh = scale * jax.random.normal(k_bhh, (4 * H,), jnp.float32)
            self.lstm_raw.append((w_ih, w_hh, b_ih, b_hh))

        k_lw, k_lb = jax.random.split(keys[1], 2)
        self.linear_w = scale * jax.random.normal(k_lw, (V, H), jnp.float32)
        self.linear_b = scale * jax.random.normal(k_lb, (V,), jnp.float32)

        # ---- padded / packed weights for the kernels (lane-dense, (8,128)-aligned) ----
        self.E_pad = _round_up(E, 128)
        self.H_pad = _round_up(H, 128)
        self.D_pad = max(self.E_pad, self.H_pad)
        self.V_pad = _round_up(V, 128)
        self.lstm_w_packed, self.lstm_b_packed = _pack_lstm(
            self.lstm_raw, H, self.H_pad, self.D_pad)
        self.linear_w_packed = (
            jnp.zeros((self.H_pad, self.V_pad), jnp.float32).at[:H, :V].set(self.linear_w.T))
        self.linear_b_packed = (
            jnp.zeros((1, self.V_pad), jnp.float32).at[0, :V].set(self.linear_b))


# ------------------------------- decoderRNN forward -------------------------------
def decoder_rnn_forward(params, features, captions):
    """features: (B, E) f32, captions: (T, B) int32 -> (T+1, B, V) f32."""
    E, H, V = params.embed_size, params.hidden_size, params.vocab_size
    H_pad, D_pad, V_pad = params.H_pad, params.D_pad, params.V_pad
    T, B = captions.shape[0], features.shape[0]
    Tt = T + 1
    B_pad = _round_up(B, 8)

    # Embedding gather + (eval-mode) dropout — plain-JAX glue.
    emb = jnp.take(params.embed_w, captions, axis=0)              # (T, B, E)
    x = jnp.concatenate([features[None, :, :], emb], axis=0)      # (Tt, B, E)

    # Timestep chunk: whole sequence in one grid step when short, else chunks of 16.
    ts_chunk = Tt if Tt <= 32 else 16
    T_pad = _round_up(Tt, ts_chunk)

    x_p = jnp.zeros((T_pad, B_pad, D_pad), jnp.float32).at[:Tt, :B, :E].set(x)

    hseq = lstm_stack(x_p, params.lstm_w_packed, params.lstm_b_packed,
                      ts_chunk=ts_chunk)                           # (T_pad, B_pad, H_pad)

    logits_p = linear(hseq.reshape(T_pad * B_pad, H_pad),
                      params.linear_w_packed, params.linear_b_packed)
    logits = logits_p.reshape(T_pad, B_pad, V_pad)[:Tt, :B, :V]
    return logits


# --------------------------------- pure-JAX ref ------------------------------------
def _ref_forward(params, features, captions):
    emb = jnp.take(params.embed_w, captions, axis=0)
    x = jnp.concatenate([features[None, :, :], emb], axis=0)
    T, B, _ = x.shape
    H = params.hidden_size
    h_in = x
    for (w_ih, w_hh, b_ih, b_hh) in params.lstm_raw:
        hs = []
        h = jnp.zeros((B, H), jnp.float32)
        c = jnp.zeros((B, H), jnp.float32)
        for t in range(T):
            gates = h_in[t] @ w_ih.T + h @ w_hh.T + b_ih + b_hh
            i = jax.nn.sigmoid(gates[:, 0 * H:1 * H])
            f = jax.nn.sigmoid(gates[:, 1 * H:2 * H])
            g = jnp.tanh(gates[:, 2 * H:3 * H])
            o = jax.nn.sigmoid(gates[:, 3 * H:4 * H])
            c = f * c + i * g
            h = o * jnp.tanh(c)
            hs.append(h)
        h_in = jnp.stack(hs, axis=0)
    return h_in @ params.linear_w.T + params.linear_b


if __name__ == "__main__":
    embed_size, hidden_size, vocab_size, num_layers = 32, 32, 64, 2
    batch, seq_len = 2, 8

    key = jax.random.PRNGKey(0)
    k_params, k_feat, k_cap = jax.random.split(key, 3)
    params = DecoderRNNParams(k_params, embed_size, hidden_size, vocab_size, num_layers)

    features = jax.random.normal(k_feat, (batch, embed_size), jnp.float32)
    captions = jax.random.randint(k_cap, (seq_len, batch), 0, vocab_size, jnp.int32)

    out = decoder_rnn_forward(params, features, captions)
    out = jax.block_until_ready(out)
    assert out.shape == (seq_len + 1, batch, vocab_size), out.shape

    ref = jax.block_until_ready(_ref_forward(params, features, captions))
    assert jnp.allclose(out, ref, rtol=1e-3, atol=1e-4), (
        "mismatch vs pure-JAX reference: max abs diff = %g"
        % float(jnp.max(jnp.abs(out - ref))))

    print("KERNEL_OK")
</pallas_src>

<mosaic_0001>
module attributes {stable_mosaic.version = 11 : i64} {
  func.func @_lstm_stack_kernel(%arg0: i32, %arg1: memref<9x8x128xf32, #tpu.memory_space<vmem>>, %arg2: memref<2x256x512xf32, #tpu.memory_space<vmem>>, %arg3: memref<2x1x512xf32, #tpu.memory_space<vmem>>, %arg4: memref<9x8x128xf32, #tpu.memory_space<vmem>>, %arg5: memref<2x8x128xf32, #tpu.memory_space<vmem>>, %arg6: memref<2x8x128xf32, #tpu.memory_space<vmem>>, %arg7: memref<8x256xf32, #tpu.memory_space<vmem>>) attributes {dimension_semantics = [#tpu.dimension_semantics<arbitrary>], iteration_bounds = array<i64: 1>, scalar_prefetch = 0 : i64, scratch_operands = 3 : i64, tpu.core_type = #tpu.core_type<tc>, window_params = [{transform_indices = @transform_0, window_bounds = array<i64: 9, 8, 128>}, {pipeline_mode = #tpu.pipeline_mode<synchronous>, transform_indices = @transform_1, window_bounds = array<i64: 2, 256, 512>}, {pipeline_mode = #tpu.pipeline_mode<synchronous>, transform_indices = @transform_2, window_bounds = array<i64: 2, 1, 512>}, {transform_indices = @transform_3, window_bounds = array<i64: 9, 8, 128>}]} {
    %c0_i32 = arith.constant 0 : i32
    %0 = arith.cmpi eq, %arg0, %c0_i32 : i32
    %1 = arith.extui %0 : i1 to i32
    %c0_i32_0 = arith.constant 0 : i32
    %2 = arith.cmpi ne, %1, %c0_i32_0 : i32
    scf.if %2 {
      %cst_538 = arith.constant 0.000000e+00 : f32
      %876 = vector.broadcast %cst_538 : f32 to vector<2x8x128xf32>
      %c0_539 = arith.constant 0 : index
      %c0_540 = arith.constant 0 : index
      %c0_541 = arith.constant 0 : index
      %877 = vector.load %arg5[%c0_539, %c0_540, %c0_541] : memref<2x8x128xf32, #tpu.memory_space<vmem>>, vector<2x8x128xf32>
      tpu.vector_store %arg5[%c0_539, %c0_540, %c0_541], %876 {strides = array<i32>} : memref<2x8x128xf32, #tpu.memory_space<vmem>>, vector<2x8x128xf32>,
      %cst_542 = arith.constant 0.000000e+00 : f32
      %878 = vector.broadcast %cst_542 : f32 to vector<2x8x128xf32>
      %c0_543 = arith.constant 0 : index
      %c0_544 = arith.constant 0 : index
      %c0_545 = arith.constant 0 : index
      %879 = vector.load %arg6[%c0_543, %c0_544, %c0_545] : memref<2x8x128xf32, #tpu.memory_space<vmem>>, vector<2x8x128xf32>
      tpu.vector_store %arg6[%c0_543, %c0_544, %c0_545], %878 {strides = array<i32>} : memref<2x8x128xf32, #tpu.memory_space<vmem>>, vector<2x8x128xf32>,
    } else {
    }
    %c0_i32_1 = arith.constant 0 : i32
    %3 = arith.index_cast %c0_i32_1 : i32 to index
    %c0 = arith.constant 0 : index
    %c0_2 = arith.constant 0 : index
    %4 = vector.load %arg1[%3, %c0, %c0_2] : memref<9x8x128xf32, #tpu.memory_space<vmem>>, vector<1x8x128xf32>
    %5 = vector.shape_cast %4 : vector<1x8x128xf32> to vector<8x128xf32>
    %c0_3 = arith.constant 0 : index
    %c0_4 = arith.constant 0 : index
    %6 = vector.load %arg7[%c0_3, %c0_4] : memref<8x256xf32, #tpu.memory_space<vmem>>, vector<8x128xf32>
    tpu.vector_store %arg7[%c0_3, %c0_4], %5 {strides = array<i32>} : memref<8x256xf32, #tpu.memory_space<vmem>>, vector<8x128xf32>,
    %c0_5 = arith.constant 0 : index
    %c0_6 = arith.constant 0 : index
    %c0_7 = arith.constant 0 : index
    %7 = vector.load %arg5[%c0_5, %c0_6, %c0_7] : memref<2x8x128xf32, #tpu.memory_space<vmem>>, vector<1x8x128xf32>
    %8 = vector.shape_cast %7 : vector<1x8x128xf32> to vector<8x128xf32>
    %c0_8 = arith.constant 0 : index
    %c128 = arith.constant 128 : index
    %9 = vector.load %arg7[%c0_8, %c128] : memref<8x256xf32, #tpu.memory_space<vmem>>, vector<8x128xf32>
    tpu.vector_store %arg7[%c0_8, %c128], %8 {strides = array<i32>} : memref<8x256xf32, #tpu.memory_space<vmem>>, vector<8x128xf32>,
    %c0_9 = arith.constant 0 : index
    %c0_10 = arith.constant 0 : index
    %10 = vector.load %arg7[%c0_9, %c0_10] : memref<8x256xf32, #tpu.memory_space<vmem>>, vector<8x256xf32>
    %c0_11 = arith.constant 0 : index
    %c0_12 = arith.constant 0 : index
    %c0_13 = arith.constant 0 : index
    %11 = vector.load %arg2[%c0_11, %c0_12, %c0_13] : memref<2x256x512xf32, #tpu.memory_space<vmem>>, vector<1x256x512xf32>
    %12 = vector.shape_cast %11 : vector<1x256x512xf32> to vector<256x512xf32>
    %cst = arith.constant dense<0.000000e+00> : vector<8x512xf32>
    %13 = tpu.matmul %10, %12, %cst {dimension_numbers = #tpu.dot_dimension_numbers<[1], [0], [0], [1], [0, 0, 1, 1], [], []>} : vector<8x256xf32>, vector<256x512xf32>, vector<8x512xf32> -> vector<8x512xf32>
    %c0_14 = arith.constant 0 : index
    %c0_15 = arith.constant 0 : index
    %c0_16 = arith.constant 0 : index
    %14 = vector.load %arg3[%c0_14, %c0_15, %c0_16] : memref<2x1x512xf32, #tpu.memory_space<vmem>>, vector<1x1x512xf32>
    %15 = vector.shape_cast %14 : vector<1x1x512xf32> to vector<1x512xf32>
    %16 = vector.broadcast %15 : vector<1x512xf32> to vector<8x512xf32>
    %17 = arith.addf %13, %16 : vector<8x512xf32>
    %18 = vector.extract_strided_slice %17 {offsets = [0, 0], sizes = [8, 128], strides = [1, 1]} : vector<8x512xf32> to vector<8x128xf32>
    %19 = arith.negf %18 : vector<8x128xf32>
    %20 = math.exp %19 : vector<8x128xf32>
    %cst_17 = arith.constant 1.000000e+00 : f32
    %21 = vector.broadcast %cst_17 : f32 to vector<8x128xf32>
    %22 = arith.addf %21, %20 : vector<8x128xf32>
    %23 = arith.divf %21, %22 : vector<8x128xf32>
    %24 = vector.extract_strided_slice %17 {offsets = [0, 128], sizes = [8, 128], strides = [1, 1]} : vector<8x512xf32> to vector<8x128xf32>
    %25 = arith.negf %24 : vector<8x128xf32>
    %26 = math.exp %25 : vector<8x128xf32>
    %cst_18 = arith.constant 1.000000e+00 : f32
    %27 = vector.broadcast %cst_18 : f32 to vector<8x128xf32>
    %28 = arith.addf %27, %26 : vector<8x128xf32>
    %29 = arith.divf %27, %28 : vector<8x128xf32>
    %30 = vector.extract_strided_slice %17 {offsets = [0, 256], sizes = [8, 128], strides = [1, 1]} : vector<8x512xf32> to vector<8x128xf32>
    %31 = math.tanh %30 : vector<8x128xf32>
    %32 = vector.extract_strided_slice %17 {offsets = [0, 384], sizes = [8, 128], strides = [1, 1]} : vector<8x512xf32> to vector<8x128xf32>
    %33 = arith.negf %32 : vector<8x128xf32>
    %34 = math.exp %33 : vector<8x128xf32>
    %cst_19 = arith.constant 1.000000e+00 : f32
    %35 = vector.broadcast %cst_19 : f32 to vector<8x128xf32>
    %36 = arith.addf %35, %34 : vector<8x128xf32>
    %37 = arith.divf %35, %36 : vector<8x128xf32>
    %c0_20 = arith.constant 0 : index
    %c0_21 = arith.constant 0 : index
    %c0_22 = arith.constant 0 : index
    %38 = vector.load %arg6[%c0_20, %c0_21, %c0_22] : memref<2x8x128xf32, #tpu.memory_space<vmem>>, vector<1x8x128xf32>
    %39 = vector.shape_cast %38 : vector<1x8x128xf32> to vector<8x128xf32>
    %40 = arith.mulf %29, %39 : vector<8x128xf32>
    %41 = arith.mulf %23, %31 : vector<8x128xf32>
    %42 = arith.addf %40, %41 : vector<8x128xf32>
    %43 = math.tanh %42 : vector<8x128xf32>
    %44 = arith.mulf %37, %43 : vector<8x128xf32>
    %c0_23 = arith.constant 0 : index
    %c0_24 = arith.constant 0 : index
    %c0_25 = arith.constant 0 : index
    %45 = vector.load %arg6[%c0_23, %c0_24, %c0_25] : memref<2x8x128xf32, #tpu.memory_space<vmem>>, vector<1x8x128xf32>
    %46 = vector.shape_cast %45 : vector<1x8x128xf32> to vector<8x128xf32>
    %47 = vector.shape_cast %42 : vector<8x128xf32> to vector<1x8x128xf32>
    tpu.vector_store %arg6[%c0_23, %c0_24, %c0_25], %47 {strides = array<i32>} : memref<2x8x128xf32, #tpu.memory_space<vmem>>, vector<1x8x128xf32>,
    %c0_26 = arith.constant 0 : index
    %c0_27 = arith.constant 0 : index
    %c0_28 = arith.constant 0 : index
    %48 = vector.load %arg5[%c0_26, %c0_27, %c0_28] : memref<2x8x128xf32, #tpu.memory_space<vmem>>, vector<1x8x128xf32>
    %49 = vector.shape_cast %48 : vector<1x8x128xf32> to vector<8x128xf32>
    %50 = vector.shape_cast %44 : vector<8x128xf32> to vector<1x8x128xf32>
    tpu.vector_store %arg5[%c0_26, %c0_27, %c0_28], %50 {strides = array<i32>} : memref<2x8x128xf32, #tpu.memory_space<vmem>>, vector<1x8x128xf32>,
    %c0_29 = arith.constant 0 : index
    %c0_30 = arith.constant 0 : index
    %51 = vector.load %arg7[%c0_29, %c0_30] : memref<8x256xf32, #tpu.memory_space<vmem>>, vector<8x128xf32>
    tpu.vector_store %arg7[%c0_29, %c0_30], %44 {strides = array<i32>} : memref<8x256xf32, #tpu.memory_space<vmem>>, vector<8x128xf32>,
    %c1 = arith.constant 1 : index
    %c0_31 = arith.constant 0 : index
    %c0_32 = arith.constant 0 : index
    %52 = vector.load %arg5[%c1, %c0_31, %c0_32] : memref<2x8x128xf32, #tpu.memory_space<vmem>>, vector<1x8x128xf32>
    %53 = vector.shape_cast %52 : vector<1x8x128xf32> to vector<8x128xf32>
    %c0_33 = arith.constant 0 : index
    %c128_34 = arith.constant 128 : index
    %54 = vector.load %arg7[%c0_33, %c128_34] : memref<8x256xf32, #tpu.memory_space<vmem>>, vector<8x128xf32>
    tpu.vector_store %arg7[%c0_33, %c128_34], %53 {strides = array<i32>} : memref<8x256xf32, #tpu.memory_space<vmem>>, vector<8x128xf32>,
    %c0_35 = arith.constant 0 : index
    %c0_36 = arith.constant 0 : index
    %55 = vector.load %arg7[%c0_35, %c0_36] : memref<8x256xf32, #tpu.memory_space<vmem>>, vector<8x256xf32>
    %c1_37 = arith.constant 1 : index
    %c0_38 = arith.constant 0 : index
    %c0_39 = arith.constant 0 : index
    %56 = vector.load %arg2[%c1_37, %c0_38, %c0_39] : memref<2x256x512xf32, #tpu.memory_space<vmem>>, vector<1x256x512xf32>
    %57 = vector.shape_cast %56 : vector<1x256x512xf32> to vector<256x512xf32>
    %cst_40 = arith.constant dense<0.000000e+00> : vector<8x512xf32>
    %58 = tpu.matmul %55, %57, %cst_40 {dimension_numbers = #tpu.dot_dimension_numbers<[1], [0], [0], [1], [0, 0, 1, 1], [], []>} : vector<8x256xf32>, vector<256x512xf32>, vector<8x512xf32> -> vector<8x512xf32>
    %c1_41 = arith.constant 1 : index
    %c0_42 = arith.constant 0 : index
    %c0_43 = arith.constant 0 : index
    %59 = vector.load %arg3[%c1_41, %c0_42, %c0_43] : memref<2x1x512xf32, #tpu.memory_space<vmem>>, vector<1x1x512xf32>
    %60 = vector.shape_cast %59 : vector<1x1x512xf32> to vector<1x512xf32>
    %61 = vector.broadcast %60 : vector<1x512xf32> to vector<8x512xf32>
    %62 = arith.addf %58, %61 : vector<8x512xf32>
    %63 = vector.extract_strided_slice %62 {offsets = [0, 0], sizes = [8, 128], strides = [1, 1]} : vector<8x512xf32> to vector<8x128xf32>
    %64 = arith.negf %63 : vector<8x128xf32>
    %65 = math.exp %64 : vector<8x128xf32>
    %cst_44 = arith.constant 1.000000e+00 : f32
    %66 = vector.broadcast %cst_44 : f32 to vector<8x128xf32>
    %67 = arith.addf %66, %65 : vector<8x128xf32>
    %68 = arith.divf %66, %67 : vector<8x128xf32>
    %69 = vector.extract_strided_slice %62 {offsets = [0, 128], sizes = [8, 128], strides = [1, 1]} : vector<8x512xf32> to vector<8x128xf32>
    %70 = arith.negf %69 : vector<8x128xf32>
    %71 = math.exp %70 : vector<8x128xf32>
    %cst_45 = arith.constant 1.000000e+00 : f32
    %72 = vector.broadcast %cst_45 : f32 to vector<8x128xf32>
    %73 = arith.addf %72, %71 : vector<8x128xf32>
    %74 = arith.divf %72, %73 : vector<8x128xf32>
    %75 = vector.extract_strided_slice %62 {offsets = [0, 256], sizes = [8, 128], strides = [1, 1]} : vector<8x512xf32> to vector<8x128xf32>
    %76 = math.tanh %75 : vector<8x128xf32>
    %77 = vector.extract_strided_slice %62 {offsets = [0, 384], sizes = [8, 128], strides = [1, 1]} : vector<8x512xf32> to vector<8x128xf32>
    %78 = arith.negf %77 : vector<8x128xf32>
    %79 = math.exp %78 : vector<8x128xf32>
    %cst_46 = arith.constant 1.000000e+00 : f32
    %80 = vector.broadcast %cst_46 : f32 to vector<8x128xf32>
    %81 = arith.addf %80, %79 : vector<8x128xf32>
    %82 = arith.divf %80, %81 : vector<8x128xf32>
    %c1_47 = arith.constant 1 : index
    %c0_48 = arith.constant 0 : index
    %c0_49 = arith.constant 0 : index
    %83 = vector.load %arg6[%c1_47, %c0_48, %c0_49] : memref<2x8x128xf32, #tpu.memory_space<vmem>>, vector<1x8x128xf32>
    %84 = vector.shape_cast %83 : vector<1x8x128xf32> to vector<8x128xf32>
    %85 = arith.mulf %74, %84 : vector<8x128xf32>
    %86 = arith.mulf %68, %76 : vector<8x128xf32>
    %87 = arith.addf %85, %86 : vector<8x128xf32>
    %88 = math.tanh %87 : vector<8x128xf32>
    %89 = arith.mulf %82, %88 : vector<8x128xf32>
    %c1_50 = arith.constant 1 : index
    %c0_51 = arith.constant 0 : index
    %c0_52 = arith.constant 0 : index
    %90 = vector.load %arg6[%c1_50, %c0_51, %c0_52] : memref<2x8x128xf32, #tpu.memory_space<vmem>>, vector<1x8x128xf32>
    %91 = vector.shape_cast %90 : vector<1x8x128xf32> to vector<8x128xf32>
    %92 = vector.shape_cast %87 : vector<8x128xf32> to vector<1x8x128xf32>
    tpu.vector_store %arg6[%c1_50, %c0_51, %c0_52], %92 {strides = array<i32>} : memref<2x8x128xf32, #tpu.memory_space<vmem>>, vector<1x8x128xf32>,
    %c1_53 = arith.constant 1 : index
    %c0_54 = arith.constant 0 : index
    %c0_55 = arith.constant 0 : index
    %93 = vector.load %arg5[%c1_53, %c0_54, %c0_55] : memref<2x8x128xf32, #tpu.memory_space<vmem>>, vector<1x8x128xf32>
    %94 = vector.shape_cast %93 : vector<1x8x128xf32> to vector<8x128xf32>
    %95 = vector.shape_cast %89 : vector<8x128xf32> to vector<1x8x128xf32>
    tpu.vector_store %arg5[%c1_53, %c0_54, %c0_55], %95 {strides = array<i32>} : memref<2x8x128xf32, #tpu.memory_space<vmem>>, vector<1x8x128xf32>,
    %96 = arith.index_cast %c0_i32_1 : i32 to index
    %c0_56 = arith.constant 0 : index
    %c0_57 = arith.constant 0 : index
    %97 = vector.load %arg4[%96, %c0_56, %c0_57] : memref<9x8x128xf32, #tpu.memory_space<vmem>>, vector<1x8x128xf32>
    %98 = vector.shape_cast %97 : vector<1x8x128xf32> to vector<8x128xf32>
    %99 = vector.shape_cast %89 : vector<8x128xf32> to vector<1x8x128xf32>
    tpu.vector_store %arg4[%96, %c0_56, %c0_57], %99 {strides = array<i32>} : memref<9x8x128xf32, #tpu.memory_space<vmem>>, vector<1x8x128xf32>,
    %c1_i32 = arith.constant 1 : i32
    %100 = arith.index_cast %c1_i32 : i32 to index
    %c0_58 = arith.constant 0 : index
    %c0_59 = arith.constant 0 : index
    %101 = vector.load %arg1[%100, %c0_58, %c0_59] : memref<9x8x128xf32, #tpu.memory_space<vmem>>, vector<1x8x128xf32>
    %102 = vector.shape_cast %101 : vector<1x8x128xf32> to vector<8x128xf32>
    %c0_60 = arith.constant 0 : index
    %c0_61 = arith.constant 0 : index
    %103 = vector.load %arg7[%c0_60, %c0_61] : memref<8x256xf32, #tpu.memory_space<vmem>>, vector<8x128xf32>
    tpu.vector_store %arg7[%c0_60, %c0_61], %102 {strides = array<i32>} : memref<8x256xf32, #tpu.memory_space<vmem>>, vector<8x128xf32>,
    %c0_62 = arith.constant 0 : index
    %c0_63 = arith.constant 0 : index
    %c0_64 = arith.constant 0 : index
    %104 = vector.load %arg5[%c0_62, %c0_63, %c0_64] : memref<2x8x128xf32, #tpu.memory_space<vmem>>, vector<1x8x128xf32>
    %105 = vector.shape_cast %104 : vector<1x8x128xf32> to vector<8x128xf32>
    %c0_65 = arith.constant 0 : index
    %c128_66 = arith.constant 128 : index
    %106 = vector.load %arg7[%c0_65, %c128_66] : memref<8x256xf32, #tpu.memory_space<vmem>>, vector<8x128xf32>
    tpu.vector_store %arg7[%c0_65, %c128_66], %105 {strides = array<i32>} : memref<8x256xf32, #tpu.memory_space<vmem>>, vector<8x128xf32>,
    %c0_67 = arith.constant 0 : index
    %c0_68 = arith.constant 0 : index
    %107 = vector.load %arg7[%c0_67, %c0_68] : memref<8x256xf32, #tpu.memory_space<vmem>>, vector<8x256xf32>
    %c0_69 = arith.constant 0 : index
    %c0_70 = arith.constant 0 : index
    %c0_71 = arith.constant 0 : index
    %108 = vector.load %arg2[%c0_69, %c0_70, %c0_71] : memref<2x256x512xf32, #tpu.memory_space<vmem>>, vector<1x256x512xf32>
    %109 = vector.shape_cast %108 : vector<1x256x512xf32> to vector<256x512xf32>
    %cst_72 = arith.constant dense<0.000000e+00> : vector<8x512xf32>
    %110 = tpu.matmul %107, %109, %cst_72 {dimension_numbers = #tpu.dot_dimension_numbers<[1], [0], [0], [1], [0, 0, 1, 1], [], []>} : vector<8x256xf32>, vector<256x512xf32>, vector<8x512xf32> -> vector<8x512xf32>
    %c0_73 = arith.constant 0 : index
    %c0_74 = arith.constant 0 : index
    %c0_75 = arith.constant 0 : index
    %111 = vector.load %arg3[%c0_73, %c0_74, %c0_75] : memref<2x1x512xf32, #tpu.memory_space<vmem>>, vector<1x1x512xf32>
    %112 = vector.shape_cast %111 : vector<1x1x512xf32> to vector<1x512xf32>
    %113 = vector.broadcast %112 : vector<1x512xf32> to vector<8x512xf32>
    %114 = arith.addf %110, %113 : vector<8x512xf32>
    %115 = vector.extract_strided_slice %114 {offsets = [0, 0], sizes = [8, 128], strides = [1, 1]} : vector<8x512xf32> to vector<8x128xf32>
    %116 = arith.negf %115 : vector<8x128xf32>
    %117 = math.exp %116 : vector<8x128xf32>
    %cst_76 = arith.constant 1.000000e+00 : f32
    %118 = vector.broadcast %cst_76 : f32 to vector<8x128xf32>
    %119 = arith.addf %118, %117 : vector<8x128xf32>
    %120 = arith.divf %118, %119 : vector<8x128xf32>
    %121 = vector.extract_strided_slice %114 {offsets = [0, 128], sizes = [8, 128], strides = [1, 1]} : vector<8x512xf32> to vector<8x128xf32>
    %122 = arith.negf %121 : vector<8x128xf32>
    %123 = math.exp %122 : vector<8x128xf32>
    %cst_77 = arith.constant 1.000000e+00 : f32
    %124 = vector.broadcast %cst_77 : f32 to vector<8x128xf32>
    %125 = arith.addf %124, %123 : vector<8x128xf32>
    %126 = arith.divf %124, %125 : vector<8x128xf32>
    %127 = vector.extract_strided_slice %114 {offsets = [0, 256], sizes = [8, 128], strides = [1, 1]} : vector<8x512xf32> to vector<8x128xf32>
    %128 = math.tanh %127 : vector<8x128xf32>
    %129 = vector.extract_strided_slice %114 {offsets = [0, 384], sizes = [8, 128], strides = [1, 1]} : vector<8x512xf32> to vector<8x128xf32>
    %130 = arith.negf %129 : vector<8x128xf32>
    %131 = math.exp %130 : vector<8x128xf32>
    %cst_78 = arith.constant 1.000000e+00 : f32
    %132 = vector.broadcast %cst_78 : f32 to vector<8x128xf32>
    %133 = arith.addf %132, %131 : vector<8x128xf32>
    %134 = arith.divf %132, %133 : vector<8x128xf32>
    %c0_79 = arith.constant 0 : index
    %c0_80 = arith.constant 0 : index
    %c0_81 = arith.constant 0 : index
    %135 = vector.load %arg6[%c0_79, %c0_80, %c0_81] : memref<2x8x128xf32, #tpu.memory_space<vmem>>, vector<1x8x128xf32>
    %136 = vector.shape_cast %135 : vector<1x8x128xf32> to vector<8x128xf32>
    %137 = arith.mulf %126, %136 : vector<8x128xf32>
    %138 = arith.mulf %120, %128 : vector<8x128xf32>
    %139 = arith.addf %137, %138 : vector<8x128xf32>
    %140 = math.tanh %139 : vector<8x128xf32>
    %141 = arith.mulf %134, %140 : vector<8x128xf32>
    %c0_82 = arith.constant 0 : index
    %c0_83 = arith.constant 0 : index
    %c0_84 = arith.constant 0 : index
    %142 = vector.load %arg6[%c0_82, %c0_83, %c0_84] : memref<2x8x128xf32, #tpu.memory_space<vmem>>, vector<1x8x128xf32>
    %143 = vector.shape_cast %142 : vector<1x8x128xf32> to vector<8x128xf32>
    %144 = vector.shape_cast %139 : vector<8x128xf32> to vector<1x8x128xf32>
    tpu.vector_store %arg6[%c0_82, %c0_83, %c0_84], %144 {strides = array<i32>} : memref<2x8x128xf32, #tpu.memory_space<vmem>>, vector<1x8x128xf32>,
    %c0_85 = arith.constant 0 : index
    %c0_86 = arith.constant 0 : index
    %c0_87 = arith.constant 0 : index
    %145 = vector.load %arg5[%c0_85, %c0_86, %c0_87] : memref<2x8x128xf32, #tpu.memory_space<vmem>>, vector<1x8x128xf32>
    %146 = vector.shape_cast %145 : vector<1x8x128xf32> to vector<8x128xf32>
    %147 = vector.shape_cast %141 : vector<8x128xf32> to vector<1x8x128xf32>
    tpu.vector_store %arg5[%c0_85, %c0_86, %c0_87], %147 {strides = array<i32>} : memref<2x8x128xf32, #tpu.memory_space<vmem>>, vector<1x8x128xf32>,
    %c0_88 = arith.constant 0 : index
    %c0_89 = arith.constant 0 : index
    %148 = vector.load %arg7[%c0_88, %c0_89] : memref<8x256xf32, #tpu.memory_space<vmem>>, vector<8x128xf32>
    tpu.vector_store %arg7[%c0_88, %c0_89], %141 {strides = array<i32>} : memref<8x256xf32, #tpu.memory_space<vmem>>, vector<8x128xf32>,
    %c1_90 = arith.constant 1 : index
    %c0_91 = arith.constant 0 : index
    %c0_92 = arith.constant 0 : index
    %149 = vector.load %arg5[%c1_90, %c0_91, %c0_92] : memref<2x8x128xf32, #tpu.memory_space<vmem>>, vector<1x8x128xf32>
    %150 = vector.shape_cast %149 : vector<1x8x128xf32> to vector<8x128xf32>
    %c0_93 = arith.constant 0 : index
    %c128_94 = arith.constant 128 : index
    %151 = vector.load %arg7[%c0_93, %c128_94] : memref<8x256xf32, #tpu.memory_space<vmem>>, vector<8x128xf32>
    tpu.vector_store %arg7[%c0_93, %c128_94], %150 {strides = array<i32>} : memref<8x256xf32, #tpu.memory_space<vmem>>, vector<8x128xf32>,
    %c0_95 = arith.constant 0 : index
    %c0_96 = arith.constant 0 : index
    %152 = vector.load %arg7[%c0_95, %c0_96] : memref<8x256xf32, #tpu.memory_space<vmem>>, vector<8x256xf32>
    %c1_97 = arith.constant 1 : index
    %c0_98 = arith.constant 0 : index
    %c0_99 = arith.constant 0 : index
    %153 = vector.load %arg2[%c1_97, %c0_98, %c0_99] : memref<2x256x512xf32, #tpu.memory_space<vmem>>, vector<1x256x512xf32>
    %154 = vector.shape_cast %153 : vector<1x256x512xf32> to vector<256x512xf32>
    %cst_100 = arith.constant dense<0.000000e+00> : vector<8x512xf32>
    %155 = tpu.matmul %152, %154, %cst_100 {dimension_numbers = #tpu.dot_dimension_numbers<[1], [0], [0], [1], [0, 0, 1, 1], [], []>} : vector<8x256xf32>, vector<256x512xf32>, vector<8x512xf32> -> vector<8x512xf32>
    %c1_101 = arith.constant 1 : index
    %c0_102 = arith.constant 0 : index
    %c0_103 = arith.constant 0 : index
    %156 = vector.load %arg3[%c1_101, %c0_102, %c0_103] : memref<2x1x512xf32, #tpu.memory_space<vmem>>, vector<1x1x512xf32>
    %157 = vector.shape_cast %156 : vector<1x1x512xf32> to vector<1x512xf32>
    %158 = vector.broadcast %157 : vector<1x512xf32> to vector<8x512xf32>
    %159 = arith.addf %155, %158 : vector<8x512xf32>
    %160 = vector.extract_strided_slice %159 {offsets = [0, 0], sizes = [8, 128], strides = [1, 1]} : vector<8x512xf32> to vector<8x128xf32>
    %161 = arith.negf %160 : vector<8x128xf32>
    %162 = math.exp %161 : vector<8x128xf32>
    %cst_104 = arith.constant 1.000000e+00 : f32
    %163 = vector.broadcast %cst_104 : f32 to vector<8x128xf32>
    %164 = arith.addf %163, %162 : vector<8x128xf32>
    %165 = arith.divf %163, %164 : vector<8x128xf32>
    %166 = vector.extract_strided_slice %159 {offsets = [0, 128], sizes = [8, 128], strides = [1, 1]} : vector<8x512xf32> to vector<8x128xf32>
    %167 = arith.negf %166 : vector<8x128xf32>
    %168 = math.exp %167 : vector<8x128xf32>
    %cst_105 = arith.constant 1.000000e+00 : f32
    %169 = vector.broadcast %cst_105 : f32 to vector<8x128xf32>
    %170 = arith.addf %169, %168 : vector<8x128xf32>
    %171 = arith.divf %169, %170 : vector<8x128xf32>
    %172 = vector.extract_strided_slice %159 {offsets = [0, 256], sizes = [8, 128], strides = [1, 1]} : vector<8x512xf32> to vector<8x128xf32>
    %173 = math.tanh %172 : vector<8x128xf32>
    %174 = vector.extract_strided_slice %159 {offsets = [0, 384], sizes = [8, 128], strides = [1, 1]} : vector<8x512xf32> to vector<8x128xf32>
    %175 = arith.negf %174 : vector<8x128xf32>
    %176 = math.exp %175 : vector<8x128xf32>
    %cst_106 = arith.constant 1.000000e+00 : f32
    %177 = vector.broadcast %cst_106 : f32 to vector<8x128xf32>
    %178 = arith.addf %177, %176 : vector<8x128xf32>
    %179 = arith.divf %177, %178 : vector<8x128xf32>
    %c1_107 = arith.constant 1 : index
    %c0_108 = arith.constant 0 : index
    %c0_109 = arith.constant 0 : index
    %180 = vector.load %arg6[%c1_107, %c0_108, %c0_109] : memref<2x8x128xf32, #tpu.memory_space<vmem>>, vector<1x8x128xf32>
    %181 = vector.shape_cast %180 : vector<1x8x128xf32> to vector<8x128xf32>
    %182 = arith.mulf %171, %181 : vector<8x128xf32>
    %183 = arith.mulf %165, %173 : vector<8x128xf32>
    %184 = arith.addf %182, %183 : vector<8x128xf32>
    %185 = math.tanh %184 : vector<8x128xf32>
    %186 = arith.mulf %179, %185 : vector<8x128xf32>
    %c1_110 = arith.constant 1 : index
    %c0_111 = arith.constant 0 : index
    %c0_112 = arith.constant 0 : index
    %187 = vector.load %arg6[%c1_110, %c0_111, %c0_112] : memref<2x8x128xf32, #tpu.memory_space<vmem>>, vector<1x8x128xf32>
    %188 = vector.shape_cast %187 : vector<1x8x128xf32> to vector<8x128xf32>
    %189 = vector.shape_cast %184 : vector<8x128xf32> to vector<1x8x128xf32>
    tpu.vector_store %arg6[%c1_110, %c0_111, %c0_112], %189 {strides = array<i32>} : memref<2x8x128xf32, #tpu.memory_space<vmem>>, vector<1x8x128xf32>,
    %c1_113 = arith.constant 1 : index
    %c0_114 = arith.constant 0 : index
    %c0_115 = arith.constant 0 : index
    %190 = vector.load %arg5[%c1_113, %c0_114, %c0_115] : memref<2x8x128xf32, #tpu.memory_space<vmem>>, vector<1x8x128xf32>
    %191 = vector.shape_cast %190 : vector<1x8x128xf32> to vector<8x128xf32>
    %192 = vector.shape_cast %186 : vector<8x128xf32> to vector<1x8x128xf32>
    tpu.vector_store %arg5[%c1_113, %c0_114, %c0_115], %192 {strides = array<i32>} : memref<2x8x128xf32, #tpu.memory_space<vmem>>, vector<1x8x128xf32>,
    %193 = arith.index_cast %c1_i32 : i32 to index
    %c0_116 = arith.constant 0 : index
    %c0_117 = arith.constant 0 : index
    %194 = vector.load %arg4[%193, %c0_116, %c0_117] : memref<9x8x128xf32, #tpu.memory_space<vmem>>, vector<1x8x128xf32>
    %195 = vector.shape_cast %194 : vector<1x8x128xf32> to vector<8x128xf32>
    %196 = vector.shape_cast %186 : vector<8x128xf32> to vector<1x8x128xf32>
    tpu.vector_store %arg4[%193, %c0_116, %c0_117], %196 {strides = array<i32>} : memref<9x8x128xf32, #tpu.memory_space<vmem>>, vector<1x8x128xf32>,
    %c2_i32 = arith.constant 2 : i32
    %197 = arith.index_cast %c2_i32 : i32 to index
    %c0_118 = arith.constant 0 : index
    %c0_119 = arith.constant 0 : index
    %198 = vector.load %arg1[%197, %c0_118, %c0_119] : memref<9x8x128xf32, #tpu.memory_space<vmem>>, vector<1x8x128xf32>
    %199 = vector.shape_cast %198 : vector<1x8x128xf32> to vector<8x128xf32>
    %c0_120 = arith.constant 0 : index
    %c0_121 = arith.constant 0 : index
    %200 = vector.load %arg7[%c0_120, %c0_121] : memref<8x256xf32, #tpu.memory_space<vmem>>, vector<8x128xf32>
    tpu.vector_store %arg7[%c0_120, %c0_121], %199 {strides = array<i32>} : memref<8x256xf32, #tpu.memory_space<vmem>>, vector<8x128xf32>,
    %c0_122 = arith.constant 0 : index
    %c0_123 = arith.constant 0 : index
    %c0_124 = arith.constant 0 : index
    %201 = vector.load %arg5[%c0_122, %c0_123, %c0_124] : memref<2x8x128xf32, #tpu.memory_space<vmem>>, vector<1x8x128xf32>
    %202 = vector.shape_cast %201 : vector<1x8x128xf32> to vector<8x128xf32>
    %c0_125 = arith.constant 0 : index
    %c128_126 = arith.constant 128 : index
    %203 = vector.load %arg7[%c0_125, %c128_126] : memref<8x256xf32, #tpu.memory_space<vmem>>, vector<8x128xf32>
    tpu.vector_store %arg7[%c0_125, %c128_126], %202 {strides = array<i32>} : memref<8x256xf32, #tpu.memory_space<vmem>>, vector<8x128xf32>,
    %c0_127 = arith.constant 0 : index
    %c0_128 = arith.constant 0 : index
    %204 = vector.load %arg7[%c0_127, %c0_128] : memref<8x256xf32, #tpu.memory_space<vmem>>, vector<8x256xf32>
    %c0_129 = arith.constant 0 : index
    %c0_130 = arith.constant 0 : index
    %c0_131 = arith.constant 0 : index
    %205 = vector.load %arg2[%c0_129, %c0_130, %c0_131] : memref<2x256x512xf32, #tpu.memory_space<vmem>>, vector<1x256x512xf32>
    %206 = vector.shape_cast %205 : vector<1x256x512xf32> to vector<256x512xf32>
    %cst_132 = arith.constant dense<0.000000e+00> : vector<8x512xf32>
    %207 = tpu.matmul %204, %206, %cst_132 {dimension_numbers = #tpu.dot_dimension_numbers<[1], [0], [0], [1], [0, 0, 1, 1], [], []>} : vector<8x256xf32>, vector<256x512xf32>, vector<8x512xf32> -> vector<8x512xf32>
    %c0_133 = arith.constant 0 : index
    %c0_134 = arith.constant 0 : index
    %c0_135 = arith.constant 0 : index
    %208 = vector.load %arg3[%c0_133, %c0_134, %c0_135] : memref<2x1x512xf32, #tpu.memory_space<vmem>>, vector<1x1x512xf32>
    %209 = vector.shape_cast %208 : vector<1x1x512xf32> to vector<1x512xf32>
    %210 = vector.broadcast %209 : vector<1x512xf32> to vector<8x512xf32>
    %211 = arith.addf %207, %210 : vector<8x512xf32>
    %212 = vector.extract_strided_slice %211 {offsets = [0, 0], sizes = [8, 128], strides = [1, 1]} : vector<8x512xf32> to vector<8x128xf32>
    %213 = arith.negf %212 : vector<8x128xf32>
    %214 = math.exp %213 : vector<8x128xf32>
    %cst_136 = arith.constant 1.000000e+00 : f32
    %215 = vector.broadcast %cst_136 : f32 to vector<8x128xf32>
    %216 = arith.addf %215, %214 : vector<8x128xf32>
    %217 = arith.divf %215, %216 : vector<8x128xf32>
    %218 = vector.extract_strided_slice %211 {offsets = [0, 128], sizes = [8, 128], strides = [1, 1]} : vector<8x512xf32> to vector<8x128xf32>
    %219 = arith.negf %218 : vector<8x128xf32>
    %220 = math.exp %219 : vector<8x128xf32>
    %cst_137 = arith.constant 1.000000e+00 : f32
    %221 = vector.broadcast %cst_137 : f32 to vector<8x128xf32>
    %222 = arith.addf %221, %220 : vector<8x128xf32>
    %223 = arith.divf %221, %222 : vector<8x128xf32>
    %224 = vector.extract_strided_slice %211 {offsets = [0, 256], sizes = [8, 128], strides = [1, 1]} : vector<8x512xf32> to vector<8x128xf32>
    %225 = math.tanh %224 : vector<8x128xf32>
    %226 = vector.extract_strided_slice %211 {offsets = [0, 384], sizes = [8, 128], strides = [1, 1]} : vector<8x512xf32> to vector<8x128xf32>
    %227 = arith.negf %226 : vector<8x128xf32>
    %228 = math.exp %227 : vector<8x128xf32>
    %cst_138 = arith.constant 1.000000e+00 : f32
    %229 = vector.broadcast %cst_138 : f32 to vector<8x128xf32>
    %230 = arith.addf %229, %228 : vector<8x128xf32>
    %231 = arith.divf %229, %230 : vector<8x128xf32>
    %c0_139 = arith.constant 0 : index
    %c0_140 = arith.constant 0 : index
    %c0_141 = arith.constant 0 : index
    %232 = vector.load %arg6[%c0_139, %c0_140, %c0_141] : memref<2x8x128xf32, #tpu.memory_space<vmem>>, vector<1x8x128xf32>
    %233 = vector.shape_cast %232 : vector<1x8x128xf32> to vector<8x128xf32>
    %234 = arith.mulf %223, %233 : vector<8x128xf32>
    %235 = arith.mulf %217, %225 : vector<8x128xf32>
    %236 = arith.addf %234, %235 : vector<8x128xf32>
    %237 = math.tanh %236 : vector<8x128xf32>
    %238 = arith.mulf %231, %237 : vector<8x128xf32>
    %c0_142 = arith.constant 0 : index
    %c0_143 = arith.constant 0 : index
    %c0_144 = arith.constant 0 : index
    %239 = vector.load %arg6[%c0_142, %c0_143, %c0_144] : memref<2x8x128xf32, #tpu.memory_space<vmem>>, vector<1x8x128xf32>
    %240 = vector.shape_cast %239 : vector<1x8x128xf32> to vector<8x128xf32>
    %241 = vector.shape_cast %236 : vector<8x128xf32> to vector<1x8x128xf32>
    tpu.vector_store %arg6[%c0_142, %c0_143, %c0_144], %241 {strides = array<i32>} : memref<2x8x128xf32, #tpu.memory_space<vmem>>, vector<1x8x128xf32>,
    %c0_145 = arith.constant 0 : index
    %c0_146 = arith.constant 0 : index
    %c0_147 = arith.constant 0 : index
    %242 = vector.load %arg5[%c0_145, %c0_146, %c0_147] : memref<2x8x128xf32, #tpu.memory_space<vmem>>, vector<1x8x128xf32>
    %243 = vector.shape_cast %242 : vector<1x8x128xf32> to vector<8x128xf32>
    %244 = vector.shape_cast %238 : vector<8x128xf32> to vector<1x8x128xf32>
    tpu.vector_store %arg5[%c0_145, %c0_146, %c0_147], %244 {strides = array<i32>} : memref<2x8x128xf32, #tpu.memory_space<vmem>>, vector<1x8x128xf32>,
    %c0_148 = arith.constant 0 : index
    %c0_149 = arith.constant 0 : index
    %245 = vector.load %arg7[%c0_148, %c0_149] : memref<8x256xf32, #tpu.memory_space<vmem>>, vector<8x128xf32>
    tpu.vector_store %arg7[%c0_148, %c0_149], %238 {strides = array<i32>} : memref<8x256xf32, #tpu.memory_space<vmem>>, vector<8x128xf32>,
    %c1_150 = arith.constant 1 : index
    %c0_151 = arith.constant 0 : index
    %c0_152 = arith.constant 0 : index
    %246 = vector.load %arg5[%c1_150, %c0_151, %c0_152] : memref<2x8x128xf32, #tpu.memory_space<vmem>>, vector<1x8x128xf32>
    %247 = vector.shape_cast %246 : vector<1x8x128xf32> to vector<8x128xf32>
    %c0_153 = arith.constant 0 : index
    %c128_154 = arith.constant 128 : index
    %248 = vector.load %arg7[%c0_153, %c128_154] : memref<8x256xf32, #tpu.memory_space<vmem>>, vector<8x128xf32>
    tpu.vector_store %arg7[%c0_153, %c128_154], %247 {strides = array<i32>} : memref<8x256xf32, #tpu.memory_space<vmem>>, vector<8x128xf32>,
    %c0_155 = arith.constant 0 : index
    %c0_156 = arith.constant 0 : index
    %249 = vector.load %arg7[%c0_155, %c0_156] : memref<8x256xf32, #tpu.memory_space<vmem>>, vector<8x256xf32>
    %c1_157 = arith.constant 1 : index
    %c0_158 = arith.constant 0 : index
    %c0_159 = arith.constant 0 : index
    %250 = vector.load %arg2[%c1_157, %c0_158, %c0_159] : memref<2x256x512xf32, #tpu.memory_space<vmem>>, vector<1x256x512xf32>
    %251 = vector.shape_cast %250 : vector<1x256x512xf32> to vector<256x512xf32>
    %cst_160 = arith.constant dense<0.000000e+00> : vector<8x512xf32>
    %252 = tpu.matmul %249, %251, %cst_160 {dimension_numbers = #tpu.dot_dimension_numbers<[1], [0], [0], [1], [0, 0, 1, 1], [], []>} : vector<8x256xf32>, vector<256x512xf32>, vector<8x512xf32> -> vector<8x512xf32>
    %c1_161 = arith.constant 1 : index
    %c0_162 = arith.constant 0 : index
    %c0_163 = arith.constant 0 : index
    %253 = vector.load %arg3[%c1_161, %c0_162, %c0_163] : memref<2x1x512xf32, #tpu.memory_space<vmem>>, vector<1x1x512xf32>
    %254 = vector.shape_cast %253 : vector<1x1x512xf32> to vector<1x512xf32>
    %255 = vector.broadcast %254 : vector<1x512xf32> to vector<8x512xf32>
    %256 = arith.addf %252, %255 : vector<8x512xf32>
    %257 = vector.extract_strided_slice %256 {offsets = [0, 0], sizes = [8, 128], strides = [1, 1]} : vector<8x512xf32> to vector<8x128xf32>
    %258 = arith.negf %257 : vector<8x128xf32>
    %259 = math.exp %258 : vector<8x128xf32>
    %cst_164 = arith.constant 1.000000e+00 : f32
    %260 = vector.broadcast %cst_164 : f32 to vector<8x128xf32>
    %261 = arith.addf %260, %259 : vector<8x128xf32>
    %262 = arith.divf %260, %261 : vector<8x128xf32>
    %263 = vector.extract_strided_slice %256 {offsets = [0, 128], sizes = [8, 128], strides = [1, 1]} : vector<8x512xf32> to vector<8x128xf32>
    %264 = arith.negf %263 : vector<8x128xf32>
    %265 = math.exp %264 : vector<8x128xf32>
    %cst_165 = arith.constant 1.000000e+00 : f32
    %266 = vector.broadcast %cst_165 : f32 to vector<8x128xf32>
    %267 = arith.addf %266, %265 : vector<8x128xf32>
    %268 = arith.divf %266, %267 : vector<8x128xf32>
    %269 = vector.extract_strided_slice %256 {offsets = [0, 256], sizes = [8, 128], strides = [1, 1]} : vector<8x512xf32> to vector<8x128xf32>
    %270 = math.tanh %269 : vector<8x128xf32>
    %271 = vector.extract_strided_slice %256 {offsets = [0, 384], sizes = [8, 128], strides = [1, 1]} : vector<8x512xf32> to vector<8x128xf32>
    %272 = arith.negf %271 : vector<8x128xf32>
    %273 = math.exp %272 : vector<8x128xf32>
    %cst_166 = arith.constant 1.000000e+00 : f32
    %274 = vector.broadcast %cst_166 : f32 to vector<8x128xf32>
    %275 = arith.addf %274, %273 : vector<8x128xf32>
    %276 = arith.divf %274, %275 : vector<8x128xf32>
    %c1_167 = arith.constant 1 : index
    %c0_168 = arith.constant 0 : index
    %c0_169 = arith.constant 0 : index
    %277 = vector.load %arg6[%c1_167, %c0_168, %c0_169] : memref<2x8x128xf32, #tpu.memory_space<vmem>>, vector<1x8x128xf32>
    %278 = vector.shape_cast %277 : vector<1x8x128xf32> to vector<8x128xf32>
    %279 = arith.mulf %268, %278 : vector<8x128xf32>
    %280 = arith.mulf %262, %270 : vector<8x128xf32>
    %281 = arith.addf %279, %280 : vector<8x128xf32>
    %282 = math.tanh %281 : vector<8x128xf32>
    %283 = arith.mulf %276, %282 : vector<8x128xf32>
    %c1_170 = arith.constant 1 : index
    %c0_171 = arith.constant 0 : index
    %c0_172 = arith.constant 0 : index
    %284 = vector.load %arg6[%c1_170, %c0_171, %c0_172] : memref<2x8x128xf32, #tpu.memory_space<vmem>>, vector<1x8x128xf32>
    %285 = vector.shape_cast %284 : vector<1x8x128xf32> to vector<8x128xf32>
    %286 = vector.shape_cast %281 : vector<8x128xf32> to vector<1x8x128xf32>
    tpu.vector_store %arg6[%c1_170, %c0_171, %c0_172], %286 {strides = array<i32>} : memref<2x8x128xf32, #tpu.memory_space<vmem>>, vector<1x8x128xf32>,
    %c1_173 = arith.constant 1 : index
    %c0_174 = arith.constant 0 : index
    %c0_175 = arith.constant 0 : index
    %287 = vector.load %arg5[%c1_173, %c0_174, %c0_175] : memref<2x8x128xf32, #tpu.memory_space<vmem>>, vector<1x8x128xf32>
    %288 = vector.shape_cast %287 : vector<1x8x128xf32> to vector<8x128xf32>
    %289 = vector.shape_cast %283 : vector<8x128xf32> to vector<1x8x128xf32>
    tpu.vector_store %arg5[%c1_173, %c0_174, %c0_175], %289 {strides = array<i32>} : memref<2x8x128xf32, #tpu.memory_space<vmem>>, vector<1x8x128xf32>,
    %290 = arith.index_cast %c2_i32 : i32 to index
    %c0_176 = arith.constant 0 : index
    %c0_177 = arith.constant 0 : index
    %291 = vector.load %arg4[%290, %c0_176, %c0_177] : memref<9x8x128xf32, #tpu.memory_space<vmem>>, vector<1x8x128xf32>
    %292 = vector.shape_cast %291 : vector<1x8x128xf32> to vector<8x128xf32>
    %293 = vector.shape_cast %283 : vector<8x128xf32> to vector<1x8x128xf32>
    tpu.vector_store %arg4[%290, %c0_176, %c0_177], %293 {strides = array<i32>} : memref<9x8x128xf32, #tpu.memory_space<vmem>>, vector<1x8x128xf32>,
    %c3_i32 = arith.constant 3 : i32
    %294 = arith.index_cast %c3_i32 : i32 to index
    %c0_178 = arith.constant 0 : index
    %c0_179 = arith.constant 0 : index
    %295 = vector.load %arg1[%294, %c0_178, %c0_179] : memref<9x8x128xf32, #tpu.memory_space<vmem>>, vector<1x8x128xf32>
    %296 = vector.shape_cast %295 : vector<1x8x128xf32> to vector<8x128xf32>
    %c0_180 = arith.constant 0 : index
    %c0_181 = arith.constant 0 : index
    %297 = vector.load %arg7[%c0_180, %c0_181] : memref<8x256xf32, #tpu.memory_space<vmem>>, vector<8x128xf32>
    tpu.vector_store %arg7[%c0_180, %c0_181], %296 {strides = array<i32>} : memref<8x256xf32, #tpu.memory_space<vmem>>, vector<8x128xf32>,
    %c0_182 = arith.constant 0 : index
    %c0_183 = arith.constant 0 : index
    %c0_184 = arith.constant 0 : index
    %298 = vector.load %arg5[%c0_182, %c0_183, %c0_184] : memref<2x8x128xf32, #tpu.memory_space<vmem>>, vector<1x8x128xf32>
    %299 = vector.shape_cast %298 : vector<1x8x128xf32> to vector<8x128xf32>
    %c0_185 = arith.constant 0 : index
    %c128_186 = arith.constant 128 : index
    %300 = vector.load %arg7[%c0_185, %c128_186] : memref<8x256xf32, #tpu.memory_space<vmem>>, vector<8x128xf32>
    tpu.vector_store %arg7[%c0_185, %c128_186], %299 {strides = array<i32>} : memref<8x256xf32, #tpu.memory_space<vmem>>, vector<8x128xf32>,
    %c0_187 = arith.constant 0 : index
    %c0_188 = arith.constant 0 : index
    %301 = vector.load %arg7[%c0_187, %c0_188] : memref<8x256xf32, #tpu.memory_space<vmem>>, vector<8x256xf32>
    %c0_189 = arith.constant 0 : index
    %c0_190 = arith.constant 0 : index
    %c0_191 = arith.constant 0 : index
    %302 = vector.load %arg2[%c0_189, %c0_190, %c0_191] : memref<2x256x512xf32, #tpu.memory_space<vmem>>, vector<1x256x512xf32>
    %303 = vector.shape_cast %302 : vector<1x256x512xf32> to vector<256x512xf32>
    %cst_192 = arith.constant dense<0.000000e+00> : vector<8x512xf32>
    %304 = tpu.matmul %301, %303, %cst_192 {dimension_numbers = #tpu.dot_dimension_numbers<[1], [0], [0], [1], [0, 0, 1, 1], [], []>} : vector<8x256xf32>, vector<256x512xf32>, vector<8x512xf32> -> vector<8x512xf32>
    %c0_193 = arith.constant 0 : index
    %c0_194 = arith.constant 0 : index
    %c0_195 = arith.constant 0 : index
    %305 = vector.load %arg3[%c0_193, %c0_194, %c0_195] : memref<2x1x512xf32, #tpu.memory_space<vmem>>, vector<1x1x512xf32>
    %306 = vector.shape_cast %305 : vector<1x1x512xf32> to vector<1x512xf32>
    %307 = vector.broadcast %306 : vector<1x512xf32> to vector<8x512xf32>
    %308 = arith.addf %304, %307 : vector<8x512xf32>
    %309 = vector.extract_strided_slice %308 {offsets = [0, 0], sizes = [8, 128], strides = [1, 1]} : vector<8x512xf32> to vector<8x128xf32>
    %310 = arith.negf %309 : vector<8x128xf32>
    %311 = math.exp %310 : vector<8x128xf32>
    %cst_196 = arith.constant 1.000000e+00 : f32
    %312 = vector.broadcast %cst_196 : f32 to vector<8x128xf32>
    %313 = arith.addf %312, %311 : vector<8x128xf32>
    %314 = arith.divf %312, %313 : vector<8x128xf32>
    %315 = vector.extract_strided_slice %308 {offsets = [0, 128], sizes = [8, 128], strides = [1, 1]} : vector<8x512xf32> to vector<8x128xf32>
    %316 = arith.negf %315 : vector<8x128xf32>
    %317 = math.exp %316 : vector<8x128xf32>
    %cst_197 = arith.constant 1.000000e+00 : f32
    %318 = vector.broadcast %cst_197 : f32 to vector<8x128xf32>
    %319 = arith.addf %318, %317 : vector<8x128xf32>
    %320 = arith.divf %318, %319 : vector<8x128xf32>
    %321 = vector.extract_strided_slice %308 {offsets = [0, 256], sizes = [8, 128], strides = [1, 1]} : vector<8x512xf32> to vector<8x128xf32>
    %322 = math.tanh %321 : vector<8x128xf32>
    %323 = vector.extract_strided_slice %308 {offsets = [0, 384], sizes = [8, 128], strides = [1, 1]} : vector<8x512xf32> to vector<8x128xf32>
    %324 = arith.negf %323 : vector<8x128xf32>
    %325 = math.exp %324 : vector<8x128xf32>
    %cst_198 = arith.constant 1.000000e+00 : f32
    %326 = vector.broadcast %cst_198 : f32 to vector<8x128xf32>
    %327 = arith.addf %326, %325 : vector<8x128xf32>
    %328 = arith.divf %326, %327 : vector<8x128xf32>
    %c0_199 = arith.constant 0 : index
    %c0_200 = arith.constant 0 : index
    %c0_201 = arith.constant 0 : index
    %329 = vector.load %arg6[%c0_199, %c0_200, %c0_201] : memref<2x8x128xf32, #tpu.memory_space<vmem>>, vector<1x8x128xf32>
    %330 = vector.shape_cast %329 : vector<1x8x128xf32> to vector<8x128xf32>
    %331 = arith.mulf %320, %330 : vector<8x128xf32>
    %332 = arith.mulf %314, %322 : vector<8x128xf32>
    %333 = arith.addf %331, %332 : vector<8x128xf32>
    %334 = math.tanh %333 : vector<8x128xf32>
    %335 = arith.mulf %328, %334 : vector<8x128xf32>
    %c0_202 = arith.constant 0 : index
    %c0_203 = arith.constant 0 : index
    %c0_204 = arith.constant 0 : index
    %336 = vector.load %arg6[%c0_202, %c0_203, %c0_204] : memref<2x8x128xf32, #tpu.memory_space<vmem>>, vector<1x8x128xf32>
    %337 = vector.shape_cast %336 : vector<1x8x128xf32> to vector<8x128xf32>
    %338 = vector.shape_cast %333 : vector<8x128xf32> to vector<1x8x128xf32>
    tpu.vector_store %arg6[%c0_202, %c0_203, %c0_204], %338 {strides = array<i32>} : memref<2x8x128xf32, #tpu.memory_space<vmem>>, vector<1x8x128xf32>,
    %c0_205 = arith.constant 0 : index
    %c0_206 = arith.constant 0 : index
    %c0_207 = arith.constant 0 : index
    %339 = vector.load %arg5[%c0_205, %c0_206, %c0_207] : memref<2x8x128xf32, #tpu.memory_space<vmem>>, vector<1x8x128xf32>
    %340 = vector.shape_cast %339 : vector<1x8x128xf32> to vector<8x128xf32>
    %341 = vector.shape_cast %335 : vector<8x128xf32> to vector<1x8x128xf32>
    tpu.vector_store %arg5[%c0_205, %c0_206, %c0_207], %341 {strides = array<i32>} : memref<2x8x128xf32, #tpu.memory_space<vmem>>, vector<1x8x128xf32>,
    %c0_208 = arith.constant 0 : index
    %c0_209 = arith.constant 0 : index
    %342 = vector.load %arg7[%c0_208, %c0_209] : memref<8x256xf32, #tpu.memory_space<vmem>>, vector<8x128xf32>
    tpu.vector_store %arg7[%c0_208, %c0_209], %335 {strides = array<i32>} : memref<8x256xf32, #tpu.memory_space<vmem>>, vector<8x128xf32>,
    %c1_210 = arith.constant 1 : index
    %c0_211 = arith.constant 0 : index
    %c0_212 = arith.constant 0 : index
    %343 = vector.load %arg5[%c1_210, %c0_211, %c0_212] : memref<2x8x128xf32, #tpu.memory_space<vmem>>, vector<1x8x128xf32>
    %344 = vector.shape_cast %343 : vector<1x8x128xf32> to vector<8x128xf32>
    %c0_213 = arith.constant 0 : index
    %c128_214 = arith.constant 128 : index
    %345 = vector.load %arg7[%c0_213, %c128_214] : memref<8x256xf32, #tpu.memory_space<vmem>>, vector<8x128xf32>
    tpu.vector_store %arg7[%c0_213, %c128_214], %344 {strides = array<i32>} : memref<8x256xf32, #tpu.memory_space<vmem>>, vector<8x128xf32>,
    %c0_215 = arith.constant 0 : index
    %c0_216 = arith.constant 0 : index
    %346 = vector.load %arg7[%c0_215, %c0_216] : memref<8x256xf32, #tpu.memory_space<vmem>>, vector<8x256xf32>
    %c1_217 = arith.constant 1 : index
    %c0_218 = arith.constant 0 : index
    %c0_219 = arith.constant 0 : index
    %347 = vector.load %arg2[%c1_217, %c0_218, %c0_219] : memref<2x256x512xf32, #tpu.memory_space<vmem>>, vector<1x256x512xf32>
    %348 = vector.shape_cast %347 : vector<1x256x512xf32> to vector<256x512xf32>
    %cst_220 = arith.constant dense<0.000000e+00> : vector<8x512xf32>
    %349 = tpu.matmul %346, %348, %cst_220 {dimension_numbers = #tpu.dot_dimension_numbers<[1], [0], [0], [1], [0, 0, 1, 1], [], []>} : vector<8x256xf32>, vector<256x512xf32>, vector<8x512xf32> -> vector<8x512xf32>
    %c1_221 = arith.constant 1 : index
    %c0_222 = arith.constant 0 : index
    %c0_223 = arith.constant 0 : index
    %350 = vector.load %arg3[%c1_221, %c0_222, %c0_223] : memref<2x1x512xf32, #tpu.memory_space<vmem>>, vector<1x1x512xf32>
    %351 = vector.shape_cast %350 : vector<1x1x512xf32> to vector<1x512xf32>
    %352 = vector.broadcast %351 : vector<1x512xf32> to vector<8x512xf32>
    %353 = arith.addf %349, %352 : vector<8x512xf32>
    %354 = vector.extract_strided_slice %353 {offsets = [0, 0], sizes = [8, 128], strides = [1, 1]} : vector<8x512xf32> to vector<8x128xf32>
    %355 = arith.negf %354 : vector<8x128xf32>
    %356 = math.exp %355 : vector<8x128xf32>
    %cst_224 = arith.constant 1.000000e+00 : f32
    %357 = vector.broadcast %cst_224 : f32 to vector<8x128xf32>
    %358 = arith.addf %357, %356 : vector<8x128xf32>
    %359 = arith.divf %357, %358 : vector<8x128xf32>
    %360 = vector.extract_strided_slice %353 {offsets = [0, 128], sizes = [8, 128], strides = [1, 1]} : vector<8x512xf32> to vector<8x128xf32>
    %361 = arith.negf %360 : vector<8x128xf32>
    %362 = math.exp %361 : vector<8x128xf32>
    %cst_225 = arith.constant 1.000000e+00 : f32
    %363 = vector.broadcast %cst_225 : f32 to vector<8x128xf32>
    %364 = arith.addf %363, %362 : vector<8x128xf32>
    %365 = arith.divf %363, %364 : vector<8x128xf32>
    %366 = vector.extract_strided_slice %353 {offsets = [0, 256], sizes = [8, 128], strides = [1, 1]} : vector<8x512xf32> to vector<8x128xf32>
    %367 = math.tanh %366 : vector<8x128xf32>
    %368 = vector.extract_strided_slice %353 {offsets = [0, 384], sizes = [8, 128], strides = [1, 1]} : vector<8x512xf32> to vector<8x128xf32>
    %369 = arith.negf %368 : vector<8x128xf32>
    %370 = math.exp %369 : vector<8x128xf32>
    %cst_226 = arith.constant 1.000000e+00 : f32
    %371 = vector.broadcast %cst_226 : f32 to vector<8x128xf32>
    %372 = arith.addf %371, %370 : vector<8x128xf32>
    %373 = arith.divf %371, %372 : vector<8x128xf32>
    %c1_227 = arith.constant 1 : index
    %c0_228 = arith.constant 0 : index
    %c0_229 = arith.constant 0 : index
    %374 = vector.load %arg6[%c1_227, %c0_228, %c0_229] : memref<2x8x128xf32, #tpu.memory_space<vmem>>, vector<1x8x128xf32>
    %375 = vector.shape_cast %374 : vector<1x8x128xf32> to vector<8x128xf32>
    %376 = arith.mulf %365, %375 : vector<8x128xf32>
    %377 = arith.mulf %359, %367 : vector<8x128xf32>
    %378 = arith.addf %376, %377 : vector<8x128xf32>
    %379 = math.tanh %378 : vector<8x128xf32>
    %380 = arith.mulf %373, %379 : vector<8x128xf32>
    %c1_230 = arith.constant 1 : index
    %c0_231 = arith.constant 0 : index
    %c0_232 = arith.constant 0 : index
    %381 = vector.load %arg6[%c1_230, %c0_231, %c0_232] : memref<2x8x128xf32, #tpu.memory_space<vmem>>, vector<1x8x128xf32>
    %382 = vector.shape_cast %381 : vector<1x8x128xf32> to vector<8x128xf32>
    %383 = vector.shape_cast %378 : vector<8x128xf32> to vector<1x8x128xf32>
    tpu.vector_store %arg6[%c1_230, %c0_231, %c0_232], %383 {strides = array<i32>} : memref<2x8x128xf32, #tpu.memory_space<vmem>>, vector<1x8x128xf32>,
    %c1_233 = arith.constant 1 : index
    %c0_234 = arith.constant 0 : index
    %c0_235 = arith.constant 0 : index
    %384 = vector.load %arg5[%c1_233, %c0_234, %c0_235] : memref<2x8x128xf32, #tpu.memory_space<vmem>>, vector<1x8x128xf32>
    %385 = vector.shape_cast %384 : vector<1x8x128xf32> to vector<8x128xf32>
    %386 = vector.shape_cast %380 : vector<8x128xf32> to vector<1x8x128xf32>
    tpu.vector_store %arg5[%c1_233, %c0_234, %c0_235], %386 {strides = array<i32>} : memref<2x8x128xf32, #tpu.memory_space<vmem>>, vector<1x8x128xf32>,
    %387 = arith.index_cast %c3_i32 : i32 to index
    %c0_236 = arith.constant 0 : index
    %c0_237 = arith.constant 0 : index
    %388 = vector.load %arg4[%387, %c0_236, %c0_237] : memref<9x8x128xf32, #tpu.memory_space<vmem>>, vector<1x8x128xf32>
    %389 = vector.shape_cast %388 : vector<1x8x128xf32> to vector<8x128xf32>
    %390 = vector.shape_cast %380 : vector<8x128xf32> to vector<1x8x128xf32>
    tpu.vector_store %arg4[%387, %c0_236, %c0_237], %390 {strides = array<i32>} : memref<9x8x128xf32, #tpu.memory_space<vmem>>, vector<1x8x128xf32>,
    %c4_i32 = arith.constant 4 : i32
    %391 = arith.index_cast %c4_i32 : i32 to index
    %c0_238 = arith.constant 0 : index
    %c0_239 = arith.constant 0 : index
    %392 = vector.load %arg1[%391, %c0_238, %c0_239] : memref<9x8x128xf32, #tpu.memory_space<vmem>>, vector<1x8x128xf32>
    %393 = vector.shape_cast %392 : vector<1x8x128xf32> to vector<8x128xf32>
    %c0_240 = arith.constant 0 : index
    %c0_241 = arith.constant 0 : index
    %394 = vector.load %arg7[%c0_240, %c0_241] : memref<8x256xf32, #tpu.memory_space<vmem>>, vector<8x128xf32>
    tpu.vector_store %arg7[%c0_240, %c0_241], %393 {strides = array<i32>} : memref<8x256xf32, #tpu.memory_space<vmem>>, vector<8x128xf32>,
    %c0_242 = arith.constant 0 : index
    %c0_243 = arith.constant 0 : index
    %c0_244 = arith.constant 0 : index
    %395 = vector.load %arg5[%c0_242, %c0_243, %c0_244] : memref<2x8x128xf32, #tpu.memory_space<vmem>>, vector<1x8x128xf32>
    %396 = vector.shape_cast %395 : vector<1x8x128xf32> to vector<8x128xf32>
    %c0_245 = arith.constant 0 : index
    %c128_246 = arith.constant 128 : index
    %397 = vector.load %arg7[%c0_245, %c128_246] : memref<8x256xf32, #tpu.memory_space<vmem>>, vector<8x128xf32>
    tpu.vector_store %arg7[%c0_245, %c128_246], %396 {strides = array<i32>} : memref<8x256xf32, #tpu.memory_space<vmem>>, vector<8x128xf32>,
    %c0_247 = arith.constant 0 : index
    %c0_248 = arith.constant 0 : index
    %398 = vector.load %arg7[%c0_247, %c0_248] : memref<8x256xf32, #tpu.memory_space<vmem>>, vector<8x256xf32>
    %c0_249 = arith.constant 0 : index
    %c0_250 = arith.constant 0 : index
    %c0_251 = arith.constant 0 : index
    %399 = vector.load %arg2[%c0_249, %c0_250, %c0_251] : memref<2x256x512xf32, #tpu.memory_space<vmem>>, vector<1x256x512xf32>
    %400 = vector.shape_cast %399 : vector<1x256x512xf32> to vector<256x512xf32>
    %cst_252 = arith.constant dense<0.000000e+00> : vector<8x512xf32>
    %401 = tpu.matmul %398, %400, %cst_252 {dimension_numbers = #tpu.dot_dimension_numbers<[1], [0], [0], [1], [0, 0, 1, 1], [], []>} : vector<8x256xf32>, vector<256x512xf32>, vector<8x512xf32> -> vector<8x512xf32>
    %c0_253 = arith.constant 0 : index
    %c0_254 = arith.constant 0 : index
    %c0_255 = arith.constant 0 : index
    %402 = vector.load %arg3[%c0_253, %c0_254, %c0_255] : memref<2x1x512xf32, #tpu.memory_space<vmem>>, vector<1x1x512xf32>
    %403 = vector.shape_cast %402 : vector<1x1x512xf32> to vector<1x512xf32>
    %404 = vector.broadcast %403 : vector<1x512xf32> to vector<8x512xf32>
    %405 = arith.addf %401, %404 : vector<8x512xf32>
    %406 = vector.extract_strided_slice %405 {offsets = [0, 0], sizes = [8, 128], strides = [1, 1]} : vector<8x512xf32> to vector<8x128xf32>
    %407 = arith.negf %406 : vector<8x128xf32>
    %408 = math.exp %407 : vector<8x128xf32>
    %cst_256 = arith.constant 1.000000e+00 : f32
    %409 = vector.broadcast %cst_256 : f32 to vector<8x128xf32>
    %410 = arith.addf %409, %408 : vector<8x128xf32>
    %411 = arith.divf %409, %410 : vector<8x128xf32>
    %412 = vector.extract_strided_slice %405 {offsets = [0, 128], sizes = [8, 128], strides = [1, 1]} : vector<8x512xf32> to vector<8x128xf32>
    %413 = arith.negf %412 : vector<8x128xf32>
    %414 = math.exp %413 : vector<8x128xf32>
    %cst_257 = arith.constant 1.000000e+00 : f32
    %415 = vector.broadcast %cst_257 : f32 to vector<8x128xf32>
    %416 = arith.addf %415, %414 : vector<8x128xf32>
    %417 = arith.divf %415, %416 : vector<8x128xf32>
    %418 = vector.extract_strided_slice %405 {offsets = [0, 256], sizes = [8, 128], strides = [1, 1]} : vector<8x512xf32> to vector<8x128xf32>
    %419 = math.tanh %418 : vector<8x128xf32>
    %420 = vector.extract_strided_slice %405 {offsets = [0, 384], sizes = [8, 128], strides = [1, 1]} : vector<8x512xf32> to vector<8x128xf32>
    %421 = arith.negf %420 : vector<8x128xf32>
    %422 = math.exp %421 : vector<8x128xf32>
    %cst_258 = arith.constant 1.000000e+00 : f32
    %423 = vector.broadcast %cst_258 : f32 to vector<8x128xf32>
    %424 = arith.addf %423, %422 : vector<8x128xf32>
    %425 = arith.divf %423, %424 : vector<8x128xf32>
    %c0_259 = arith.constant 0 : index
    %c0_260 = arith.constant 0 : index
    %c0_261 = arith.constant 0 : index
    %426 = vector.load %arg6[%c0_259, %c0_260, %c0_261] : memref<2x8x128xf32, #tpu.memory_space<vmem>>, vector<1x8x128xf32>
    %427 = vector.shape_cast %426 : vector<1x8x128xf32> to vector<8x128xf32>
    %428 = arith.mulf %417, %427 : vector<8x128xf32>
    %429 = arith.mulf %411, %419 : vector<8x128xf32>
    %430 = arith.addf %428, %429 : vector<8x128xf32>
    %431 = math.tanh %430 : vector<8x128xf32>
    %432 = arith.mulf %425, %431 : vector<8x128xf32>
    %c0_262 = arith.constant 0 : index
    %c0_263 = arith.constant 0 : index
    %c0_264 = arith.constant 0 : index
    %433 = vector.load %arg6[%c0_262, %c0_263, %c0_264] : memref<2x8x128xf32, #tpu.memory_space<vmem>>, vector<1x8x128xf32>
    %434 = vector.shape_cast %433 : vector<1x8x128xf32> to vector<8x128xf32>
    %435 = vector.shape_cast %430 : vector<8x128xf32> to vector<1x8x128xf32>
    tpu.vector_store %arg6[%c0_262, %c0_263, %c0_264], %435 {strides = array<i32>} : memref<2x8x128xf32, #tpu.memory_space<vmem>>, vector<1x8x128xf32>,
    %c0_265 = arith.constant 0 : index
    %c0_266 = arith.constant 0 : index
    %c0_267 = arith.constant 0 : index
    %436 = vector.load %arg5[%c0_265, %c0_266, %c0_267] : memref<2x8x128xf32, #tpu.memory_space<vmem>>, vector<1x8x128xf32>
    %437 = vector.shape_cast %436 : vector<1x8x128xf32> to vector<8x128xf32>
    %438 = vector.shape_cast %432 : vector<8x128xf32> to vector<1x8x128xf32>
    tpu.vector_store %arg5[%c0_265, %c0_266, %c0_267], %438 {strides = array<i32>} : memref<2x8x128xf32, #tpu.memory_space<vmem>>, vector<1x8x128xf32>,
    %c0_268 = arith.constant 0 : index
    %c0_269 = arith.constant 0 : index
    %439 = vector.load %arg7[%c0_268, %c0_269] : memref<8x256xf32, #tpu.memory_space<vmem>>, vector<8x128xf32>
    tpu.vector_store %arg7[%c0_268, %c0_269], %432 {strides = array<i32>} : memref<8x256xf32, #tpu.memory_space<vmem>>, vector<8x128xf32>,
    %c1_270 = arith.constant 1 : index
    %c0_271 = arith.constant 0 : index
    %c0_272 = arith.constant 0 : index
    %440 = vector.load %arg5[%c1_270, %c0_271, %c0_272] : memref<2x8x128xf32, #tpu.memory_space<vmem>>, vector<1x8x128xf32>
    %441 = vector.shape_cast %440 : vector<1x8x128xf32> to vector<8x128xf32>
    %c0_273 = arith.constant 0 : index
    %c128_274 = arith.constant 128 : index
    %442 = vector.load %arg7[%c0_273, %c128_274] : memref<8x256xf32, #tpu.memory_space<vmem>>, vector<8x128xf32>
    tpu.vector_store %arg7[%c0_273, %c128_274], %441 {strides = array<i32>} : memref<8x256xf32, #tpu.memory_space<vmem>>, vector<8x128xf32>,
    %c0_275 = arith.constant 0 : index
    %c0_276 = arith.constant 0 : index
    %443 = vector.load %arg7[%c0_275, %c0_276] : memref<8x256xf32, #tpu.memory_space<vmem>>, vector<8x256xf32>
    %c1_277 = arith.constant 1 : index
    %c0_278 = arith.constant 0 : index
    %c0_279 = arith.constant 0 : index
    %444 = vector.load %arg2[%c1_277, %c0_278, %c0_279] : memref<2x256x512xf32, #tpu.memory_space<vmem>>, vector<1x256x512xf32>
    %445 = vector.shape_cast %444 : vector<1x256x512xf32> to vector<256x512xf32>
    %cst_280 = arith.constant dense<0.000000e+00> : vector<8x512xf32>
    %446 = tpu.matmul %443, %445, %cst_280 {dimension_numbers = #tpu.dot_dimension_numbers<[1], [0], [0], [1], [0, 0, 1, 1], [], []>} : vector<8x256xf32>, vector<256x512xf32>, vector<8x512xf32> -> vector<8x512xf32>
    %c1_281 = arith.constant 1 : index
    %c0_282 = arith.constant 0 : index
    %c0_283 = arith.constant 0 : index
    %447 = vector.load %arg3[%c1_281, %c0_282, %c0_283] : memref<2x1x512xf32, #tpu.memory_space<vmem>>, vector<1x1x512xf32>
    %448 = vector.shape_cast %447 : vector<1x1x512xf32> to vector<1x512xf32>
    %449 = vector.broadcast %448 : vector<1x512xf32> to vector<8x512xf32>
    %450 = arith.addf %446, %449 : vector<8x512xf32>
    %451 = vector.extract_strided_slice %450 {offsets = [0, 0], sizes = [8, 128], strides = [1, 1]} : vector<8x512xf32> to vector<8x128xf32>
    %452 = arith.negf %451 : vector<8x128xf32>
    %453 = math.exp %452 : vector<8x128xf32>
    %cst_284 = arith.constant 1.000000e+00 : f32
    %454 = vector.broadcast %cst_284 : f32 to vector<8x128xf32>
    %455 = arith.addf %454, %453 : vector<8x128xf32>
    %456 = arith.divf %454, %455 : vector<8x128xf32>
    %457 = vector.extract_strided_slice %450 {offsets = [0, 128], sizes = [8, 128], strides = [1, 1]} : vector<8x512xf32> to vector<8x128xf32>
    %458 = arith.negf %457 : vector<8x128xf32>
    %459 = math.exp %458 : vector<8x128xf32>
    %cst_285 = arith.constant 1.000000e+00 : f32
    %460 = vector.broadcast %cst_285 : f32 to vector<8x128xf32>
    %461 = arith.addf %460, %459 : vector<8x128xf32>
    %462 = arith.divf %460, %461 : vector<8x128xf32>
    %463 = vector.extract_strided_slice %450 {offsets = [0, 256], sizes = [8, 128], strides = [1, 1]} : vector<8x512xf32> to vector<8x128xf32>
    %464 = math.tanh %463 : vector<8x128xf32>
    %465 = vector.extract_strided_slice %450 {offsets = [0, 384], sizes = [8, 128], strides = [1, 1]} : vector<8x512xf32> to vector<8x128xf32>
    %466 = arith.negf %465 : vector<8x128xf32>
    %467 = math.exp %466 : vector<8x128xf32>
    %cst_286 = arith.constant 1.000000e+00 : f32
    %468 = vector.broadcast %cst_286 : f32 to vector<8x128xf32>
    %469 = arith.addf %468, %467 : vector<8x128xf32>
    %470 = arith.divf %468, %469 : vector<8x128xf32>
    %c1_287 = arith.constant 1 : index
    %c0_288 = arith.constant 0 : index
    %c0_289 = arith.constant 0 : index
    %471 = vector.load %arg6[%c1_287, %c0_288, %c0_289] : memref<2x8x128xf32, #tpu.memory_space<vmem>>, vector<1x8x128xf32>
    %472 = vector.shape_cast %471 : vector<1x8x128xf32> to vector<8x128xf32>
    %473 = arith.mulf %462, %472 : vector<8x128xf32>
    %474 = arith.mulf %456, %464 : vector<8x128xf32>
    %475 = arith.addf %473, %474 : vector<8x128xf32>
    %476 = math.tanh %475 : vector<8x128xf32>
    %477 = arith.mulf %470, %476 : vector<8x128xf32>
    %c1_290 = arith.constant 1 : index
    %c0_291 = arith.constant 0 : index
    %c0_292 = arith.constant 0 : index
    %478 = vector.load %arg6[%c1_290, %c0_291, %c0_292] : memref<2x8x128xf32, #tpu.memory_space<vmem>>, vector<1x8x128xf32>
    %479 = vector.shape_cast %478 : vector<1x8x128xf32> to vector<8x128xf32>
    %480 = vector.shape_cast %475 : vector<8x128xf32> to vector<1x8x128xf32>
    tpu.vector_store %arg6[%c1_290, %c0_291, %c0_292], %480 {strides = array<i32>} : memref<2x8x128xf32, #tpu.memory_space<vmem>>, vector<1x8x128xf32>,
    %c1_293 = arith.constant 1 : index
    %c0_294 = arith.constant 0 : index
    %c0_295 = arith.constant 0 : index
    %481 = vector.load %arg5[%c1_293, %c0_294, %c0_295] : memref<2x8x128xf32, #tpu.memory_space<vmem>>, vector<1x8x128xf32>
    %482 = vector.shape_cast %481 : vector<1x8x128xf32> to vector<8x128xf32>
    %483 = vector.shape_cast %477 : vector<8x128xf32> to vector<1x8x128xf32>
    tpu.vector_store %arg5[%c1_293, %c0_294, %c0_295], %483 {strides = array<i32>} : memref<2x8x128xf32, #tpu.memory_space<vmem>>, vector<1x8x128xf32>,
    %484 = arith.index_cast %c4_i32 : i32 to index
    %c0_296 = arith.constant 0 : index
    %c0_297 = arith.constant 0 : index
    %485 = vector.load %arg4[%484, %c0_296, %c0_297] : memref<9x8x128xf32, #tpu.memory_space<vmem>>, vector<1x8x128xf32>
    %486 = vector.shape_cast %485 : vector<1x8x128xf32> to vector<8x128xf32>
    %487 = vector.shape_cast %477 : vector<8x128xf32> to vector<1x8x128xf32>
    tpu.vector_store %arg4[%484, %c0_296, %c0_297], %487 {strides = array<i32>} : memref<9x8x128xf32, #tpu.memory_space<vmem>>, vector<1x8x128xf32>,
    %c5_i32 = arith.constant 5 : i32
    %488 = arith.index_cast %c5_i32 : i32 to index
    %c0_298 = arith.constant 0 : index
    %c0_299 = arith.constant 0 : index
    %489 = vector.load %arg1[%488, %c0_298, %c0_299] : memref<9x8x128xf32, #tpu.memory_space<vmem>>, vector<1x8x128xf32>
    %490 = vector.shape_cast %489 : vector<1x8x128xf32> to vector<8x128xf32>
    %c0_300 = arith.constant 0 : index
    %c0_301 = arith.constant 0 : index
    %491 = vector.load %arg7[%c0_300, %c0_301] : memref<8x256xf32, #tpu.memory_space<vmem>>, vector<8x128xf32>
    tpu.vector_store %arg7[%c0_300, %c0_301], %490 {strides = array<i32>} : memref<8x256xf32, #tpu.memory_space<vmem>>, vector<8x128xf32>,
    %c0_302 = arith.constant 0 : index
    %c0_303 = arith.constant 0 : index
    %c0_304 = arith.constant 0 : index
    %492 = vector.load %arg5[%c0_302, %c0_303, %c0_304] : memref<2x8x128xf32, #tpu.memory_space<vmem>>, vector<1x8x128xf32>
    %493 = vector.shape_cast %492 : vector<1x8x128xf32> to vector<8x128xf32>
    %c0_305 = arith.constant 0 : index
    %c128_306 = arith.constant 128 : index
    %494 = vector.load %arg7[%c0_305, %c128_306] : memref<8x256xf32, #tpu.memory_space<vmem>>, vector<8x128xf32>
    tpu.vector_store %arg7[%c0_305, %c128_306], %493 {strides = array<i32>} : memref<8x256xf32, #tpu.memory_space<vmem>>, vector<8x128xf32>,
    %c0_307 = arith.constant 0 : index
    %c0_308 = arith.constant 0 : index
    %495 = vector.load %arg7[%c0_307, %c0_308] : memref<8x256xf32, #tpu.memory_space<vmem>>, vector<8x256xf32>
    %c0_309 = arith.constant 0 : index
    %c0_310 = arith.constant 0 : index
    %c0_311 = arith.constant 0 : index
    %496 = vector.load %arg2[%c0_309, %c0_310, %c0_311] : memref<2x256x512xf32, #tpu.memory_space<vmem>>, vector<1x256x512xf32>
    %497 = vector.shape_cast %496 : vector<1x256x512xf32> to vector<256x512xf32>
    %cst_312 = arith.constant dense<0.000000e+00> : vector<8x512xf32>
    %498 = tpu.matmul %495, %497, %cst_312 {dimension_numbers = #tpu.dot_dimension_numbers<[1], [0], [0], [1], [0, 0, 1, 1], [], []>} : vector<8x256xf32>, vector<256x512xf32>, vector<8x512xf32> -> vector<8x512xf32>
    %c0_313 = arith.constant 0 : index
    %c0_314 = arith.constant 0 : index
    %c0_315 = arith.constant 0 : index
    %499 = vector.load %arg3[%c0_313, %c0_314, %c0_315] : memref<2x1x512xf32, #tpu.memory_space<vmem>>, vector<1x1x512xf32>
    %500 = vector.shape_cast %499 : vector<1x1x512xf32> to vector<1x512xf32>
    %501 = vector.broadcast %500 : vector<1x512xf32> to vector<8x512xf32>
    %502 = arith.addf %498, %501 : vector<8x512xf32>
    %503 = vector.extract_strided_slice %502 {offsets = [0, 0], sizes = [8, 128], strides = [1, 1]} : vector<8x512xf32> to vector<8x128xf32>
    %504 = arith.negf %503 : vector<8x128xf32>
    %505 = math.exp %504 : vector<8x128xf32>
    %cst_316 = arith.constant 1.000000e+00 : f32
    %506 = vector.broadcast %cst_316 : f32 to vector<8x128xf32>
    %507 = arith.addf %506, %505 : vector<8x128xf32>
    %508 = arith.divf %506, %507 : vector<8x128xf32>
    %509 = vector.extract_strided_slice %502 {offsets = [0, 128], sizes = [8, 128], strides = [1, 1]} : vector<8x512xf32> to vector<8x128xf32>
    %510 = arith.negf %509 : vector<8x128xf32>
    %511 = math.exp %510 : vector<8x128xf32>
    %cst_317 = arith.constant 1.000000e+00 : f32
    %512 = vector.broadcast %cst_317 : f32 to vector<8x128xf32>
    %513 = arith.addf %512, %511 : vector<8x128xf32>
    %514 = arith.divf %512, %513 : vector<8x128xf32>
    %515 = vector.extract_strided_slice %502 {offsets = [0, 256], sizes = [8, 128], strides = [1, 1]} : vector<8x512xf32> to vector<8x128xf32>
    %516 = math.tanh %515 : vector<8x128xf32>
    %517 = vector.extract_strided_slice %502 {offsets = [0, 384], sizes = [8, 128], strides = [1, 1]} : vector<8x512xf32> to vector<8x128xf32>
    %518 = arith.negf %517 : vector<8x128xf32>
    %519 = math.exp %518 : vector<8x128xf32>
    %cst_318 = arith.constant 1.000000e+00 : f32
    %520 = vector.broadcast %cst_318 : f32 to vector<8x128xf32>
    %521 = arith.addf %520, %519 : vector<8x128xf32>
    %522 = arith.divf %520, %521 : vector<8x128xf32>
    %c0_319 = arith.constant 0 : index
    %c0_320 = arith.constant 0 : index
    %c0_321 = arith.constant 0 : index
    %523 = vector.load %arg6[%c0_319, %c0_320, %c0_321] : memref<2x8x128xf32, #tpu.memory_space<vmem>>, vector<1x8x128xf32>
    %524 = vector.shape_cast %523 : vector<1x8x128xf32> to vector<8x128xf32>
    %525 = arith.mulf %514, %524 : vector<8x128xf32>
    %526 = arith.mulf %508, %516 : vector<8x128xf32>
    %527 = arith.addf %525, %526 : vector<8x128xf32>
    %528 = math.tanh %527 : vector<8x128xf32>
    %529 = arith.mulf %522, %528 : vector<8x128xf32>
    %c0_322 = arith.constant 0 : index
    %c0_323 = arith.constant 0 : index
    %c0_324 = arith.constant 0 : index
    %530 = vector.load %arg6[%c0_322, %c0_323, %c0_324] : memref<2x8x128xf32, #tpu.memory_space<vmem>>, vector<1x8x128xf32>
    %531 = vector.shape_cast %530 : vector<1x8x128xf32> to vector<8x128xf32>
    %532 = vector.shape_cast %527 : vector<8x128xf32> to vector<1x8x128xf32>
    tpu.vector_store %arg6[%c0_322, %c0_323, %c0_324], %532 {strides = array<i32>} : memref<2x8x128xf32, #tpu.memory_space<vmem>>, vector<1x8x128xf32>,
    %c0_325 = arith.constant 0 : index
    %c0_326 = arith.constant 0 : index
    %c0_327 = arith.constant 0 : index
    %533 = vector.load %arg5[%c0_325, %c0_326, %c0_327] : memref<2x8x128xf32, #tpu.memory_space<vmem>>, vector<1x8x128xf32>
    %534 = vector.shape_cast %533 : vector<1x8x128xf32> to vector<8x128xf32>
    %535 = vector.shape_cast %529 : vector<8x128xf32> to vector<1x8x128xf32>
    tpu.vector_store %arg5[%c0_325, %c0_326, %c0_327], %535 {strides = array<i32>} : memref<2x8x128xf32, #tpu.memory_space<vmem>>, vector<1x8x128xf32>,
    %c0_328 = arith.constant 0 : index
    %c0_329 = arith.constant 0 : index
    %536 = vector.load %arg7[%c0_328, %c0_329] : memref<8x256xf32, #tpu.memory_space<vmem>>, vector<8x128xf32>
    tpu.vector_store %arg7[%c0_328, %c0_329], %529 {strides = array<i32>} : memref<8x256xf32, #tpu.memory_space<vmem>>, vector<8x128xf32>,
    %c1_330 = arith.constant 1 : index
    %c0_331 = arith.constant 0 : index
    %c0_332 = arith.constant 0 : index
    %537 = vector.load %arg5[%c1_330, %c0_331, %c0_332] : memref<2x8x128xf32, #tpu.memory_space<vmem>>, vector<1x8x128xf32>
    %538 = vector.shape_cast %537 : vector<1x8x128xf32> to vector<8x128xf32>
    %c0_333 = arith.constant 0 : index
    %c128_334 = arith.constant 128 : index
    %539 = vector.load %arg7[%c0_333, %c128_334] : memref<8x256xf32, #tpu.memory_space<vmem>>, vector<8x128xf32>
    tpu.vector_store %arg7[%c0_333, %c128_334], %538 {strides = array<i32>} : memref<8x256xf32, #tpu.memory_space<vmem>>, vector<8x128xf32>,
    %c0_335 = arith.constant 0 : index
    %c0_336 = arith.constant 0 : index
    %540 = vector.load %arg7[%c0_335, %c0_336] : memref<8x256xf32, #tpu.memory_space<vmem>>, vector<8x256xf32>
    %c1_337 = arith.constant 1 : index
    %c0_338 = arith.constant 0 : index
    %c0_339 = arith.constant 0 : index
    %541 = vector.load %arg2[%c1_337, %c0_338, %c0_339] : memref<2x256x512xf32, #tpu.memory_space<vmem>>, vector<1x256x512xf32>
    %542 = vector.shape_cast %541 : vector<1x256x512xf32> to vector<256x512xf32>
    %cst_340 = arith.constant dense<0.000000e+00> : vector<8x512xf32>
    %543 = tpu.matmul %540, %542, %cst_340 {dimension_numbers = #tpu.dot_dimension_numbers<[1], [0], [0], [1], [0, 0, 1, 1], [], []>} : vector<8x256xf32>, vector<256x512xf32>, vector<8x512xf32> -> vector<8x512xf32>
    %c1_341 = arith.constant 1 : index
    %c0_342 = arith.constant 0 : index
    %c0_343 = arith.constant 0 : index
    %544 = vector.load %arg3[%c1_341, %c0_342, %c0_343] : memref<2x1x512xf32, #tpu.memory_space<vmem>>, vector<1x1x512xf32>
    %545 = vector.shape_cast %544 : vector<1x1x512xf32> to vector<1x512xf32>
    %546 = vector.broadcast %545 : vector<1x512xf32> to vector<8x512xf32>
    %547 = arith.addf %543, %546 : vector<8x512xf32>
    %548 = vector.extract_strided_slice %547 {offsets = [0, 0], sizes = [8, 128], strides = [1, 1]} : vector<8x512xf32> to vector<8x128xf32>
    %549 = arith.negf %548 : vector<8x128xf32>
    %550 = math.exp %549 : vector<8x128xf32>
    %cst_344 = arith.constant 1.000000e+00 : f32
    %551 = vector.broadcast %cst_344 : f32 to vector<8x128xf32>
    %552 = arith.addf %551, %550 : vector<8x128xf32>
    %553 = arith.divf %551, %552 : vector<8x128xf32>
    %554 = vector.extract_strided_slice %547 {offsets = [0, 128], sizes = [8, 128], strides = [1, 1]} : vector<8x512xf32> to vector<8x128xf32>
    %555 = arith.negf %554 : vector<8x128xf32>
    %556 = math.exp %555 : vector<8x128xf32>
    %cst_345 = arith.constant 1.000000e+00 : f32
    %557 = vector.broadcast %cst_345 : f32 to vector<8x128xf32>
    %558 = arith.addf %557, %556 : vector<8x128xf32>
    %559 = arith.divf %557, %558 : vector<8x128xf32>
    %560 = vector.extract_strided_slice %547 {offsets = [0, 256], sizes = [8, 128], strides = [1, 1]} : vector<8x512xf32> to vector<8x128xf32>
    %561 = math.tanh %560 : vector<8x128xf32>
    %562 = vector.extract_strided_slice %547 {offsets = [0, 384], sizes = [8, 128], strides = [1, 1]} : vector<8x512xf32> to vector<8x128xf32>
    %563 = arith.negf %562 : vector<8x128xf32>
    %564 = math.exp %563 : vector<8x128xf32>
    %cst_346 = arith.constant 1.000000e+00 : f32
    %565 = vector.broadcast %cst_346 : f32 to vector<8x128xf32>
    %566 = arith.addf %565, %564 : vector<8x128xf32>
    %567 = arith.divf %565, %566 : vector<8x128xf32>
    %c1_347 = arith.constant 1 : index
    %c0_348 = arith.constant 0 : index
    %c0_349 = arith.constant 0 : index
    %568 = vector.load %arg6[%c1_347, %c0_348, %c0_349] : memref<2x8x128xf32, #tpu.memory_space<vmem>>, vector<1x8x128xf32>
    %569 = vector.shape_cast %568 : vector<1x8x128xf32> to vector<8x128xf32>
    %570 = arith.mulf %559, %569 : vector<8x128xf32>
    %571 = arith.mulf %553, %561 : vector<8x128xf32>
    %572 = arith.addf %570, %571 : vector<8x128xf32>
    %573 = math.tanh %572 : vector<8x128xf32>
    %574 = arith.mulf %567, %573 : vector<8x128xf32>
    %c1_350 = arith.constant 1 : index
    %c0_351 = arith.constant 0 : index
    %c0_352 = arith.constant 0 : index
    %575 = vector.load %arg6[%c1_350, %c0_351, %c0_352] : memref<2x8x128xf32, #tpu.memory_space<vmem>>, vector<1x8x128xf32>
    %576 = vector.shape_cast %575 : vector<1x8x128xf32> to vector<8x128xf32>
    %577 = vector.shape_cast %572 : vector<8x128xf32> to vector<1x8x128xf32>
    tpu.vector_store %arg6[%c1_350, %c0_351, %c0_352], %577 {strides = array<i32>} : memref<2x8x128xf32, #tpu.memory_space<vmem>>, vector<1x8x128xf32>,
    %c1_353 = arith.constant 1 : index
    %c0_354 = arith.constant 0 : index
    %c0_355 = arith.constant 0 : index
    %578 = vector.load %arg5[%c1_353, %c0_354, %c0_355] : memref<2x8x128xf32, #tpu.memory_space<vmem>>, vector<1x8x128xf32>
    %579 = vector.shape_cast %578 : vector<1x8x128xf32> to vector<8x128xf32>
    %580 = vector.shape_cast %574 : vector<8x128xf32> to vector<1x8x128xf32>
    tpu.vector_store %arg5[%c1_353, %c0_354, %c0_355], %580 {strides = array<i32>} : memref<2x8x128xf32, #tpu.memory_space<vmem>>, vector<1x8x128xf32>,
    %581 = arith.index_cast %c5_i32 : i32 to index
    %c0_356 = arith.constant 0 : index
    %c0_357 = arith.constant 0 : index
    %582 = vector.load %arg4[%581, %c0_356, %c0_357] : memref<9x8x128xf32, #tpu.memory_space<vmem>>, vector<1x8x128xf32>
    %583 = vector.shape_cast %582 : vector<1x8x128xf32> to vector<8x128xf32>
    %584 = vector.shape_cast %574 : vector<8x128xf32> to vector<1x8x128xf32>
    tpu.vector_store %arg4[%581, %c0_356, %c0_357], %584 {strides = array<i32>} : memref<9x8x128xf32, #tpu.memory_space<vmem>>, vector<1x8x128xf32>,
    %c6_i32 = arith.constant 6 : i32
    %585 = arith.index_cast %c6_i32 : i32 to index
    %c0_358 = arith.constant 0 : index
    %c0_359 = arith.constant 0 : index
    %586 = vector.load %arg1[%585, %c0_358, %c0_359] : memref<9x8x128xf32, #tpu.memory_space<vmem>>, vector<1x8x128xf32>
    %587 = vector.shape_cast %586 : vector<1x8x128xf32> to vector<8x128xf32>
    %c0_360 = arith.constant 0 : index
    %c0_361 = arith.constant 0 : index
    %588 = vector.load %arg7[%c0_360, %c0_361] : memref<8x256xf32, #tpu.memory_space<vmem>>, vector<8x128xf32>
    tpu.vector_store %arg7[%c0_360, %c0_361], %587 {strides = array<i32>} : memref<8x256xf32, #tpu.memory_space<vmem>>, vector<8x128xf32>,
    %c0_362 = arith.constant 0 : index
    %c0_363 = arith.constant 0 : index
    %c0_364 = arith.constant 0 : index
    %589 = vector.load %arg5[%c0_362, %c0_363, %c0_364] : memref<2x8x128xf32, #tpu.memory_space<vmem>>, vector<1x8x128xf32>
    %590 = vector.shape_cast %589 : vector<1x8x128xf32> to vector<8x128xf32>
    %c0_365 = arith.constant 0 : index
    %c128_366 = arith.constant 128 : index
    %591 = vector.load %arg7[%c0_365, %c128_366] : memref<8x256xf32, #tpu.memory_space<vmem>>, vector<8x128xf32>
    tpu.vector_store %arg7[%c0_365, %c128_366], %590 {strides = array<i32>} : memref<8x256xf32, #tpu.memory_space<vmem>>, vector<8x128xf32>,
    %c0_367 = arith.constant 0 : index
    %c0_368 = arith.constant 0 : index
    %592 = vector.load %arg7[%c0_367, %c0_368] : memref<8x256xf32, #tpu.memory_space<vmem>>, vector<8x256xf32>
    %c0_369 = arith.constant 0 : index
    %c0_370 = arith.constant 0 : index
    %c0_371 = arith.constant 0 : index
    %593 = vector.load %arg2[%c0_369, %c0_370, %c0_371] : memref<2x256x512xf32, #tpu.memory_space<vmem>>, vector<1x256x512xf32>
    %594 = vector.shape_cast %593 : vector<1x256x512xf32> to vector<256x512xf32>
    %cst_372 = arith.constant dense<0.000000e+00> : vector<8x512xf32>
    %595 = tpu.matmul %592, %594, %cst_372 {dimension_numbers = #tpu.dot_dimension_numbers<[1], [0], [0], [1], [0, 0, 1, 1], [], []>} : vector<8x256xf32>, vector<256x512xf32>, vector<8x512xf32> -> vector<8x512xf32>
    %c0_373 = arith.constant 0 : index
    %c0_374 = arith.constant 0 : index
    %c0_375 = arith.constant 0 : index
    %596 = vector.load %arg3[%c0_373, %c0_374, %c0_375] : memref<2x1x512xf32, #tpu.memory_space<vmem>>, vector<1x1x512xf32>
    %597 = vector.shape_cast %596 : vector<1x1x512xf32> to vector<1x512xf32>
    %598 = vector.broadcast %597 : vector<1x512xf32> to vector<8x512xf32>
    %599 = arith.addf %595, %598 : vector<8x512xf32>
    %600 = vector.extract_strided_slice %599 {offsets = [0, 0], sizes = [8, 128], strides = [1, 1]} : vector<8x512xf32> to vector<8x128xf32>
    %601 = arith.negf %600 : vector<8x128xf32>
    %602 = math.exp %601 : vector<8x128xf32>
    %cst_376 = arith.constant 1.000000e+00 : f32
    %603 = vector.broadcast %cst_376 : f32 to vector<8x128xf32>
    %604 = arith.addf %603, %602 : vector<8x128xf32>
    %605 = arith.divf %603, %604 : vector<8x128xf32>
    %606 = vector.extract_strided_slice %599 {offsets = [0, 128], sizes = [8, 128], strides = [1, 1]} : vector<8x512xf32> to vector<8x128xf32>
    %607 = arith.negf %606 : vector<8x128xf32>
    %608 = math.exp %607 : vector<8x128xf32>
    %cst_377 = arith.constant 1.000000e+00 : f32
    %609 = vector.broadcast %cst_377 : f32 to vector<8x128xf32>
    %610 = arith.addf %609, %608 : vector<8x128xf32>
    %611 = arith.divf %609, %610 : vector<8x128xf32>
    %612 = vector.extract_strided_slice %599 {offsets = [0, 256], sizes = [8, 128], strides = [1, 1]} : vector<8x512xf32> to vector<8x128xf32>
    %613 = math.tanh %612 : vector<8x128xf32>
    %614 = vector.extract_strided_slice %599 {offsets = [0, 384], sizes = [8, 128], strides = [1, 1]} : vector<8x512xf32> to vector<8x128xf32>
    %615 = arith.negf %614 : vector<8x128xf32>
    %616 = math.exp %615 : vector<8x128xf32>
    %cst_378 = arith.constant 1.000000e+00 : f32
    %617 = vector.broadcast %cst_378 : f32 to vector<8x128xf32>
    %618 = arith.addf %617, %616 : vector<8x128xf32>
    %619 = arith.divf %617, %618 : vector<8x128xf32>
    %c0_379 = arith.constant 0 : index
    %c0_380 = arith.constant 0 : index
    %c0_381 = arith.constant 0 : index
    %620 = vector.load %arg6[%c0_379, %c0_380, %c0_381] : memref<2x8x128xf32, #tpu.memory_space<vmem>>, vector<1x8x128xf32>
    %621 = vector.shape_cast %620 : vector<1x8x128xf32> to vector<8x128xf32>
    %622 = arith.mulf %611, %621 : vector<8x128xf32>
    %623 = arith.mulf %605, %613 : vector<8x128xf32>
    %624 = arith.addf %622, %623 : vector<8x128xf32>
    %625 = math.tanh %624 : vector<8x128xf32>
    %626 = arith.mulf %619, %625 : vector<8x128xf32>
    %c0_382 = arith.constant 0 : index
    %c0_383 = arith.constant 0 : index
    %c0_384 = arith.constant 0 : index
    %627 = vector.load %arg6[%c0_382, %c0_383, %c0_384] : memref<2x8x128xf32, #tpu.memory_space<vmem>>, vector<1x8x128xf32>
    %628 = vector.shape_cast %627 : vector<1x8x128xf32> to vector<8x128xf32>
    %629 = vector.shape_cast %624 : vector<8x128xf32> to vector<1x8x128xf32>
    tpu.vector_store %arg6[%c0_382, %c0_383, %c0_384], %629 {strides = array<i32>} : memref<2x8x128xf32, #tpu.memory_space<vmem>>, vector<1x8x128xf32>,
    %c0_385 = arith.constant 0 : index
    %c0_386 = arith.constant 0 : index
    %c0_387 = arith.constant 0 : index
    %630 = vector.load %arg5[%c0_385, %c0_386, %c0_387] : memref<2x8x128xf32, #tpu.memory_space<vmem>>, vector<1x8x128xf32>
    %631 = vector.shape_cast %630 : vector<1x8x128xf32> to vector<8x128xf32>
    %632 = vector.shape_cast %626 : vector<8x128xf32> to vector<1x8x128xf32>
    tpu.vector_store %arg5[%c0_385, %c0_386, %c0_387], %632 {strides = array<i32>} : memref<2x8x128xf32, #tpu.memory_space<vmem>>, vector<1x8x128xf32>,
    %c0_388 = arith.constant 0 : index
    %c0_389 = arith.constant 0 : index
    %633 = vector.load %arg7[%c0_388, %c0_389] : memref<8x256xf32, #tpu.memory_space<vmem>>, vector<8x128xf32>
    tpu.vector_store %arg7[%c0_388, %c0_389], %626 {strides = array<i32>} : memref<8x256xf32, #tpu.memory_space<vmem>>, vector<8x128xf32>,
    %c1_390 = arith.constant 1 : index
    %c0_391 = arith.constant 0 : index
    %c0_392 = arith.constant 0 : index
    %634 = vector.load %arg5[%c1_390, %c0_391, %c0_392] : memref<2x8x128xf32, #tpu.memory_space<vmem>>, vector<1x8x128xf32>
    %635 = vector.shape_cast %634 : vector<1x8x128xf32> to vector<8x128xf32>
    %c0_393 = arith.constant 0 : index
    %c128_394 = arith.constant 128 : index
    %636 = vector.load %arg7[%c0_393, %c128_394] : memref<8x256xf32, #tpu.memory_space<vmem>>, vector<8x128xf32>
    tpu.vector_store %arg7[%c0_393, %c128_394], %635 {strides = array<i32>} : memref<8x256xf32, #tpu.memory_space<vmem>>, vector<8x128xf32>,
    %c0_395 = arith.constant 0 : index
    %c0_396 = arith.constant 0 : index
    %637 = vector.load %arg7[%c0_395, %c0_396] : memref<8x256xf32, #tpu.memory_space<vmem>>, vector<8x256xf32>
    %c1_397 = arith.constant 1 : index
    %c0_398 = arith.constant 0 : index
    %c0_399 = arith.constant 0 : index
    %638 = vector.load %arg2[%c1_397, %c0_398, %c0_399] : memref<2x256x512xf32, #tpu.memory_space<vmem>>, vector<1x256x512xf32>
    %639 = vector.shape_cast %638 : vector<1x256x512xf32> to vector<256x512xf32>
    %cst_400 = arith.constant dense<0.000000e+00> : vector<8x512xf32>
    %640 = tpu.matmul %637, %639, %cst_400 {dimension_numbers = #tpu.dot_dimension_numbers<[1], [0], [0], [1], [0, 0, 1, 1], [], []>} : vector<8x256xf32>, vector<256x512xf32>, vector<8x512xf32> -> vector<8x512xf32>
    %c1_401 = arith.constant 1 : index
    %c0_402 = arith.constant 0 : index
    %c0_403 = arith.constant 0 : index
    %641 = vector.load %arg3[%c1_401, %c0_402, %c0_403] : memref<2x1x512xf32, #tpu.memory_space<vmem>>, vector<1x1x512xf32>
    %642 = vector.shape_cast %641 : vector<1x1x512xf32> to vector<1x512xf32>
    %643 = vector.broadcast %642 : vector<1x512xf32> to vector<8x512xf32>
    %644 = arith.addf %640, %643 : vector<8x512xf32>
    %645 = vector.extract_strided_slice %644 {offsets = [0, 0], sizes = [8, 128], strides = [1, 1]} : vector<8x512xf32> to vector<8x128xf32>
    %646 = arith.negf %645 : vector<8x128xf32>
    %647 = math.exp %646 : vector<8x128xf32>
    %cst_404 = arith.constant 1.000000e+00 : f32
    %648 = vector.broadcast %cst_404 : f32 to vector<8x128xf32>
    %649 = arith.addf %648, %647 : vector<8x128xf32>
    %650 = arith.divf %648, %649 : vector<8x128xf32>
    %651 = vector.extract_strided_slice %644 {offsets = [0, 128], sizes = [8, 128], strides = [1, 1]} : vector<8x512xf32> to vector<8x128xf32>
    %652 = arith.negf %651 : vector<8x128xf32>
    %653 = math.exp %652 : vector<8x128xf32>
    %cst_405 = arith.constant 1.000000e+00 : f32
    %654 = vector.broadcast %cst_405 : f32 to vector<8x128xf32>
    %655 = arith.addf %654, %653 : vector<8x128xf32>
    %656 = arith.divf %654, %655 : vector<8x128xf32>
    %657 = vector.extract_strided_slice %644 {offsets = [0, 256], sizes = [8, 128], strides = [1, 1]} : vector<8x512xf32> to vector<8x128xf32>
    %658 = math.tanh %657 : vector<8x128xf32>
    %659 = vector.extract_strided_slice %644 {offsets = [0, 384], sizes = [8, 128], strides = [1, 1]} : vector<8x512xf32> to vector<8x128xf32>
    %660 = arith.negf %659 : vector<8x128xf32>
    %661 = math.exp %660 : vector<8x128xf32>
    %cst_406 = arith.constant 1.000000e+00 : f32
    %662 = vector.broadcast %cst_406 : f32 to vector<8x128xf32>
    %663 = arith.addf %662, %661 : vector<8x128xf32>
    %664 = arith.divf %662, %663 : vector<8x128xf32>
    %c1_407 = arith.constant 1 : index
    %c0_408 = arith.constant 0 : index
    %c0_409 = arith.constant 0 : index
    %665 = vector.load %arg6[%c1_407, %c0_408, %c0_409] : memref<2x8x128xf32, #tpu.memory_space<vmem>>, vector<1x8x128xf32>
    %666 = vector.shape_cast %665 : vector<1x8x128xf32> to vector<8x128xf32>
    %667 = arith.mulf %656, %666 : vector<8x128xf32>
    %668 = arith.mulf %650, %658 : vector<8x128xf32>
    %669 = arith.addf %667, %668 : vector<8x128xf32>
    %670 = math.tanh %669 : vector<8x128xf32>
    %671 = arith.mulf %664, %670 : vector<8x128xf32>
    %c1_410 = arith.constant 1 : index
    %c0_411 = arith.constant 0 : index
    %c0_412 = arith.constant 0 : index
    %672 = vector.load %arg6[%c1_410, %c0_411, %c0_412] : memref<2x8x128xf32, #tpu.memory_space<vmem>>, vector<1x8x128xf32>
    %673 = vector.shape_cast %672 : vector<1x8x128xf32> to vector<8x128xf32>
    %674 = vector.shape_cast %669 : vector<8x128xf32> to vector<1x8x128xf32>
    tpu.vector_store %arg6[%c1_410, %c0_411, %c0_412], %674 {strides = array<i32>} : memref<2x8x128xf32, #tpu.memory_space<vmem>>, vector<1x8x128xf32>,
    %c1_413 = arith.constant 1 : index
    %c0_414 = arith.constant 0 : index
    %c0_415 = arith.constant 0 : index
    %675 = vector.load %arg5[%c1_413, %c0_414, %c0_415] : memref<2x8x128xf32, #tpu.memory_space<vmem>>, vector<1x8x128xf32>
    %676 = vector.shape_cast %675 : vector<1x8x128xf32> to vector<8x128xf32>
    %677 = vector.shape_cast %671 : vector<8x128xf32> to vector<1x8x128xf32>
    tpu.vector_store %arg5[%c1_413, %c0_414, %c0_415], %677 {strides = array<i32>} : memref<2x8x128xf32, #tpu.memory_space<vmem>>, vector<1x8x128xf32>,
    %678 = arith.index_cast %c6_i32 : i32 to index
    %c0_416 = arith.constant 0 : index
    %c0_417 = arith.constant 0 : index
    %679 = vector.load %arg4[%678, %c0_416, %c0_417] : memref<9x8x128xf32, #tpu.memory_space<vmem>>, vector<1x8x128xf32>
    %680 = vector.shape_cast %679 : vector<1x8x128xf32> to vector<8x128xf32>
    %681 = vector.shape_cast %671 : vector<8x128xf32> to vector<1x8x128xf32>
    tpu.vector_store %arg4[%678, %c0_416, %c0_417], %681 {strides = array<i32>} : memref<9x8x128xf32, #tpu.memory_space<vmem>>, vector<1x8x128xf32>,
    %c7_i32 = arith.constant 7 : i32
    %682 = arith.index_cast %c7_i32 : i32 to index
    %c0_418 = arith.constant 0 : index
    %c0_419 = arith.constant 0 : index
    %683 = vector.load %arg1[%682, %c0_418, %c0_419] : memref<9x8x128xf32, #tpu.memory_space<vmem>>, vector<1x8x128xf32>
    %684 = vector.shape_cast %683 : vector<1x8x128xf32> to vector<8x128xf32>
    %c0_420 = arith.constant 0 : index
    %c0_421 = arith.constant 0 : index
    %685 = vector.load %arg7[%c0_420, %c0_421] : memref<8x256xf32, #tpu.memory_space<vmem>>, vector<8x128xf32>
    tpu.vector_store %arg7[%c0_420, %c0_421], %684 {strides = array<i32>} : memref<8x256xf32, #tpu.memory_space<vmem>>, vector<8x128xf32>,
    %c0_422 = arith.constant 0 : index
    %c0_423 = arith.constant 0 : index
    %c0_424 = arith.constant 0 : index
    %686 = vector.load %arg5[%c0_422, %c0_423, %c0_424] : memref<2x8x128xf32, #tpu.memory_space<vmem>>, vector<1x8x128xf32>
    %687 = vector.shape_cast %686 : vector<1x8x128xf32> to vector<8x128xf32>
    %c0_425 = arith.constant 0 : index
    %c128_426 = arith.constant 128 : index
    %688 = vector.load %arg7[%c0_425, %c128_426] : memref<8x256xf32, #tpu.memory_space<vmem>>, vector<8x128xf32>
    tpu.vector_store %arg7[%c0_425, %c128_426], %687 {strides = array<i32>} : memref<8x256xf32, #tpu.memory_space<vmem>>, vector<8x128xf32>,
    %c0_427 = arith.constant 0 : index
    %c0_428 = arith.constant 0 : index
    %689 = vector.load %arg7[%c0_427, %c0_428] : memref<8x256xf32, #tpu.memory_space<vmem>>, vector<8x256xf32>
    %c0_429 = arith.constant 0 : index
    %c0_430 = arith.constant 0 : index
    %c0_431 = arith.constant 0 : index
    %690 = vector.load %arg2[%c0_429, %c0_430, %c0_431] : memref<2x256x512xf32, #tpu.memory_space<vmem>>, vector<1x256x512xf32>
    %691 = vector.shape_cast %690 : vector<1x256x512xf32> to vector<256x512xf32>
    %cst_432 = arith.constant dense<0.000000e+00> : vector<8x512xf32>
    %692 = tpu.matmul %689, %691, %cst_432 {dimension_numbers = #tpu.dot_dimension_numbers<[1], [0], [0], [1], [0, 0, 1, 1], [], []>} : vector<8x256xf32>, vector<256x512xf32>, vector<8x512xf32> -> vector<8x512xf32>
    %c0_433 = arith.constant 0 : index
    %c0_434 = arith.constant 0 : index
    %c0_435 = arith.constant 0 : index
    %693 = vector.load %arg3[%c0_433, %c0_434, %c0_435] : memref<2x1x512xf32, #tpu.memory_space<vmem>>, vector<1x1x512xf32>
    %694 = vector.shape_cast %693 : vector<1x1x512xf32> to vector<1x512xf32>
    %695 = vector.broadcast %694 : vector<1x512xf32> to vector<8x512xf32>
    %696 = arith.addf %692, %695 : vector<8x512xf32>
    %697 = vector.extract_strided_slice %696 {offsets = [0, 0], sizes = [8, 128], strides = [1, 1]} : vector<8x512xf32> to vector<8x128xf32>
    %698 = arith.negf %697 : vector<8x128xf32>
    %699 = math.exp %698 : vector<8x128xf32>
    %cst_436 = arith.constant 1.000000e+00 : f32
    %700 = vector.broadcast %cst_436 : f32 to vector<8x128xf32>
    %701 = arith.addf %700, %699 : vector<8x128xf32>
    %702 = arith.divf %700, %701 : vector<8x128xf32>
    %703 = vector.extract_strided_slice %696 {offsets = [0, 128], sizes = [8, 128], strides = [1, 1]} : vector<8x512xf32> to vector<8x128xf32>
    %704 = arith.negf %703 : vector<8x128xf32>
    %705 = math.exp %704 : vector<8x128xf32>
    %cst_437 = arith.constant 1.000000e+00 : f32
    %706 = vector.broadcast %cst_437 : f32 to vector<8x128xf32>
    %707 = arith.addf %706, %705 : vector<8x128xf32>
    %708 = arith.divf %706, %707 : vector<8x128xf32>
    %709 = vector.extract_strided_slice %696 {offsets = [0, 256], sizes = [8, 128], strides = [1, 1]} : vector<8x512xf32> to vector<8x128xf32>
    %710 = math.tanh %709 : vector<8x128xf32>
    %711 = vector.extract_strided_slice %696 {offsets = [0, 384], sizes = [8, 128], strides = [1, 1]} : vector<8x512xf32> to vector<8x128xf32>
    %712 = arith.negf %711 : vector<8x128xf32>
    %713 = math.exp %712 : vector<8x128xf32>
    %cst_438 = arith.constant 1.000000e+00 : f32
    %714 = vector.broadcast %cst_438 : f32 to vector<8x128xf32>
    %715 = arith.addf %714, %713 : vector<8x128xf32>
    %716 = arith.divf %714, %715 : vector<8x128xf32>
    %c0_439 = arith.constant 0 : index
    %c0_440 = arith.constant 0 : index
    %c0_441 = arith.constant 0 : index
    %717 = vector.load %arg6[%c0_439, %c0_440, %c0_441] : memref<2x8x128xf32, #tpu.memory_space<vmem>>, vector<1x8x128xf32>
    %718 = vector.shape_cast %717 : vector<1x8x128xf32> to vector<8x128xf32>
    %719 = arith.mulf %708, %718 : vector<8x128xf32>
    %720 = arith.mulf %702, %710 : vector<8x128xf32>
    %721 = arith.addf %719, %720 : vector<8x128xf32>
    %722 = math.tanh %721 : vector<8x128xf32>
    %723 = arith.mulf %716, %722 : vector<8x128xf32>
    %c0_442 = arith.constant 0 : index
    %c0_443 = arith.constant 0 : index
    %c0_444 = arith.constant 0 : index
    %724 = vector.load %arg6[%c0_442, %c0_443, %c0_444] : memref<2x8x128xf32, #tpu.memory_space<vmem>>, vector<1x8x128xf32>
    %725 = vector.shape_cast %724 : vector<1x8x128xf32> to vector<8x128xf32>
    %726 = vector.shape_cast %721 : vector<8x128xf32> to vector<1x8x128xf32>
    tpu.vector_store %arg6[%c0_442, %c0_443, %c0_444], %726 {strides = array<i32>} : memref<2x8x128xf32, #tpu.memory_space<vmem>>, vector<1x8x128xf32>,
    %c0_445 = arith.constant 0 : index
    %c0_446 = arith.constant 0 : index
    %c0_447 = arith.constant 0 : index
    %727 = vector.load %arg5[%c0_445, %c0_446, %c0_447] : memref<2x8x128xf32, #tpu.memory_space<vmem>>, vector<1x8x128xf32>
    %728 = vector.shape_cast %727 : vector<1x8x128xf32> to vector<8x128xf32>
    %729 = vector.shape_cast %723 : vector<8x128xf32> to vector<1x8x128xf32>
    tpu.vector_store %arg5[%c0_445, %c0_446, %c0_447], %729 {strides = array<i32>} : memref<2x8x128xf32, #tpu.memory_space<vmem>>, vector<1x8x128xf32>,
    %c0_448 = arith.constant 0 : index
    %c0_449 = arith.constant 0 : index
    %730 = vector.load %arg7[%c0_448, %c0_449] : memref<8x256xf32, #tpu.memory_space<vmem>>, vector<8x128xf32>
    tpu.vector_store %arg7[%c0_448, %c0_449], %723 {strides = array<i32>} : memref<8x256xf32, #tpu.memory_space<vmem>>, vector<8x128xf32>,
    %c1_450 = arith.constant 1 : index
    %c0_451 = arith.constant 0 : index
    %c0_452 = arith.constant 0 : index
    %731 = vector.load %arg5[%c1_450, %c0_451, %c0_452] : memref<2x8x128xf32, #tpu.memory_space<vmem>>, vector<1x8x128xf32>
    %732 = vector.shape_cast %731 : vector<1x8x128xf32> to vector<8x128xf32>
    %c0_453 = arith.constant 0 : index
    %c128_454 = arith.constant 128 : index
    %733 = vector.load %arg7[%c0_453, %c128_454] : memref<8x256xf32, #tpu.memory_space<vmem>>, vector<8x128xf32>
    tpu.vector_store %arg7[%c0_453, %c128_454], %732 {strides = array<i32>} : memref<8x256xf32, #tpu.memory_space<vmem>>, vector<8x128xf32>,
    %c0_455 = arith.constant 0 : index
    %c0_456 = arith.constant 0 : index
    %734 = vector.load %arg7[%c0_455, %c0_456] : memref<8x256xf32, #tpu.memory_space<vmem>>, vector<8x256xf32>
    %c1_457 = arith.constant 1 : index
    %c0_458 = arith.constant 0 : index
    %c0_459 = arith.constant 0 : index
    %735 = vector.load %arg2[%c1_457, %c0_458, %c0_459] : memref<2x256x512xf32, #tpu.memory_space<vmem>>, vector<1x256x512xf32>
    %736 = vector.shape_cast %735 : vector<1x256x512xf32> to vector<256x512xf32>
    %cst_460 = arith.constant dense<0.000000e+00> : vector<8x512xf32>
    %737 = tpu.matmul %734, %736, %cst_460 {dimension_numbers = #tpu.dot_dimension_numbers<[1], [0], [0], [1], [0, 0, 1, 1], [], []>} : vector<8x256xf32>, vector<256x512xf32>, vector<8x512xf32> -> vector<8x512xf32>
    %c1_461 = arith.constant 1 : index
    %c0_462 = arith.constant 0 : index
    %c0_463 = arith.constant 0 : index
    %738 = vector.load %arg3[%c1_461, %c0_462, %c0_463] : memref<2x1x512xf32, #tpu.memory_space<vmem>>, vector<1x1x512xf32>
    %739 = vector.shape_cast %738 : vector<1x1x512xf32> to vector<1x512xf32>
    %740 = vector.broadcast %739 : vector<1x512xf32> to vector<8x512xf32>
    %741 = arith.addf %737, %740 : vector<8x512xf32>
    %742 = vector.extract_strided_slice %741 {offsets = [0, 0], sizes = [8, 128], strides = [1, 1]} : vector<8x512xf32> to vector<8x128xf32>
    %743 = arith.negf %742 : vector<8x128xf32>
    %744 = math.exp %743 : vector<8x128xf32>
    %cst_464 = arith.constant 1.000000e+00 : f32
    %745 = vector.broadcast %cst_464 : f32 to vector<8x128xf32>
    %746 = arith.addf %745, %744 : vector<8x128xf32>
    %747 = arith.divf %745, %746 : vector<8x128xf32>
    %748 = vector.extract_strided_slice %741 {offsets = [0, 128], sizes = [8, 128], strides = [1, 1]} : vector<8x512xf32> to vector<8x128xf32>
    %749 = arith.negf %748 : vector<8x128xf32>
    %750 = math.exp %749 : vector<8x128xf32>
    %cst_465 = arith.constant 1.000000e+00 : f32
    %751 = vector.broadcast %cst_465 : f32 to vector<8x128xf32>
    %752 = arith.addf %751, %750 : vector<8x128xf32>
    %753 = arith.divf %751, %752 : vector<8x128xf32>
    %754 = vector.extract_strided_slice %741 {offsets = [0, 256], sizes = [8, 128], strides = [1, 1]} : vector<8x512xf32> to vector<8x128xf32>
    %755 = math.tanh %754 : vector<8x128xf32>
    %756 = vector.extract_strided_slice %741 {offsets = [0, 384], sizes = [8, 128], strides = [1, 1]} : vector<8x512xf32> to vector<8x128xf32>
    %757 = arith.negf %756 : vector<8x128xf32>
    %758 = math.exp %757 : vector<8x128xf32>
    %cst_466 = arith.constant 1.000000e+00 : f32
    %759 = vector.broadcast %cst_466 : f32 to vector<8x128xf32>
    %760 = arith.addf %759, %758 : vector<8x128xf32>
    %761 = arith.divf %759, %760 : vector<8x128xf32>
    %c1_467 = arith.constant 1 : index
    %c0_468 = arith.constant 0 : index
    %c0_469 = arith.constant 0 : index
    %762 = vector.load %arg6[%c1_467, %c0_468, %c0_469] : memref<2x8x128xf32, #tpu.memory_space<vmem>>, vector<1x8x128xf32>
    %763 = vector.shape_cast %762 : vector<1x8x128xf32> to vector<8x128xf32>
    %764 = arith.mulf %753, %763 : vector<8x128xf32>
    %765 = arith.mulf %747, %755 : vector<8x128xf32>
    %766 = arith.addf %764, %765 : vector<8x128xf32>
    %767 = math.tanh %766 : vector<8x128xf32>
    %768 = arith.mulf %761, %767 : vector<8x128xf32>
    %c1_470 = arith.constant 1 : index
    %c0_471 = arith.constant 0 : index
    %c0_472 = arith.constant 0 : index
    %769 = vector.load %arg6[%c1_470, %c0_471, %c0_472] : memref<2x8x128xf32, #tpu.memory_space<vmem>>, vector<1x8x128xf32>
    %770 = vector.shape_cast %769 : vector<1x8x128xf32> to vector<8x128xf32>
    %771 = vector.shape_cast %766 : vector<8x128xf32> to vector<1x8x128xf32>
    tpu.vector_store %arg6[%c1_470, %c0_471, %c0_472], %771 {strides = array<i32>} : memref<2x8x128xf32, #tpu.memory_space<vmem>>, vector<1x8x128xf32>,
    %c1_473 = arith.constant 1 : index
    %c0_474 = arith.constant 0 : index
    %c0_475 = arith.constant 0 : index
    %772 = vector.load %arg5[%c1_473, %c0_474, %c0_475] : memref<2x8x128xf32, #tpu.memory_space<vmem>>, vector<1x8x128xf32>
    %773 = vector.shape_cast %772 : vector<1x8x128xf32> to vector<8x128xf32>
    %774 = vector.shape_cast %768 : vector<8x128xf32> to vector<1x8x128xf32>
    tpu.vector_store %arg5[%c1_473, %c0_474, %c0_475], %774 {strides = array<i32>} : memref<2x8x128xf32, #tpu.memory_space<vmem>>, vector<1x8x128xf32>,
    %775 = arith.index_cast %c7_i32 : i32 to index
    %c0_476 = arith.constant 0 : index
    %c0_477 = arith.constant 0 : index
    %776 = vector.load %arg4[%775, %c0_476, %c0_477] : memref<9x8x128xf32, #tpu.memory_space<vmem>>, vector<1x8x128xf32>
    %777 = vector.shape_cast %776 : vector<1x8x128xf32> to vector<8x128xf32>
    %778 = vector.shape_cast %768 : vector<8x128xf32> to vector<1x8x128xf32>
    tpu.vector_store %arg4[%775, %c0_476, %c0_477], %778 {strides = array<i32>} : memref<9x8x128xf32, #tpu.memory_space<vmem>>, vector<1x8x128xf32>,
    %c8_i32 = arith.constant 8 : i32
    %779 = arith.index_cast %c8_i32 : i32 to index
    %c0_478 = arith.constant 0 : index
    %c0_479 = arith.constant 0 : index
    %780 = vector.load %arg1[%779, %c0_478, %c0_479] : memref<9x8x128xf32, #tpu.memory_space<vmem>>, vector<1x8x128xf32>
    %781 = vector.shape_cast %780 : vector<1x8x128xf32> to vector<8x128xf32>
    %c0_480 = arith.constant 0 : index
    %c0_481 = arith.constant 0 : index
    %782 = vector.load %arg7[%c0_480, %c0_481] : memref<8x256xf32, #tpu.memory_space<vmem>>, vector<8x128xf32>
    tpu.vector_store %arg7[%c0_480, %c0_481], %781 {strides = array<i32>} : memref<8x256xf32, #tpu.memory_space<vmem>>, vector<8x128xf32>,
    %c0_482 = arith.constant 0 : index
    %c0_483 = arith.constant 0 : index
    %c0_484 = arith.constant 0 : index
    %783 = vector.load %arg5[%c0_482, %c0_483, %c0_484] : memref<2x8x128xf32, #tpu.memory_space<vmem>>, vector<1x8x128xf32>
    %784 = vector.shape_cast %783 : vector<1x8x128xf32> to vector<8x128xf32>
    %c0_485 = arith.constant 0 : index
    %c128_486 = arith.constant 128 : index
    %785 = vector.load %arg7[%c0_485, %c128_486] : memref<8x256xf32, #tpu.memory_space<vmem>>, vector<8x128xf32>
    tpu.vector_store %arg7[%c0_485, %c128_486], %784 {strides = array<i32>} : memref<8x256xf32, #tpu.memory_space<vmem>>, vector<8x128xf32>,
    %c0_487 = arith.constant 0 : index
    %c0_488 = arith.constant 0 : index
    %786 = vector.load %arg7[%c0_487, %c0_488] : memref<8x256xf32, #tpu.memory_space<vmem>>, vector<8x256xf32>
    %c0_489 = arith.constant 0 : index
    %c0_490 = arith.constant 0 : index
    %c0_491 = arith.constant 0 : index
    %787 = vector.load %arg2[%c0_489, %c0_490, %c0_491] : memref<2x256x512xf32, #tpu.memory_space<vmem>>, vector<1x256x512xf32>
    %788 = vector.shape_cast %787 : vector<1x256x512xf32> to vector<256x512xf32>
    %cst_492 = arith.constant dense<0.000000e+00> : vector<8x512xf32>
    %789 = tpu.matmul %786, %788, %cst_492 {dimension_numbers = #tpu.dot_dimension_numbers<[1], [0], [0], [1], [0, 0, 1, 1], [], []>} : vector<8x256xf32>, vector<256x512xf32>, vector<8x512xf32> -> vector<8x512xf32>
    %c0_493 = arith.constant 0 : index
    %c0_494 = arith.constant 0 : index
    %c0_495 = arith.constant 0 : index
    %790 = vector.load %arg3[%c0_493, %c0_494, %c0_495] : memref<2x1x512xf32, #tpu.memory_space<vmem>>, vector<1x1x512xf32>
    %791 = vector.shape_cast %790 : vector<1x1x512xf32> to vector<1x512xf32>
    %792 = vector.broadcast %791 : vector<1x512xf32> to vector<8x512xf32>
    %793 = arith.addf %789, %792 : vector<8x512xf32>
    %794 = vector.extract_strided_slice %793 {offsets = [0, 0], sizes = [8, 128], strides = [1, 1]} : vector<8x512xf32> to vector<8x128xf32>
    %795 = arith.negf %794 : vector<8x128xf32>
    %796 = math.exp %795 : vector<8x128xf32>
    %cst_496 = arith.constant 1.000000e+00 : f32
    %797 = vector.broadcast %cst_496 : f32 to vector<8x128xf32>
    %798 = arith.addf %797, %796 : vector<8x128xf32>
    %799 = arith.divf %797, %798 : vector<8x128xf32>
    %800 = vector.extract_strided_slice %793 {offsets = [0, 128], sizes = [8, 128], strides = [1, 1]} : vector<8x512xf32> to vector<8x128xf32>
    %801 = arith.negf %800 : vector<8x128xf32>
    %802 = math.exp %801 : vector<8x128xf32>
    %cst_497 = arith.constant 1.000000e+00 : f32
    %803 = vector.broadcast %cst_497 : f32 to vector<8x128xf32>
    %804 = arith.addf %803, %802 : vector<8x128xf32>
    %805 = arith.divf %803, %804 : vector<8x128xf32>
    %806 = vector.extract_strided_slice %793 {offsets = [0, 256], sizes = [8, 128], strides = [1, 1]} : vector<8x512xf32> to vector<8x128xf32>
    %807 = math.tanh %806 : vector<8x128xf32>
    %808 = vector.extract_strided_slice %793 {offsets = [0, 384], sizes = [8, 128], strides = [1, 1]} : vector<8x512xf32> to vector<8x128xf32>
    %809 = arith.negf %808 : vector<8x128xf32>
    %810 = math.exp %809 : vector<8x128xf32>
    %cst_498 = arith.constant 1.000000e+00 : f32
    %811 = vector.broadcast %cst_498 : f32 to vector<8x128xf32>
    %812 = arith.addf %811, %810 : vector<8x128xf32>
    %813 = arith.divf %811, %812 : vector<8x128xf32>
    %c0_499 = arith.constant 0 : index
    %c0_500 = arith.constant 0 : index
    %c0_501 = arith.constant 0 : index
    %814 = vector.load %arg6[%c0_499, %c0_500, %c0_501] : memref<2x8x128xf32, #tpu.memory_space<vmem>>, vector<1x8x128xf32>
    %815 = vector.shape_cast %814 : vector<1x8x128xf32> to vector<8x128xf32>
    %816 = arith.mulf %805, %815 : vector<8x128xf32>
    %817 = arith.mulf %799, %807 : vector<8x128xf32>
    %818 = arith.addf %816, %817 : vector<8x128xf32>
    %819 = math.tanh %818 : vector<8x128xf32>
    %820 = arith.mulf %813, %819 : vector<8x128xf32>
    %c0_502 = arith.constant 0 : index
    %c0_503 = arith.constant 0 : index
    %c0_504 = arith.constant 0 : index
    %821 = vector.load %arg6[%c0_502, %c0_503, %c0_504] : memref<2x8x128xf32, #tpu.memory_space<vmem>>, vector<1x8x128xf32>
    %822 = vector.shape_cast %821 : vector<1x8x128xf32> to vector<8x128xf32>
    %823 = vector.shape_cast %818 : vector<8x128xf32> to vector<1x8x128xf32>
    tpu.vector_store %arg6[%c0_502, %c0_503, %c0_504], %823 {strides = array<i32>} : memref<2x8x128xf32, #tpu.memory_space<vmem>>, vector<1x8x128xf32>,
    %c0_505 = arith.constant 0 : index
    %c0_506 = arith.constant 0 : index
    %c0_507 = arith.constant 0 : index
    %824 = vector.load %arg5[%c0_505, %c0_506, %c0_507] : memref<2x8x128xf32, #tpu.memory_space<vmem>>, vector<1x8x128xf32>
    %825 = vector.shape_cast %824 : vector<1x8x128xf32> to vector<8x128xf32>
    %826 = vector.shape_cast %820 : vector<8x128xf32> to vector<1x8x128xf32>
    tpu.vector_store %arg5[%c0_505, %c0_506, %c0_507], %826 {strides = array<i32>} : memref<2x8x128xf32, #tpu.memory_space<vmem>>, vector<1x8x128xf32>,
    %c0_508 = arith.constant 0 : index
    %c0_509 = arith.constant 0 : index
    %827 = vector.load %arg7[%c0_508, %c0_509] : memref<8x256xf32, #tpu.memory_space<vmem>>, vector<8x128xf32>
    tpu.vector_store %arg7[%c0_508, %c0_509], %820 {strides = array<i32>} : memref<8x256xf32, #tpu.memory_space<vmem>>, vector<8x128xf32>,
    %c1_510 = arith.constant 1 : index
    %c0_511 = arith.constant 0 : index
    %c0_512 = arith.constant 0 : index
    %828 = vector.load %arg5[%c1_510, %c0_511, %c0_512] : memref<2x8x128xf32, #tpu.memory_space<vmem>>, vector<1x8x128xf32>
    %829 = vector.shape_cast %828 : vector<1x8x128xf32> to vector<8x128xf32>
    %c0_513 = arith.constant 0 : index
    %c128_514 = arith.constant 128 : index
    %830 = vector.load %arg7[%c0_513, %c128_514] : memref<8x256xf32, #tpu.memory_space<vmem>>, vector<8x128xf32>
    tpu.vector_store %arg7[%c0_513, %c128_514], %829 {strides = array<i32>} : memref<8x256xf32, #tpu.memory_space<vmem>>, vector<8x128xf32>,
    %c0_515 = arith.constant 0 : index
    %c0_516 = arith.constant 0 : index
    %831 = vector.load %arg7[%c0_515, %c0_516] : memref<8x256xf32, #tpu.memory_space<vmem>>, vector<8x256xf32>
    %c1_517 = arith.constant 1 : index
    %c0_518 = arith.constant 0 : index
    %c0_519 = arith.constant 0 : index
    %832 = vector.load %arg2[%c1_517, %c0_518, %c0_519] : memref<2x256x512xf32, #tpu.memory_space<vmem>>, vector<1x256x512xf32>
    %833 = vector.shape_cast %832 : vector<1x256x512xf32> to vector<256x512xf32>
    %cst_520 = arith.constant dense<0.000000e+00> : vector<8x512xf32>
    %834 = tpu.matmul %831, %833, %cst_520 {dimension_numbers = #tpu.dot_dimension_numbers<[1], [0], [0], [1], [0, 0, 1, 1], [], []>} : vector<8x256xf32>, vector<256x512xf32>, vector<8x512xf32> -> vector<8x512xf32>
    %c1_521 = arith.constant 1 : index
    %c0_522 = arith.constant 0 : index
    %c0_523 = arith.constant 0 : index
    %835 = vector.load %arg3[%c1_521, %c0_522, %c0_523] : memref<2x1x512xf32, #tpu.memory_space<vmem>>, vector<1x1x512xf32>
    %836 = vector.shape_cast %835 : vector<1x1x512xf32> to vector<1x512xf32>
    %837 = vector.broadcast %836 : vector<1x512xf32> to vector<8x512xf32>
    %838 = arith.addf %834, %837 : vector<8x512xf32>
    %839 = vector.extract_strided_slice %838 {offsets = [0, 0], sizes = [8, 128], strides = [1, 1]} : vector<8x512xf32> to vector<8x128xf32>
    %840 = arith.negf %839 : vector<8x128xf32>
    %841 = math.exp %840 : vector<8x128xf32>
    %cst_524 = arith.constant 1.000000e+00 : f32
    %842 = vector.broadcast %cst_524 : f32 to vector<8x128xf32>
    %843 = arith.addf %842, %841 : vector<8x128xf32>
    %844 = arith.divf %842, %843 : vector<8x128xf32>
    %845 = vector.extract_strided_slice %838 {offsets = [0, 128], sizes = [8, 128], strides = [1, 1]} : vector<8x512xf32> to vector<8x128xf32>
    %846 = arith.negf %845 : vector<8x128xf32>
    %847 = math.exp %846 : vector<8x128xf32>
    %cst_525 = arith.constant 1.000000e+00 : f32
    %848 = vector.broadcast %cst_525 : f32 to vector<8x128xf32>
    %849 = arith.addf %848, %847 : vector<8x128xf32>
    %850 = arith.divf %848, %849 : vector<8x128xf32>
    %851 = vector.extract_strided_slice %838 {offsets = [0, 256], sizes = [8, 128], strides = [1, 1]} : vector<8x512xf32> to vector<8x128xf32>
    %852 = math.tanh %851 : vector<8x128xf32>
    %853 = vector.extract_strided_slice %838 {offsets = [0, 384], sizes = [8, 128], strides = [1, 1]} : vector<8x512xf32> to vector<8x128xf32>
    %854 = arith.negf %853 : vector<8x128xf32>
    %855 = math.exp %854 : vector<8x128xf32>
    %cst_526 = arith.constant 1.000000e+00 : f32
    %856 = vector.broadcast %cst_526 : f32 to vector<8x128xf32>
    %857 = arith.addf %856, %855 : vector<8x128xf32>
    %858 = arith.divf %856, %857 : vector<8x128xf32>
    %c1_527 = arith.constant 1 : index
    %c0_528 = arith.constant 0 : index
    %c0_529 = arith.constant 0 : index
    %859 = vector.load %arg6[%c1_527, %c0_528, %c0_529] : memref<2x8x128xf32, #tpu.memory_space<vmem>>, vector<1x8x128xf32>
    %860 = vector.shape_cast %859 : vector<1x8x128xf32> to vector<8x128xf32>
    %861 = arith.mulf %850, %860 : vector<8x128xf32>
    %862 = arith.mulf %844, %852 : vector<8x128xf32>
    %863 = arith.addf %861, %862 : vector<8x128xf32>
    %864 = math.tanh %863 : vector<8x128xf32>
    %865 = arith.mulf %858, %864 : vector<8x128xf32>
    %c1_530 = arith.constant 1 : index
    %c0_531 = arith.constant 0 : index
    %c0_532 = arith.constant 0 : index
    %866 = vector.load %arg6[%c1_530, %c0_531, %c0_532] : memref<2x8x128xf32, #tpu.memory_space<vmem>>, vector<1x8x128xf32>
    %867 = vector.shape_cast %866 : vector<1x8x128xf32> to vector<8x128xf32>
    %868 = vector.shape_cast %863 : vector<8x128xf32> to vector<1x8x128xf32>
    tpu.vector_store %arg6[%c1_530, %c0_531, %c0_532], %868 {strides = array<i32>} : memref<2x8x128xf32, #tpu.memory_space<vmem>>, vector<1x8x128xf32>,
    %c1_533 = arith.constant 1 : index
    %c0_534 = arith.constant 0 : index
    %c0_535 = arith.constant 0 : index
    %869 = vector.load %arg5[%c1_533, %c0_534, %c0_535] : memref<2x8x128xf32, #tpu.memory_space<vmem>>, vector<1x8x128xf32>
    %870 = vector.shape_cast %869 : vector<1x8x128xf32> to vector<8x128xf32>
    %871 = vector.shape_cast %865 : vector<8x128xf32> to vector<1x8x128xf32>
    tpu.vector_store %arg5[%c1_533, %c0_534, %c0_535], %871 {strides = array<i32>} : memref<2x8x128xf32, #tpu.memory_space<vmem>>, vector<1x8x128xf32>,
    %872 = arith.index_cast %c8_i32 : i32 to index
    %c0_536 = arith.constant 0 : index
    %c0_537 = arith.constant 0 : index
    %873 = vector.load %arg4[%872, %c0_536, %c0_537] : memref<9x8x128xf32, #tpu.memory_space<vmem>>, vector<1x8x128xf32>
    %874 = vector.shape_cast %873 : vector<1x8x128xf32> to vector<8x128xf32>
    %875 = vector.shape_cast %865 : vector<8x128xf32> to vector<1x8x128xf32>
    tpu.vector_store %arg4[%872, %c0_536, %c0_537], %875 {strides = array<i32>} : memref<9x8x128xf32, #tpu.memory_space<vmem>>, vector<1x8x128xf32>,
    %c9_i32 = arith.constant 9 : i32
    return
  }
  func.func @transform_0(%arg0: i32) -> (i32, i32, i32) {
    %c0_i32 = arith.constant 0 : i32
    %c0_i32_0 = arith.constant 0 : i32
    %c0_i32_1 = arith.constant 0 : i32
    return %arg0, %c0_i32, %c0_i32_0 : i32, i32, i32
  }
  func.func @transform_1(%arg0: i32) -> (i32, i32, i32) {
    %c0_i32 = arith.constant 0 : i32
    %c0_i32_0 = arith.constant 0 : i32
    %c0_i32_1 = arith.constant 0 : i32
    %c0_i32_2 = arith.constant 0 : i32
    return %c0_i32, %c0_i32_0, %c0_i32_1 : i32, i32, i32
  }
  func.func @transform_2(%arg0: i32) -> (i32, i32, i32) {
    %c0_i32 = arith.constant 0 : i32
    %c0_i32_0 = arith.constant 0 : i32
    %c0_i32_1 = arith.constant 0 : i32
    %c0_i32_2 = arith.constant 0 : i32
    return %c0_i32, %c0_i32_0, %c0_i32_1 : i32, i32, i32
  }
  func.func @transform_3(%arg0: i32) -> (i32, i32, i32) {
    %c0_i32 = arith.constant 0 : i32
    %c0_i32_0 = arith.constant 0 : i32
    %c0_i32_1 = arith.constant 0 : i32
    return %arg0, %c0_i32, %c0_i32_0 : i32, i32, i32
  }
}

</mosaic_0001>

<llo_original>
// kernel: tpu_custom_call.1
$region0: #{tpu_custom_call.1}
  #allocation0 [shape = 'u32[]', space=smem, size = 0x4, offset = 0x4, fixed_abs, tag = 'smem constant byte address 0x4 - core index']
  #allocation1 [shape = 'u32[144,128]{1,0:T(1,128)}', space=vmem, size = 0x12000, scoped, tag = 'internal scratch']
  #allocation2 [shape = 'f32[2,8,128]{2,1,0:T(8,128)}', space=vmem, size = 0x2000, scoped, tag = 'scratch operand']
  #allocation3 [shape = 'f32[2,8,128]{2,1,0:T(8,128)}', space=vmem, size = 0x2000, scoped, tag = 'scratch operand']
  #allocation4 [shape = 'f32[8,256]{1,0:T(8,128)}', space=vmem, size = 0x2000, scoped, tag = 'scratch operand']
  %s0 = inlined_call_operand.hbm [shape: f32[9,8,128], index: 0, kind: input, shape index: {}]
  %s1 = inlined_call_operand.hbm [shape: f32[2,256,512], index: 1, kind: input, shape index: {}]
  %s2 = inlined_call_operand.hbm [shape: f32[2,1,512], index: 2, kind: input, shape index: {}]
  %s3 = inlined_call_operand.hbm [shape: f32[9,8,128], index: 3, kind: output, shape index: {}]
  %s4 = sld [smem:[#allocation0]]
  $region38: #{tpu_custom_call.1} parent=0
    _
  %s6 = ssub.s32 1, %s4
  %s7 = scalar_select 0, %s6, %s4
  $region1: #{tpu_custom_call.1} parent=0
    #allocation5 [shape = 'u8[36864]{0}', space=vmem, size = 0x9000, scoped, tag = 'input window, operand 0, single buffered']
    #allocation6 [shape = 's32[1]{0}', space=sflag, size = 0x4, scoped, tag = 'scoped memory for tpu_custom_call.1']
    #allocation7 [shape = 's32[1]{0}', space=sflag, size = 0x4, scoped, tag = 'scoped memory for tpu_custom_call.1']
    #allocation8 [shape = 'u8[1048576]{0}', space=vmem, size = 0x100000, scoped, tag = 'input window, operand 1, single buffered']
    #allocation9 [shape = 's32[1]{0}', space=sflag, size = 0x4, scoped, tag = 'scoped memory for tpu_custom_call.1']
    #allocation10 [shape = 'u8[4096]{0}', space=vmem, size = 0x1000, scoped, tag = 'input window, operand 2, single buffered']
    #allocation11 [shape = 'u8[36864]{0}', space=vmem, size = 0x9000, scoped, tag = 'output window, operand 0, single buffered']
    %8 = vsyncpa [#allocation6], 0
    %9 = vsyncpa [#allocation9], 0
    %10 = vsyncpa [#allocation7], 0
    // Predicated region
    $region2: #{tpu_custom_call.1} parent=1 // pred_check
      _
    $region3: #{tpu_custom_call.1} parent=1 // pred_check_branch
      %12 = sbr.rel (0) target = $region5
    $region4: #{tpu_custom_call.1} parent=1 // pred_region
      %s14 = ssub.s32 1152, 1152
      %15 = vsyncadd [#allocation6], %s14
      %s16 = sshll.u32 [#allocation5], 4
      %s17 = int_to_ptr.vmem [resolvable:$true] %s16
      %22 = dma.hbm_to_vmem [thread:$0]  %s0, 1152, %s17, [#allocation6], 128, 128, 8
    $region5: #{tpu_custom_call.1} parent=1 // pred_fallthru
      _
    // Predicated region
    $region6: #{tpu_custom_call.1} parent=1 // pred_check
      _
    $region7: #{tpu_custom_call.1} parent=1 // pred_check_branch
      %24 = sbr.rel (0) target = $region9
    $region8: #{tpu_custom_call.1} parent=1 // pred_region
      %s26 = ssub.s32 32768, 32768
      %27 = vsyncadd [#allocation9], %s26
      %s28 = sshll.u32 [#allocation8], 4
      %s29 = int_to_ptr.vmem [resolvable:$true] %s28
      %34 = dma.hbm_to_vmem [thread:$0]  %s1, 32768, %s29, [#allocation9], 512, 512, 32
    $region9: #{tpu_custom_call.1} parent=1 // pred_fallthru
      _
    // Predicated region
    $region10: #{tpu_custom_call.1} parent=1 // pred_check
      _
    $region11: #{tpu_custom_call.1} parent=1 // pred_check_branch
      %36 = sbr.rel (0) target = $region13
    $region12: #{tpu_custom_call.1} parent=1 // pred_region
      %s38 = ssub.s32 128, 128
      %39 = vsyncadd [#allocation9], %s38
      %s40 = sshll.u32 [#allocation10], 4
      %s41 = int_to_ptr.vmem [resolvable:$true] %s40
      %46 = dma.hbm_to_vmem [thread:$0]  %s2, 128, %s41, [#allocation9], 64, 64, 4
    $region13: #{tpu_custom_call.1} parent=1 // pred_fallthru
      _
    // Predicated region
    $region14: #{tpu_custom_call.1} parent=1 // pred_check
      _
    $region15: #{tpu_custom_call.1} parent=1 // pred_check_branch
      %48 = sbr.rel (0) target = $region17
    $region16: #{tpu_custom_call.1} parent=1 // pred_region
      %49 = dma.done [#allocation6], 1152
    $region17: #{tpu_custom_call.1} parent=1 // pred_fallthru
      _
    // Predicated region
    $region18: #{tpu_custom_call.1} parent=1 // pred_check
      _
    $region19: #{tpu_custom_call.1} parent=1 // pred_check_branch
      %51 = sbr.rel (0) target = $region21
    $region20: #{tpu_custom_call.1} parent=1 // pred_region
      %52 = dma.done [#allocation9], 32768
    $region21: #{tpu_custom_call.1} parent=1 // pred_fallthru
      _
    // Predicated region
    $region22: #{tpu_custom_call.1} parent=1 // pred_check
      _
    $region23: #{tpu_custom_call.1} parent=1 // pred_check_branch
      %54 = sbr.rel (0) target = $region25
    $region24: #{tpu_custom_call.1} parent=1 // pred_region
      %55 = dma.done [#allocation9], 128
    $region25: #{tpu_custom_call.1} parent=1 // pred_fallthru
      _
    %p56 = scmp.eq.s32.totalorder 0, 0
    // Predicated region
    $region26: #{tpu_custom_call.1} parent=1 // pred_check
      %p57 = pneg %p56
    $region27: #{tpu_custom_call.1} parent=1 // pred_check_branch
      %59 = sbr.rel (%p57) target = $region29
    $region28: #{tpu_custom_call.1} parent=1 // pred_region
      %60 = vst [vmem:[#allocation2] sm:$0xff] 0.0
      %61 = vst [vmem:[#allocation2 + $0x8] sm:$0xff] 0.0
      %62 = vst [vmem:[#allocation3] sm:$0xff] 0.0
      %63 = vst [vmem:[#allocation3 + $0x8] sm:$0xff] 0.0
    $region29: #{tpu_custom_call.1} parent=1 // pred_fallthru
      _
    %v64 = vld [vmem:[#allocation5] sm:$0xff]
    %65 = vst [vmem:[#allocation4] sm:$0xff] %v64
    %v66 = vld [vmem:[#allocation2] sm:$0xff]
    %67 = vst [vmem:[#allocation4 + $0x8] sm:$0xff] %v66
    %v68 = vld [vmem:[#allocation4] sm:$0xff]
    %v69 = vld [vmem:[#allocation4 + $0x8] sm:$0xff]
    %v70 = vld [vmem:[#allocation8] sm:$0xff]
    %v71 = vld [vmem:[#allocation8 + $0x8] sm:$0xff]
    %v72 = vld [vmem:[#allocation8 + $0x10] sm:$0xff]
    %v73 = vld [vmem:[#allocation8 + $0x18] sm:$0xff]
    %v74 = vld [vmem:[#allocation8 + $0x20] sm:$0xff]
    %v75 = vld [vmem:[#allocation8 + $0x28] sm:$0xff]
    %v76 = vld [vmem:[#allocation8 + $0x30] sm:$0xff]
    %v77 = vld [vmem:[#allocation8 + $0x38] sm:$0xff]
    %v78 = vld [vmem:[#allocation8 + $0x40] sm:$0xff]
    %v79 = vld [vmem:[#allocation8 + $0x48] sm:$0xff]
    %v80 = vld [vmem:[#allocation8 + $0x50] sm:$0xff]
    %v81 = vld [vmem:[#allocation8 + $0x58] sm:$0xff]
    %v82 = vld [vmem:[#allocation8 + $0x60] sm:$0xff]
    %v83 = vld [vmem:[#allocation8 + $0x68] sm:$0xff]
    %v84 = vld [vmem:[#allocation8 + $0x70] sm:$0xff]
    %v85 = vld [vmem:[#allocation8 + $0x78] sm:$0xff]
    %v86 = vld [vmem:[#allocation8 + $0x80] sm:$0xff]
    %v87 = vld [vmem:[#allocation8 + $0x88] sm:$0xff]
    %v88 = vld [vmem:[#allocation8 + $0x90] sm:$0xff]
    %v89 = vld [vmem:[#allocation8 + $0x98] sm:$0xff]
    %v90 = vld [vmem:[#allocation8 + $0xa0] sm:$0xff]
    %v91 = vld [vmem:[#allocation8 + $0xa8] sm:$0xff]
    %v92 = vld [vmem:[#allocation8 + $0xb0] sm:$0xff]
    %v93 = vld [vmem:[#allocation8 + $0xb8] sm:$0xff]
    %v94 = vld [vmem:[#allocation8 + $0xc0] sm:$0xff]
    %v95 = vld [vmem:[#allocation8 + $0xc8] sm:$0xff]
    %v96 = vld [vmem:[#allocation8 + $0xd0] sm:$0xff]
    %v97 = vld [vmem:[#allocation8 + $0xd8] sm:$0xff]
    %v98 = vld [vmem:[#allocation8 + $0xe0] sm:$0xff]
    %v99 = vld [vmem:[#allocation8 + $0xe8] sm:$0xff]
    %v100 = vld [vmem:[#allocation8 + $0xf0] sm:$0xff]
    %v101 = vld [vmem:[#allocation8 + $0xf8] sm:$0xff]
    %v102 = vld [vmem:[#allocation8 + $0x100] sm:$0xff]
    %v103 = vld [vmem:[#allocation8 + $0x108] sm:$0xff]
    %v104 = vld [vmem:[#allocation8 + $0x110] sm:$0xff]
    %v105 = vld [vmem:[#allocation8 + $0x118] sm:$0xff]
    %v106 = vld [vmem:[#allocation8 + $0x120] sm:$0xff]
    %v107 = vld [vmem:[#allocation8 + $0x128] sm:$0xff]
    %v108 = vld [vmem:[#allocation8 + $0x130] sm:$0xff]
    %v109 = vld [vmem:[#allocation8 + $0x138] sm:$0xff]
    %v110 = vld [vmem:[#allocation8 + $0x140] sm:$0xff]
    %v111 = vld [vmem:[#allocation8 + $0x148] sm:$0xff]
    %v112 = vld [vmem:[#allocation8 + $0x150] sm:$0xff]
    %v113 = vld [vmem:[#allocation8 + $0x158] sm:$0xff]
    %v114 = vld [vmem:[#allocation8 + $0x160] sm:$0xff]
    %v115 = vld [vmem:[#allocation8 + $0x168] sm:$0xff]
    %v116 = vld [vmem:[#allocation8 + $0x170] sm:$0xff]
    %v117 = vld [vmem:[#allocation8 + $0x178] sm:$0xff]
    %v118 = vld [vmem:[#allocation8 + $0x180] sm:$0xff]
    %v119 = vld [vmem:[#allocation8 + $0x188] sm:$0xff]
    %v120 = vld [vmem:[#allocation8 + $0x190] sm:$0xff]
    %v121 = vld [vmem:[#allocation8 + $0x198] sm:$0xff]
    %v122 = vld [vmem:[#allocation8 + $0x1a0] sm:$0xff]
    %v123 = vld [vmem:[#allocation8 + $0x1a8] sm:$0xff]
    %v124 = vld [vmem:[#allocation8 + $0x1b0] sm:$0xff]
    %v125 = vld [vmem:[#allocation8 + $0x1b8] sm:$0xff]
    %v126 = vld [vmem:[#allocation8 + $0x1c0] sm:$0xff]
    %v127 = vld [vmem:[#allocation8 + $0x1c8] sm:$0xff]
    %v128 = vld [vmem:[#allocation8 + $0x1d0] sm:$0xff]
    %v129 = vld [vmem:[#allocation8 + $0x1d8] sm:$0xff]
    %v130 = vld [vmem:[#allocation8 + $0x1e0] sm:$0xff]
    %v131 = vld [vmem:[#allocation8 + $0x1e8] sm:$0xff]
    %v132 = vld [vmem:[#allocation8 + $0x1f0] sm:$0xff]
    %v133 = vld [vmem:[#allocation8 + $0x1f8] sm:$0xff]
    %v134 = vld [vmem:[#allocation8 + $0x200] sm:$0xff]
    %v135 = vld [vmem:[#allocation8 + $0x208] sm:$0xff]
    %v136 = vld [vmem:[#allocation8 + $0x210] sm:$0xff]
    %v137 = vld [vmem:[#allocation8 + $0x218] sm:$0xff]
    %v138 = vld [vmem:[#allocation8 + $0x220] sm:$0xff]
    %v139 = vld [vmem:[#allocation8 + $0x228] sm:$0xff]
    %v140 = vld [vmem:[#allocation8 + $0x230] sm:$0xff]
    %v141 = vld [vmem:[#allocation8 + $0x238] sm:$0xff]
    %v142 = vld [vmem:[#allocation8 + $0x240] sm:$0xff]
    %v143 = vld [vmem:[#allocation8 + $0x248] sm:$0xff]
    %v144 = vld [vmem:[#allocation8 + $0x250] sm:$0xff]
    %v145 = vld [vmem:[#allocation8 + $0x258] sm:$0xff]
    %v146 = vld [vmem:[#allocation8 + $0x260] sm:$0xff]
    %v147 = vld [vmem:[#allocation8 + $0x268] sm:$0xff]
    %v148 = vld [vmem:[#allocation8 + $0x270] sm:$0xff]
    %v149 = vld [vmem:[#allocation8 + $0x278] sm:$0xff]
    %v150 = vld [vmem:[#allocation8 + $0x280] sm:$0xff]
    %v151 = vld [vmem:[#allocation8 + $0x288] sm:$0xff]
    %v152 = vld [vmem:[#allocation8 + $0x290] sm:$0xff]
    %v153 = vld [vmem:[#allocation8 + $0x298] sm:$0xff]
    %v154 = vld [vmem:[#allocation8 + $0x2a0] sm:$0xff]
    %v155 = vld [vmem:[#allocation8 + $0x2a8] sm:$0xff]
    %v156 = vld [vmem:[#allocation8 + $0x2b0] sm:$0xff]
    %v157 = vld [vmem:[#allocation8 + $0x2b8] sm:$0xff]
    %v158 = vld [vmem:[#allocation8 + $0x2c0] sm:$0xff]
    %v159 = vld [vmem:[#allocation8 + $0x2c8] sm:$0xff]
    %v160 = vld [vmem:[#allocation8 + $0x2d0] sm:$0xff]
    %v161 = vld [vmem:[#allocation8 + $0x2d8] sm:$0xff]
    %v162 = vld [vmem:[#allocation8 + $0x2e0] sm:$0xff]
    %v163 = vld [vmem:[#allocation8 + $0x2e8] sm:$0xff]
    %v164 = vld [vmem:[#allocation8 + $0x2f0] sm:$0xff]
    %v165 = vld [vmem:[#allocation8 + $0x2f8] sm:$0xff]
    %v166 = vld [vmem:[#allocation8 + $0x300] sm:$0xff]
    %v167 = vld [vmem:[#allocation8 + $0x308] sm:$0xff]
    %v168 = vld [vmem:[#allocation8 + $0x310] sm:$0xff]
    %v169 = vld [vmem:[#allocation8 + $0x318] sm:$0xff]
    %v170 = vld [vmem:[#allocation8 + $0x320] sm:$0xff]
    %v171 = vld [vmem:[#allocation8 + $0x328] sm:$0xff]
    %v172 = vld [vmem:[#allocation8 + $0x330] sm:$0xff]
    %v173 = vld [vmem:[#allocation8 + $0x338] sm:$0xff]
    %v174 = vld [vmem:[#allocation8 + $0x340] sm:$0xff]
    %v175 = vld [vmem:[#allocation8 + $0x348] sm:$0xff]
    %v176 = vld [vmem:[#allocation8 + $0x350] sm:$0xff]
    %v177 = vld [vmem:[#allocation8 + $0x358] sm:$0xff]
    %v178 = vld [vmem:[#allocation8 + $0x360] sm:$0xff]
    %v179 = vld [vmem:[#allocation8 + $0x368] sm:$0xff]
    %v180 = vld [vmem:[#allocation8 + $0x370] sm:$0xff]
    %v181 = vld [vmem:[#allocation8 + $0x378] sm:$0xff]
    %v182 = vld [vmem:[#allocation8 + $0x380] sm:$0xff]
    %v183 = vld [vmem:[#allocation8 + $0x388] sm:$0xff]
    %v184 = vld [vmem:[#allocation8 + $0x390] sm:$0xff]
    %v185 = vld [vmem:[#allocation8 + $0x398] sm:$0xff]
    %v186 = vld [vmem:[#allocation8 + $0x3a0] sm:$0xff]
    %v187 = vld [vmem:[#allocation8 + $0x3a8] sm:$0xff]
    %v188 = vld [vmem:[#allocation8 + $0x3b0] sm:$0xff]
    %v189 = vld [vmem:[#allocation8 + $0x3b8] sm:$0xff]
    %v190 = vld [vmem:[#allocation8 + $0x3c0] sm:$0xff]
    %v191 = vld [vmem:[#allocation8 + $0x3c8] sm:$0xff]
    %v192 = vld [vmem:[#allocation8 + $0x3d0] sm:$0xff]
    %v193 = vld [vmem:[#allocation8 + $0x3d8] sm:$0xff]
    %v194 = vld [vmem:[#allocation8 + $0x3e0] sm:$0xff]
    %v195 = vld [vmem:[#allocation8 + $0x3e8] sm:$0xff]
    %v196 = vld [vmem:[#allocation8 + $0x3f0] sm:$0xff]
    %v197 = vld [vmem:[#allocation8 + $0x3f8] sm:$0xff]
    %v198 = vld [vmem:[#allocation10] sm:$0xf]
    %v200 = vlaneseq
    %v201 = vshrl.u32 %v200, 7
    %v202 = vsub.s32 0, %v201
    %v203 = vrot.slane %v198, %v202
    %v204 = vlaneseq
    %v205 = vshrl.u32 %v204, 7
    %v206 = vsub.s32 1, %v205
    %v207 = vrot.slane %v198, %v206
    %v208 = vlaneseq
    %v209 = vshrl.u32 %v208, 7
    %v210 = vsub.s32 2, %v209
    %v211 = vrot.slane %v198, %v210
    %v212 = vlaneseq
    %v213 = vshrl.u32 %v212, 7
    %v214 = vsub.s32 3, %v213
    %v215 = vrot.slane %v198, %v214
    %220 = vmatprep.subr.mxu0 %v131
    %221 = vmatpush1.msra.mxu0 %v130
    %222 = vmatprep.subr.mxu0 %v127
    %223 = vmatpush1.msra.mxu0 %v126
    %224 = vmatprep.subr.mxu0 %v123
    %225 = vmatpush1.msra.mxu0 %v122
    %226 = vmatprep.subr.mxu0 %v119
    %227 = vmatpush1.msra.mxu0 %v118
    %228 = vmatprep.subr.mxu0 %v115
    %229 = vmatpush1.msra.mxu0 %v114
    %230 = vmatprep.subr.mxu0 %v111
    %231 = vmatpush1.msra.mxu0 %v110
    %232 = vmatprep.subr.mxu0 %v107
    %233 = vmatpush1.msra.mxu0 %v106
    %234 = vmatprep.subr.mxu0 %v103
    %235 = vmatpush1.msra.mxu0 %v102
    %236 = vmatprep.subr.mxu0 %v99
    %237 = vmatpush1.msra.mxu0 %v98
    %238 = vmatprep.subr.mxu0 %v95
    %239 = vmatpush1.msra.mxu0 %v94
    %240 = vmatprep.subr.mxu0 %v91
    %241 = vmatpush1.msra.mxu0 %v90
    %242 = vmatprep.subr.mxu0 %v87
    %243 = vmatpush1.msra.mxu0 %v86
    %244 = vmatprep.subr.mxu0 %v83
    %245 = vmatpush1.msra.mxu0 %v82
    %246 = vmatprep.subr.mxu0 %v79
    %247 = vmatpush1.msra.mxu0 %v78
    %248 = vmatprep.subr.mxu0 %v75
    %249 = vmatpush1.msra.mxu0 %v74
    %250 = vmatprep.subr.mxu0 %v71
    %251 = vmatpush1.msra.mxu0 %v70
    %252 = vmatprep.subr.mxu0 %v195
    %253 = vmatpush2.msra.mxu0 %v194
    %254 = vmatprep.subr.mxu0 %v191
    %255 = vmatpush2.msra.mxu0 %v190
    %256 = vmatprep.subr.mxu0 %v187
    %257 = vmatpush2.msra.mxu0 %v186
    %258 = vmatprep.subr.mxu0 %v183
    %259 = vmatpush2.msra.mxu0 %v182
    %260 = vmatprep.subr.mxu0 %v179
    %261 = vmatpush2.msra.mxu0 %v178
    %262 = vmatprep.subr.mxu0 %v175
    %263 = vmatpush2.msra.mxu0 %v174
    %264 = vmatprep.subr.mxu0 %v171
    %265 = vmatpush2.msra.mxu0 %v170
    %266 = vmatprep.subr.mxu0 %v167
    %267 = vmatpush2.msra.mxu0 %v166
    %268 = vmatprep.subr.mxu0 %v163
    %269 = vmatpush2.msra.mxu0 %v162
    %270 = vmatprep.subr.mxu0 %v159
    %271 = vmatpush2.msra.mxu0 %v158
    %272 = vmatprep.subr.mxu0 %v155
    %273 = vmatpush2.msra.mxu0 %v154
    %274 = vmatprep.subr.mxu0 %v151
    %275 = vmatpush2.msra.mxu0 %v150
    %276 = vmatprep.subr.mxu0 %v147
    %277 = vmatpush2.msra.mxu0 %v146
    %278 = vmatprep.subr.mxu0 %v143
    %279 = vmatpush2.msra.mxu0 %v142
    %280 = vmatprep.subr.mxu0 %v139
    %281 = vmatpush2.msra.mxu0 %v138
    %282 = vmatprep.subr.mxu0 %v135
    %283 = vmatpush2.msra.mxu0 %v134
    %284 = vmatprep.mubr.f32.mxu0 %v69
    %285 = vmatmul.mubr.f32.gmra.mxu0 %v68
    %v286 = vpop.f32.mrf.mxu0
    %v287 = vadd.f32 %v203, %v286
    %v288 = vpop.f32.mrf.mxu0
    %v289 = vadd.f32 %v207, %v288
    %290 = vdwg.mxu0
    %291 = vmatprep.subr.mxu0 %v133
    %292 = vmatpush1.msra.mxu0 %v132
    %293 = vmatprep.subr.mxu0 %v129
    %294 = vmatpush1.msra.mxu0 %v128
    %295 = vmatprep.subr.mxu0 %v125
    %296 = vmatpush1.msra.mxu0 %v124
    %297 = vmatprep.subr.mxu0 %v121
    %298 = vmatpush1.msra.mxu0 %v120
    %299 = vmatprep.subr.mxu0 %v117
    %300 = vmatpush1.msra.mxu0 %v116
    %301 = vmatprep.subr.mxu0 %v113
    %302 = vmatpush1.msra.mxu0 %v112
    %303 = vmatprep.subr.mxu0 %v109
    %304 = vmatpush1.msra.mxu0 %v108
    %305 = vmatprep.subr.mxu0 %v105
    %306 = vmatpush1.msra.mxu0 %v104
    %307 = vmatprep.subr.mxu0 %v101
    %308 = vmatpush1.msra.mxu0 %v100
    %309 = vmatprep.subr.mxu0 %v97
    %310 = vmatpush1.msra.mxu0 %v96
    %311 = vmatprep.subr.mxu0 %v93
    %312 = vmatpush1.msra.mxu0 %v92
    %313 = vmatprep.subr.mxu0 %v89
    %314 = vmatpush1.msra.mxu0 %v88
    %315 = vmatprep.subr.mxu0 %v85
    %316 = vmatpush1.msra.mxu0 %v84
    %317 = vmatprep.subr.mxu0 %v81
    %318 = vmatpush1.msra.mxu0 %v80
    %319 = vmatprep.subr.mxu0 %v77
    %320 = vmatpush1.msra.mxu0 %v76
    %321 = vmatprep.subr.mxu0 %v73
    %322 = vmatpush1.msra.mxu0 %v72
    %323 = vmatprep.subr.mxu0 %v197
    %324 = vmatpush2.msra.mxu0 %v196
    %325 = vmatprep.subr.mxu0 %v193
    %326 = vmatpush2.msra.mxu0 %v192
    %327 = vmatprep.subr.mxu0 %v189
    %328 = vmatpush2.msra.mxu0 %v188
    %329 = vmatprep.subr.mxu0 %v185
    %330 = vmatpush2.msra.mxu0 %v184
    %331 = vmatprep.subr.mxu0 %v181
    %332 = vmatpush2.msra.mxu0 %v180
    %333 = vmatprep.subr.mxu0 %v177
    %334 = vmatpush2.msra.mxu0 %v176
    %335 = vmatprep.subr.mxu0 %v173
    %336 = vmatpush2.msra.mxu0 %v172
    %337 = vmatprep.subr.mxu0 %v169
    %338 = vmatpush2.msra.mxu0 %v168
    %339 = vmatprep.subr.mxu0 %v165
    %340 = vmatpush2.msra.mxu0 %v164
    %341 = vmatprep.subr.mxu0 %v161
    %342 = vmatpush2.msra.mxu0 %v160
    %343 = vmatprep.subr.mxu0 %v157
    %344 = vmatpush2.msra.mxu0 %v156
    %345 = vmatprep.subr.mxu0 %v153
    %346 = vmatpush2.msra.mxu0 %v152
    %347 = vmatprep.subr.mxu0 %v149
    %348 = vmatpush2.msra.mxu0 %v148
    %349 = vmatprep.subr.mxu0 %v145
    %350 = vmatpush2.msra.mxu0 %v144
    %351 = vmatprep.subr.mxu0 %v141
    %352 = vmatpush2.msra.mxu0 %v140
    %353 = vmatprep.subr.mxu0 %v137
    %354 = vmatpush2.msra.mxu0 %v136
    %355 = vmatprep.mubr.f32.mxu0 %v69
    %356 = vmatmul.mubr.f32.gmra.mxu0 %v68
    %v357 = vpop.f32.mrf.mxu0
    %v358 = vadd.f32 %v211, %v357
    %v359 = vpop.f32.mrf.mxu0
    %v360 = vadd.f32 %v215, %v359
    %361 = vdwg.mxu0
    %v362 = vxor.u32 %v287, 2147483648
    %v363 = vmul.f32 %v362, 1.442695
    %v364 = vpow.pop %v363
    %v365 = vadd.f32 %v364, 1.0
    %v366 = vrcp.pop %v365
    %v367 = vmul.f32 1.0, %v366
    %v368 = vxor.u32 %v289, 2147483648
    %v369 = vmul.f32 %v368, 1.442695
    %v370 = vpow.pop %v369
    %v371 = vadd.f32 %v370, 1.0
    %v372 = vrcp.pop %v371
    %v373 = vmul.f32 1.0, %v372
    %v374 = vtanh.pop %v358
    %v375 = vxor.u32 %v360, 2147483648
    %v376 = vmul.f32 %v375, 1.442695
    %v377 = vpow.pop %v376
    %v378 = vadd.f32 %v377, 1.0
    %v379 = vrcp.pop %v378
    %v380 = vmul.f32 1.0, %v379
    %v381 = vld [vmem:[#allocation3] sm:$0xff]
    %v382 = vmul.f32 %v373, %v381
    %v383 = vmul.f32 %v367, %v374
    %v384 = vadd.f32 %v382, %v383
    %v385 = vtanh.pop %v384
    %v386 = vmul.f32 %v380, %v385
    %387 = vst [vmem:[#allocation3] sm:$0xff] %v384
    %388 = vst [vmem:[#allocation2] sm:$0xff] %v386
    %389 = vst [vmem:[#allocation4] sm:$0xff] %v386
    %s390 = scalar_lea.vmem [#allocation2], 8
    %v391 = vld [vmem:[%s390] sm:$0xff]
    %392 = vst [vmem:[#allocation4 + $0x8] sm:$0xff] %v391
    %v393 = vld [vmem:[#allocation4] sm:$0xff]
    %v394 = vld [vmem:[#allocation4 + $0x8] sm:$0xff]
    %s395 = scalar_lea.vmem [#allocation8], 1024
    %v396 = vld [vmem:[%s395] sm:$0xff]
    %v397 = vld [vmem:[%s395 + $0x8] sm:$0xff]
    %v398 = vld [vmem:[%s395 + $0x10] sm:$0xff]
    %v399 = vld [vmem:[%s395 + $0x18] sm:$0xff]
    %v400 = vld [vmem:[%s395 + $0x20] sm:$0xff]
    %v401 = vld [vmem:[%s395 + $0x28] sm:$0xff]
    %v402 = vld [vmem:[%s395 + $0x30] sm:$0xff]
    %v403 = vld [vmem:[%s395 + $0x38] sm:$0xff]
    %v404 = vld [vmem:[%s395 + $0x40] sm:$0xff]
    %v405 = vld [vmem:[%s395 + $0x48] sm:$0xff]
    %v406 = vld [vmem:[%s395 + $0x50] sm:$0xff]
    %v407 = vld [vmem:[%s395 + $0x58] sm:$0xff]
    %v408 = vld [vmem:[%s395 + $0x60] sm:$0xff]
    %v409 = vld [vmem:[%s395 + $0x68] sm:$0xff]
    %v410 = vld [vmem:[%s395 + $0x70] sm:$0xff]
    %v411 = vld [vmem:[%s395 + $0x78] sm:$0xff]
    %v412 = vld [vmem:[%s395 + $0x80] sm:$0xff]
    %v413 = vld [vmem:[%s395 + $0x88] sm:$0xff]
    %v414 = vld [vmem:[%s395 + $0x90] sm:$0xff]
    %v415 = vld [vmem:[%s395 + $0x98] sm:$0xff]
    %v416 = vld [vmem:[%s395 + $0xa0] sm:$0xff]
    %v417 = vld [vmem:[%s395 + $0xa8] sm:$0xff]
    %v418 = vld [vmem:[%s395 + $0xb0] sm:$0xff]
    %v419 = vld [vmem:[%s395 + $0xb8] sm:$0xff]
    %v420 = vld [vmem:[%s395 + $0xc0] sm:$0xff]
    %v421 = vld [vmem:[%s395 + $0xc8] sm:$0xff]
    %v422 = vld [vmem:[%s395 + $0xd0] sm:$0xff]
    %v423 = vld [vmem:[%s395 + $0xd8] sm:$0xff]
    %v424 = vld [vmem:[%s395 + $0xe0] sm:$0xff]
    %v425 = vld [vmem:[%s395 + $0xe8] sm:$0xff]
    %v426 = vld [vmem:[%s395 + $0xf0] sm:$0xff]
    %v427 = vld [vmem:[%s395 + $0xf8] sm:$0xff]
    %v428 = vld [vmem:[%s395 + $0x100] sm:$0xff]
    %v429 = vld [vmem:[%s395 + $0x108] sm:$0xff]
    %v430 = vld [vmem:[%s395 + $0x110] sm:$0xff]
    %v431 = vld [vmem:[%s395 + $0x118] sm:$0xff]
    %v432 = vld [vmem:[%s395 + $0x120] sm:$0xff]
    %v433 = vld [vmem:[%s395 + $0x128] sm:$0xff]
    %v434 = vld [vmem:[%s395 + $0x130] sm:$0xff]
    %v435 = vld [vmem:[%s395 + $0x138] sm:$0xff]
    %v436 = vld [vmem:[%s395 + $0x140] sm:$0xff]
    %v437 = vld [vmem:[%s395 + $0x148] sm:$0xff]
    %v438 = vld [vmem:[%s395 + $0x150] sm:$0xff]
    %v439 = vld [vmem:[%s395 + $0x158] sm:$0xff]
    %v440 = vld [vmem:[%s395 + $0x160] sm:$0xff]
    %v441 = vld [vmem:[%s395 + $0x168] sm:$0xff]
    %v442 = vld [vmem:[%s395 + $0x170] sm:$0xff]
    %v443 = vld [vmem:[%s395 + $0x178] sm:$0xff]
    %v444 = vld [vmem:[%s395 + $0x180] sm:$0xff]
    %v445 = vld [vmem:[%s395 + $0x188] sm:$0xff]
    %v446 = vld [vmem:[%s395 + $0x190] sm:$0xff]
    %v447 = vld [vmem:[%s395 + $0x198] sm:$0xff]
    %v448 = vld [vmem:[%s395 + $0x1a0] sm:$0xff]
    %v449 = vld [vmem:[%s395 + $0x1a8] sm:$0xff]
    %v450 = vld [vmem:[%s395 + $0x1b0] sm:$0xff]
    %v451 = vld [vmem:[%s395 + $0x1b8] sm:$0xff]
    %v452 = vld [vmem:[%s395 + $0x1c0] sm:$0xff]
    %v453 = vld [vmem:[%s395 + $0x1c8] sm:$0xff]
    %v454 = vld [vmem:[%s395 + $0x1d0] sm:$0xff]
    %v455 = vld [vmem:[%s395 + $0x1d8] sm:$0xff]
    %v456 = vld [vmem:[%s395 + $0x1e0] sm:$0xff]
    %v457 = vld [vmem:[%s395 + $0x1e8] sm:$0xff]
    %v458 = vld [vmem:[%s395 + $0x1f0] sm:$0xff]
    %v459 = vld [vmem:[%s395 + $0x1f8] sm:$0xff]
    %v460 = vld [vmem:[%s395 + $0x200] sm:$0xff]
    %v461 = vld [vmem:[%s395 + $0x208] sm:$0xff]
    %v462 = vld [vmem:[%s395 + $0x210] sm:$0xff]
    %v463 = vld [vmem:[%s395 + $0x218] sm:$0xff]
    %v464 = vld [vmem:[%s395 + $0x220] sm:$0xff]
    %v465 = vld [vmem:[%s395 + $0x228] sm:$0xff]
    %v466 = vld [vmem:[%s395 + $0x230] sm:$0xff]
    %v467 = vld [vmem:[%s395 + $0x238] sm:$0xff]
    %v468 = vld [vmem:[%s395 + $0x240] sm:$0xff]
    %v469 = vld [vmem:[%s395 + $0x248] sm:$0xff]
    %v470 = vld [vmem:[%s395 + $0x250] sm:$0xff]
    %v471 = vld [vmem:[%s395 + $0x258] sm:$0xff]
    %v472 = vld [vmem:[%s395 + $0x260] sm:$0xff]
    %v473 = vld [vmem:[%s395 + $0x268] sm:$0xff]
    %v474 = vld [vmem:[%s395 + $0x270] sm:$0xff]
    %v475 = vld [vmem:[%s395 + $0x278] sm:$0xff]
    %v476 = vld [vmem:[%s395 + $0x280] sm:$0xff]
    %v477 = vld [vmem:[%s395 + $0x288] sm:$0xff]
    %v478 = vld [vmem:[%s395 + $0x290] sm:$0xff]
    %v479 = vld [vmem:[%s395 + $0x298] sm:$0xff]
    %v480 = vld [vmem:[%s395 + $0x2a0] sm:$0xff]
    %v481 = vld [vmem:[%s395 + $0x2a8] sm:$0xff]
    %v482 = vld [vmem:[%s395 + $0x2b0] sm:$0xff]
    %v483 = vld [vmem:[%s395 + $0x2b8] sm:$0xff]
    %v484 = vld [vmem:[%s395 + $0x2c0] sm:$0xff]
    %v485 = vld [vmem:[%s395 + $0x2c8] sm:$0xff]
    %v486 = vld [vmem:[%s395 + $0x2d0] sm:$0xff]
    %v487 = vld [vmem:[%s395 + $0x2d8] sm:$0xff]
    %v488 = vld [vmem:[%s395 + $0x2e0] sm:$0xff]
    %v489 = vld [vmem:[%s395 + $0x2e8] sm:$0xff]
    %v490 = vld [vmem:[%s395 + $0x2f0] sm:$0xff]
    %v491 = vld [vmem:[%s395 + $0x2f8] sm:$0xff]
    %v492 = vld [vmem:[%s395 + $0x300] sm:$0xff]
    %v493 = vld [vmem:[%s395 + $0x308] sm:$0xff]
    %v494 = vld [vmem:[%s395 + $0x310] sm:$0xff]
    %v495 = vld [vmem:[%s395 + $0x318] sm:$0xff]
    %v496 = vld [vmem:[%s395 + $0x320] sm:$0xff]
    %v497 = vld [vmem:[%s395 + $0x328] sm:$0xff]
    %v498 = vld [vmem:[%s395 + $0x330] sm:$0xff]
    %v499 = vld [vmem:[%s395 + $0x338] sm:$0xff]
    %v500 = vld [vmem:[%s395 + $0x340] sm:$0xff]
    %v501 = vld [vmem:[%s395 + $0x348] sm:$0xff]
    %v502 = vld [vmem:[%s395 + $0x350] sm:$0xff]
    %v503 = vld [vmem:[%s395 + $0x358] sm:$0xff]
    %v504 = vld [vmem:[%s395 + $0x360] sm:$0xff]
    %v505 = vld [vmem:[%s395 + $0x368] sm:$0xff]
    %v506 = vld [vmem:[%s395 + $0x370] sm:$0xff]
    %v507 = vld [vmem:[%s395 + $0x378] sm:$0xff]
    %v508 = vld [vmem:[%s395 + $0x380] sm:$0xff]
    %v509 = vld [vmem:[%s395 + $0x388] sm:$0xff]
    %v510 = vld [vmem:[%s395 + $0x390] sm:$0xff]
    %v511 = vld [vmem:[%s395 + $0x398] sm:$0xff]
    %v512 = vld [vmem:[%s395 + $0x3a0] sm:$0xff]
    %v513 = vld [vmem:[%s395 + $0x3a8] sm:$0xff]
    %v514 = vld [vmem:[%s395 + $0x3b0] sm:$0xff]
    %v515 = vld [vmem:[%s395 + $0x3b8] sm:$0xff]
    %v516 = vld [vmem:[%s395 + $0x3c0] sm:$0xff]
    %v517 = vld [vmem:[%s395 + $0x3c8] sm:$0xff]
    %v518 = vld [vmem:[%s395 + $0x3d0] sm:$0xff]
    %v519 = vld [vmem:[%s395 + $0x3d8] sm:$0xff]
    %v520 = vld [vmem:[%s395 + $0x3e0] sm:$0xff]
    %v521 = vld [vmem:[%s395 + $0x3e8] sm:$0xff]
    %v522 = vld [vmem:[%s395 + $0x3f0] sm:$0xff]
    %v523 = vld [vmem:[%s395 + $0x3f8] sm:$0xff]
    %s524 = scalar_lea.vmem [#allocation10], 4
    %v525 = vld [vmem:[%s524] sm:$0xf]
    %v527 = vlaneseq
    %v528 = vshrl.u32 %v527, 7
    %v529 = vsub.s32 0, %v528
    %v530 = vrot.slane %v525, %v529
    %v531 = vlaneseq
    %v532 = vshrl.u32 %v531, 7
    %v533 = vsub.s32 1, %v532
    %v534 = vrot.slane %v525, %v533
    %v535 = vlaneseq
    %v536 = vshrl.u32 %v535, 7
    %v537 = vsub.s32 2, %v536
    %v538 = vrot.slane %v525, %v537
    %v539 = vlaneseq
    %v540 = vshrl.u32 %v539, 7
    %v541 = vsub.s32 3, %v540
    %v542 = vrot.slane %v525, %v541
    %547 = vmatprep.subr.mxu0 %v457
    %548 = vmatpush1.msra.mxu0 %v456
    %549 = vmatprep.subr.mxu0 %v453
    %550 = vmatpush1.msra.mxu0 %v452
    %551 = vmatprep.subr.mxu0 %v449
    %552 = vmatpush1.msra.mxu0 %v448
    %553 = vmatprep.subr.mxu0 %v445
    %554 = vmatpush1.msra.mxu0 %v444
    %555 = vmatprep.subr.mxu0 %v441
    %556 = vmatpush1.msra.mxu0 %v440
    %557 = vmatprep.subr.mxu0 %v437
    %558 = vmatpush1.msra.mxu0 %v436
    %559 = vmatprep.subr.mxu0 %v433
    %560 = vmatpush1.msra.mxu0 %v432
    %561 = vmatprep.subr.mxu0 %v429
    %562 = vmatpush1.msra.mxu0 %v428
    %563 = vmatprep.subr.mxu0 %v425
    %564 = vmatpush1.msra.mxu0 %v424
    %565 = vmatprep.subr.mxu0 %v421
    %566 = vmatpush1.msra.mxu0 %v420
    %567 = vmatprep.subr.mxu0 %v417
    %568 = vmatpush1.msra.mxu0 %v416
    %569 = vmatprep.subr.mxu0 %v413
    %570 = vmatpush1.msra.mxu0 %v412
    %571 = vmatprep.subr.mxu0 %v409
    %572 = vmatpush1.msra.mxu0 %v408
    %573 = vmatprep.subr.mxu0 %v405
    %574 = vmatpush1.msra.mxu0 %v404
    %575 = vmatprep.subr.mxu0 %v401
    %576 = vmatpush1.msra.mxu0 %v400
    %577 = vmatprep.subr.mxu0 %v397
    %578 = vmatpush1.msra.mxu0 %v396
    %579 = vmatprep.subr.mxu0 %v521
    %580 = vmatpush2.msra.mxu0 %v520
    %581 = vmatprep.subr.mxu0 %v517
    %582 = vmatpush2.msra.mxu0 %v516
    %583 = vmatprep.subr.mxu0 %v513
    %584 = vmatpush2.msra.mxu0 %v512
    %585 = vmatprep.subr.mxu0 %v509
    %586 = vmatpush2.msra.mxu0 %v508
    %587 = vmatprep.subr.mxu0 %v505
    %588 = vmatpush2.msra.mxu0 %v504
    %589 = vmatprep.subr.mxu0 %v501
    %590 = vmatpush2.msra.mxu0 %v500
    %591 = vmatprep.subr.mxu0 %v497
    %592 = vmatpush2.msra.mxu0 %v496
    %593 = vmatprep.subr.mxu0 %v493
    %594 = vmatpush2.msra.mxu0 %v492
    %595 = vmatprep.subr.mxu0 %v489
    %596 = vmatpush2.msra.mxu0 %v488
    %597 = vmatprep.subr.mxu0 %v485
    %598 = vmatpush2.msra.mxu0 %v484
    %599 = vmatprep.subr.mxu0 %v481
    %600 = vmatpush2.msra.mxu0 %v480
    %601 = vmatprep.subr.mxu0 %v477
    %602 = vmatpush2.msra.mxu0 %v476
    %603 = vmatprep.subr.mxu0 %v473
    %604 = vmatpush2.msra.mxu0 %v472
    %605 = vmatprep.subr.mxu0 %v469
    %606 = vmatpush2.msra.mxu0 %v468
    %607 = vmatprep.subr.mxu0 %v465
    %608 = vmatpush2.msra.mxu0 %v464
    %609 = vmatprep.subr.mxu0 %v461
    %610 = vmatpush2.msra.mxu0 %v460
    %611 = vmatprep.mubr.f32.mxu0 %v394
    %612 = vmatmul.mubr.f32.gmra.mxu0 %v393
    %v613 = vpop.f32.mrf.mxu0
    %v614 = vadd.f32 %v530, %v613
    %v615 = vpop.f32.mrf.mxu0
    %v616 = vadd.f32 %v534, %v615
    %617 = vdwg.mxu0
    %618 = vmatprep.subr.mxu0 %v459
    %619 = vmatpush1.msra.mxu0 %v458
    %620 = vmatprep.subr.mxu0 %v455
    %621 = vmatpush1.msra.mxu0 %v454
    %622 = vmatprep.subr.mxu0 %v451
    %623 = vmatpush1.msra.mxu0 %v450
    %624 = vmatprep.subr.mxu0 %v447
    %625 = vmatpush1.msra.mxu0 %v446
    %626 = vmatprep.subr.mxu0 %v443
    %627 = vmatpush1.msra.mxu0 %v442
    %628 = vmatprep.subr.mxu0 %v439
    %629 = vmatpush1.msra.mxu0 %v438
    %630 = vmatprep.subr.mxu0 %v435
    %631 = vmatpush1.msra.mxu0 %v434
    %632 = vmatprep.subr.mxu0 %v431
    %633 = vmatpush1.msra.mxu0 %v430
    %634 = vmatprep.subr.mxu0 %v427
    %635 = vmatpush1.msra.mxu0 %v426
    %636 = vmatprep.subr.mxu0 %v423
    %637 = vmatpush1.msra.mxu0 %v422
    %638 = vmatprep.subr.mxu0 %v419
    %639 = vmatpush1.msra.mxu0 %v418
    %640 = vmatprep.subr.mxu0 %v415
    %641 = vmatpush1.msra.mxu0 %v414
    %642 = vmatprep.subr.mxu0 %v411
    %643 = vmatpush1.msra.mxu0 %v410
    %644 = vmatprep.subr.mxu0 %v407
    %645 = vmatpush1.msra.mxu0 %v406
    %646 = vmatprep.subr.mxu0 %v403
    %647 = vmatpush1.msra.mxu0 %v402
    %648 = vmatprep.subr.mxu0 %v399
    %649 = vmatpush1.msra.mxu0 %v398
    %650 = vmatprep.subr.mxu0 %v523
    %651 = vmatpush2.msra.mxu0 %v522
    %652 = vmatprep.subr.mxu0 %v519
    %653 = vmatpush2.msra.mxu0 %v518
    %654 = vmatprep.subr.mxu0 %v515
    %655 = vmatpush2.msra.mxu0 %v514
    %656 = vmatprep.subr.mxu0 %v511
    %657 = vmatpush2.msra.mxu0 %v510
    %658 = vmatprep.subr.mxu0 %v507
    %659 = vmatpush2.msra.mxu0 %v506
    %660 = vmatprep.subr.mxu0 %v503
    %661 = vmatpush2.msra.mxu0 %v502
    %662 = vmatprep.subr.mxu0 %v499
    %663 = vmatpush2.msra.mxu0 %v498
    %664 = vmatprep.subr.mxu0 %v495
    %665 = vmatpush2.msra.mxu0 %v494
    %666 = vmatprep.subr.mxu0 %v491
    %667 = vmatpush2.msra.mxu0 %v490
    %668 = vmatprep.subr.mxu0 %v487
    %669 = vmatpush2.msra.mxu0 %v486
    %670 = vmatprep.subr.mxu0 %v483
    %671 = vmatpush2.msra.mxu0 %v482
    %672 = vmatprep.subr.mxu0 %v479
    %673 = vmatpush2.msra.mxu0 %v478
    %674 = vmatprep.subr.mxu0 %v475
    %675 = vmatpush2.msra.mxu0 %v474
    %676 = vmatprep.subr.mxu0 %v471
    %677 = vmatpush2.msra.mxu0 %v470
    %678 = vmatprep.subr.mxu0 %v467
    %679 = vmatpush2.msra.mxu0 %v466
    %680 = vmatprep.subr.mxu0 %v463
    %681 = vmatpush2.msra.mxu0 %v462
    %682 = vmatprep.mubr.f32.mxu0 %v394
    %683 = vmatmul.mubr.f32.gmra.mxu0 %v393
    %v684 = vpop.f32.mrf.mxu0
    %v685 = vadd.f32 %v538, %v684
    %v686 = vpop.f32.mrf.mxu0
    %v687 = vadd.f32 %v542, %v686
    %688 = vdwg.mxu0
    %v689 = vxor.u32 %v614, 2147483648
    %v690 = vmul.f32 %v689, 1.442695
    %v691 = vpow.pop %v690
    %v692 = vadd.f32 %v691, 1.0
    %v693 = vrcp.pop %v692
    %v694 = vmul.f32 1.0, %v693
    %v695 = vxor.u32 %v616, 2147483648
    %v696 = vmul.f32 %v695, 1.442695
    %v697 = vpow.pop %v696
    %v698 = vadd.f32 %v697, 1.0
    %v699 = vrcp.pop %v698
    %v700 = vmul.f32 1.0, %v699
    %v701 = vtanh.pop %v685
    %v702 = vxor.u32 %v687, 2147483648
    %v703 = vmul.f32 %v702, 1.442695
    %v704 = vpow.pop %v703
    %v705 = vadd.f32 %v704, 1.0
    %v706 = vrcp.pop %v705
    %v707 = vmul.f32 1.0, %v706
    %s708 = scalar_lea.vmem [#allocation3], 8
    %v709 = vld [vmem:[%s708] sm:$0xff]
    %v710 = vmul.f32 %v700, %v709
    %v711 = vmul.f32 %v694, %v701
    %v712 = vadd.f32 %v710, %v711
    %v713 = vtanh.pop %v712
    %v714 = vmul.f32 %v707, %v713
    %715 = vst [vmem:[%s708] sm:$0xff] %v712
    %716 = vst [vmem:[%s390] sm:$0xff] %v714
    %717 = vst [vmem:[#allocation11] sm:$0xff] %v714
    %s718 = scalar_lea.vmem [#allocation5], 8
    %v719 = vld [vmem:[%s718] sm:$0xff]
    %720 = vst [vmem:[#allocation4] sm:$0xff] %v719
    %v721 = vld [vmem:[#allocation2] sm:$0xff]
    %722 = vst [vmem:[#allocation4 + $0x8] sm:$0xff] %v721
    %v723 = vld [vmem:[#allocation4] sm:$0xff]
    %v724 = vld [vmem:[#allocation4 + $0x8] sm:$0xff]
    %v725 = vld [vmem:[#allocation8] sm:$0xff]
    %v726 = vld [vmem:[#allocation8 + $0x8] sm:$0xff]
    %v727 = vld [vmem:[#allocation8 + $0x10] sm:$0xff]
    %v728 = vld [vmem:[#allocation8 + $0x18] sm:$0xff]
    %v729 = vld [vmem:[#allocation8 + $0x20] sm:$0xff]
    %v730 = vld [vmem:[#allocation8 + $0x28] sm:$0xff]
    %v731 = vld [vmem:[#allocation8 + $0x30] sm:$0xff]
    %v732 = vld [vmem:[#allocation8 + $0x38] sm:$0xff]
    %v733 = vld [vmem:[#allocation8 + $0x40] sm:$0xff]
    %v734 = vld [vmem:[#allocation8 + $0x48] sm:$0xff]
    %v735 = vld [vmem:[#allocation8 + $0x50] sm:$0xff]
    %v736 = vld [vmem:[#allocation8 + $0x58] sm:$0xff]
    %v737 = vld [vmem:[#allocation8 + $0x60] sm:$0xff]
    %v738 = vld [vmem:[#allocation8 + $0x68] sm:$0xff]
    %v739 = vld [vmem:[#allocation8 + $0x70] sm:$0xff]
    %v740 = vld [vmem:[#allocation8 + $0x78] sm:$0xff]
    %v741 = vld [vmem:[#allocation8 + $0x80] sm:$0xff]
    %v742 = vld [vmem:[#allocation8 + $0x88] sm:$0xff]
    %v743 = vld [vmem:[#allocation8 + $0x90] sm:$0xff]
    %v744 = vld [vmem:[#allocation8 + $0x98] sm:$0xff]
    %v745 = vld [vmem:[#allocation8 + $0xa0] sm:$0xff]
    %v746 = vld [vmem:[#allocation8 + $0xa8] sm:$0xff]
    %v747 = vld [vmem:[#allocation8 + $0xb0] sm:$0xff]
    %v748 = vld [vmem:[#allocation8 + $0xb8] sm:$0xff]
    %v749 = vld [vmem:[#allocation8 + $0xc0] sm:$0xff]
    %v750 = vld [vmem:[#allocation8 + $0xc8] sm:$0xff]
    %v751 = vld [vmem:[#allocation8 + $0xd0] sm:$0xff]
    %v752 = vld [vmem:[#allocation8 + $0xd8] sm:$0xff]
    %v753 = vld [vmem:[#allocation8 + $0xe0] sm:$0xff]
    %v754 = vld [vmem:[#allocation8 + $0xe8] sm:$0xff]
    %v755 = vld [vmem:[#allocation8 + $0xf0] sm:$0xff]
    %v756 = vld [vmem:[#allocation8 + $0xf8] sm:$0xff]
    %v757 = vld [vmem:[#allocation8 + $0x100] sm:$0xff]
    %v758 = vld [vmem:[#allocation8 + $0x108] sm:$0xff]
    %v759 = vld [vmem:[#allocation8 + $0x110] sm:$0xff]
    %v760 = vld [vmem:[#allocation8 + $0x118] sm:$0xff]
    %v761 = vld [vmem:[#allocation8 + $0x120] sm:$0xff]
    %v762 = vld [vmem:[#allocation8 + $0x128] sm:$0xff]
    %v763 = vld [vmem:[#allocation8 + $0x130] sm:$0xff]
    %v764 = vld [vmem:[#allocation8 + $0x138] sm:$0xff]
    %v765 = vld [vmem:[#allocation8 + $0x140] sm:$0xff]
    %v766 = vld [vmem:[#allocation8 + $0x148] sm:$0xff]
    %v767 = vld [vmem:[#allocation8 + $0x150] sm:$0xff]
    %v768 = vld [vmem:[#allocation8 + $0x158] sm:$0xff]
    %v769 = vld [vmem:[#allocation8 + $0x160] sm:$0xff]
    %v770 = vld [vmem:[#allocation8 + $0x168] sm:$0xff]
    %v771 = vld [vmem:[#allocation8 + $0x170] sm:$0xff]
    %v772 = vld [vmem:[#allocation8 + $0x178] sm:$0xff]
    %v773 = vld [vmem:[#allocation8 + $0x180] sm:$0xff]
    %v774 = vld [vmem:[#allocation8 + $0x188] sm:$0xff]
    %v775 = vld [vmem:[#allocation8 + $0x190] sm:$0xff]
    %v776 = vld [vmem:[#allocation8 + $0x198] sm:$0xff]
    %v777 = vld [vmem:[#allocation8 + $0x1a0] sm:$0xff]
    %v778 = vld [vmem:[#allocation8 + $0x1a8] sm:$0xff]
    %v779 = vld [vmem:[#allocation8 + $0x1b0] sm:$0xff]
    %v780 = vld [vmem:[#allocation8 + $0x1b8] sm:$0xff]
    %v781 = vld [vmem:[#allocation8 + $0x1c0] sm:$0xff]
    %v782 = vld [vmem:[#allocation8 + $0x1c8] sm:$0xff]
    %v783 = vld [vmem:[#allocation8 + $0x1d0] sm:$0xff]
    %v784 = vld [vmem:[#allocation8 + $0x1d8] sm:$0xff]
    %v785 = vld [vmem:[#allocation8 + $0x1e0] sm:$0xff]
    %v786 = vld [vmem:[#allocation8 + $0x1e8] sm:$0xff]
    %v787 = vld [vmem:[#allocation8 + $0x1f0] sm:$0xff]
    %v788 = vld [vmem:[#allocation8 + $0x1f8] sm:$0xff]
    %v789 = vld [vmem:[#allocation8 + $0x200] sm:$0xff]
    %v790 = vld [vmem:[#allocation8 + $0x208] sm:$0xff]
    %v791 = vld [vmem:[#allocation8 + $0x210] sm:$0xff]
    %v792 = vld [vmem:[#allocation8 + $0x218] sm:$0xff]
    %v793 = vld [vmem:[#allocation8 + $0x220] sm:$0xff]
    %v794 = vld [vmem:[#allocation8 + $0x228] sm:$0xff]
    %v795 = vld [vmem:[#allocation8 + $0x230] sm:$0xff]
    %v796 = vld [vmem:[#allocation8 + $0x238] sm:$0xff]
    %v797 = vld [vmem:[#allocation8 + $0x240] sm:$0xff]
    %v798 = vld [vmem:[#allocation8 + $0x248] sm:$0xff]
    %v799 = vld [vmem:[#allocation8 + $0x250] sm:$0xff]
    %v800 = vld [vmem:[#allocation8 + $0x258] sm:$0xff]
    %v801 = vld [vmem:[#allocation8 + $0x260] sm:$0xff]
    %v802 = vld [vmem:[#allocation8 + $0x268] sm:$0xff]
    %v803 = vld [vmem:[#allocation8 + $0x270] sm:$0xff]
    %v804 = vld [vmem:[#allocation8 + $0x278] sm:$0xff]
    %v805 = vld [vmem:[#allocation8 + $0x280] sm:$0xff]
    %v806 = vld [vmem:[#allocation8 + $0x288] sm:$0xff]
    %v807 = vld [vmem:[#allocation8 + $0x290] sm:$0xff]
    %v808 = vld [vmem:[#allocation8 + $0x298] sm:$0xff]
    %v809 = vld [vmem:[#allocation8 + $0x2a0] sm:$0xff]
    %v810 = vld [vmem:[#allocation8 + $0x2a8] sm:$0xff]
    %v811 = vld [vmem:[#allocation8 + $0x2b0] sm:$0xff]
    %v812 = vld [vmem:[#allocation8 + $0x2b8] sm:$0xff]
    %v813 = vld [vmem:[#allocation8 + $0x2c0] sm:$0xff]
    %v814 = vld [vmem:[#allocation8 + $0x2c8] sm:$0xff]
    %v815 = vld [vmem:[#allocation8 + $0x2d0] sm:$0xff]
    %v816 = vld [vmem:[#allocation8 + $0x2d8] sm:$0xff]
    %v817 = vld [vmem:[#allocation8 + $0x2e0] sm:$0xff]
    %v818 = vld [vmem:[#allocation8 + $0x2e8] sm:$0xff]
    %v819 = vld [vmem:[#allocation8 + $0x2f0] sm:$0xff]
    %v820 = vld [vmem:[#allocation8 + $0x2f8] sm:$0xff]
    %v821 = vld [vmem:[#allocation8 + $0x300] sm:$0xff]
    %v822 = vld [vmem:[#allocation8 + $0x308] sm:$0xff]
    %v823 = vld [vmem:[#allocation8 + $0x310] sm:$0xff]
    %v824 = vld [vmem:[#allocation8 + $0x318] sm:$0xff]
    %v825 = vld [vmem:[#allocation8 + $0x320] sm:$0xff]
    %v826 = vld [vmem:[#allocation8 + $0x328] sm:$0xff]
    %v827 = vld [vmem:[#allocation8 + $0x330] sm:$0xff]
    %v828 = vld [vmem:[#allocation8 + $0x338] sm:$0xff]
    %v829 = vld [vmem:[#allocation8 + $0x340] sm:$0xff]
    %v830 = vld [vmem:[#allocation8 + $0x348] sm:$0xff]
    %v831 = vld [vmem:[#allocation8 + $0x350] sm:$0xff]
    %v832 = vld [vmem:[#allocation8 + $0x358] sm:$0xff]
    %v833 = vld [vmem:[#allocation8 + $0x360] sm:$0xff]
    %v834 = vld [vmem:[#allocation8 + $0x368] sm:$0xff]
    %v835 = vld [vmem:[#allocation8 + $0x370] sm:$0xff]
    %v836 = vld [vmem:[#allocation8 + $0x378] sm:$0xff]
    %v837 = vld [vmem:[#allocation8 + $0x380] sm:$0xff]
    %v838 = vld [vmem:[#allocation8 + $0x388] sm:$0xff]
    %v839 = vld [vmem:[#allocation8 + $0x390] sm:$0xff]
    %v840 = vld [vmem:[#allocation8 + $0x398] sm:$0xff]
    %v841 = vld [vmem:[#allocation8 + $0x3a0] sm:$0xff]
    %v842 = vld [vmem:[#allocation8 + $0x3a8] sm:$0xff]
    %v843 = vld [vmem:[#allocation8 + $0x3b0] sm:$0xff]
    %v844 = vld [vmem:[#allocation8 + $0x3b8] sm:$0xff]
    %v845 = vld [vmem:[#allocation8 + $0x3c0] sm:$0xff]
    %v846 = vld [vmem:[#allocation8 + $0x3c8] sm:$0xff]
    %v847 = vld [vmem:[#allocation8 + $0x3d0] sm:$0xff]
    %v848 = vld [vmem:[#allocation8 + $0x3d8] sm:$0xff]
    %v849 = vld [vmem:[#allocation8 + $0x3e0] sm:$0xff]
    %v850 = vld [vmem:[#allocation8 + $0x3e8] sm:$0xff]
    %v851 = vld [vmem:[#allocation8 + $0x3f0] sm:$0xff]
    %v852 = vld [vmem:[#allocation8 + $0x3f8] sm:$0xff]
    %v853 = vld [vmem:[#allocation10] sm:$0xf]
    %v855 = vlaneseq
    %v856 = vshrl.u32 %v855, 7
    %v857 = vsub.s32 0, %v856
    %v858 = vrot.slane %v853, %v857
    %v859 = vlaneseq
    %v860 = vshrl.u32 %v859, 7
    %v861 = vsub.s32 1, %v860
    %v862 = vrot.slane %v853, %v861
    %v863 = vlaneseq
    %v864 = vshrl.u32 %v863, 7
    %v865 = vsub.s32 2, %v864
    %v866 = vrot.slane %v853, %v865
    %v867 = vlaneseq
    %v868 = vshrl.u32 %v867, 7
    %v869 = vsub.s32 3, %v868
    %v870 = vrot.slane %v853, %v869
    %875 = vmatprep.subr.mxu0 %v786
    %876 = vmatpush1.msra.mxu0 %v785
    %877 = vmatprep.subr.mxu0 %v782
    %878 = vmatpush1.msra.mxu0 %v781
    %879 = vmatprep.subr.mxu0 %v778
    %880 = vmatpush1.msra.mxu0 %v777
    %881 = vmatprep.subr.mxu0 %v774
    %882 = vmatpush1.msra.mxu0 %v773
    %883 = vmatprep.subr.mxu0 %v770
    %884 = vmatpush1.msra.mxu0 %v769
    %885 = vmatprep.subr.mxu0 %v766
    %886 = vmatpush1.msra.mxu0 %v765
    %887 = vmatprep.subr.mxu0 %v762
    %888 = vmatpush1.msra.mxu0 %v761
    %889 = vmatprep.subr.mxu0 %v758
    %890 = vmatpush1.msra.mxu0 %v757
    %891 = vmatprep.subr.mxu0 %v754
    %892 = vmatpush1.msra.mxu0 %v753
    %893 = vmatprep.subr.mxu0 %v750
    %894 = vmatpush1.msra.mxu0 %v749
    %895 = vmatprep.subr.mxu0 %v746
    %896 = vmatpush1.msra.mxu0 %v745
    %897 = vmatprep.subr.mxu0 %v742
    %898 = vmatpush1.msra.mxu0 %v741
    %899 = vmatprep.subr.mxu0 %v738
    %900 = vmatpush1.msra.mxu0 %v737
    %901 = vmatprep.subr.mxu0 %v734
    %902 = vmatpush1.msra.mxu0 %v733
    %903 = vmatprep.subr.mxu0 %v730
    %904 = vmatpush1.msra.mxu0 %v729
    %905 = vmatprep.subr.mxu0 %v726
    %906 = vmatpush1.msra.mxu0 %v725
    %907 = vmatprep.subr.mxu0 %v850
    %908 = vmatpush2.msra.mxu0 %v849
    %909 = vmatprep.subr.mxu0 %v846
    %910 = vmatpush2.msra.mxu0 %v845
    %911 = vmatprep.subr.mxu0 %v842
    %912 = vmatpush2.msra.mxu0 %v841
    %913 = vmatprep.subr.mxu0 %v838
    %914 = vmatpush2.msra.mxu0 %v837
    %915 = vmatprep.subr.mxu0 %v834
    %916 = vmatpush2.msra.mxu0 %v833
    %917 = vmatprep.subr.mxu0 %v830
    %918 = vmatpush2.msra.mxu0 %v829
    %919 = vmatprep.subr.mxu0 %v826
    %920 = vmatpush2.msra.mxu0 %v825
    %921 = vmatprep.subr.mxu0 %v822
    %922 = vmatpush2.msra.mxu0 %v821
    %923 = vmatprep.subr.mxu0 %v818
    %924 = vmatpush2.msra.mxu0 %v817
    %925 = vmatprep.subr.mxu0 %v814
    %926 = vmatpush2.msra.mxu0 %v813
    %927 = vmatprep.subr.mxu0 %v810
    %928 = vmatpush2.msra.mxu0 %v809
    %929 = vmatprep.subr.mxu0 %v806
    %930 = vmatpush2.msra.mxu0 %v805
    %931 = vmatprep.subr.mxu0 %v802
    %932 = vmatpush2.msra.mxu0 %v801
    %933 = vmatprep.subr.mxu0 %v798
    %934 = vmatpush2.msra.mxu0 %v797
    %935 = vmatprep.subr.mxu0 %v794
    %936 = vmatpush2.msra.mxu0 %v793
    %937 = vmatprep.subr.mxu0 %v790
    %938 = vmatpush2.msra.mxu0 %v789
    %939 = vmatprep.mubr.f32.mxu0 %v724
    %940 = vmatmul.mubr.f32.gmra.mxu0 %v723
    %v941 = vpop.f32.mrf.mxu0
    %v942 = vadd.f32 %v858, %v941
    %v943 = vpop.f32.mrf.mxu0
    %v944 = vadd.f32 %v862, %v943
    %945 = vdwg.mxu0
    %946 = vmatprep.subr.mxu0 %v788
    %947 = vmatpush1.msra.mxu0 %v787
    %948 = vmatprep.subr.mxu0 %v784
    %949 = vmatpush1.msra.mxu0 %v783
    %950 = vmatprep.subr.mxu0 %v780
    %951 = vmatpush1.msra.mxu0 %v779
    %952 = vmatprep.subr.mxu0 %v776
    %953 = vmatpush1.msra.mxu0 %v775
    %954 = vmatprep.subr.mxu0 %v772
    %955 = vmatpush1.msra.mxu0 %v771
    %956 = vmatprep.subr.mxu0 %v768
    %957 = vmatpush1.msra.mxu0 %v767
    %958 = vmatprep.subr.mxu0 %v764
    %959 = vmatpush1.msra.mxu0 %v763
    %960 = vmatprep.subr.mxu0 %v760
    %961 = vmatpush1.msra.mxu0 %v759
    %962 = vmatprep.subr.mxu0 %v756
    %963 = vmatpush1.msra.mxu0 %v755
    %964 = vmatprep.subr.mxu0 %v752
    %965 = vmatpush1.msra.mxu0 %v751
    %966 = vmatprep.subr.mxu0 %v748
    %967 = vmatpush1.msra.mxu0 %v747
    %968 = vmatprep.subr.mxu0 %v744
    %969 = vmatpush1.msra.mxu0 %v743
    %970 = vmatprep.subr.mxu0 %v740
    %971 = vmatpush1.msra.mxu0 %v739
    %972 = vmatprep.subr.mxu0 %v736
    %973 = vmatpush1.msra.mxu0 %v735
    %974 = vmatprep.subr.mxu0 %v732
    %975 = vmatpush1.msra.mxu0 %v731
    %976 = vmatprep.subr.mxu0 %v728
    %977 = vmatpush1.msra.mxu0 %v727
    %978 = vmatprep.subr.mxu0 %v852
    %979 = vmatpush2.msra.mxu0 %v851
    %980 = vmatprep.subr.mxu0 %v848
    %981 = vmatpush2.msra.mxu0 %v847
    %982 = vmatprep.subr.mxu0 %v844
    %983 = vmatpush2.msra.mxu0 %v843
    %984 = vmatprep.subr.mxu0 %v840
    %985 = vmatpush2.msra.mxu0 %v839
    %986 = vmatprep.subr.mxu0 %v836
    %987 = vmatpush2.msra.mxu0 %v835
    %988 = vmatprep.subr.mxu0 %v832
    %989 = vmatpush2.msra.mxu0 %v831
    %990 = vmatprep.subr.mxu0 %v828
    %991 = vmatpush2.msra.mxu0 %v827
    %992 = vmatprep.subr.mxu0 %v824
    %993 = vmatpush2.msra.mxu0 %v823
    %994 = vmatprep.subr.mxu0 %v820
    %995 = vmatpush2.msra.mxu0 %v819
    %996 = vmatprep.subr.mxu0 %v816
    %997 = vmatpush2.msra.mxu0 %v815
    %998 = vmatprep.subr.mxu0 %v812
    %999 = vmatpush2.msra.mxu0 %v811
    %1000 = vmatprep.subr.mxu0 %v808
    %1001 = vmatpush2.msra.mxu0 %v807
    %1002 = vmatprep.subr.mxu0 %v804
    %1003 = vmatpush2.msra.mxu0 %v803
    %1004 = vmatprep.subr.mxu0 %v800
    %1005 = vmatpush2.msra.mxu0 %v799
    %1006 = vmatprep.subr.mxu0 %v796
    %1007 = vmatpush2.msra.mxu0 %v795
    %1008 = vmatprep.subr.mxu0 %v792
    %1009 = vmatpush2.msra.mxu0 %v791
    %1010 = vmatprep.mubr.f32.mxu0 %v724
    %1011 = vmatmul.mubr.f32.gmra.mxu0 %v723
    %v1012 = vpop.f32.mrf.mxu0
    %v1013 = vadd.f32 %v866, %v1012
    %v1014 = vpop.f32.mrf.mxu0
    %v1015 = vadd.f32 %v870, %v1014
    %1016 = vdwg.mxu0
    %v1017 = vxor.u32 %v942, 2147483648
    %v1018 = vmul.f32 %v1017, 1.442695
    %v1019 = vpow.pop %v1018
    %v1020 = vadd.f32 %v1019, 1.0
    %v1021 = vrcp.pop %v1020
    %v1022 = vmul.f32 1.0, %v1021
    %v1023 = vxor.u32 %v944, 2147483648
    %v1024 = vmul.f32 %v1023, 1.442695
    %v1025 = vpow.pop %v1024
    %v1026 = vadd.f32 %v1025, 1.0
    %v1027 = vrcp.pop %v1026
    %v1028 = vmul.f32 1.0, %v1027
    %v1029 = vtanh.pop %v1013
    %v1030 = vxor.u32 %v1015, 2147483648
    %v1031 = vmul.f32 %v1030, 1.442695
    %v1032 = vpow.pop %v1031
    %v1033 = vadd.f32 %v1032, 1.0
    %v1034 = vrcp.pop %v1033
    %v1035 = vmul.f32 1.0, %v1034
    %v1036 = vld [vmem:[#allocation3] sm:$0xff]
    %v1037 = vmul.f32 %v1028, %v1036
    %v1038 = vmul.f32 %v1022, %v1029
    %v1039 = vadd.f32 %v1037, %v1038
    %v1040 = vtanh.pop %v1039
    %v1041 = vmul.f32 %v1035, %v1040
    %1042 = vst [vmem:[#allocation3] sm:$0xff] %v1039
    %1043 = vst [vmem:[#allocation2] sm:$0xff] %v1041
    %1044 = vst [vmem:[#allocation4] sm:$0xff] %v1041
    %v1045 = vld [vmem:[%s390] sm:$0xff]
    %1046 = vst [vmem:[#allocation4 + $0x8] sm:$0xff] %v1045
    %v1047 = vld [vmem:[#allocation4] sm:$0xff]
    %v1048 = vld [vmem:[#allocation4 + $0x8] sm:$0xff]
    %v1049 = vld [vmem:[%s395] sm:$0xff]
    %v1050 = vld [vmem:[%s395 + $0x8] sm:$0xff]
    %v1051 = vld [vmem:[%s395 + $0x10] sm:$0xff]
    %v1052 = vld [vmem:[%s395 + $0x18] sm:$0xff]
    %v1053 = vld [vmem:[%s395 + $0x20] sm:$0xff]
    %v1054 = vld [vmem:[%s395 + $0x28] sm:$0xff]
    %v1055 = vld [vmem:[%s395 + $0x30] sm:$0xff]
    %v1056 = vld [vmem:[%s395 + $0x38] sm:$0xff]
    %v1057 = vld [vmem:[%s395 + $0x40] sm:$0xff]
    %v1058 = vld [vmem:[%s395 + $0x48] sm:$0xff]
    %v1059 = vld [vmem:[%s395 + $0x50] sm:$0xff]
    %v1060 = vld [vmem:[%s395 + $0x58] sm:$0xff]
    %v1061 = vld [vmem:[%s395 + $0x60] sm:$0xff]
    %v1062 = vld [vmem:[%s395 + $0x68] sm:$0xff]
    %v1063 = vld [vmem:[%s395 + $0x70] sm:$0xff]
    %v1064 = vld [vmem:[%s395 + $0x78] sm:$0xff]
    %v1065 = vld [vmem:[%s395 + $0x80] sm:$0xff]
    %v1066 = vld [vmem:[%s395 + $0x88] sm:$0xff]
    %v1067 = vld [vmem:[%s395 + $0x90] sm:$0xff]
    %v1068 = vld [vmem:[%s395 + $0x98] sm:$0xff]
    %v1069 = vld [vmem:[%s395 + $0xa0] sm:$0xff]
    %v1070 = vld [vmem:[%s395 + $0xa8] sm:$0xff]
    %v1071 = vld [vmem:[%s395 + $0xb0] sm:$0xff]
    %v1072 = vld [vmem:[%s395 + $0xb8] sm:$0xff]
    %v1073 = vld [vmem:[%s395 + $0xc0] sm:$0xff]
    %v1074 = vld [vmem:[%s395 + $0xc8] sm:$0xff]
    %v1075 = vld [vmem:[%s395 + $0xd0] sm:$0xff]
    %v1076 = vld [vmem:[%s395 + $0xd8] sm:$0xff]
    %v1077 = vld [vmem:[%s395 + $0xe0] sm:$0xff]
    %v1078 = vld [vmem:[%s395 + $0xe8] sm:$0xff]
    %v1079 = vld [vmem:[%s395 + $0xf0] sm:$0xff]
    %v1080 = vld [vmem:[%s395 + $0xf8] sm:$0xff]
    %v1081 = vld [vmem:[%s395 + $0x100] sm:$0xff]
    %v1082 = vld [vmem:[%s395 + $0x108] sm:$0xff]
    %v1083 = vld [vmem:[%s395 + $0x110] sm:$0xff]
    %v1084 = vld [vmem:[%s395 + $0x118] sm:$0xff]
    %v1085 = vld [vmem:[%s395 + $0x120] sm:$0xff]
    %v1086 = vld [vmem:[%s395 + $0x128] sm:$0xff]
    %v1087 = vld [vmem:[%s395 + $0x130] sm:$0xff]
    %v1088 = vld [vmem:[%s395 + $0x138] sm:$0xff]
    %v1089 = vld [vmem:[%s395 + $0x140] sm:$0xff]
    %v1090 = vld [vmem:[%s395 + $0x148] sm:$0xff]
    %v1091 = vld [vmem:[%s395 + $0x150] sm:$0xff]
    %v1092 = vld [vmem:[%s395 + $0x158] sm:$0xff]
    %v1093 = vld [vmem:[%s395 + $0x160] sm:$0xff]
    %v1094 = vld [vmem:[%s395 + $0x168] sm:$0xff]
    %v1095 = vld [vmem:[%s395 + $0x170] sm:$0xff]
    %v1096 = vld [vmem:[%s395 + $0x178] sm:$0xff]
    %v1097 = vld [vmem:[%s395 + $0x180] sm:$0xff]
    %v1098 = vld [vmem:[%s395 + $0x188] sm:$0xff]
    %v1099 = vld [vmem:[%s395 + $0x190] sm:$0xff]
    %v1100 = vld [vmem:[%s395 + $0x198] sm:$0xff]
    %v1101 = vld [vmem:[%s395 + $0x1a0] sm:$0xff]
    %v1102 = vld [vmem:[%s395 + $0x1a8] sm:$0xff]
    %v1103 = vld [vmem:[%s395 + $0x1b0] sm:$0xff]
    %v1104 = vld [vmem:[%s395 + $0x1b8] sm:$0xff]
    %v1105 = vld [vmem:[%s395 + $0x1c0] sm:$0xff]
    %v1106 = vld [vmem:[%s395 + $0x1c8] sm:$0xff]
    %v1107 = vld [vmem:[%s395 + $0x1d0] sm:$0xff]
    %v1108 = vld [vmem:[%s395 + $0x1d8] sm:$0xff]
    %v1109 = vld [vmem:[%s395 + $0x1e0] sm:$0xff]
    %v1110 = vld [vmem:[%s395 + $0x1e8] sm:$0xff]
    %v1111 = vld [vmem:[%s395 + $0x1f0] sm:$0xff]
    %v1112 = vld [vmem:[%s395 + $0x1f8] sm:$0xff]
    %v1113 = vld [vmem:[%s395 + $0x200] sm:$0xff]
    %v1114 = vld [vmem:[%s395 + $0x208] sm:$0xff]
    %v1115 = vld [vmem:[%s395 + $0x210] sm:$0xff]
    %v1116 = vld [vmem:[%s395 + $0x218] sm:$0xff]
    %v1117 = vld [vmem:[%s395 + $0x220] sm:$0xff]
    %v1118 = vld [vmem:[%s395 + $0x228] sm:$0xff]
    %v1119 = vld [vmem:[%s395 + $0x230] sm:$0xff]
    %v1120 = vld [vmem:[%s395 + $0x238] sm:$0xff]
    %v1121 = vld [vmem:[%s395 + $0x240] sm:$0xff]
    %v1122 = vld [vmem:[%s395 + $0x248] sm:$0xff]
    %v1123 = vld [vmem:[%s395 + $0x250] sm:$0xff]
    %v1124 = vld [vmem:[%s395 + $0x258] sm:$0xff]
    %v1125 = vld [vmem:[%s395 + $0x260] sm:$0xff]
    %v1126 = vld [vmem:[%s395 + $0x268] sm:$0xff]
    %v1127 = vld [vmem:[%s395 + $0x270] sm:$0xff]
    %v1128 = vld [vmem:[%s395 + $0x278] sm:$0xff]
    %v1129 = vld [vmem:[%s395 + $0x280] sm:$0xff]
    %v1130 = vld [vmem:[%s395 + $0x288] sm:$0xff]
    %v1131 = vld [vmem:[%s395 + $0x290] sm:$0xff]
    %v1132 = vld [vmem:[%s395 + $0x298] sm:$0xff]
    %v1133 = vld [vmem:[%s395 + $0x2a0] sm:$0xff]
    %v1134 = vld [vmem:[%s395 + $0x2a8] sm:$0xff]
    %v1135 = vld [vmem:[%s395 + $0x2b0] sm:$0xff]
    %v1136 = vld [vmem:[%s395 + $0x2b8] sm:$0xff]
    %v1137 = vld [vmem:[%s395 + $0x2c0] sm:$0xff]
    %v1138 = vld [vmem:[%s395 + $0x2c8] sm:$0xff]
    %v1139 = vld [vmem:[%s395 + $0x2d0] sm:$0xff]
    %v1140 = vld [vmem:[%s395 + $0x2d8] sm:$0xff]
    %v1141 = vld [vmem:[%s395 + $0x2e0] sm:$0xff]
    %v1142 = vld [vmem:[%s395 + $0x2e8] sm:$0xff]
    %v1143 = vld [vmem:[%s395 + $0x2f0] sm:$0xff]
    %v1144 = vld [vmem:[%s395 + $0x2f8] sm:$0xff]
    %v1145 = vld [vmem:[%s395 + $0x300] sm:$0xff]
    %v1146 = vld [vmem:[%s395 + $0x308] sm:$0xff]
    %v1147 = vld [vmem:[%s395 + $0x310] sm:$0xff]
    %v1148 = vld [vmem:[%s395 + $0x318] sm:$0xff]
    %v1149 = vld [vmem:[%s395 + $0x320] sm:$0xff]
    %v1150 = vld [vmem:[%s395 + $0x328] sm:$0xff]
    %v1151 = vld [vmem:[%s395 + $0x330] sm:$0xff]
    %v1152 = vld [vmem:[%s395 + $0x338] sm:$0xff]
    %v1153 = vld [vmem:[%s395 + $0x340] sm:$0xff]
    %v1154 = vld [vmem:[%s395 + $0x348] sm:$0xff]
    %v1155 = vld [vmem:[%s395 + $0x350] sm:$0xff]
    %v1156 = vld [vmem:[%s395 + $0x358] sm:$0xff]
    %v1157 = vld [vmem:[%s395 + $0x360] sm:$0xff]
    %v1158 = vld [vmem:[%s395 + $0x368] sm:$0xff]
    %v1159 = vld [vmem:[%s395 + $0x370] sm:$0xff]
    %v1160 = vld [vmem:[%s395 + $0x378] sm:$0xff]
    %v1161 = vld [vmem:[%s395 + $0x380] sm:$0xff]
    %v1162 = vld [vmem:[%s395 + $0x388] sm:$0xff]
    %v1163 = vld [vmem:[%s395 + $0x390] sm:$0xff]
    %v1164 = vld [vmem:[%s395 + $0x398] sm:$0xff]
    %v1165 = vld [vmem:[%s395 + $0x3a0] sm:$0xff]
    %v1166 = vld [vmem:[%s395 + $0x3a8] sm:$0xff]
    %v1167 = vld [vmem:[%s395 + $0x3b0] sm:$0xff]
    %v1168 = vld [vmem:[%s395 + $0x3b8] sm:$0xff]
    %v1169 = vld [vmem:[%s395 + $0x3c0] sm:$0xff]
    %v1170 = vld [vmem:[%s395 + $0x3c8] sm:$0xff]
    %v1171 = vld [vmem:[%s395 + $0x3d0] sm:$0xff]
    %v1172 = vld [vmem:[%s395 + $0x3d8] sm:$0xff]
    %v1173 = vld [vmem:[%s395 + $0x3e0] sm:$0xff]
    %v1174 = vld [vmem:[%s395 + $0x3e8] sm:$0xff]
    %v1175 = vld [vmem:[%s395 + $0x3f0] sm:$0xff]
    %v1176 = vld [vmem:[%s395 + $0x3f8] sm:$0xff]
    %v1177 = vld [vmem:[%s524] sm:$0xf]
    %v1179 = vlaneseq
    %v1180 = vshrl.u32 %v1179, 7
    %v1181 = vsub.s32 0, %v1180
    %v1182 = vrot.slane %v1177, %v1181
    %v1183 = vlaneseq
    %v1184 = vshrl.u32 %v1183, 7
    %v1185 = vsub.s32 1, %v1184
    %v1186 = vrot.slane %v1177, %v1185
    %v1187 = vlaneseq
    %v1188 = vshrl.u32 %v1187, 7
    %v1189 = vsub.s32 2, %v1188
    %v1190 = vrot.slane %v1177, %v1189
    %v1191 = vlaneseq
    %v1192 = vshrl.u32 %v1191, 7
    %v1193 = vsub.s32 3, %v1192
    %v1194 = vrot.slane %v1177, %v1193
    %1199 = vmatprep.subr.mxu0 %v1110
    %1200 = vmatpush1.msra.mxu0 %v1109
    %1201 = vmatprep.subr.mxu0 %v1106
    %1202 = vmatpush1.msra.mxu0 %v1105
    %1203 = vmatprep.subr.mxu0 %v1102
    %1204 = vmatpush1.msra.mxu0 %v1101
    %1205 = vmatprep.subr.mxu0 %v1098
    %1206 = vmatpush1.msra.mxu0 %v1097
    %1207 = vmatprep.subr.mxu0 %v1094
    %1208 = vmatpush1.msra.mxu0 %v1093
    %1209 = vmatprep.subr.mxu0 %v1090
    %1210 = vmatpush1.msra.mxu0 %v1089
    %1211 = vmatprep.subr.mxu0 %v1086
    %1212 = vmatpush1.msra.mxu0 %v1085
    %1213 = vmatprep.subr.mxu0 %v1082
    %1214 = vmatpush1.msra.mxu0 %v1081
    %1215 = vmatprep.subr.mxu0 %v1078
    %1216 = vmatpush1.msra.mxu0 %v1077
    %1217 = vmatprep.subr.mxu0 %v1074
    %1218 = vmatpush1.msra.mxu0 %v1073
    %1219 = vmatprep.subr.mxu0 %v1070
    %1220 = vmatpush1.msra.mxu0 %v1069
    %1221 = vmatprep.subr.mxu0 %v1066
    %1222 = vmatpush1.msra.mxu0 %v1065
    %1223 = vmatprep.subr.mxu0 %v1062
    %1224 = vmatpush1.msra.mxu0 %v1061
    %1225 = vmatprep.subr.mxu0 %v1058
    %1226 = vmatpush1.msra.mxu0 %v1057
    %1227 = vmatprep.subr.mxu0 %v1054
    %1228 = vmatpush1.msra.mxu0 %v1053
    %1229 = vmatprep.subr.mxu0 %v1050
    %1230 = vmatpush1.msra.mxu0 %v1049
    %1231 = vmatprep.subr.mxu0 %v1174
    %1232 = vmatpush2.msra.mxu0 %v1173
    %1233 = vmatprep.subr.mxu0 %v1170
    %1234 = vmatpush2.msra.mxu0 %v1169
    %1235 = vmatprep.subr.mxu0 %v1166
    %1236 = vmatpush2.msra.mxu0 %v1165
    %1237 = vmatprep.subr.mxu0 %v1162
    %1238 = vmatpush2.msra.mxu0 %v1161
    %1239 = vmatprep.subr.mxu0 %v1158
    %1240 = vmatpush2.msra.mxu0 %v1157
    %1241 = vmatprep.subr.mxu0 %v1154
    %1242 = vmatpush2.msra.mxu0 %v1153
    %1243 = vmatprep.subr.mxu0 %v1150
    %1244 = vmatpush2.msra.mxu0 %v1149
    %1245 = vmatprep.subr.mxu0 %v1146
    %1246 = vmatpush2.msra.mxu0 %v1145
    %1247 = vmatprep.subr.mxu0 %v1142
    %1248 = vmatpush2.msra.mxu0 %v1141
    %1249 = vmatprep.subr.mxu0 %v1138
    %1250 = vmatpush2.msra.mxu0 %v1137
    %1251 = vmatprep.subr.mxu0 %v1134
    %1252 = vmatpush2.msra.mxu0 %v1133
    %1253 = vmatprep.subr.mxu0 %v1130
    %1254 = vmatpush2.msra.mxu0 %v1129
    %1255 = vmatprep.subr.mxu0 %v1126
    %1256 = vmatpush2.msra.mxu0 %v1125
    %1257 = vmatprep.subr.mxu0 %v1122
    %1258 = vmatpush2.msra.mxu0 %v1121
    %1259 = vmatprep.subr.mxu0 %v1118
    %1260 = vmatpush2.msra.mxu0 %v1117
    %1261 = vmatprep.subr.mxu0 %v1114
    %1262 = vmatpush2.msra.mxu0 %v1113
    %1263 = vmatprep.mubr.f32.mxu0 %v1048
    %1264 = vmatmul.mubr.f32.gmra.mxu0 %v1047
    %v1265 = vpop.f32.mrf.mxu0
    %v1266 = vadd.f32 %v1182, %v1265
    %v1267 = vpop.f32.mrf.mxu0
    %v1268 = vadd.f32 %v1186, %v1267
    %1269 = vdwg.mxu0
    %1270 = vmatprep.subr.mxu0 %v1112
    %1271 = vmatpush1.msra.mxu0 %v1111
    %1272 = vmatprep.subr.mxu0 %v1108
    %1273 = vmatpush1.msra.mxu0 %v1107
    %1274 = vmatprep.subr.mxu0 %v1104
    %1275 = vmatpush1.msra.mxu0 %v1103
    %1276 = vmatprep.subr.mxu0 %v1100
    %1277 = vmatpush1.msra.mxu0 %v1099
    %1278 = vmatprep.subr.mxu0 %v1096
    %1279 = vmatpush1.msra.mxu0 %v1095
    %1280 = vmatprep.subr.mxu0 %v1092
    %1281 = vmatpush1.msra.mxu0 %v1091
    %1282 = vmatprep.subr.mxu0 %v1088
    %1283 = vmatpush1.msra.mxu0 %v1087
    %1284 = vmatprep.subr.mxu0 %v1084
    %1285 = vmatpush1.msra.mxu0 %v1083
    %1286 = vmatprep.subr.mxu0 %v1080
    %1287 = vmatpush1.msra.mxu0 %v1079
    %1288 = vmatprep.subr.mxu0 %v1076
    %1289 = vmatpush1.msra.mxu0 %v1075
    %1290 = vmatprep.subr.mxu0 %v1072
    %1291 = vmatpush1.msra.mxu0 %v1071
    %1292 = vmatprep.subr.mxu0 %v1068
    %1293 = vmatpush1.msra.mxu0 %v1067
    %1294 = vmatprep.subr.mxu0 %v1064
    %1295 = vmatpush1.msra.mxu0 %v1063
    %1296 = vmatprep.subr.mxu0 %v1060
    %1297 = vmatpush1.msra.mxu0 %v1059
    %1298 = vmatprep.subr.mxu0 %v1056
    %1299 = vmatpush1.msra.mxu0 %v1055
    %1300 = vmatprep.subr.mxu0 %v1052
    %1301 = vmatpush1.msra.mxu0 %v1051
    %1302 = vmatprep.subr.mxu0 %v1176
    %1303 = vmatpush2.msra.mxu0 %v1175
    %1304 = vmatprep.subr.mxu0 %v1172
    %1305 = vmatpush2.msra.mxu0 %v1171
    %1306 = vmatprep.subr.mxu0 %v1168
    %1307 = vmatpush2.msra.mxu0 %v1167
    %1308 = vmatprep.subr.mxu0 %v1164
    %1309 = vmatpush2.msra.mxu0 %v1163
    %1310 = vmatprep.subr.mxu0 %v1160
    %1311 = vmatpush2.msra.mxu0 %v1159
    %1312 = vmatprep.subr.mxu0 %v1156
    %1313 = vmatpush2.msra.mxu0 %v1155
    %1314 = vmatprep.subr.mxu0 %v1152
    %1315 = vmatpush2.msra.mxu0 %v1151
    %1316 = vmatprep.subr.mxu0 %v1148
    %1317 = vmatpush2.msra.mxu0 %v1147
    %1318 = vmatprep.subr.mxu0 %v1144
    %1319 = vmatpush2.msra.mxu0 %v1143
    %1320 = vmatprep.subr.mxu0 %v1140
    %1321 = vmatpush2.msra.mxu0 %v1139
    %1322 = vmatprep.subr.mxu0 %v1136
    %1323 = vmatpush2.msra.mxu0 %v1135
    %1324 = vmatprep.subr.mxu0 %v1132
    %1325 = vmatpush2.msra.mxu0 %v1131
    %1326 = vmatprep.subr.mxu0 %v1128
    %1327 = vmatpush2.msra.mxu0 %v1127
    %1328 = vmatprep.subr.mxu0 %v1124
    %1329 = vmatpush2.msra.mxu0 %v1123
    %1330 = vmatprep.subr.mxu0 %v1120
    %1331 = vmatpush2.msra.mxu0 %v1119
    %1332 = vmatprep.subr.mxu0 %v1116
    %1333 = vmatpush2.msra.mxu0 %v1115
    %1334 = vmatprep.mubr.f32.mxu0 %v1048
    %1335 = vmatmul.mubr.f32.gmra.mxu0 %v1047
    %v1336 = vpop.f32.mrf.mxu0
    %v1337 = vadd.f32 %v1190, %v1336
    %v1338 = vpop.f32.mrf.mxu0
    %v1339 = vadd.f32 %v1194, %v1338
    %1340 = vdwg.mxu0
    %v1341 = vxor.u32 %v1266, 2147483648
    %v1342 = vmul.f32 %v1341, 1.442695
    %v1343 = vpow.pop %v1342
    %v1344 = vadd.f32 %v1343, 1.0
    %v1345 = vrcp.pop %v1344
    %v1346 = vmul.f32 1.0, %v1345
    %v1347 = vxor.u32 %v1268, 2147483648
    %v1348 = vmul.f32 %v1347, 1.442695
    %v1349 = vpow.pop %v1348
    %v1350 = vadd.f32 %v1349, 1.0
    %v1351 = vrcp.pop %v1350
    %v1352 = vmul.f32 1.0, %v1351
    %v1353 = vtanh.pop %v1337
    %v1354 = vxor.u32 %v1339, 2147483648
    %v1355 = vmul.f32 %v1354, 1.442695
    %v1356 = vpow.pop %v1355
    %v1357 = vadd.f32 %v1356, 1.0
    %v1358 = vrcp.pop %v1357
    %v1359 = vmul.f32 1.0, %v1358
    %v1360 = vld [vmem:[%s708] sm:$0xff]
    %v1361 = vmul.f32 %v1352, %v1360
    %v1362 = vmul.f32 %v1346, %v1353
    %v1363 = vadd.f32 %v1361, %v1362
    %v1364 = vtanh.pop %v1363
    %v1365 = vmul.f32 %v1359, %v1364
    %1366 = vst [vmem:[%s708] sm:$0xff] %v1363
    %1367 = vst [vmem:[%s390] sm:$0xff] %v1365
    %s1368 = scalar_lea.vmem [#allocation11], 8
    %1369 = vst [vmem:[%s1368] sm:$0xff] %v1365
    %s1370 = scalar_lea.vmem [#allocation5], 16
    %v1371 = vld [vmem:[%s1370] sm:$0xff]
    %1372 = vst [vmem:[#allocation4] sm:$0xff] %v1371
    %v1373 = vld [vmem:[#allocation2] sm:$0xff]
    %1374 = vst [vmem:[#allocation4 + $0x8] sm:$0xff] %v1373
    %v1375 = vld [vmem:[#allocation4] sm:$0xff]
    %v1376 = vld [vmem:[#allocation4 + $0x8] sm:$0xff]
    %v1377 = vld [vmem:[#allocation8] sm:$0xff]
    %v1378 = vld [vmem:[#allocation8 + $0x8] sm:$0xff]
    %v1379 = vld [vmem:[#allocation8 + $0x10] sm:$0xff]
    %v1380 = vld [vmem:[#allocation8 + $0x18] sm:$0xff]
    %v1381 = vld [vmem:[#allocation8 + $0x20] sm:$0xff]
    %v1382 = vld [vmem:[#allocation8 + $0x28] sm:$0xff]
    %v1383 = vld [vmem:[#allocation8 + $0x30] sm:$0xff]
    %v1384 = vld [vmem:[#allocation8 + $0x38] sm:$0xff]
    %v1385 = vld [vmem:[#allocation8 + $0x40] sm:$0xff]
    %v1386 = vld [vmem:[#allocation8 + $0x48] sm:$0xff]
    %v1387 = vld [vmem:[#allocation8 + $0x50] sm:$0xff]
    %v1388 = vld [vmem:[#allocation8 + $0x58] sm:$0xff]
    %v1389 = vld [vmem:[#allocation8 + $0x60] sm:$0xff]
    %v1390 = vld [vmem:[#allocation8 + $0x68] sm:$0xff]
    %v1391 = vld [vmem:[#allocation8 + $0x70] sm:$0xff]
    %v1392 = vld [vmem:[#allocation8 + $0x78] sm:$0xff]
    %v1393 = vld [vmem:[#allocation8 + $0x80] sm:$0xff]
    %v1394 = vld [vmem:[#allocation8 + $0x88] sm:$0xff]
    %v1395 = vld [vmem:[#allocation8 + $0x90] sm:$0xff]
    %v1396 = vld [vmem:[#allocation8 + $0x98] sm:$0xff]
    %v1397 = vld [vmem:[#allocation8 + $0xa0] sm:$0xff]
    %v1398 = vld [vmem:[#allocation8 + $0xa8] sm:$0xff]
    %v1399 = vld [vmem:[#allocation8 + $0xb0] sm:$0xff]
    %v1400 = vld [vmem:[#allocation8 + $0xb8] sm:$0xff]
    %v1401 = vld [vmem:[#allocation8 + $0xc0] sm:$0xff]
    %v1402 = vld [vmem:[#allocation8 + $0xc8] sm:$0xff]
    %v1403 = vld [vmem:[#allocation8 + $0xd0] sm:$0xff]
    %v1404 = vld [vmem:[#allocation8 + $0xd8] sm:$0xff]
    %v1405 = vld [vmem:[#allocation8 + $0xe0] sm:$0xff]
    %v1406 = vld [vmem:[#allocation8 + $0xe8] sm:$0xff]
    %v1407 = vld [vmem:[#allocation8 + $0xf0] sm:$0xff]
    %v1408 = vld [vmem:[#allocation8 + $0xf8] sm:$0xff]
    %v1409 = vld [vmem:[#allocation8 + $0x100] sm:$0xff]
    %v1410 = vld [vmem:[#allocation8 + $0x108] sm:$0xff]
    %v1411 = vld [vmem:[#allocation8 + $0x110] sm:$0xff]
    %v1412 = vld [vmem:[#allocation8 + $0x118] sm:$0xff]
    %v1413 = vld [vmem:[#allocation8 + $0x120] sm:$0xff]
    %v1414 = vld [vmem:[#allocation8 + $0x128] sm:$0xff]
    %v1415 = vld [vmem:[#allocation8 + $0x130] sm:$0xff]
    %v1416 = vld [vmem:[#allocation8 + $0x138] sm:$0xff]
    %v1417 = vld [vmem:[#allocation8 + $0x140] sm:$0xff]
    %v1418 = vld [vmem:[#allocation8 + $0x148] sm:$0xff]
    %v1419 = vld [vmem:[#allocation8 + $0x150] sm:$0xff]
    %v1420 = vld [vmem:[#allocation8 + $0x158] sm:$0xff]
    %v1421 = vld [vmem:[#allocation8 + $0x160] sm:$0xff]
    %v1422 = vld [vmem:[#allocation8 + $0x168] sm:$0xff]
    %v1423 = vld [vmem:[#allocation8 + $0x170] sm:$0xff]
    %v1424 = vld [vmem:[#allocation8 + $0x178] sm:$0xff]
    %v1425 = vld [vmem:[#allocation8 + $0x180] sm:$0xff]
    %v1426 = vld [vmem:[#allocation8 + $0x188] sm:$0xff]
    %v1427 = vld [vmem:[#allocation8 + $0x190] sm:$0xff]
    %v1428 = vld [vmem:[#allocation8 + $0x198] sm:$0xff]
    %v1429 = vld [vmem:[#allocation8 + $0x1a0] sm:$0xff]
    %v1430 = vld [vmem:[#allocation8 + $0x1a8] sm:$0xff]
    %v1431 = vld [vmem:[#allocation8 + $0x1b0] sm:$0xff]
    %v1432 = vld [vmem:[#allocation8 + $0x1b8] sm:$0xff]
    %v1433 = vld [vmem:[#allocation8 + $0x1c0] sm:$0xff]
    %v1434 = vld [vmem:[#allocation8 + $0x1c8] sm:$0xff]
    %v1435 = vld [vmem:[#allocation8 + $0x1d0] sm:$0xff]
    %v1436 = vld [vmem:[#allocation8 + $0x1d8] sm:$0xff]
    %v1437 = vld [vmem:[#allocation8 + $0x1e0] sm:$0xff]
    %v1438 = vld [vmem:[#allocation8 + $0x1e8] sm:$0xff]
    %v1439 = vld [vmem:[#allocation8 + $0x1f0] sm:$0xff]
    %v1440 = vld [vmem:[#allocation8 + $0x1f8] sm:$0xff]
    %v1441 = vld [vmem:[#allocation8 + $0x200] sm:$0xff]
    %v1442 = vld [vmem:[#allocation8 + $0x208] sm:$0xff]
    %v1443 = vld [vmem:[#allocation8 + $0x210] sm:$0xff]
    %v1444 = vld [vmem:[#allocation8 + $0x218] sm:$0xff]
    %v1445 = vld [vmem:[#allocation8 + $0x220] sm:$0xff]
    %v1446 = vld [vmem:[#allocation8 + $0x228] sm:$0xff]
    %v1447 = vld [vmem:[#allocation8 + $0x230] sm:$0xff]
    %v1448 = vld [vmem:[#allocation8 + $0x238] sm:$0xff]
    %v1449 = vld [vmem:[#allocation8 + $0x240] sm:$0xff]
    %v1450 = vld [vmem:[#allocation8 + $0x248] sm:$0xff]
    %v1451 = vld [vmem:[#allocation8 + $0x250] sm:$0xff]
    %v1452 = vld [vmem:[#allocation8 + $0x258] sm:$0xff]
    %v1453 = vld [vmem:[#allocation8 + $0x260] sm:$0xff]
    %v1454 = vld [vmem:[#allocation8 + $0x268] sm:$0xff]
    %v1455 = vld [vmem:[#allocation8 + $0x270] sm:$0xff]
    %v1456 = vld [vmem:[#allocation8 + $0x278] sm:$0xff]
    %v1457 = vld [vmem:[#allocation8 + $0x280] sm:$0xff]
    %v1458 = vld [vmem:[#allocation8 + $0x288] sm:$0xff]
    %v1459 = vld [vmem:[#allocation8 + $0x290] sm:$0xff]
    %v1460 = vld [vmem:[#allocation8 + $0x298] sm:$0xff]
    %v1461 = vld [vmem:[#allocation8 + $0x2a0] sm:$0xff]
    %v1462 = vld [vmem:[#allocation8 + $0x2a8] sm:$0xff]
    %v1463 = vld [vmem:[#allocation8 + $0x2b0] sm:$0xff]
    %v1464 = vld [vmem:[#allocation8 + $0x2b8] sm:$0xff]
    %v1465 = vld [vmem:[#allocation8 + $0x2c0] sm:$0xff]
    %v1466 = vld [vmem:[#allocation8 + $0x2c8] sm:$0xff]
    %v1467 = vld [vmem:[#allocation8 + $0x2d0] sm:$0xff]
    %v1468 = vld [vmem:[#allocation8 + $0x2d8] sm:$0xff]
    %v1469 = vld [vmem:[#allocation8 + $0x2e0] sm:$0xff]
    %v1470 = vld [vmem:[#allocation8 + $0x2e8] sm:$0xff]
    %v1471 = vld [vmem:[#allocation8 + $0x2f0] sm:$0xff]
    %v1472 = vld [vmem:[#allocation8 + $0x2f8] sm:$0xff]
    %v1473 = vld [vmem:[#allocation8 + $0x300] sm:$0xff]
    %v1474 = vld [vmem:[#allocation8 + $0x308] sm:$0xff]
    %v1475 = vld [vmem:[#allocation8 + $0x310] sm:$0xff]
    %v1476 = vld [vmem:[#allocation8 + $0x318] sm:$0xff]
    %v1477 = vld [vmem:[#allocation8 + $0x320] sm:$0xff]
    %v1478 = vld [vmem:[#allocation8 + $0x328] sm:$0xff]
    %v1479 = vld [vmem:[#allocation8 + $0x330] sm:$0xff]
    %v1480 = vld [vmem:[#allocation8 + $0x338] sm:$0xff]
    %v1481 = vld [vmem:[#allocation8 + $0x340] sm:$0xff]
    %v1482 = vld [vmem:[#allocation8 + $0x348] sm:$0xff]
    %v1483 = vld [vmem:[#allocation8 + $0x350] sm:$0xff]
    %v1484 = vld [vmem:[#allocation8 + $0x358] sm:$0xff]
    %v1485 = vld [vmem:[#allocation8 + $0x360] sm:$0xff]
    %v1486 = vld [vmem:[#allocation8 + $0x368] sm:$0xff]
    %v1487 = vld [vmem:[#allocation8 + $0x370] sm:$0xff]
    %v1488 = vld [vmem:[#allocation8 + $0x378] sm:$0xff]
    %v1489 = vld [vmem:[#allocation8 + $0x380] sm:$0xff]
    %v1490 = vld [vmem:[#allocation8 + $0x388] sm:$0xff]
    %v1491 = vld [vmem:[#allocation8 + $0x390] sm:$0xff]
    %v1492 = vld [vmem:[#allocation8 + $0x398] sm:$0xff]
    %v1493 = vld [vmem:[#allocation8 + $0x3a0] sm:$0xff]
    %v1494 = vld [vmem:[#allocation8 + $0x3a8] sm:$0xff]
    %v1495 = vld [vmem:[#allocation8 + $0x3b0] sm:$0xff]
    %v1496 = vld [vmem:[#allocation8 + $0x3b8] sm:$0xff]
    %v1497 = vld [vmem:[#allocation8 + $0x3c0] sm:$0xff]
    %v1498 = vld [vmem:[#allocation8 + $0x3c8] sm:$0xff]
    %v1499 = vld [vmem:[#allocation8 + $0x3d0] sm:$0xff]
    %v1500 = vld [vmem:[#allocation8 + $0x3d8] sm:$0xff]
    %v1501 = vld [vmem:[#allocation8 + $0x3e0] sm:$0xff]
    %v1502 = vld [vmem:[#allocation8 + $0x3e8] sm:$0xff]
    %v1503 = vld [vmem:[#allocation8 + $0x3f0] sm:$0xff]
    %v1504 = vld [vmem:[#allocation8 + $0x3f8] sm:$0xff]
    %v1505 = vld [vmem:[#allocation10] sm:$0xf]
    %v1507 = vlaneseq
    %v1508 = vshrl.u32 %v1507, 7
    %v1509 = vsub.s32 0, %v1508
    %v1510 = vrot.slane %v1505, %v1509
    %v1511 = vlaneseq
    %v1512 = vshrl.u32 %v1511, 7
    %v1513 = vsub.s32 1, %v1512
    %v1514 = vrot.slane %v1505, %v1513
    %v1515 = vlaneseq
    %v1516 = vshrl.u32 %v1515, 7
    %v1517 = vsub.s32 2, %v1516
    %v1518 = vrot.slane %v1505, %v1517
    %v1519 = vlaneseq
    %v1520 = vshrl.u32 %v1519, 7
    %v1521 = vsub.s32 3, %v1520
    %v1522 = vrot.slane %v1505, %v1521
    %1527 = vmatprep.subr.mxu0 %v1438
    %1528 = vmatpush1.msra.mxu0 %v1437
    %1529 = vmatprep.subr.mxu0 %v1434
    %1530 = vmatpush1.msra.mxu0 %v1433
    %1531 = vmatprep.subr.mxu0 %v1430
    %1532 = vmatpush1.msra.mxu0 %v1429
    %1533 = vmatprep.subr.mxu0 %v1426
    %1534 = vmatpush1.msra.mxu0 %v1425
    %1535 = vmatprep.subr.mxu0 %v1422
    %1536 = vmatpush1.msra.mxu0 %v1421
    %1537 = vmatprep.subr.mxu0 %v1418
    %1538 = vmatpush1.msra.mxu0 %v1417
    %1539 = vmatprep.subr.mxu0 %v1414
    %1540 = vmatpush1.msra.mxu0 %v1413
    %1541 = vmatprep.subr.mxu0 %v1410
    %1542 = vmatpush1.msra.mxu0 %v1409
    %1543 = vmatprep.subr.mxu0 %v1406
    %1544 = vmatpush1.msra.mxu0 %v1405
    %1545 = vmatprep.subr.mxu0 %v1402
    %1546 = vmatpush1.msra.mxu0 %v1401
    %1547 = vmatprep.subr.mxu0 %v1398
    %1548 = vmatpush1.msra.mxu0 %v1397
    %1549 = vmatprep.subr.mxu0 %v1394
    %1550 = vmatpush1.msra.mxu0 %v1393
    %1551 = vmatprep.subr.mxu0 %v1390
    %1552 = vmatpush1.msra.mxu0 %v1389
    %1553 = vmatprep.subr.mxu0 %v1386
    %1554 = vmatpush1.msra.mxu0 %v1385
    %1555 = vmatprep.subr.mxu0 %v1382
    %1556 = vmatpush1.msra.mxu0 %v1381
    %1557 = vmatprep.subr.mxu0 %v1378
    %1558 = vmatpush1.msra.mxu0 %v1377
    %1559 = vmatprep.subr.mxu0 %v1502
    %1560 = vmatpush2.msra.mxu0 %v1501
    %1561 = vmatprep.subr.mxu0 %v1498
    %1562 = vmatpush2.msra.mxu0 %v1497
    %1563 = vmatprep.subr.mxu0 %v1494
    %1564 = vmatpush2.msra.mxu0 %v1493
    %1565 = vmatprep.subr.mxu0 %v1490
    %1566 = vmatpush2.msra.mxu0 %v1489
    %1567 = vmatprep.subr.mxu0 %v1486
    %1568 = vmatpush2.msra.mxu0 %v1485
    %1569 = vmatprep.subr.mxu0 %v1482
    %1570 = vmatpush2.msra.mxu0 %v1481
    %1571 = vmatprep.subr.mxu0 %v1478
    %1572 = vmatpush2.msra.mxu0 %v1477
    %1573 = vmatprep.subr.mxu0 %v1474
    %1574 = vmatpush2.msra.mxu0 %v1473
    %1575 = vmatprep.subr.mxu0 %v1470
    %1576 = vmatpush2.msra.mxu0 %v1469
    %1577 = vmatprep.subr.mxu0 %v1466
    %1578 = vmatpush2.msra.mxu0 %v1465
    %1579 = vmatprep.subr.mxu0 %v1462
    %1580 = vmatpush2.msra.mxu0 %v1461
    %1581 = vmatprep.subr.mxu0 %v1458
    %1582 = vmatpush2.msra.mxu0 %v1457
    %1583 = vmatprep.subr.mxu0 %v1454
    %1584 = vmatpush2.msra.mxu0 %v1453
    %1585 = vmatprep.subr.mxu0 %v1450
    %1586 = vmatpush2.msra.mxu0 %v1449
    %1587 = vmatprep.subr.mxu0 %v1446
    %1588 = vmatpush2.msra.mxu0 %v1445
    %1589 = vmatprep.subr.mxu0 %v1442
    %1590 = vmatpush2.msra.mxu0 %v1441
    %1591 = vmatprep.mubr.f32.mxu0 %v1376
    %1592 = vmatmul.mubr.f32.gmra.mxu0 %v1375
    %v1593 = vpop.f32.mrf.mxu0
    %v1594 = vadd.f32 %v1510, %v1593
    %v1595 = vpop.f32.mrf.mxu0
    %v1596 = vadd.f32 %v1514, %v1595
    %1597 = vdwg.mxu0
    %1598 = vmatprep.subr.mxu0 %v1440
    %1599 = vmatpush1.msra.mxu0 %v1439
    %1600 = vmatprep.subr.mxu0 %v1436
    %1601 = vmatpush1.msra.mxu0 %v1435
    %1602 = vmatprep.subr.mxu0 %v1432
    %1603 = vmatpush1.msra.mxu0 %v1431
    %1604 = vmatprep.subr.mxu0 %v1428
    %1605 = vmatpush1.msra.mxu0 %v1427
    %1606 = vmatprep.subr.mxu0 %v1424
    %1607 = vmatpush1.msra.mxu0 %v1423
    %1608 = vmatprep.subr.mxu0 %v1420
    %1609 = vmatpush1.msra.mxu0 %v1419
    %1610 = vmatprep.subr.mxu0 %v1416
    %1611 = vmatpush1.msra.mxu0 %v1415
    %1612 = vmatprep.subr.mxu0 %v1412
    %1613 = vmatpush1.msra.mxu0 %v1411
    %1614 = vmatprep.subr.mxu0 %v1408
    %1615 = vmatpush1.msra.mxu0 %v1407
    %1616 = vmatprep.subr.mxu0 %v1404
    %1617 = vmatpush1.msra.mxu0 %v1403
    %1618 = vmatprep.subr.mxu0 %v1400
    %1619 = vmatpush1.msra.mxu0 %v1399
    %1620 = vmatprep.subr.mxu0 %v1396
    %1621 = vmatpush1.msra.mxu0 %v1395
    %1622 = vmatprep.subr.mxu0 %v1392
    %1623 = vmatpush1.msra.mxu0 %v1391
    %1624 = vmatprep.subr.mxu0 %v1388
    %1625 = vmatpush1.msra.mxu0 %v1387
    %1626 = vmatprep.subr.mxu0 %v1384
    %1627 = vmatpush1.msra.mxu0 %v1383
    %1628 = vmatprep.subr.mxu0 %v1380
    %1629 = vmatpush1.msra.mxu0 %v1379
    %1630 = vmatprep.subr.mxu0 %v1504
    %1631 = vmatpush2.msra.mxu0 %v1503
    %1632 = vmatprep.subr.mxu0 %v1500
    %1633 = vmatpush2.msra.mxu0 %v1499
    %1634 = vmatprep.subr.mxu0 %v1496
    %1635 = vmatpush2.msra.mxu0 %v1495
    %1636 = vmatprep.subr.mxu0 %v1492
    %1637 = vmatpush2.msra.mxu0 %v1491
    %1638 = vmatprep.subr.mxu0 %v1488
    %1639 = vmatpush2.msra.mxu0 %v1487
    %1640 = vmatprep.subr.mxu0 %v1484
    %1641 = vmatpush2.msra.mxu0 %v1483
    %1642 = vmatprep.subr.mxu0 %v1480
    %1643 = vmatpush2.msra.mxu0 %v1479
    %1644 = vmatprep.subr.mxu0 %v1476
    %1645 = vmatpush2.msra.mxu0 %v1475
    %1646 = vmatprep.subr.mxu0 %v1472
    %1647 = vmatpush2.msra.mxu0 %v1471
    %1648 = vmatprep.subr.mxu0 %v1468
    %1649 = vmatpush2.msra.mxu0 %v1467
    %1650 = vmatprep.subr.mxu0 %v1464
    %1651 = vmatpush2.msra.mxu0 %v1463
    %1652 = vmatprep.subr.mxu0 %v1460
    %1653 = vmatpush2.msra.mxu0 %v1459
    %1654 = vmatprep.subr.mxu0 %v1456
    %1655 = vmatpush2.msra.mxu0 %v1455
    %1656 = vmatprep.subr.mxu0 %v1452
    %1657 = vmatpush2.msra.mxu0 %v1451
    %1658 = vmatprep.subr.mxu0 %v1448
    %1659 = vmatpush2.msra.mxu0 %v1447
    %1660 = vmatprep.subr.mxu0 %v1444
    %1661 = vmatpush2.msra.mxu0 %v1443
    %1662 = vmatprep.mubr.f32.mxu0 %v1376
    %1663 = vmatmul.mubr.f32.gmra.mxu0 %v1375
    %v1664 = vpop.f32.mrf.mxu0
    %v1665 = vadd.f32 %v1518, %v1664
    %v1666 = vpop.f32.mrf.mxu0
    %v1667 = vadd.f32 %v1522, %v1666
    %1668 = vdwg.mxu0
    %v1669 = vxor.u32 %v1594, 2147483648
    %v1670 = vmul.f32 %v1669, 1.442695
    %v1671 = vpow.pop %v1670
    %v1672 = vadd.f32 %v1671, 1.0
    %v1673 = vrcp.pop %v1672
    %v1674 = vmul.f32 1.0, %v1673
    %v1675 = vxor.u32 %v1596, 2147483648
    %v1676 = vmul.f32 %v1675, 1.442695
    %v1677 = vpow.pop %v1676
    %v1678 = vadd.f32 %v1677, 1.0
    %v1679 = vrcp.pop %v1678
    %v1680 = vmul.f32 1.0, %v1679
    %v1681 = vtanh.pop %v1665
    %v1682 = vxor.u32 %v1667, 2147483648
    %v1683 = vmul.f32 %v1682, 1.442695
    %v1684 = vpow.pop %v1683
    %v1685 = vadd.f32 %v1684, 1.0
    %v1686 = vrcp.pop %v1685
    %v1687 = vmul.f32 1.0, %v1686
    %v1688 = vld [vmem:[#allocation3] sm:$0xff]
    %v1689 = vmul.f32 %v1680, %v1688
    %v1690 = vmul.f32 %v1674, %v1681
    %v1691 = vadd.f32 %v1689, %v1690
    %v1692 = vtanh.pop %v1691
    %v1693 = vmul.f32 %v1687, %v1692
    %1694 = vst [vmem:[#allocation3] sm:$0xff] %v1691
    %1695 = vst [vmem:[#allocation2] sm:$0xff] %v1693
    %1696 = vst [vmem:[#allocation4] sm:$0xff] %v1693
    %v1697 = vld [vmem:[%s390] sm:$0xff]
    %1698 = vst [vmem:[#allocation4 + $0x8] sm:$0xff] %v1697
    %v1699 = vld [vmem:[#allocation4] sm:$0xff]
    %v1700 = vld [vmem:[#allocation4 + $0x8] sm:$0xff]
    %v1701 = vld [vmem:[%s395] sm:$0xff]
    %v1702 = vld [vmem:[%s395 + $0x8] sm:$0xff]
    %v1703 = vld [vmem:[%s395 + $0x10] sm:$0xff]
    %v1704 = vld [vmem:[%s395 + $0x18] sm:$0xff]
    %v1705 = vld [vmem:[%s395 + $0x20] sm:$0xff]
    %v1706 = vld [vmem:[%s395 + $0x28] sm:$0xff]
    %v1707 = vld [vmem:[%s395 + $0x30] sm:$0xff]
    %v1708 = vld [vmem:[%s395 + $0x38] sm:$0xff]
    %v1709 = vld [vmem:[%s395 + $0x40] sm:$0xff]
    %v1710 = vld [vmem:[%s395 + $0x48] sm:$0xff]
    %v1711 = vld [vmem:[%s395 + $0x50] sm:$0xff]
    %v1712 = vld [vmem:[%s395 + $0x58] sm:$0xff]
    %v1713 = vld [vmem:[%s395 + $0x60] sm:$0xff]
    %v1714 = vld [vmem:[%s395 + $0x68] sm:$0xff]
    %v1715 = vld [vmem:[%s395 + $0x70] sm:$0xff]
    %v1716 = vld [vmem:[%s395 + $0x78] sm:$0xff]
    %v1717 = vld [vmem:[%s395 + $0x80] sm:$0xff]
    %v1718 = vld [vmem:[%s395 + $0x88] sm:$0xff]
    %v1719 = vld [vmem:[%s395 + $0x90] sm:$0xff]
    %v1720 = vld [vmem:[%s395 + $0x98] sm:$0xff]
    %v1721 = vld [vmem:[%s395 + $0xa0] sm:$0xff]
    %v1722 = vld [vmem:[%s395 + $0xa8] sm:$0xff]
    %v1723 = vld [vmem:[%s395 + $0xb0] sm:$0xff]
    %v1724 = vld [vmem:[%s395 + $0xb8] sm:$0xff]
    %v1725 = vld [vmem:[%s395 + $0xc0] sm:$0xff]
    %v1726 = vld [vmem:[%s395 + $0xc8] sm:$0xff]
    %v1727 = vld [vmem:[%s395 + $0xd0] sm:$0xff]
    %v1728 = vld [vmem:[%s395 + $0xd8] sm:$0xff]
    %v1729 = vld [vmem:[%s395 + $0xe0] sm:$0xff]
    %v1730 = vld [vmem:[%s395 + $0xe8] sm:$0xff]
    %v1731 = vld [vmem:[%s395 + $0xf0] sm:$0xff]
    %v1732 = vld [vmem:[%s395 + $0xf8] sm:$0xff]
    %v1733 = vld [vmem:[%s395 + $0x100] sm:$0xff]
    %v1734 = vld [vmem:[%s395 + $0x108] sm:$0xff]
    %v1735 = vld [vmem:[%s395 + $0x110] sm:$0xff]
    %v1736 = vld [vmem:[%s395 + $0x118] sm:$0xff]
    %v1737 = vld [vmem:[%s395 + $0x120] sm:$0xff]
    %v1738 = vld [vmem:[%s395 + $0x128] sm:$0xff]
    %v1739 = vld [vmem:[%s395 + $0x130] sm:$0xff]
    %v1740 = vld [vmem:[%s395 + $0x138] sm:$0xff]
    %v1741 = vld [vmem:[%s395 + $0x140] sm:$0xff]
    %v1742 = vld [vmem:[%s395 + $0x148] sm:$0xff]
    %v1743 = vld [vmem:[%s395 + $0x150] sm:$0xff]
    %v1744 = vld [vmem:[%s395 + $0x158] sm:$0xff]
    %v1745 = vld [vmem:[%s395 + $0x160] sm:$0xff]
    %v1746 = vld [vmem:[%s395 + $0x168] sm:$0xff]
    %v1747 = vld [vmem:[%s395 + $0x170] sm:$0xff]
    %v1748 = vld [vmem:[%s395 + $0x178] sm:$0xff]
    %v1749 = vld [vmem:[%s395 + $0x180] sm:$0xff]
    %v1750 = vld [vmem:[%s395 + $0x188] sm:$0xff]
    %v1751 = vld [vmem:[%s395 + $0x190] sm:$0xff]
    %v1752 = vld [vmem:[%s395 + $0x198] sm:$0xff]
    %v1753 = vld [vmem:[%s395 + $0x1a0] sm:$0xff]
    %v1754 = vld [vmem:[%s395 + $0x1a8] sm:$0xff]
    %v1755 = vld [vmem:[%s395 + $0x1b0] sm:$0xff]
    %v1756 = vld [vmem:[%s395 + $0x1b8] sm:$0xff]
    %v1757 = vld [vmem:[%s395 + $0x1c0] sm:$0xff]
    %v1758 = vld [vmem:[%s395 + $0x1c8] sm:$0xff]
    %v1759 = vld [vmem:[%s395 + $0x1d0] sm:$0xff]
    %v1760 = vld [vmem:[%s395 + $0x1d8] sm:$0xff]
    %v1761 = vld [vmem:[%s395 + $0x1e0] sm:$0xff]
    %v1762 = vld [vmem:[%s395 + $0x1e8] sm:$0xff]
    %v1763 = vld [vmem:[%s395 + $0x1f0] sm:$0xff]
    %v1764 = vld [vmem:[%s395 + $0x1f8] sm:$0xff]
    %v1765 = vld [vmem:[%s395 + $0x200] sm:$0xff]
    %v1766 = vld [vmem:[%s395 + $0x208] sm:$0xff]
    %v1767 = vld [vmem:[%s395 + $0x210] sm:$0xff]
    %v1768 = vld [vmem:[%s395 + $0x218] sm:$0xff]
    %v1769 = vld [vmem:[%s395 + $0x220] sm:$0xff]
    %v1770 = vld [vmem:[%s395 + $0x228] sm:$0xff]
    %v1771 = vld [vmem:[%s395 + $0x230] sm:$0xff]
    %v1772 = vld [vmem:[%s395 + $0x238] sm:$0xff]
    %v1773 = vld [vmem:[%s395 + $0x240] sm:$0xff]
    %v1774 = vld [vmem:[%s395 + $0x248] sm:$0xff]
    %v1775 = vld [vmem:[%s395 + $0x250] sm:$0xff]
    %v1776 = vld [vmem:[%s395 + $0x258] sm:$0xff]
    %v1777 = vld [vmem:[%s395 + $0x260] sm:$0xff]
    %v1778 = vld [vmem:[%s395 + $0x268] sm:$0xff]
    %v1779 = vld [vmem:[%s395 + $0x270] sm:$0xff]
    %v1780 = vld [vmem:[%s395 + $0x278] sm:$0xff]
    %v1781 = vld [vmem:[%s395 + $0x280] sm:$0xff]
    %v1782 = vld [vmem:[%s395 + $0x288] sm:$0xff]
    %v1783 = vld [vmem:[%s395 + $0x290] sm:$0xff]
    %v1784 = vld [vmem:[%s395 + $0x298] sm:$0xff]
    %v1785 = vld [vmem:[%s395 + $0x2a0] sm:$0xff]
    %v1786 = vld [vmem:[%s395 + $0x2a8] sm:$0xff]
    %v1787 = vld [vmem:[%s395 + $0x2b0] sm:$0xff]
    %v1788 = vld [vmem:[%s395 + $0x2b8] sm:$0xff]
    %v1789 = vld [vmem:[%s395 + $0x2c0] sm:$0xff]
    %v1790 = vld [vmem:[%s395 + $0x2c8] sm:$0xff]
    %v1791 = vld [vmem:[%s395 + $0x2d0] sm:$0xff]
    %v1792 = vld [vmem:[%s395 + $0x2d8] sm:$0xff]
    %v1793 = vld [vmem:[%s395 + $0x2e0] sm:$0xff]
    %v1794 = vld [vmem:[%s395 + $0x2e8] sm:$0xff]
    %v1795 = vld [vmem:[%s395 + $0x2f0] sm:$0xff]
    %v1796 = vld [vmem:[%s395 + $0x2f8] sm:$0xff]
    %v1797 = vld [vmem:[%s395 + $0x300] sm:$0xff]
    %v1798 = vld [vmem:[%s395 + $0x308] sm:$0xff]
    %v1799 = vld [vmem:[%s395 + $0x310] sm:$0xff]
    %v1800 = vld [vmem:[%s395 + $0x318] sm:$0xff]
    %v1801 = vld [vmem:[%s395 + $0x320] sm:$0xff]
    %v1802 = vld [vmem:[%s395 + $0x328] sm:$0xff]
    %v1803 = vld [vmem:[%s395 + $0x330] sm:$0xff]
    %v1804 = vld [vmem:[%s395 + $0x338] sm:$0xff]
    %v1805 = vld [vmem:[%s395 + $0x340] sm:$0xff]
    %v1806 = vld [vmem:[%s395 + $0x348] sm:$0xff]
    %v1807 = vld [vmem:[%s395 + $0x350] sm:$0xff]
    %v1808 = vld [vmem:[%s395 + $0x358] sm:$0xff]
    %v1809 = vld [vmem:[%s395 + $0x360] sm:$0xff]
    %v1810 = vld [vmem:[%s395 + $0x368] sm:$0xff]
    %v1811 = vld [vmem:[%s395 + $0x370] sm:$0xff]
    %v1812 = vld [vmem:[%s395 + $0x378] sm:$0xff]
    %v1813 = vld [vmem:[%s395 + $0x380] sm:$0xff]
    %v1814 = vld [vmem:[%s395 + $0x388] sm:$0xff]
    %v1815 = vld [vmem:[%s395 + $0x390] sm:$0xff]
    %v1816 = vld [vmem:[%s395 + $0x398] sm:$0xff]
    %v1817 = vld [vmem:[%s395 + $0x3a0] sm:$0xff]
    %v1818 = vld [vmem:[%s395 + $0x3a8] sm:$0xff]
    %v1819 = vld [vmem:[%s395 + $0x3b0] sm:$0xff]
    %v1820 = vld [vmem:[%s395 + $0x3b8] sm:$0xff]
    %v1821 = vld [vmem:[%s395 + $0x3c0] sm:$0xff]
    %v1822 = vld [vmem:[%s395 + $0x3c8] sm:$0xff]
    %v1823 = vld [vmem:[%s395 + $0x3d0] sm:$0xff]
    %v1824 = vld [vmem:[%s395 + $0x3d8] sm:$0xff]
    %v1825 = vld [vmem:[%s395 + $0x3e0] sm:$0xff]
    %v1826 = vld [vmem:[%s395 + $0x3e8] sm:$0xff]
    %v1827 = vld [vmem:[%s395 + $0x3f0] sm:$0xff]
    %v1828 = vld [vmem:[%s395 + $0x3f8] sm:$0xff]
    %v1829 = vld [vmem:[%s524] sm:$0xf]
    %v1831 = vlaneseq
    %v1832 = vshrl.u32 %v1831, 7
    %v1833 = vsub.s32 0, %v1832
    %v1834 = vrot.slane %v1829, %v1833
    %v1835 = vlaneseq
    %v1836 = vshrl.u32 %v1835, 7
    %v1837 = vsub.s32 1, %v1836
    %v1838 = vrot.slane %v1829, %v1837
    %v1839 = vlaneseq
    %v1840 = vshrl.u32 %v1839, 7
    %v1841 = vsub.s32 2, %v1840
    %v1842 = vrot.slane %v1829, %v1841
    %v1843 = vlaneseq
    %v1844 = vshrl.u32 %v1843, 7
    %v1845 = vsub.s32 3, %v1844
    %v1846 = vrot.slane %v1829, %v1845
    %1851 = vmatprep.subr.mxu0 %v1762
    %1852 = vmatpush1.msra.mxu0 %v1761
    %1853 = vmatprep.subr.mxu0 %v1758
    %1854 = vmatpush1.msra.mxu0 %v1757
    %1855 = vmatprep.subr.mxu0 %v1754
    %1856 = vmatpush1.msra.mxu0 %v1753
    %1857 = vmatprep.subr.mxu0 %v1750
    %1858 = vmatpush1.msra.mxu0 %v1749
    %1859 = vmatprep.subr.mxu0 %v1746
    %1860 = vmatpush1.msra.mxu0 %v1745
    %1861 = vmatprep.subr.mxu0 %v1742
    %1862 = vmatpush1.msra.mxu0 %v1741
    %1863 = vmatprep.subr.mxu0 %v1738
    %1864 = vmatpush1.msra.mxu0 %v1737
    %1865 = vmatprep.subr.mxu0 %v1734
    %1866 = vmatpush1.msra.mxu0 %v1733
    %1867 = vmatprep.subr.mxu0 %v1730
    %1868 = vmatpush1.msra.mxu0 %v1729
    %1869 = vmatprep.subr.mxu0 %v1726
    %1870 = vmatpush1.msra.mxu0 %v1725
    %1871 = vmatprep.subr.mxu0 %v1722
    %1872 = vmatpush1.msra.mxu0 %v1721
    %1873 = vmatprep.subr.mxu0 %v1718
    %1874 = vmatpush1.msra.mxu0 %v1717
    %1875 = vmatprep.subr.mxu0 %v1714
    %1876 = vmatpush1.msra.mxu0 %v1713
    %1877 = vmatprep.subr.mxu0 %v1710
    %1878 = vmatpush1.msra.mxu0 %v1709
    %1879 = vmatprep.subr.mxu0 %v1706
    %1880 = vmatpush1.msra.mxu0 %v1705
    %1881 = vmatprep.subr.mxu0 %v1702
    %1882 = vmatpush1.msra.mxu0 %v1701
    %1883 = vmatprep.subr.mxu0 %v1826
    %1884 = vmatpush2.msra.mxu0 %v1825
    %1885 = vmatprep.subr.mxu0 %v1822
    %1886 = vmatpush2.msra.mxu0 %v1821
    %1887 = vmatprep.subr.mxu0 %v1818
    %1888 = vmatpush2.msra.mxu0 %v1817
    %1889 = vmatprep.subr.mxu0 %v1814
    %1890 = vmatpush2.msra.mxu0 %v1813
    %1891 = vmatprep.subr.mxu0 %v1810
    %1892 = vmatpush2.msra.mxu0 %v1809
    %1893 = vmatprep.subr.mxu0 %v1806
    %1894 = vmatpush2.msra.mxu0 %v1805
    %1895 = vmatprep.subr.mxu0 %v1802
    %1896 = vmatpush2.msra.mxu0 %v1801
    %1897 = vmatprep.subr.mxu0 %v1798
    %1898 = vmatpush2.msra.mxu0 %v1797
    %1899 = vmatprep.subr.mxu0 %v1794
    %1900 = vmatpush2.msra.mxu0 %v1793
    %1901 = vmatprep.subr.mxu0 %v1790
    %1902 = vmatpush2.msra.mxu0 %v1789
    %1903 = vmatprep.subr.mxu0 %v1786
    %1904 = vmatpush2.msra.mxu0 %v1785
    %1905 = vmatprep.subr.mxu0 %v1782
    %1906 = vmatpush2.msra.mxu0 %v1781
    %1907 = vmatprep.subr.mxu0 %v1778
    %1908 = vmatpush2.msra.mxu0 %v1777
    %1909 = vmatprep.subr.mxu0 %v1774
    %1910 = vmatpush2.msra.mxu0 %v1773
    %1911 = vmatprep.subr.mxu0 %v1770
    %1912 = vmatpush2.msra.mxu0 %v1769
    %1913 = vmatprep.subr.mxu0 %v1766
    %1914 = vmatpush2.msra.mxu0 %v1765
    %1915 = vmatprep.mubr.f32.mxu0 %v1700
    %1916 = vmatmul.mubr.f32.gmra.mxu0 %v1699
    %v1917 = vpop.f32.mrf.mxu0
    %v1918 = vadd.f32 %v1834, %v1917
    %v1919 = vpop.f32.mrf.mxu0
    %v1920 = vadd.f32 %v1838, %v1919
    %1921 = vdwg.mxu0
    %1922 = vmatprep.subr.mxu0 %v1764
    %1923 = vmatpush1.msra.mxu0 %v1763
    %1924 = vmatprep.subr.mxu0 %v1760
    %1925 = vmatpush1.msra.mxu0 %v1759
    %1926 = vmatprep.subr.mxu0 %v1756
    %1927 = vmatpush1.msra.mxu0 %v1755
    %1928 = vmatprep.subr.mxu0 %v1752
    %1929 = vmatpush1.msra.mxu0 %v1751
    %1930 = vmatprep.subr.mxu0 %v1748
    %1931 = vmatpush1.msra.mxu0 %v1747
    %1932 = vmatprep.subr.mxu0 %v1744
    %1933 = vmatpush1.msra.mxu0 %v1743
    %1934 = vmatprep.subr.mxu0 %v1740
    %1935 = vmatpush1.msra.mxu0 %v1739
    %1936 = vmatprep.subr.mxu0 %v1736
    %1937 = vmatpush1.msra.mxu0 %v1735
    %1938 = vmatprep.subr.mxu0 %v1732
    %1939 = vmatpush1.msra.mxu0 %v1731
    %1940 = vmatprep.subr.mxu0 %v1728
    %1941 = vmatpush1.msra.mxu0 %v1727
    %1942 = vmatprep.subr.mxu0 %v1724
    %1943 = vmatpush1.msra.mxu0 %v1723
    %1944 = vmatprep.subr.mxu0 %v1720
    %1945 = vmatpush1.msra.mxu0 %v1719
    %1946 = vmatprep.subr.mxu0 %v1716
    %1947 = vmatpush1.msra.mxu0 %v1715
    %1948 = vmatprep.subr.mxu0 %v1712
    %1949 = vmatpush1.msra.mxu0 %v1711
    %1950 = vmatprep.subr.mxu0 %v1708
    %1951 = vmatpush1.msra.mxu0 %v1707
    %1952 = vmatprep.subr.mxu0 %v1704
    %1953 = vmatpush1.msra.mxu0 %v1703
    %1954 = vmatprep.subr.mxu0 %v1828
    %1955 = vmatpush2.msra.mxu0 %v1827
    %1956 = vmatprep.subr.mxu0 %v1824
    %1957 = vmatpush2.msra.mxu0 %v1823
    %1958 = vmatprep.subr.mxu0 %v1820
    %1959 = vmatpush2.msra.mxu0 %v1819
    %1960 = vmatprep.subr.mxu0 %v1816
    %1961 = vmatpush2.msra.mxu0 %v1815
    %1962 = vmatprep.subr.mxu0 %v1812
    %1963 = vmatpush2.msra.mxu0 %v1811
    %1964 = vmatprep.subr.mxu0 %v1808
    %1965 = vmatpush2.msra.mxu0 %v1807
    %1966 = vmatprep.subr.mxu0 %v1804
    %1967 = vmatpush2.msra.mxu0 %v1803
    %1968 = vmatprep.subr.mxu0 %v1800
    %1969 = vmatpush2.msra.mxu0 %v1799
    %1970 = vmatprep.subr.mxu0 %v1796
    %1971 = vmatpush2.msra.mxu0 %v1795
    %1972 = vmatprep.subr.mxu0 %v1792
    %1973 = vmatpush2.msra.mxu0 %v1791
    %1974 = vmatprep.subr.mxu0 %v1788
    %1975 = vmatpush2.msra.mxu0 %v1787
    %1976 = vmatprep.subr.mxu0 %v1784
    %1977 = vmatpush2.msra.mxu0 %v1783
    %1978 = vmatprep.subr.mxu0 %v1780
    %1979 = vmatpush2.msra.mxu0 %v1779
    %1980 = vmatprep.subr.mxu0 %v1776
    %1981 = vmatpush2.msra.mxu0 %v1775
    %1982 = vmatprep.subr.mxu0 %v1772
    %1983 = vmatpush2.msra.mxu0 %v1771
    %1984 = vmatprep.subr.mxu0 %v1768
    %1985 = vmatpush2.msra.mxu0 %v1767
    %1986 = vmatprep.mubr.f32.mxu0 %v1700
    %1987 = vmatmul.mubr.f32.gmra.mxu0 %v1699
    %v1988 = vpop.f32.mrf.mxu0
    %v1989 = vadd.f32 %v1842, %v1988
    %v1990 = vpop.f32.mrf.mxu0
    %v1991 = vadd.f32 %v1846, %v1990
    %1992 = vdwg.mxu0
    %v1993 = vxor.u32 %v1918, 2147483648
    %v1994 = vmul.f32 %v1993, 1.442695
    %v1995 = vpow.pop %v1994
    %v1996 = vadd.f32 %v1995, 1.0
    %v1997 = vrcp.pop %v1996
    %v1998 = vmul.f32 1.0, %v1997
    %v1999 = vxor.u32 %v1920, 2147483648
    %v2000 = vmul.f32 %v1999, 1.442695
    %v2001 = vpow.pop %v2000
    %v2002 = vadd.f32 %v2001, 1.0
    %v2003 = vrcp.pop %v2002
    %v2004 = vmul.f32 1.0, %v2003
    %v2005 = vtanh.pop %v1989
    %v2006 = vxor.u32 %v1991, 2147483648
    %v2007 = vmul.f32 %v2006, 1.442695
    %v2008 = vpow.pop %v2007
    %v2009 = vadd.f32 %v2008, 1.0
    %v2010 = vrcp.pop %v2009
    %v2011 = vmul.f32 1.0, %v2010
    %v2012 = vld [vmem:[%s708] sm:$0xff]
    %v2013 = vmul.f32 %v2004, %v2012
    %v2014 = vmul.f32 %v1998, %v2005
    %v2015 = vadd.f32 %v2013, %v2014
    %v2016 = vtanh.pop %v2015
    %v2017 = vmul.f32 %v2011, %v2016
    %2018 = vst [vmem:[%s708] sm:$0xff] %v2015
    %2019 = vst [vmem:[%s390] sm:$0xff] %v2017
    %s2020 = scalar_lea.vmem [#allocation11], 16
    %2021 = vst [vmem:[%s2020] sm:$0xff] %v2017
    %s2022 = scalar_lea.vmem [#allocation5], 24
    %v2023 = vld [vmem:[%s2022] sm:$0xff]
    %2024 = vst [vmem:[#allocation4] sm:$0xff] %v2023
    %v2025 = vld [vmem:[#allocation2] sm:$0xff]
    %2026 = vst [vmem:[#allocation4 + $0x8] sm:$0xff] %v2025
    %v2027 = vld [vmem:[#allocation4] sm:$0xff]
    %v2028 = vld [vmem:[#allocation4 + $0x8] sm:$0xff]
    %v2029 = vld [vmem:[#allocation8] sm:$0xff]
    %v2030 = vld [vmem:[#allocation8 + $0x8] sm:$0xff]
    %v2031 = vld [vmem:[#allocation8 + $0x10] sm:$0xff]
    %v2032 = vld [vmem:[#allocation8 + $0x18] sm:$0xff]
    %v2033 = vld [vmem:[#allocation8 + $0x20] sm:$0xff]
    %v2034 = vld [vmem:[#allocation8 + $0x28] sm:$0xff]
    %v2035 = vld [vmem:[#allocation8 + $0x30] sm:$0xff]
    %v2036 = vld [vmem:[#allocation8 + $0x38] sm:$0xff]
    %v2037 = vld [vmem:[#allocation8 + $0x40] sm:$0xff]
    %v2038 = vld [vmem:[#allocation8 + $0x48] sm:$0xff]
    %v2039 = vld [vmem:[#allocation8 + $0x50] sm:$0xff]
    %v2040 = vld [vmem:[#allocation8 + $0x58] sm:$0xff]
    %v2041 = vld [vmem:[#allocation8 + $0x60] sm:$0xff]
    %v2042 = vld [vmem:[#allocation8 + $0x68] sm:$0xff]
    %v2043 = vld [vmem:[#allocation8 + $0x70] sm:$0xff]
    %v2044 = vld [vmem:[#allocation8 + $0x78] sm:$0xff]
    %v2045 = vld [vmem:[#allocation8 + $0x80] sm:$0xff]
    %v2046 = vld [vmem:[#allocation8 + $0x88] sm:$0xff]
    %v2047 = vld [vmem:[#allocation8 + $0x90] sm:$0xff]
    %v2048 = vld [vmem:[#allocation8 + $0x98] sm:$0xff]
    %v2049 = vld [vmem:[#allocation8 + $0xa0] sm:$0xff]
    %v2050 = vld [vmem:[#allocation8 + $0xa8] sm:$0xff]
    %v2051 = vld [vmem:[#allocation8 + $0xb0] sm:$0xff]
    %v2052 = vld [vmem:[#allocation8 + $0xb8] sm:$0xff]
    %v2053 = vld [vmem:[#allocation8 + $0xc0] sm:$0xff]
    %v2054 = vld [vmem:[#allocation8 + $0xc8] sm:$0xff]
    %v2055 = vld [vmem:[#allocation8 + $0xd0] sm:$0xff]
    %v2056 = vld [vmem:[#allocation8 + $0xd8] sm:$0xff]
    %v2057 = vld [vmem:[#allocation8 + $0xe0] sm:$0xff]
    %v2058 = vld [vmem:[#allocation8 + $0xe8] sm:$0xff]
    %v2059 = vld [vmem:[#allocation8 + $0xf0] sm:$0xff]
    %v2060 = vld [vmem:[#allocation8 + $0xf8] sm:$0xff]
    %v2061 = vld [vmem:[#allocation8 + $0x100] sm:$0xff]
    %v2062 = vld [vmem:[#allocation8 + $0x108] sm:$0xff]
    %v2063 = vld [vmem:[#allocation8 + $0x110] sm:$0xff]
    %v2064 = vld [vmem:[#allocation8 + $0x118] sm:$0xff]
    %v2065 = vld [vmem:[#allocation8 + $0x120] sm:$0xff]
    %v2066 = vld [vmem:[#allocation8 + $0x128] sm:$0xff]
    %v2067 = vld [vmem:[#allocation8 + $0x130] sm:$0xff]
    %v2068 = vld [vmem:[#allocation8 + $0x138] sm:$0xff]
    %v2069 = vld [vmem:[#allocation8 + $0x140] sm:$0xff]
    %v2070 = vld [vmem:[#allocation8 + $0x148] sm:$0xff]
    %v2071 = vld [vmem:[#allocation8 + $0x150] sm:$0xff]
    %v2072 = vld [vmem:[#allocation8 + $0x158] sm:$0xff]
    %v2073 = vld [vmem:[#allocation8 + $0x160] sm:$0xff]
    %v2074 = vld [vmem:[#allocation8 + $0x168] sm:$0xff]
    %v2075 = vld [vmem:[#allocation8 + $0x170] sm:$0xff]
    %v2076 = vld [vmem:[#allocation8 + $0x178] sm:$0xff]
    %v2077 = vld [vmem:[#allocation8 + $0x180] sm:$0xff]
    %v2078 = vld [vmem:[#allocation8 + $0x188] sm:$0xff]
    %v2079 = vld [vmem:[#allocation8 + $0x190] sm:$0xff]
    %v2080 = vld [vmem:[#allocation8 + $0x198] sm:$0xff]
    %v2081 = vld [vmem:[#allocation8 + $0x1a0] sm:$0xff]
    %v2082 = vld [vmem:[#allocation8 + $0x1a8] sm:$0xff]
    %v2083 = vld [vmem:[#allocation8 + $0x1b0] sm:$0xff]
    %v2084 = vld [vmem:[#allocation8 + $0x1b8] sm:$0xff]
    %v2085 = vld [vmem:[#allocation8 + $0x1c0] sm:$0xff]
    %v2086 = vld [vmem:[#allocation8 + $0x1c8] sm:$0xff]
    %v2087 = vld [vmem:[#allocation8 + $0x1d0] sm:$0xff]
    %v2088 = vld [vmem:[#allocation8 + $0x1d8] sm:$0xff]
    %v2089 = vld [vmem:[#allocation8 + $0x1e0] sm:$0xff]
    %v2090 = vld [vmem:[#allocation8 + $0x1e8] sm:$0xff]
    %v2091 = vld [vmem:[#allocation8 + $0x1f0] sm:$0xff]
    %v2092 = vld [vmem:[#allocation8 + $0x1f8] sm:$0xff]
    %v2093 = vld [vmem:[#allocation8 + $0x200] sm:$0xff]
    %v2094 = vld [vmem:[#allocation8 + $0x208] sm:$0xff]
    %v2095 = vld [vmem:[#allocation8 + $0x210] sm:$0xff]
    %v2096 = vld [vmem:[#allocation8 + $0x218] sm:$0xff]
    %v2097 = vld [vmem:[#allocation8 + $0x220] sm:$0xff]
    %v2098 = vld [vmem:[#allocation8 + $0x228] sm:$0xff]
    %v2099 = vld [vmem:[#allocation8 + $0x230] sm:$0xff]
    %v2100 = vld [vmem:[#allocation8 + $0x238] sm:$0xff]
    %v2101 = vld [vmem:[#allocation8 + $0x240] sm:$0xff]
    %v2102 = vld [vmem:[#allocation8 + $0x248] sm:$0xff]
    %v2103 = vld [vmem:[#allocation8 + $0x250] sm:$0xff]
    %v2104 = vld [vmem:[#allocation8 + $0x258] sm:$0xff]
    %v2105 = vld [vmem:[#allocation8 + $0x260] sm:$0xff]
    %v2106 = vld [vmem:[#allocation8 + $0x268] sm:$0xff]
    %v2107 = vld [vmem:[#allocation8 + $0x270] sm:$0xff]
    %v2108 = vld [vmem:[#allocation8 + $0x278] sm:$0xff]
    %v2109 = vld [vmem:[#allocation8 + $0x280] sm:$0xff]
    %v2110 = vld [vmem:[#allocation8 + $0x288] sm:$0xff]
    %v2111 = vld [vmem:[#allocation8 + $0x290] sm:$0xff]
    %v2112 = vld [vmem:[#allocation8 + $0x298] sm:$0xff]
    %v2113 = vld [vmem:[#allocation8 + $0x2a0] sm:$0xff]
    %v2114 = vld [vmem:[#allocation8 + $0x2a8] sm:$0xff]
    %v2115 = vld [vmem:[#allocation8 + $0x2b0] sm:$0xff]
    %v2116 = vld [vmem:[#allocation8 + $0x2b8] sm:$0xff]
    %v2117 = vld [vmem:[#allocation8 + $0x2c0] sm:$0xff]
    %v2118 = vld [vmem:[#allocation8 + $0x2c8] sm:$0xff]
    %v2119 = vld [vmem:[#allocation8 + $0x2d0] sm:$0xff]
    %v2120 = vld [vmem:[#allocation8 + $0x2d8] sm:$0xff]
    %v2121 = vld [vmem:[#allocation8 + $0x2e0] sm:$0xff]
    %v2122 = vld [vmem:[#allocation8 + $0x2e8] sm:$0xff]
    %v2123 = vld [vmem:[#allocation8 + $0x2f0] sm:$0xff]
    %v2124 = vld [vmem:[#allocation8 + $0x2f8] sm:$0xff]
    %v2125 = vld [vmem:[#allocation8 + $0x300] sm:$0xff]
    %v2126 = vld [vmem:[#allocation8 + $0x308] sm:$0xff]
    %v2127 = vld [vmem:[#allocation8 + $0x310] sm:$0xff]
    %v2128 = vld [vmem:[#allocation8 + $0x318] sm:$0xff]
    %v2129 = vld [vmem:[#allocation8 + $0x320] sm:$0xff]
    %v2130 = vld [vmem:[#allocation8 + $0x328] sm:$0xff]
    %v2131 = vld [vmem:[#allocation8 + $0x330] sm:$0xff]
    %v2132 = vld [vmem:[#allocation8 + $0x338] sm:$0xff]
    %v2133 = vld [vmem:[#allocation8 + $0x340] sm:$0xff]
    %v2134 = vld [vmem:[#allocation8 + $0x348] sm:$0xff]
    %v2135 = vld [vmem:[#allocation8 + $0x350] sm:$0xff]
    %v2136 = vld [vmem:[#allocation8 + $0x358] sm:$0xff]
    %v2137 = vld [vmem:[#allocation8 + $0x360] sm:$0xff]
    %v2138 = vld [vmem:[#allocation8 + $0x368] sm:$0xff]
    %v2139 = vld [vmem:[#allocation8 + $0x370] sm:$0xff]
    %v2140 = vld [vmem:[#allocation8 + $0x378] sm:$0xff]
    %v2141 = vld [vmem:[#allocation8 + $0x380] sm:$0xff]
    %v2142 = vld [vmem:[#allocation8 + $0x388] sm:$0xff]
    %v2143 = vld [vmem:[#allocation8 + $0x390] sm:$0xff]
    %v2144 = vld [vmem:[#allocation8 + $0x398] sm:$0xff]
    %v2145 = vld [vmem:[#allocation8 + $0x3a0] sm:$0xff]
    %v2146 = vld [vmem:[#allocation8 + $0x3a8] sm:$0xff]
    %v2147 = vld [vmem:[#allocation8 + $0x3b0] sm:$0xff]
    %v2148 = vld [vmem:[#allocation8 + $0x3b8] sm:$0xff]
    %v2149 = vld [vmem:[#allocation8 + $0x3c0] sm:$0xff]
    %v2150 = vld [vmem:[#allocation8 + $0x3c8] sm:$0xff]
    %v2151 = vld [vmem:[#allocation8 + $0x3d0] sm:$0xff]
    %v2152 = vld [vmem:[#allocation8 + $0x3d8] sm:$0xff]
    %v2153 = vld [vmem:[#allocation8 + $0x3e0] sm:$0xff]
    %v2154 = vld [vmem:[#allocation8 + $0x3e8] sm:$0xff]
    %v2155 = vld [vmem:[#allocation8 + $0x3f0] sm:$0xff]
    %v2156 = vld [vmem:[#allocation8 + $0x3f8] sm:$0xff]
    %v2157 = vld [vmem:[#allocation10] sm:$0xf]
    %v2159 = vlaneseq
    %v2160 = vshrl.u32 %v2159, 7
    %v2161 = vsub.s32 0, %v2160
    %v2162 = vrot.slane %v2157, %v2161
    %v2163 = vlaneseq
    %v2164 = vshrl.u32 %v2163, 7
    %v2165 = vsub.s32 1, %v2164
    %v2166 = vrot.slane %v2157, %v2165
    %v2167 = vlaneseq
    %v2168 = vshrl.u32 %v2167, 7
    %v2169 = vsub.s32 2, %v2168
    %v2170 = vrot.slane %v2157, %v2169
    %v2171 = vlaneseq
    %v2172 = vshrl.u32 %v2171, 7
    %v2173 = vsub.s32 3, %v2172
    %v2174 = vrot.slane %v2157, %v2173
    %2179 = vmatprep.subr.mxu0 %v2090
    %2180 = vmatpush1.msra.mxu0 %v2089
    %2181 = vmatprep.subr.mxu0 %v2086
    %2182 = vmatpush1.msra.mxu0 %v2085
    %2183 = vmatprep.subr.mxu0 %v2082
    %2184 = vmatpush1.msra.mxu0 %v2081
    %2185 = vmatprep.subr.mxu0 %v2078
    %2186 = vmatpush1.msra.mxu0 %v2077
    %2187 = vmatprep.subr.mxu0 %v2074
    %2188 = vmatpush1.msra.mxu0 %v2073
    %2189 = vmatprep.subr.mxu0 %v2070
    %2190 = vmatpush1.msra.mxu0 %v2069
    %2191 = vmatprep.subr.mxu0 %v2066
    %2192 = vmatpush1.msra.mxu0 %v2065
    %2193 = vmatprep.subr.mxu0 %v2062
    %2194 = vmatpush1.msra.mxu0 %v2061
    %2195 = vmatprep.subr.mxu0 %v2058
    %2196 = vmatpush1.msra.mxu0 %v2057
    %2197 = vmatprep.subr.mxu0 %v2054
    %2198 = vmatpush1.msra.mxu0 %v2053
    %2199 = vmatprep.subr.mxu0 %v2050
    %2200 = vmatpush1.msra.mxu0 %v2049
    %2201 = vmatprep.subr.mxu0 %v2046
    %2202 = vmatpush1.msra.mxu0 %v2045
    %2203 = vmatprep.subr.mxu0 %v2042
    %2204 = vmatpush1.msra.mxu0 %v2041
    %2205 = vmatprep.subr.mxu0 %v2038
    %2206 = vmatpush1.msra.mxu0 %v2037
    %2207 = vmatprep.subr.mxu0 %v2034
    %2208 = vmatpush1.msra.mxu0 %v2033
    %2209 = vmatprep.subr.mxu0 %v2030
    %2210 = vmatpush1.msra.mxu0 %v2029
    %2211 = vmatprep.subr.mxu0 %v2154
    %2212 = vmatpush2.msra.mxu0 %v2153
    %2213 = vmatprep.subr.mxu0 %v2150
    %2214 = vmatpush2.msra.mxu0 %v2149
    %2215 = vmatprep.subr.mxu0 %v2146
    %2216 = vmatpush2.msra.mxu0 %v2145
    %2217 = vmatprep.subr.mxu0 %v2142
    %2218 = vmatpush2.msra.mxu0 %v2141
    %2219 = vmatprep.subr.mxu0 %v2138
    %2220 = vmatpush2.msra.mxu0 %v2137
    %2221 = vmatprep.subr.mxu0 %v2134
    %2222 = vmatpush2.msra.mxu0 %v2133
    %2223 = vmatprep.subr.mxu0 %v2130
    %2224 = vmatpush2.msra.mxu0 %v2129
    %2225 = vmatprep.subr.mxu0 %v2126
    %2226 = vmatpush2.msra.mxu0 %v2125
    %2227 = vmatprep.subr.mxu0 %v2122
    %2228 = vmatpush2.msra.mxu0 %v2121
    %2229 = vmatprep.subr.mxu0 %v2118
    %2230 = vmatpush2.msra.mxu0 %v2117
    %2231 = vmatprep.subr.mxu0 %v2114
    %2232 = vmatpush2.msra.mxu0 %v2113
    %2233 = vmatprep.subr.mxu0 %v2110
    %2234 = vmatpush2.msra.mxu0 %v2109
    %2235 = vmatprep.subr.mxu0 %v2106
    %2236 = vmatpush2.msra.mxu0 %v2105
    %2237 = vmatprep.subr.mxu0 %v2102
    %2238 = vmatpush2.msra.mxu0 %v2101
    %2239 = vmatprep.subr.mxu0 %v2098
    %2240 = vmatpush2.msra.mxu0 %v2097
    %2241 = vmatprep.subr.mxu0 %v2094
    %2242 = vmatpush2.msra.mxu0 %v2093
    %2243 = vmatprep.mubr.f32.mxu0 %v2028
    %2244 = vmatmul.mubr.f32.gmra.mxu0 %v2027
    %v2245 = vpop.f32.mrf.mxu0
    %v2246 = vadd.f32 %v2162, %v2245
    %v2247 = vpop.f32.mrf.mxu0
    %v2248 = vadd.f32 %v2166, %v2247
    %2249 = vdwg.mxu0
    %2250 = vmatprep.subr.mxu0 %v2092
    %2251 = vmatpush1.msra.mxu0 %v2091
    %2252 = vmatprep.subr.mxu0 %v2088
    %2253 = vmatpush1.msra.mxu0 %v2087
    %2254 = vmatprep.subr.mxu0 %v2084
    %2255 = vmatpush1.msra.mxu0 %v2083
    %2256 = vmatprep.subr.mxu0 %v2080
    %2257 = vmatpush1.msra.mxu0 %v2079
    %2258 = vmatprep.subr.mxu0 %v2076
    %2259 = vmatpush1.msra.mxu0 %v2075
    %2260 = vmatprep.subr.mxu0 %v2072
    %2261 = vmatpush1.msra.mxu0 %v2071
    %2262 = vmatprep.subr.mxu0 %v2068
    %2263 = vmatpush1.msra.mxu0 %v2067
    %2264 = vmatprep.subr.mxu0 %v2064
    %2265 = vmatpush1.msra.mxu0 %v2063
    %2266 = vmatprep.subr.mxu0 %v2060
    %2267 = vmatpush1.msra.mxu0 %v2059
    %2268 = vmatprep.subr.mxu0 %v2056
    %2269 = vmatpush1.msra.mxu0 %v2055
    %2270 = vmatprep.subr.mxu0 %v2052
    %2271 = vmatpush1.msra.mxu0 %v2051
    %2272 = vmatprep.subr.mxu0 %v2048
    %2273 = vmatpush1.msra.mxu0 %v2047
    %2274 = vmatprep.subr.mxu0 %v2044
    %2275 = vmatpush1.msra.mxu0 %v2043
    %2276 = vmatprep.subr.mxu0 %v2040
    %2277 = vmatpush1.msra.mxu0 %v2039
    %2278 = vmatprep.subr.mxu0 %v2036
    %2279 = vmatpush1.msra.mxu0 %v2035
    %2280 = vmatprep.subr.mxu0 %v2032
    %2281 = vmatpush1.msra.mxu0 %v2031
    %2282 = vmatprep.subr.mxu0 %v2156
    %2283 = vmatpush2.msra.mxu0 %v2155
    %2284 = vmatprep.subr.mxu0 %v2152
    %2285 = vmatpush2.msra.mxu0 %v2151
    %2286 = vmatprep.subr.mxu0 %v2148
    %2287 = vmatpush2.msra.mxu0 %v2147
    %2288 = vmatprep.subr.mxu0 %v2144
    %2289 = vmatpush2.msra.mxu0 %v2143
    %2290 = vmatprep.subr.mxu0 %v2140
    %2291 = vmatpush2.msra.mxu0 %v2139
    %2292 = vmatprep.subr.mxu0 %v2136
    %2293 = vmatpush2.msra.mxu0 %v2135
    %2294 = vmatprep.subr.mxu0 %v2132
    %2295 = vmatpush2.msra.mxu0 %v2131
    %2296 = vmatprep.subr.mxu0 %v2128
    %2297 = vmatpush2.msra.mxu0 %v2127
    %2298 = vmatprep.subr.mxu0 %v2124
    %2299 = vmatpush2.msra.mxu0 %v2123
    %2300 = vmatprep.subr.mxu0 %v2120
    %2301 = vmatpush2.msra.mxu0 %v2119
    %2302 = vmatprep.subr.mxu0 %v2116
    %2303 = vmatpush2.msra.mxu0 %v2115
    %2304 = vmatprep.subr.mxu0 %v2112
    %2305 = vmatpush2.msra.mxu0 %v2111
    %2306 = vmatprep.subr.mxu0 %v2108
    %2307 = vmatpush2.msra.mxu0 %v2107
    %2308 = vmatprep.subr.mxu0 %v2104
    %2309 = vmatpush2.msra.mxu0 %v2103
    %2310 = vmatprep.subr.mxu0 %v2100
    %2311 = vmatpush2.msra.mxu0 %v2099
    %2312 = vmatprep.subr.mxu0 %v2096
    %2313 = vmatpush2.msra.mxu0 %v2095
    %2314 = vmatprep.mubr.f32.mxu0 %v2028
    %2315 = vmatmul.mubr.f32.gmra.mxu0 %v2027
    %v2316 = vpop.f32.mrf.mxu0
    %v2317 = vadd.f32 %v2170, %v2316
    %v2318 = vpop.f32.mrf.mxu0
    %v2319 = vadd.f32 %v2174, %v2318
    %2320 = vdwg.mxu0
    %v2321 = vxor.u32 %v2246, 2147483648
    %v2322 = vmul.f32 %v2321, 1.442695
    %v2323 = vpow.pop %v2322
    %v2324 = vadd.f32 %v2323, 1.0
    %v2325 = vrcp.pop %v2324
    %v2326 = vmul.f32 1.0, %v2325
    %v2327 = vxor.u32 %v2248, 2147483648
    %v2328 = vmul.f32 %v2327, 1.442695
    %v2329 = vpow.pop %v2328
    %v2330 = vadd.f32 %v2329, 1.0
    %v2331 = vrcp.pop %v2330
    %v2332 = vmul.f32 1.0, %v2331
    %v2333 = vtanh.pop %v2317
    %v2334 = vxor.u32 %v2319, 2147483648
    %v2335 = vmul.f32 %v2334, 1.442695
    %v2336 = vpow.pop %v2335
    %v2337 = vadd.f32 %v2336, 1.0
    %v2338 = vrcp.pop %v2337
    %v2339 = vmul.f32 1.0, %v2338
    %v2340 = vld [vmem:[#allocation3] sm:$0xff]
    %v2341 = vmul.f32 %v2332, %v2340
    %v2342 = vmul.f32 %v2326, %v2333
    %v2343 = vadd.f32 %v2341, %v2342
    %v2344 = vtanh.pop %v2343
    %v2345 = vmul.f32 %v2339, %v2344
    %2346 = vst [vmem:[#allocation3] sm:$0xff] %v2343
    %2347 = vst [vmem:[#allocation2] sm:$0xff] %v2345
    %2348 = vst [vmem:[#allocation4] sm:$0xff] %v2345
    %v2349 = vld [vmem:[%s390] sm:$0xff]
    %2350 = vst [vmem:[#allocation4 + $0x8] sm:$0xff] %v2349
    %v2351 = vld [vmem:[#allocation4] sm:$0xff]
    %v2352 = vld [vmem:[#allocation4 + $0x8] sm:$0xff]
    %v2353 = vld [vmem:[%s395] sm:$0xff]
    %v2354 = vld [vmem:[%s395 + $0x8] sm:$0xff]
    %v2355 = vld [vmem:[%s395 + $0x10] sm:$0xff]
    %v2356 = vld [vmem:[%s395 + $0x18] sm:$0xff]
    %v2357 = vld [vmem:[%s395 + $0x20] sm:$0xff]
    %v2358 = vld [vmem:[%s395 + $0x28] sm:$0xff]
    %v2359 = vld [vmem:[%s395 + $0x30] sm:$0xff]
    %v2360 = vld [vmem:[%s395 + $0x38] sm:$0xff]
    %v2361 = vld [vmem:[%s395 + $0x40] sm:$0xff]
    %v2362 = vld [vmem:[%s395 + $0x48] sm:$0xff]
    %v2363 = vld [vmem:[%s395 + $0x50] sm:$0xff]
    %v2364 = vld [vmem:[%s395 + $0x58] sm:$0xff]
    %v2365 = vld [vmem:[%s395 + $0x60] sm:$0xff]
    %v2366 = vld [vmem:[%s395 + $0x68] sm:$0xff]
    %v2367 = vld [vmem:[%s395 + $0x70] sm:$0xff]
    %v2368 = vld [vmem:[%s395 + $0x78] sm:$0xff]
    %v2369 = vld [vmem:[%s395 + $0x80] sm:$0xff]
    %v2370 = vld [vmem:[%s395 + $0x88] sm:$0xff]
    %v2371 = vld [vmem:[%s395 + $0x90] sm:$0xff]
    %v2372 = vld [vmem:[%s395 + $0x98] sm:$0xff]
    %v2373 = vld [vmem:[%s395 + $0xa0] sm:$0xff]
    %v2374 = vld [vmem:[%s395 + $0xa8] sm:$0xff]
    %v2375 = vld [vmem:[%s395 + $0xb0] sm:$0xff]
    %v2376 = vld [vmem:[%s395 + $0xb8] sm:$0xff]
    %v2377 = vld [vmem:[%s395 + $0xc0] sm:$0xff]
    %v2378 = vld [vmem:[%s395 + $0xc8] sm:$0xff]
    %v2379 = vld [vmem:[%s395 + $0xd0] sm:$0xff]
    %v2380 = vld [vmem:[%s395 + $0xd8] sm:$0xff]
    %v2381 = vld [vmem:[%s395 + $0xe0] sm:$0xff]
    %v2382 = vld [vmem:[%s395 + $0xe8] sm:$0xff]
    %v2383 = vld [vmem:[%s395 + $0xf0] sm:$0xff]
    %v2384 = vld [vmem:[%s395 + $0xf8] sm:$0xff]
    %v2385 = vld [vmem:[%s395 + $0x100] sm:$0xff]
    %v2386 = vld [vmem:[%s395 + $0x108] sm:$0xff]
    %v2387 = vld [vmem:[%s395 + $0x110] sm:$0xff]
    %v2388 = vld [vmem:[%s395 + $0x118] sm:$0xff]
    %v2389 = vld [vmem:[%s395 + $0x120] sm:$0xff]
    %v2390 = vld [vmem:[%s395 + $0x128] sm:$0xff]
    %v2391 = vld [vmem:[%s395 + $0x130] sm:$0xff]
    %v2392 = vld [vmem:[%s395 + $0x138] sm:$0xff]
    %v2393 = vld [vmem:[%s395 + $0x140] sm:$0xff]
    %v2394 = vld [vmem:[%s395 + $0x148] sm:$0xff]
    %v2395 = vld [vmem:[%s395 + $0x150] sm:$0xff]
    %v2396 = vld [vmem:[%s395 + $0x158] sm:$0xff]
    %v2397 = vld [vmem:[%s395 + $0x160] sm:$0xff]
    %v2398 = vld [vmem:[%s395 + $0x168] sm:$0xff]
    %v2399 = vld [vmem:[%s395 + $0x170] sm:$0xff]
    %v2400 = vld [vmem:[%s395 + $0x178] sm:$0xff]
    %v2401 = vld [vmem:[%s395 + $0x180] sm:$0xff]
    %v2402 = vld [vmem:[%s395 + $0x188] sm:$0xff]
    %v2403 = vld [vmem:[%s395 + $0x190] sm:$0xff]
    %v2404 = vld [vmem:[%s395 + $0x198] sm:$0xff]
    %v2405 = vld [vmem:[%s395 + $0x1a0] sm:$0xff]
    %v2406 = vld [vmem:[%s395 + $0x1a8] sm:$0xff]
    %v2407 = vld [vmem:[%s395 + $0x1b0] sm:$0xff]
    %v2408 = vld [vmem:[%s395 + $0x1b8] sm:$0xff]
    %v2409 = vld [vmem:[%s395 + $0x1c0] sm:$0xff]
    %v2410 = vld [vmem:[%s395 + $0x1c8] sm:$0xff]
    %v2411 = vld [vmem:[%s395 + $0x1d0] sm:$0xff]
    %v2412 = vld [vmem:[%s395 + $0x1d8] sm:$0xff]
    %v2413 = vld [vmem:[%s395 + $0x1e0] sm:$0xff]
    %v2414 = vld [vmem:[%s395 + $0x1e8] sm:$0xff]
    %v2415 = vld [vmem:[%s395 + $0x1f0] sm:$0xff]
    %v2416 = vld [vmem:[%s395 + $0x1f8] sm:$0xff]
    %v2417 = vld [vmem:[%s395 + $0x200] sm:$0xff]
    %v2418 = vld [vmem:[%s395 + $0x208] sm:$0xff]
    %v2419 = vld [vmem:[%s395 + $0x210] sm:$0xff]
    %v2420 = vld [vmem:[%s395 + $0x218] sm:$0xff]
    %v2421 = vld [vmem:[%s395 + $0x220] sm:$0xff]
    %v2422 = vld [vmem:[%s395 + $0x228] sm:$0xff]
    %v2423 = vld [vmem:[%s395 + $0x230] sm:$0xff]
    %v2424 = vld [vmem:[%s395 + $0x238] sm:$0xff]
    %v2425 = vld [vmem:[%s395 + $0x240] sm:$0xff]
    %v2426 = vld [vmem:[%s395 + $0x248] sm:$0xff]
    %v2427 = vld [vmem:[%s395 + $0x250] sm:$0xff]
    %v2428 = vld [vmem:[%s395 + $0x258] sm:$0xff]
    %v2429 = vld [vmem:[%s395 + $0x260] sm:$0xff]
    %v2430 = vld [vmem:[%s395 + $0x268] sm:$0xff]
    %v2431 = vld [vmem:[%s395 + $0x270] sm:$0xff]
    %v2432 = vld [vmem:[%s395 + $0x278] sm:$0xff]
    %v2433 = vld [vmem:[%s395 + $0x280] sm:$0xff]
    %v2434 = vld [vmem:[%s395 + $0x288] sm:$0xff]
    %v2435 = vld [vmem:[%s395 + $0x290] sm:$0xff]
    %v2436 = vld [vmem:[%s395 + $0x298] sm:$0xff]
    %v2437 = vld [vmem:[%s395 + $0x2a0] sm:$0xff]
    %v2438 = vld [vmem:[%s395 + $0x2a8] sm:$0xff]
    %v2439 = vld [vmem:[%s395 + $0x2b0] sm:$0xff]
    %v2440 = vld [vmem:[%s395 + $0x2b8] sm:$0xff]
    %v2441 = vld [vmem:[%s395 + $0x2c0] sm:$0xff]
    %v2442 = vld [vmem:[%s395 + $0x2c8] sm:$0xff]
    %v2443 = vld [vmem:[%s395 + $0x2d0] sm:$0xff]
    %v2444 = vld [vmem:[%s395 + $0x2d8] sm:$0xff]
    %v2445 = vld [vmem:[%s395 + $0x2e0] sm:$0xff]
    %v2446 = vld [vmem:[%s395 + $0x2e8] sm:$0xff]
    %v2447 = vld [vmem:[%s395 + $0x2f0] sm:$0xff]
    %v2448 = vld [vmem:[%s395 + $0x2f8] sm:$0xff]
    %v2449 = vld [vmem:[%s395 + $0x300] sm:$0xff]
    %v2450 = vld [vmem:[%s395 + $0x308] sm:$0xff]
    %v2451 = vld [vmem:[%s395 + $0x310] sm:$0xff]
    %v2452 = vld [vmem:[%s395 + $0x318] sm:$0xff]
    %v2453 = vld [vmem:[%s395 + $0x320] sm:$0xff]
    %v2454 = vld [vmem:[%s395 + $0x328] sm:$0xff]
    %v2455 = vld [vmem:[%s395 + $0x330] sm:$0xff]
    %v2456 = vld [vmem:[%s395 + $0x338] sm:$0xff]
    %v2457 = vld [vmem:[%s395 + $0x340] sm:$0xff]
    %v2458 = vld [vmem:[%s395 + $0x348] sm:$0xff]
    %v2459 = vld [vmem:[%s395 + $0x350] sm:$0xff]
    %v2460 = vld [vmem:[%s395 + $0x358] sm:$0xff]
    %v2461 = vld [vmem:[%s395 + $0x360] sm:$0xff]
    %v2462 = vld [vmem:[%s395 + $0x368] sm:$0xff]
    %v2463 = vld [vmem:[%s395 + $0x370] sm:$0xff]
    %v2464 = vld [vmem:[%s395 + $0x378] sm:$0xff]
    %v2465 = vld [vmem:[%s395 + $0x380] sm:$0xff]
    %v2466 = vld [vmem:[%s395 + $0x388] sm:$0xff]
    %v2467 = vld [vmem:[%s395 + $0x390] sm:$0xff]
    %v2468 = vld [vmem:[%s395 + $0x398] sm:$0xff]
    %v2469 = vld [vmem:[%s395 + $0x3a0] sm:$0xff]
    %v2470 = vld [vmem:[%s395 + $0x3a8] sm:$0xff]
    %v2471 = vld [vmem:[%s395 + $0x3b0] sm:$0xff]
    %v2472 = vld [vmem:[%s395 + $0x3b8] sm:$0xff]
    %v2473 = vld [vmem:[%s395 + $0x3c0] sm:$0xff]
    %v2474 = vld [vmem:[%s395 + $0x3c8] sm:$0xff]
    %v2475 = vld [vmem:[%s395 + $0x3d0] sm:$0xff]
    %v2476 = vld [vmem:[%s395 + $0x3d8] sm:$0xff]
    %v2477 = vld [vmem:[%s395 + $0x3e0] sm:$0xff]
    %v2478 = vld [vmem:[%s395 + $0x3e8] sm:$0xff]
    %v2479 = vld [vmem:[%s395 + $0x3f0] sm:$0xff]
    %v2480 = vld [vmem:[%s395 + $0x3f8] sm:$0xff]
    %v2481 = vld [vmem:[%s524] sm:$0xf]
    %v2483 = vlaneseq
    %v2484 = vshrl.u32 %v2483, 7
    %v2485 = vsub.s32 0, %v2484
    %v2486 = vrot.slane %v2481, %v2485
    %v2487 = vlaneseq
    %v2488 = vshrl.u32 %v2487, 7
    %v2489 = vsub.s32 1, %v2488
    %v2490 = vrot.slane %v2481, %v2489
    %v2491 = vlaneseq
    %v2492 = vshrl.u32 %v2491, 7
    %v2493 = vsub.s32 2, %v2492
    %v2494 = vrot.slane %v2481, %v2493
    %v2495 = vlaneseq
    %v2496 = vshrl.u32 %v2495, 7
    %v2497 = vsub.s32 3, %v2496
    %v2498 = vrot.slane %v2481, %v2497
    %2503 = vmatprep.subr.mxu0 %v2414
    %2504 = vmatpush1.msra.mxu0 %v2413
    %2505 = vmatprep.subr.mxu0 %v2410
    %2506 = vmatpush1.msra.mxu0 %v2409
    %2507 = vmatprep.subr.mxu0 %v2406
    %2508 = vmatpush1.msra.mxu0 %v2405
    %2509 = vmatprep.subr.mxu0 %v2402
    %2510 = vmatpush1.msra.mxu0 %v2401
    %2511 = vmatprep.subr.mxu0 %v2398
    %2512 = vmatpush1.msra.mxu0 %v2397
    %2513 = vmatprep.subr.mxu0 %v2394
    %2514 = vmatpush1.msra.mxu0 %v2393
    %2515 = vmatprep.subr.mxu0 %v2390
    %2516 = vmatpush1.msra.mxu0 %v2389
    %2517 = vmatprep.subr.mxu0 %v2386
    %2518 = vmatpush1.msra.mxu0 %v2385
    %2519 = vmatprep.subr.mxu0 %v2382
    %2520 = vmatpush1.msra.mxu0 %v2381
    %2521 = vmatprep.subr.mxu0 %v2378
    %2522 = vmatpush1.msra.mxu0 %v2377
    %2523 = vmatprep.subr.mxu0 %v2374
    %2524 = vmatpush1.msra.mxu0 %v2373
    %2525 = vmatprep.subr.mxu0 %v2370
    %2526 = vmatpush1.msra.mxu0 %v2369
    %2527 = vmatprep.subr.mxu0 %v2366
    %2528 = vmatpush1.msra.mxu0 %v2365
    %2529 = vmatprep.subr.mxu0 %v2362
    %2530 = vmatpush1.msra.mxu0 %v2361
    %2531 = vmatprep.subr.mxu0 %v2358
    %2532 = vmatpush1.msra.mxu0 %v2357
    %2533 = vmatprep.subr.mxu0 %v2354
    %2534 = vmatpush1.msra.mxu0 %v2353
    %2535 = vmatprep.subr.mxu0 %v2478
    %2536 = vmatpush2.msra.mxu0 %v2477
    %2537 = vmatprep.subr.mxu0 %v2474
    %2538 = vmatpush2.msra.mxu0 %v2473
    %2539 = vmatprep.subr.mxu0 %v2470
    %2540 = vmatpush2.msra.mxu0 %v2469
    %2541 = vmatprep.subr.mxu0 %v2466
    %2542 = vmatpush2.msra.mxu0 %v2465
    %2543 = vmatprep.subr.mxu0 %v2462
    %2544 = vmatpush2.msra.mxu0 %v2461
    %2545 = vmatprep.subr.mxu0 %v2458
    %2546 = vmatpush2.msra.mxu0 %v2457
    %2547 = vmatprep.subr.mxu0 %v2454
    %2548 = vmatpush2.msra.mxu0 %v2453
    %2549 = vmatprep.subr.mxu0 %v2450
    %2550 = vmatpush2.msra.mxu0 %v2449
    %2551 = vmatprep.subr.mxu0 %v2446
    %2552 = vmatpush2.msra.mxu0 %v2445
    %2553 = vmatprep.subr.mxu0 %v2442
    %2554 = vmatpush2.msra.mxu0 %v2441
    %2555 = vmatprep.subr.mxu0 %v2438
    %2556 = vmatpush2.msra.mxu0 %v2437
    %2557 = vmatprep.subr.mxu0 %v2434
    %2558 = vmatpush2.msra.mxu0 %v2433
    %2559 = vmatprep.subr.mxu0 %v2430
    %2560 = vmatpush2.msra.mxu0 %v2429
    %2561 = vmatprep.subr.mxu0 %v2426
    %2562 = vmatpush2.msra.mxu0 %v2425
    %2563 = vmatprep.subr.mxu0 %v2422
    %2564 = vmatpush2.msra.mxu0 %v2421
    %2565 = vmatprep.subr.mxu0 %v2418
    %2566 = vmatpush2.msra.mxu0 %v2417
    %2567 = vmatprep.mubr.f32.mxu0 %v2352
    %2568 = vmatmul.mubr.f32.gmra.mxu0 %v2351
    %v2569 = vpop.f32.mrf.mxu0
    %v2570 = vadd.f32 %v2486, %v2569
    %v2571 = vpop.f32.mrf.mxu0
    %v2572 = vadd.f32 %v2490, %v2571
    %2573 = vdwg.mxu0
    %2574 = vmatprep.subr.mxu0 %v2416
    %2575 = vmatpush1.msra.mxu0 %v2415
    %2576 = vmatprep.subr.mxu0 %v2412
    %2577 = vmatpush1.msra.mxu0 %v2411
    %2578 = vmatprep.subr.mxu0 %v2408
    %2579 = vmatpush1.msra.mxu0 %v2407
    %2580 = vmatprep.subr.mxu0 %v2404
    %2581 = vmatpush1.msra.mxu0 %v2403
    %2582 = vmatprep.subr.mxu0 %v2400
    %2583 = vmatpush1.msra.mxu0 %v2399
    %2584 = vmatprep.subr.mxu0 %v2396
    %2585 = vmatpush1.msra.mxu0 %v2395
    %2586 = vmatprep.subr.mxu0 %v2392
    %2587 = vmatpush1.msra.mxu0 %v2391
    %2588 = vmatprep.subr.mxu0 %v2388
    %2589 = vmatpush1.msra.mxu0 %v2387
    %2590 = vmatprep.subr.mxu0 %v2384
    %2591 = vmatpush1.msra.mxu0 %v2383
    %2592 = vmatprep.subr.mxu0 %v2380
    %2593 = vmatpush1.msra.mxu0 %v2379
    %2594 = vmatprep.subr.mxu0 %v2376
    %2595 = vmatpush1.msra.mxu0 %v2375
    %2596 = vmatprep.subr.mxu0 %v2372
    %2597 = vmatpush1.msra.mxu0 %v2371
    %2598 = vmatprep.subr.mxu0 %v2368
    %2599 = vmatpush1.msra.mxu0 %v2367
    %2600 = vmatprep.subr.mxu0 %v2364
    %2601 = vmatpush1.msra.mxu0 %v2363
    %2602 = vmatprep.subr.mxu0 %v2360
    %2603 = vmatpush1.msra.mxu0 %v2359
    %2604 = vmatprep.subr.mxu0 %v2356
    %2605 = vmatpush1.msra.mxu0 %v2355
    %2606 = vmatprep.subr.mxu0 %v2480
    %2607 = vmatpush2.msra.mxu0 %v2479
    %2608 = vmatprep.subr.mxu0 %v2476
    %2609 = vmatpush2.msra.mxu0 %v2475
    %2610 = vmatprep.subr.mxu0 %v2472
    %2611 = vmatpush2.msra.mxu0 %v2471
    %2612 = vmatprep.subr.mxu0 %v2468
    %2613 = vmatpush2.msra.mxu0 %v2467
    %2614 = vmatprep.subr.mxu0 %v2464
    %2615 = vmatpush2.msra.mxu0 %v2463
    %2616 = vmatprep.subr.mxu0 %v2460
    %2617 = vmatpush2.msra.mxu0 %v2459
    %2618 = vmatprep.subr.mxu0 %v2456
    %2619 = vmatpush2.msra.mxu0 %v2455
    %2620 = vmatprep.subr.mxu0 %v2452
    %2621 = vmatpush2.msra.mxu0 %v2451
    %2622 = vmatprep.subr.mxu0 %v2448
    %2623 = vmatpush2.msra.mxu0 %v2447
    %2624 = vmatprep.subr.mxu0 %v2444
    %2625 = vmatpush2.msra.mxu0 %v2443
    %2626 = vmatprep.subr.mxu0 %v2440
    %2627 = vmatpush2.msra.mxu0 %v2439
    %2628 = vmatprep.subr.mxu0 %v2436
    %2629 = vmatpush2.msra.mxu0 %v2435
    %2630 = vmatprep.subr.mxu0 %v2432
    %2631 = vmatpush2.msra.mxu0 %v2431
    %2632 = vmatprep.subr.mxu0 %v2428
    %2633 = vmatpush2.msra.mxu0 %v2427
    %2634 = vmatprep.subr.mxu0 %v2424
    %2635 = vmatpush2.msra.mxu0 %v2423
    %2636 = vmatprep.subr.mxu0 %v2420
    %2637 = vmatpush2.msra.mxu0 %v2419
    %2638 = vmatprep.mubr.f32.mxu0 %v2352
    %2639 = vmatmul.mubr.f32.gmra.mxu0 %v2351
    %v2640 = vpop.f32.mrf.mxu0
    %v2641 = vadd.f32 %v2494, %v2640
    %v2642 = vpop.f32.mrf.mxu0
    %v2643 = vadd.f32 %v2498, %v2642
    %2644 = vdwg.mxu0
    %v2645 = vxor.u32 %v2570, 2147483648
    %v2646 = vmul.f32 %v2645, 1.442695
    %v2647 = vpow.pop %v2646
    %v2648 = vadd.f32 %v2647, 1.0
    %v2649 = vrcp.pop %v2648
    %v2650 = vmul.f32 1.0, %v2649
    %v2651 = vxor.u32 %v2572, 2147483648
    %v2652 = vmul.f32 %v2651, 1.442695
    %v2653 = vpow.pop %v2652
    %v2654 = vadd.f32 %v2653, 1.0
    %v2655 = vrcp.pop %v2654
    %v2656 = vmul.f32 1.0, %v2655
    %v2657 = vtanh.pop %v2641
    %v2658 = vxor.u32 %v2643, 2147483648
    %v2659 = vmul.f32 %v2658, 1.442695
    %v2660 = vpow.pop %v2659
    %v2661 = vadd.f32 %v2660, 1.0
    %v2662 = vrcp.pop %v2661
    %v2663 = vmul.f32 1.0, %v2662
    %v2664 = vld [vmem:[%s708] sm:$0xff]
    %v2665 = vmul.f32 %v2656, %v2664
    %v2666 = vmul.f32 %v2650, %v2657
    %v2667 = vadd.f32 %v2665, %v2666
    %v2668 = vtanh.pop %v2667
    %v2669 = vmul.f32 %v2663, %v2668
    %2670 = vst [vmem:[%s708] sm:$0xff] %v2667
    %2671 = vst [vmem:[%s390] sm:$0xff] %v2669
    %s2672 = scalar_lea.vmem [#allocation11], 24
    %2673 = vst [vmem:[%s2672] sm:$0xff] %v2669
    %s2674 = scalar_lea.vmem [#allocation5], 32
    %v2675 = vld [vmem:[%s2674] sm:$0xff]
    %2676 = vst [vmem:[#allocation4] sm:$0xff] %v2675
    %v2677 = vld [vmem:[#allocation2] sm:$0xff]
    %2678 = vst [vmem:[#allocation4 + $0x8] sm:$0xff] %v2677
    %v2679 = vld [vmem:[#allocation4] sm:$0xff]
    %v2680 = vld [vmem:[#allocation4 + $0x8] sm:$0xff]
    %v2681 = vld [vmem:[#allocation8] sm:$0xff]
    %v2682 = vld [vmem:[#allocation8 + $0x8] sm:$0xff]
    %v2683 = vld [vmem:[#allocation8 + $0x10] sm:$0xff]
    %v2684 = vld [vmem:[#allocation8 + $0x18] sm:$0xff]
    %v2685 = vld [vmem:[#allocation8 + $0x20] sm:$0xff]
    %v2686 = vld [vmem:[#allocation8 + $0x28] sm:$0xff]
    %v2687 = vld [vmem:[#allocation8 + $0x30] sm:$0xff]
    %v2688 = vld [vmem:[#allocation8 + $0x38] sm:$0xff]
    %v2689 = vld [vmem:[#allocation8 + $0x40] sm:$0xff]
    %v2690 = vld [vmem:[#allocation8 + $0x48] sm:$0xff]
    %v2691 = vld [vmem:[#allocation8 + $0x50] sm:$0xff]
    %v2692 = vld [vmem:[#allocation8 + $0x58] sm:$0xff]
    %v2693 = vld [vmem:[#allocation8 + $0x60] sm:$0xff]
    %v2694 = vld [vmem:[#allocation8 + $0x68] sm:$0xff]
    %v2695 = vld [vmem:[#allocation8 + $0x70] sm:$0xff]
    %v2696 = vld [vmem:[#allocation8 + $0x78] sm:$0xff]
    %v2697 = vld [vmem:[#allocation8 + $0x80] sm:$0xff]
    %v2698 = vld [vmem:[#allocation8 + $0x88] sm:$0xff]
    %v2699 = vld [vmem:[#allocation8 + $0x90] sm:$0xff]
    %v2700 = vld [vmem:[#allocation8 + $0x98] sm:$0xff]
    %v2701 = vld [vmem:[#allocation8 + $0xa0] sm:$0xff]
    %v2702 = vld [vmem:[#allocation8 + $0xa8] sm:$0xff]
    %v2703 = vld [vmem:[#allocation8 + $0xb0] sm:$0xff]
    %v2704 = vld [vmem:[#allocation8 + $0xb8] sm:$0xff]
    %v2705 = vld [vmem:[#allocation8 + $0xc0] sm:$0xff]
    %v2706 = vld [vmem:[#allocation8 + $0xc8] sm:$0xff]
    %v2707 = vld [vmem:[#allocation8 + $0xd0] sm:$0xff]
    %v2708 = vld [vmem:[#allocation8 + $0xd8] sm:$0xff]
    %v2709 = vld [vmem:[#allocation8 + $0xe0] sm:$0xff]
    %v2710 = vld [vmem:[#allocation8 + $0xe8] sm:$0xff]
    %v2711 = vld [vmem:[#allocation8 + $0xf0] sm:$0xff]
    %v2712 = vld [vmem:[#allocation8 + $0xf8] sm:$0xff]
    %v2713 = vld [vmem:[#allocation8 + $0x100] sm:$0xff]
    %v2714 = vld [vmem:[#allocation8 + $0x108] sm:$0xff]
    %v2715 = vld [vmem:[#allocation8 + $0x110] sm:$0xff]
    %v2716 = vld [vmem:[#allocation8 + $0x118] sm:$0xff]
    %v2717 = vld [vmem:[#allocation8 + $0x120] sm:$0xff]
    %v2718 = vld [vmem:[#allocation8 + $0x128] sm:$0xff]
    %v2719 = vld [vmem:[#allocation8 + $0x130] sm:$0xff]
    %v2720 = vld [vmem:[#allocation8 + $0x138] sm:$0xff]
    %v2721 = vld [vmem:[#allocation8 + $0x140] sm:$0xff]
    %v2722 = vld [vmem:[#allocation8 + $0x148] sm:$0xff]
    %v2723 = vld [vmem:[#allocation8 + $0x150] sm:$0xff]
    %v2724 = vld [vmem:[#allocation8 + $0x158] sm:$0xff]
    %v2725 = vld [vmem:[#allocation8 + $0x160] sm:$0xff]
    %v2726 = vld [vmem:[#allocation8 + $0x168] sm:$0xff]
    %v2727 = vld [vmem:[#allocation8 + $0x170] sm:$0xff]
    %v2728 = vld [vmem:[#allocation8 + $0x178] sm:$0xff]
    %v2729 = vld [vmem:[#allocation8 + $0x180] sm:$0xff]
    %v2730 = vld [vmem:[#allocation8 + $0x188] sm:$0xff]
    %v2731 = vld [vmem:[#allocation8 + $0x190] sm:$0xff]
    %v2732 = vld [vmem:[#allocation8 + $0x198] sm:$0xff]
    %v2733 = vld [vmem:[#allocation8 + $0x1a0] sm:$0xff]
    %v2734 = vld [vmem:[#allocation8 + $0x1a8] sm:$0xff]
    %v2735 = vld [vmem:[#allocation8 + $0x1b0] sm:$0xff]
    %v2736 = vld [vmem:[#allocation8 + $0x1b8] sm:$0xff]
    %v2737 = vld [vmem:[#allocation8 + $0x1c0] sm:$0xff]
    %v2738 = vld [vmem:[#allocation8 + $0x1c8] sm:$0xff]
    %v2739 = vld [vmem:[#allocation8 + $0x1d0] sm:$0xff]
    %v2740 = vld [vmem:[#allocation8 + $0x1d8] sm:$0xff]
    %v2741 = vld [vmem:[#allocation8 + $0x1e0] sm:$0xff]
    %v2742 = vld [vmem:[#allocation8 + $0x1e8] sm:$0xff]
    %v2743 = vld [vmem:[#allocation8 + $0x1f0] sm:$0xff]
    %v2744 = vld [vmem:[#allocation8 + $0x1f8] sm:$0xff]
    %v2745 = vld [vmem:[#allocation8 + $0x200] sm:$0xff]
    %v2746 = vld [vmem:[#allocation8 + $0x208] sm:$0xff]
    %v2747 = vld [vmem:[#allocation8 + $0x210] sm:$0xff]
    %v2748 = vld [vmem:[#allocation8 + $0x218] sm:$0xff]
    %v2749 = vld [vmem:[#allocation8 + $0x220] sm:$0xff]
    %v2750 = vld [vmem:[#allocation8 + $0x228] sm:$0xff]
    %v2751 = vld [vmem:[#allocation8 + $0x230] sm:$0xff]
    %v2752 = vld [vmem:[#allocation8 + $0x238] sm:$0xff]
    %v2753 = vld [vmem:[#allocation8 + $0x240] sm:$0xff]
    %v2754 = vld [vmem:[#allocation8 + $0x248] sm:$0xff]
    %v2755 = vld [vmem:[#allocation8 + $0x250] sm:$0xff]
    %v2756 = vld [vmem:[#allocation8 + $0x258] sm:$0xff]
    %v2757 = vld [vmem:[#allocation8 + $0x260] sm:$0xff]
    %v2758 = vld [vmem:[#allocation8 + $0x268] sm:$0xff]
    %v2759 = vld [vmem:[#allocation8 + $0x270] sm:$0xff]
    %v2760 = vld [vmem:[#allocation8 + $0x278] sm:$0xff]
    %v2761 = vld [vmem:[#allocation8 + $0x280] sm:$0xff]
    %v2762 = vld [vmem:[#allocation8 + $0x288] sm:$0xff]
    %v2763 = vld [vmem:[#allocation8 + $0x290] sm:$0xff]
    %v2764 = vld [vmem:[#allocation8 + $0x298] sm:$0xff]
    %v2765 = vld [vmem:[#allocation8 + $0x2a0] sm:$0xff]
    %v2766 = vld [vmem:[#allocation8 + $0x2a8] sm:$0xff]
    %v2767 = vld [vmem:[#allocation8 + $0x2b0] sm:$0xff]
    %v2768 = vld [vmem:[#allocation8 + $0x2b8] sm:$0xff]
    %v2769 = vld [vmem:[#allocation8 + $0x2c0] sm:$0xff]
    %v2770 = vld [vmem:[#allocation8 + $0x2c8] sm:$0xff]
    %v2771 = vld [vmem:[#allocation8 + $0x2d0] sm:$0xff]
    %v2772 = vld [vmem:[#allocation8 + $0x2d8] sm:$0xff]
    %v2773 = vld [vmem:[#allocation8 + $0x2e0] sm:$0xff]
    %v2774 = vld [vmem:[#allocation8 + $0x2e8] sm:$0xff]
    %v2775 = vld [vmem:[#allocation8 + $0x2f0] sm:$0xff]
    %v2776 = vld [vmem:[#allocation8 + $0x2f8] sm:$0xff]
    %v2777 = vld [vmem:[#allocation8 + $0x300] sm:$0xff]
    %v2778 = vld [vmem:[#allocation8 + $0x308] sm:$0xff]
    %v2779 = vld [vmem:[#allocation8 + $0x310] sm:$0xff]
    %v2780 = vld [vmem:[#allocation8 + $0x318] sm:$0xff]
    %v2781 = vld [vmem:[#allocation8 + $0x320] sm:$0xff]
    %v2782 = vld [vmem:[#allocation8 + $0x328] sm:$0xff]
    %v2783 = vld [vmem:[#allocation8 + $0x330] sm:$0xff]
    %v2784 = vld [vmem:[#allocation8 + $0x338] sm:$0xff]
    %v2785 = vld [vmem:[#allocation8 + $0x340] sm:$0xff]
    %v2786 = vld [vmem:[#allocation8 + $0x348] sm:$0xff]
    %v2787 = vld [vmem:[#allocation8 + $0x350] sm:$0xff]
    %v2788 = vld [vmem:[#allocation8 + $0x358] sm:$0xff]
    %v2789 = vld [vmem:[#allocation8 + $0x360] sm:$0xff]
    %v2790 = vld [vmem:[#allocation8 + $0x368] sm:$0xff]
    %v2791 = vld [vmem:[#allocation8 + $0x370] sm:$0xff]
    %v2792 = vld [vmem:[#allocation8 + $0x378] sm:$0xff]
    %v2793 = vld [vmem:[#allocation8 + $0x380] sm:$0xff]
    %v2794 = vld [vmem:[#allocation8 + $0x388] sm:$0xff]
    %v2795 = vld [vmem:[#allocation8 + $0x390] sm:$0xff]
    %v2796 = vld [vmem:[#allocation8 + $0x398] sm:$0xff]
    %v2797 = vld [vmem:[#allocation8 + $0x3a0] sm:$0xff]
    %v2798 = vld [vmem:[#allocation8 + $0x3a8] sm:$0xff]
    %v2799 = vld [vmem:[#allocation8 + $0x3b0] sm:$0xff]
    %v2800 = vld [vmem:[#allocation8 + $0x3b8] sm:$0xff]
    %v2801 = vld [vmem:[#allocation8 + $0x3c0] sm:$0xff]
    %v2802 = vld [vmem:[#allocation8 + $0x3c8] sm:$0xff]
    %v2803 = vld [vmem:[#allocation8 + $0x3d0] sm:$0xff]
    %v2804 = vld [vmem:[#allocation8 + $0x3d8] sm:$0xff]
    %v2805 = vld [vmem:[#allocation8 + $0x3e0] sm:$0xff]
    %v2806 = vld [vmem:[#allocation8 + $0x3e8] sm:$0xff]
    %v2807 = vld [vmem:[#allocation8 + $0x3f0] sm:$0xff]
    %v2808 = vld [vmem:[#allocation8 + $0x3f8] sm:$0xff]
    %v2809 = vld [vmem:[#allocation10] sm:$0xf]
    %v2811 = vlaneseq
    %v2812 = vshrl.u32 %v2811, 7
    %v2813 = vsub.s32 0, %v2812
    %v2814 = vrot.slane %v2809, %v2813
    %v2815 = vlaneseq
    %v2816 = vshrl.u32 %v2815, 7
    %v2817 = vsub.s32 1, %v2816
    %v2818 = vrot.slane %v2809, %v2817
    %v2819 = vlaneseq
    %v2820 = vshrl.u32 %v2819, 7
    %v2821 = vsub.s32 2, %v2820
    %v2822 = vrot.slane %v2809, %v2821
    %v2823 = vlaneseq
    %v2824 = vshrl.u32 %v2823, 7
    %v2825 = vsub.s32 3, %v2824
    %v2826 = vrot.slane %v2809, %v2825
    %2831 = vmatprep.subr.mxu0 %v2742
    %2832 = vmatpush1.msra.mxu0 %v2741
    %2833 = vmatprep.subr.mxu0 %v2738
    %2834 = vmatpush1.msra.mxu0 %v2737
    %2835 = vmatprep.subr.mxu0 %v2734
    %2836 = vmatpush1.msra.mxu0 %v2733
    %2837 = vmatprep.subr.mxu0 %v2730
    %2838 = vmatpush1.msra.mxu0 %v2729
    %2839 = vmatprep.subr.mxu0 %v2726
    %2840 = vmatpush1.msra.mxu0 %v2725
    %2841 = vmatprep.subr.mxu0 %v2722
    %2842 = vmatpush1.msra.mxu0 %v2721
    %2843 = vmatprep.subr.mxu0 %v2718
    %2844 = vmatpush1.msra.mxu0 %v2717
    %2845 = vmatprep.subr.mxu0 %v2714
    %2846 = vmatpush1.msra.mxu0 %v2713
    %2847 = vmatprep.subr.mxu0 %v2710
    %2848 = vmatpush1.msra.mxu0 %v2709
    %2849 = vmatprep.subr.mxu0 %v2706
    %2850 = vmatpush1.msra.mxu0 %v2705
    %2851 = vmatprep.subr.mxu0 %v2702
    %2852 = vmatpush1.msra.mxu0 %v2701
    %2853 = vmatprep.subr.mxu0 %v2698
    %2854 = vmatpush1.msra.mxu0 %v2697
    %2855 = vmatprep.subr.mxu0 %v2694
    %2856 = vmatpush1.msra.mxu0 %v2693
    %2857 = vmatprep.subr.mxu0 %v2690
    %2858 = vmatpush1.msra.mxu0 %v2689
    %2859 = vmatprep.subr.mxu0 %v2686
    %2860 = vmatpush1.msra.mxu0 %v2685
    %2861 = vmatprep.subr.mxu0 %v2682
    %2862 = vmatpush1.msra.mxu0 %v2681
    %2863 = vmatprep.subr.mxu0 %v2806
    %2864 = vmatpush2.msra.mxu0 %v2805
    %2865 = vmatprep.subr.mxu0 %v2802
    %2866 = vmatpush2.msra.mxu0 %v2801
    %2867 = vmatprep.subr.mxu0 %v2798
    %2868 = vmatpush2.msra.mxu0 %v2797
    %2869 = vmatprep.subr.mxu0 %v2794
    %2870 = vmatpush2.msra.mxu0 %v2793
    %2871 = vmatprep.subr.mxu0 %v2790
    %2872 = vmatpush2.msra.mxu0 %v2789
    %2873 = vmatprep.subr.mxu0 %v2786
    %2874 = vmatpush2.msra.mxu0 %v2785
    %2875 = vmatprep.subr.mxu0 %v2782
    %2876 = vmatpush2.msra.mxu0 %v2781
    %2877 = vmatprep.subr.mxu0 %v2778
    %2878 = vmatpush2.msra.mxu0 %v2777
    %2879 = vmatprep.subr.mxu0 %v2774
    %2880 = vmatpush2.msra.mxu0 %v2773
    %2881 = vmatprep.subr.mxu0 %v2770
    %2882 = vmatpush2.msra.mxu0 %v2769
    %2883 = vmatprep.subr.mxu0 %v2766
    %2884 = vmatpush2.msra.mxu0 %v2765
    %2885 = vmatprep.subr.mxu0 %v2762
    %2886 = vmatpush2.msra.mxu0 %v2761
    %2887 = vmatprep.subr.mxu0 %v2758
    %2888 = vmatpush2.msra.mxu0 %v2757
    %2889 = vmatprep.subr.mxu0 %v2754
    %2890 = vmatpush2.msra.mxu0 %v2753
    %2891 = vmatprep.subr.mxu0 %v2750
    %2892 = vmatpush2.msra.mxu0 %v2749
    %2893 = vmatprep.subr.mxu0 %v2746
    %2894 = vmatpush2.msra.mxu0 %v2745
    %2895 = vmatprep.mubr.f32.mxu0 %v2680
    %2896 = vmatmul.mubr.f32.gmra.mxu0 %v2679
    %v2897 = vpop.f32.mrf.mxu0
    %v2898 = vadd.f32 %v2814, %v2897
    %v2899 = vpop.f32.mrf.mxu0
    %v2900 = vadd.f32 %v2818, %v2899
    %2901 = vdwg.mxu0
    %2902 = vmatprep.subr.mxu0 %v2744
    %2903 = vmatpush1.msra.mxu0 %v2743
    %2904 = vmatprep.subr.mxu0 %v2740
    %2905 = vmatpush1.msra.mxu0 %v2739
    %2906 = vmatprep.subr.mxu0 %v2736
    %2907 = vmatpush1.msra.mxu0 %v2735
    %2908 = vmatprep.subr.mxu0 %v2732
    %2909 = vmatpush1.msra.mxu0 %v2731
    %2910 = vmatprep.subr.mxu0 %v2728
    %2911 = vmatpush1.msra.mxu0 %v2727
    %2912 = vmatprep.subr.mxu0 %v2724
    %2913 = vmatpush1.msra.mxu0 %v2723
    %2914 = vmatprep.subr.mxu0 %v2720
    %2915 = vmatpush1.msra.mxu0 %v2719
    %2916 = vmatprep.subr.mxu0 %v2716
    %2917 = vmatpush1.msra.mxu0 %v2715
    %2918 = vmatprep.subr.mxu0 %v2712
    %2919 = vmatpush1.msra.mxu0 %v2711
    %2920 = vmatprep.subr.mxu0 %v2708
    %2921 = vmatpush1.msra.mxu0 %v2707
    %2922 = vmatprep.subr.mxu0 %v2704
    %2923 = vmatpush1.msra.mxu0 %v2703
    %2924 = vmatprep.subr.mxu0 %v2700
    %2925 = vmatpush1.msra.mxu0 %v2699
    %2926 = vmatprep.subr.mxu0 %v2696
    %2927 = vmatpush1.msra.mxu0 %v2695
    %2928 = vmatprep.subr.mxu0 %v2692
    %2929 = vmatpush1.msra.mxu0 %v2691
    %2930 = vmatprep.subr.mxu0 %v2688
    %2931 = vmatpush1.msra.mxu0 %v2687
    %2932 = vmatprep.subr.mxu0 %v2684
    %2933 = vmatpush1.msra.mxu0 %v2683
    %2934 = vmatprep.subr.mxu0 %v2808
    %2935 = vmatpush2.msra.mxu0 %v2807
    %2936 = vmatprep.subr.mxu0 %v2804
    %2937 = vmatpush2.msra.mxu0 %v2803
    %2938 = vmatprep.subr.mxu0 %v2800
    %2939 = vmatpush2.msra.mxu0 %v2799
    %2940 = vmatprep.subr.mxu0 %v2796
    %2941 = vmatpush2.msra.mxu0 %v2795
    %2942 = vmatprep.subr.mxu0 %v2792
    %2943 = vmatpush2.msra.mxu0 %v2791
    %2944 = vmatprep.subr.mxu0 %v2788
    %2945 = vmatpush2.msra.mxu0 %v2787
    %2946 = vmatprep.subr.mxu0 %v2784
    %2947 = vmatpush2.msra.mxu0 %v2783
    %2948 = vmatprep.subr.mxu0 %v2780
    %2949 = vmatpush2.msra.mxu0 %v2779
    %2950 = vmatprep.subr.mxu0 %v2776
    %2951 = vmatpush2.msra.mxu0 %v2775
    %2952 = vmatprep.subr.mxu0 %v2772
    %2953 = vmatpush2.msra.mxu0 %v2771
    %2954 = vmatprep.subr.mxu0 %v2768
    %2955 = vmatpush2.msra.mxu0 %v2767
    %2956 = vmatprep.subr.mxu0 %v2764
    %2957 = vmatpush2.msra.mxu0 %v2763
    %2958 = vmatprep.subr.mxu0 %v2760
    %2959 = vmatpush2.msra.mxu0 %v2759
    %2960 = vmatprep.subr.mxu0 %v2756
    %2961 = vmatpush2.msra.mxu0 %v2755
    %2962 = vmatprep.subr.mxu0 %v2752
    %2963 = vmatpush2.msra.mxu0 %v2751
    %2964 = vmatprep.subr.mxu0 %v2748
    %2965 = vmatpush2.msra.mxu0 %v2747
    %2966 = vmatprep.mubr.f32.mxu0 %v2680
    %2967 = vmatmul.mubr.f32.gmra.mxu0 %v2679
    %v2968 = vpop.f32.mrf.mxu0
    %v2969 = vadd.f32 %v2822, %v2968
    %v2970 = vpop.f32.mrf.mxu0
    %v2971 = vadd.f32 %v2826, %v2970
    %2972 = vdwg.mxu0
    %v2973 = vxor.u32 %v2898, 2147483648
    %v2974 = vmul.f32 %v2973, 1.442695
    %v2975 = vpow.pop %v2974
    %v2976 = vadd.f32 %v2975, 1.0
    %v2977 = vrcp.pop %v2976
    %v2978 = vmul.f32 1.0, %v2977
    %v2979 = vxor.u32 %v2900, 2147483648
    %v2980 = vmul.f32 %v2979, 1.442695
    %v2981 = vpow.pop %v2980
    %v2982 = vadd.f32 %v2981, 1.0
    %v2983 = vrcp.pop %v2982
    %v2984 = vmul.f32 1.0, %v2983
    %v2985 = vtanh.pop %v2969
    %v2986 = vxor.u32 %v2971, 2147483648
    %v2987 = vmul.f32 %v2986, 1.442695
    %v2988 = vpow.pop %v2987
    %v2989 = vadd.f32 %v2988, 1.0
    %v2990 = vrcp.pop %v2989
    %v2991 = vmul.f32 1.0, %v2990
    %v2992 = vld [vmem:[#allocation3] sm:$0xff]
    %v2993 = vmul.f32 %v2984, %v2992
    %v2994 = vmul.f32 %v2978, %v2985
    %v2995 = vadd.f32 %v2993, %v2994
    %v2996 = vtanh.pop %v2995
    %v2997 = vmul.f32 %v2991, %v2996
    %2998 = vst [vmem:[#allocation3] sm:$0xff] %v2995
    %2999 = vst [vmem:[#allocation2] sm:$0xff] %v2997
    %3000 = vst [vmem:[#allocation4] sm:$0xff] %v2997
    %v3001 = vld [vmem:[%s390] sm:$0xff]
    %3002 = vst [vmem:[#allocation4 + $0x8] sm:$0xff] %v3001
    %v3003 = vld [vmem:[#allocation4] sm:$0xff]
    %v3004 = vld [vmem:[#allocation4 + $0x8] sm:$0xff]
    %v3005 = vld [vmem:[%s395] sm:$0xff]
    %v3006 = vld [vmem:[%s395 + $0x8] sm:$0xff]
    %v3007 = vld [vmem:[%s395 + $0x10] sm:$0xff]
    %v3008 = vld [vmem:[%s395 + $0x18] sm:$0xff]
    %v3009 = vld [vmem:[%s395 + $0x20] sm:$0xff]
    %v3010 = vld [vmem:[%s395 + $0x28] sm:$0xff]
    %v3011 = vld [vmem:[%s395 + $0x30] sm:$0xff]
    %v3012 = vld [vmem:[%s395 + $0x38] sm:$0xff]
    %v3013 = vld [vmem:[%s395 + $0x40] sm:$0xff]
    %v3014 = vld [vmem:[%s395 + $0x48] sm:$0xff]
    %v3015 = vld [vmem:[%s395 + $0x50] sm:$0xff]
    %v3016 = vld [vmem:[%s395 + $0x58] sm:$0xff]
    %v3017 = vld [vmem:[%s395 + $0x60] sm:$0xff]
    %v3018 = vld [vmem:[%s395 + $0x68] sm:$0xff]
    %v3019 = vld [vmem:[%s395 + $0x70] sm:$0xff]
    %v3020 = vld [vmem:[%s395 + $0x78] sm:$0xff]
    %v3021 = vld [vmem:[%s395 + $0x80] sm:$0xff]
    %v3022 = vld [vmem:[%s395 + $0x88] sm:$0xff]
    %v3023 = vld [vmem:[%s395 + $0x90] sm:$0xff]
    %v3024 = vld [vmem:[%s395 + $0x98] sm:$0xff]
    %v3025 = vld [vmem:[%s395 + $0xa0] sm:$0xff]
    %v3026 = vld [vmem:[%s395 + $0xa8] sm:$0xff]
    %v3027 = vld [vmem:[%s395 + $0xb0] sm:$0xff]
    %v3028 = vld [vmem:[%s395 + $0xb8] sm:$0xff]
    %v3029 = vld [vmem:[%s395 + $0xc0] sm:$0xff]
    %v3030 = vld [vmem:[%s395 + $0xc8] sm:$0xff]
    %v3031 = vld [vmem:[%s395 + $0xd0] sm:$0xff]
    %v3032 = vld [vmem:[%s395 + $0xd8] sm:$0xff]
    %v3033 = vld [vmem:[%s395 + $0xe0] sm:$0xff]
    %v3034 = vld [vmem:[%s395 + $0xe8] sm:$0xff]
    %v3035 = vld [vmem:[%s395 + $0xf0] sm:$0xff]
    %v3036 = vld [vmem:[%s395 + $0xf8] sm:$0xff]
    %v3037 = vld [vmem:[%s395 + $0x100] sm:$0xff]
    %v3038 = vld [vmem:[%s395 + $0x108] sm:$0xff]
    %v3039 = vld [vmem:[%s395 + $0x110] sm:$0xff]
    %v3040 = vld [vmem:[%s395 + $0x118] sm:$0xff]
    %v3041 = vld [vmem:[%s395 + $0x120] sm:$0xff]
    %v3042 = vld [vmem:[%s395 + $0x128] sm:$0xff]
    %v3043 = vld [vmem:[%s395 + $0x130] sm:$0xff]
    %v3044 = vld [vmem:[%s395 + $0x138] sm:$0xff]
    %v3045 = vld [vmem:[%s395 + $0x140] sm:$0xff]
    %v3046 = vld [vmem:[%s395 + $0x148] sm:$0xff]
    %v3047 = vld [vmem:[%s395 + $0x150] sm:$0xff]
    %v3048 = vld [vmem:[%s395 + $0x158] sm:$0xff]
    %v3049 = vld [vmem:[%s395 + $0x160] sm:$0xff]
    %v3050 = vld [vmem:[%s395 + $0x168] sm:$0xff]
    %v3051 = vld [vmem:[%s395 + $0x170] sm:$0xff]
    %v3052 = vld [vmem:[%s395 + $0x178] sm:$0xff]
    %v3053 = vld [vmem:[%s395 + $0x180] sm:$0xff]
    %v3054 = vld [vmem:[%s395 + $0x188] sm:$0xff]
    %v3055 = vld [vmem:[%s395 + $0x190] sm:$0xff]
    %v3056 = vld [vmem:[%s395 + $0x198] sm:$0xff]
    %v3057 = vld [vmem:[%s395 + $0x1a0] sm:$0xff]
    %v3058 = vld [vmem:[%s395 + $0x1a8] sm:$0xff]
    %v3059 = vld [vmem:[%s395 + $0x1b0] sm:$0xff]
    %v3060 = vld [vmem:[%s395 + $0x1b8] sm:$0xff]
    %v3061 = vld [vmem:[%s395 + $0x1c0] sm:$0xff]
    %v3062 = vld [vmem:[%s395 + $0x1c8] sm:$0xff]
    %v3063 = vld [vmem:[%s395 + $0x1d0] sm:$0xff]
    %v3064 = vld [vmem:[%s395 + $0x1d8] sm:$0xff]
    %v3065 = vld [vmem:[%s395 + $0x1e0] sm:$0xff]
    %v3066 = vld [vmem:[%s395 + $0x1e8] sm:$0xff]
    %v3067 = vld [vmem:[%s395 + $0x1f0] sm:$0xff]
    %v3068 = vld [vmem:[%s395 + $0x1f8] sm:$0xff]
    %v3069 = vld [vmem:[%s395 + $0x200] sm:$0xff]
    %v3070 = vld [vmem:[%s395 + $0x208] sm:$0xff]
    %v3071 = vld [vmem:[%s395 + $0x210] sm:$0xff]
    %v3072 = vld [vmem:[%s395 + $0x218] sm:$0xff]
    %v3073 = vld [vmem:[%s395 + $0x220] sm:$0xff]
    %v3074 = vld [vmem:[%s395 + $0x228] sm:$0xff]
    %v3075 = vld [vmem:[%s395 + $0x230] sm:$0xff]
    %v3076 = vld [vmem:[%s395 + $0x238] sm:$0xff]
    %v3077 = vld [vmem:[%s395 + $0x240] sm:$0xff]
    %v3078 = vld [vmem:[%s395 + $0x248] sm:$0xff]
    %v3079 = vld [vmem:[%s395 + $0x250] sm:$0xff]
    %v3080 = vld [vmem:[%s395 + $0x258] sm:$0xff]
    %v3081 = vld [vmem:[%s395 + $0x260] sm:$0xff]
    %v3082 = vld [vmem:[%s395 + $0x268] sm:$0xff]
    %v3083 = vld [vmem:[%s395 + $0x270] sm:$0xff]
    %v3084 = vld [vmem:[%s395 + $0x278] sm:$0xff]
    %v3085 = vld [vmem:[%s395 + $0x280] sm:$0xff]
    %v3086 = vld [vmem:[%s395 + $0x288] sm:$0xff]
    %v3087 = vld [vmem:[%s395 + $0x290] sm:$0xff]
    %v3088 = vld [vmem:[%s395 + $0x298] sm:$0xff]
    %v3089 = vld [vmem:[%s395 + $0x2a0] sm:$0xff]
    %v3090 = vld [vmem:[%s395 + $0x2a8] sm:$0xff]
    %v3091 = vld [vmem:[%s395 + $0x2b0] sm:$0xff]
    %v3092 = vld [vmem:[%s395 + $0x2b8] sm:$0xff]
    %v3093 = vld [vmem:[%s395 + $0x2c0] sm:$0xff]
    %v3094 = vld [vmem:[%s395 + $0x2c8] sm:$0xff]
    %v3095 = vld [vmem:[%s395 + $0x2d0] sm:$0xff]
    %v3096 = vld [vmem:[%s395 + $0x2d8] sm:$0xff]
    %v3097 = vld [vmem:[%s395 + $0x2e0] sm:$0xff]
    %v3098 = vld [vmem:[%s395 + $0x2e8] sm:$0xff]
    %v3099 = vld [vmem:[%s395 + $0x2f0] sm:$0xff]
    %v3100 = vld [vmem:[%s395 + $0x2f8] sm:$0xff]
    %v3101 = vld [vmem:[%s395 + $0x300] sm:$0xff]
    %v3102 = vld [vmem:[%s395 + $0x308] sm:$0xff]
    %v3103 = vld [vmem:[%s395 + $0x310] sm:$0xff]
    %v3104 = vld [vmem:[%s395 + $0x318] sm:$0xff]
    %v3105 = vld [vmem:[%s395 + $0x320] sm:$0xff]
    %v3106 = vld [vmem:[%s395 + $0x328] sm:$0xff]
    %v3107 = vld [vmem:[%s395 + $0x330] sm:$0xff]
    %v3108 = vld [vmem:[%s395 + $0x338] sm:$0xff]
    %v3109 = vld [vmem:[%s395 + $0x340] sm:$0xff]
    %v3110 = vld [vmem:[%s395 + $0x348] sm:$0xff]
    %v3111 = vld [vmem:[%s395 + $0x350] sm:$0xff]
    %v3112 = vld [vmem:[%s395 + $0x358] sm:$0xff]
    %v3113 = vld [vmem:[%s395 + $0x360] sm:$0xff]
    %v3114 = vld [vmem:[%s395 + $0x368] sm:$0xff]
    %v3115 = vld [vmem:[%s395 + $0x370] sm:$0xff]
    %v3116 = vld [vmem:[%s395 + $0x378] sm:$0xff]
    %v3117 = vld [vmem:[%s395 + $0x380] sm:$0xff]
    %v3118 = vld [vmem:[%s395 + $0x388] sm:$0xff]
    %v3119 = vld [vmem:[%s395 + $0x390] sm:$0xff]
    %v3120 = vld [vmem:[%s395 + $0x398] sm:$0xff]
    %v3121 = vld [vmem:[%s395 + $0x3a0] sm:$0xff]
    %v3122 = vld [vmem:[%s395 + $0x3a8] sm:$0xff]
    %v3123 = vld [vmem:[%s395 + $0x3b0] sm:$0xff]
    %v3124 = vld [vmem:[%s395 + $0x3b8] sm:$0xff]
    %v3125 = vld [vmem:[%s395 + $0x3c0] sm:$0xff]
    %v3126 = vld [vmem:[%s395 + $0x3c8] sm:$0xff]
    %v3127 = vld [vmem:[%s395 + $0x3d0] sm:$0xff]
    %v3128 = vld [vmem:[%s395 + $0x3d8] sm:$0xff]
    %v3129 = vld [vmem:[%s395 + $0x3e0] sm:$0xff]
    %v3130 = vld [vmem:[%s395 + $0x3e8] sm:$0xff]
    %v3131 = vld [vmem:[%s395 + $0x3f0] sm:$0xff]
    %v3132 = vld [vmem:[%s395 + $0x3f8] sm:$0xff]
    %v3133 = vld [vmem:[%s524] sm:$0xf]
    %v3135 = vlaneseq
    %v3136 = vshrl.u32 %v3135, 7
    %v3137 = vsub.s32 0, %v3136
    %v3138 = vrot.slane %v3133, %v3137
    %v3139 = vlaneseq
    %v3140 = vshrl.u32 %v3139, 7
    %v3141 = vsub.s32 1, %v3140
    %v3142 = vrot.slane %v3133, %v3141
    %v3143 = vlaneseq
    %v3144 = vshrl.u32 %v3143, 7
    %v3145 = vsub.s32 2, %v3144
    %v3146 = vrot.slane %v3133, %v3145
    %v3147 = vlaneseq
    %v3148 = vshrl.u32 %v3147, 7
    %v3149 = vsub.s32 3, %v3148
    %v3150 = vrot.slane %v3133, %v3149
    %3155 = vmatprep.subr.mxu0 %v3066
    %3156 = vmatpush1.msra.mxu0 %v3065
    %3157 = vmatprep.subr.mxu0 %v3062
    %3158 = vmatpush1.msra.mxu0 %v3061
    %3159 = vmatprep.subr.mxu0 %v3058
    %3160 = vmatpush1.msra.mxu0 %v3057
    %3161 = vmatprep.subr.mxu0 %v3054
    %3162 = vmatpush1.msra.mxu0 %v3053
    %3163 = vmatprep.subr.mxu0 %v3050
    %3164 = vmatpush1.msra.mxu0 %v3049
    %3165 = vmatprep.subr.mxu0 %v3046
    %3166 = vmatpush1.msra.mxu0 %v3045
    %3167 = vmatprep.subr.mxu0 %v3042
    %3168 = vmatpush1.msra.mxu0 %v3041
    %3169 = vmatprep.subr.mxu0 %v3038
    %3170 = vmatpush1.msra.mxu0 %v3037
    %3171 = vmatprep.subr.mxu0 %v3034
    %3172 = vmatpush1.msra.mxu0 %v3033
    %3173 = vmatprep.subr.mxu0 %v3030
    %3174 = vmatpush1.msra.mxu0 %v3029
    %3175 = vmatprep.subr.mxu0 %v3026
    %3176 = vmatpush1.msra.mxu0 %v3025
    %3177 = vmatprep.subr.mxu0 %v3022
    %3178 = vmatpush1.msra.mxu0 %v3021
    %3179 = vmatprep.subr.mxu0 %v3018
    %3180 = vmatpush1.msra.mxu0 %v3017
    %3181 = vmatprep.subr.mxu0 %v3014
    %3182 = vmatpush1.msra.mxu0 %v3013
    %3183 = vmatprep.subr.mxu0 %v3010
    %3184 = vmatpush1.msra.mxu0 %v3009
    %3185 = vmatprep.subr.mxu0 %v3006
    %3186 = vmatpush1.msra.mxu0 %v3005
    %3187 = vmatprep.subr.mxu0 %v3130
    %3188 = vmatpush2.msra.mxu0 %v3129
    %3189 = vmatprep.subr.mxu0 %v3126
    %3190 = vmatpush2.msra.mxu0 %v3125
    %3191 = vmatprep.subr.mxu0 %v3122
    %3192 = vmatpush2.msra.mxu0 %v3121
    %3193 = vmatprep.subr.mxu0 %v3118
    %3194 = vmatpush2.msra.mxu0 %v3117
    %3195 = vmatprep.subr.mxu0 %v3114
    %3196 = vmatpush2.msra.mxu0 %v3113
    %3197 = vmatprep.subr.mxu0 %v3110
    %3198 = vmatpush2.msra.mxu0 %v3109
    %3199 = vmatprep.subr.mxu0 %v3106
    %3200 = vmatpush2.msra.mxu0 %v3105
    %3201 = vmatprep.subr.mxu0 %v3102
    %3202 = vmatpush2.msra.mxu0 %v3101
    %3203 = vmatprep.subr.mxu0 %v3098
    %3204 = vmatpush2.msra.mxu0 %v3097
    %3205 = vmatprep.subr.mxu0 %v3094
    %3206 = vmatpush2.msra.mxu0 %v3093
    %3207 = vmatprep.subr.mxu0 %v3090
    %3208 = vmatpush2.msra.mxu0 %v3089
    %3209 = vmatprep.subr.mxu0 %v3086
    %3210 = vmatpush2.msra.mxu0 %v3085
    %3211 = vmatprep.subr.mxu0 %v3082
    %3212 = vmatpush2.msra.mxu0 %v3081
    %3213 = vmatprep.subr.mxu0 %v3078
    %3214 = vmatpush2.msra.mxu0 %v3077
    %3215 = vmatprep.subr.mxu0 %v3074
    %3216 = vmatpush2.msra.mxu0 %v3073
    %3217 = vmatprep.subr.mxu0 %v3070
    %3218 = vmatpush2.msra.mxu0 %v3069
    %3219 = vmatprep.mubr.f32.mxu0 %v3004
    %3220 = vmatmul.mubr.f32.gmra.mxu0 %v3003
    %v3221 = vpop.f32.mrf.mxu0
    %v3222 = vadd.f32 %v3138, %v3221
    %v3223 = vpop.f32.mrf.mxu0
    %v3224 = vadd.f32 %v3142, %v3223
    %3225 = vdwg.mxu0
    %3226 = vmatprep.subr.mxu0 %v3068
    %3227 = vmatpush1.msra.mxu0 %v3067
    %3228 = vmatprep.subr.mxu0 %v3064
    %3229 = vmatpush1.msra.mxu0 %v3063
    %3230 = vmatprep.subr.mxu0 %v3060
    %3231 = vmatpush1.msra.mxu0 %v3059
    %3232 = vmatprep.subr.mxu0 %v3056
    %3233 = vmatpush1.msra.mxu0 %v3055
    %3234 = vmatprep.subr.mxu0 %v3052
    %3235 = vmatpush1.msra.mxu0 %v3051
    %3236 = vmatprep.subr.mxu0 %v3048
    %3237 = vmatpush1.msra.mxu0 %v3047
    %3238 = vmatprep.subr.mxu0 %v3044
    %3239 = vmatpush1.msra.mxu0 %v3043
    %3240 = vmatprep.subr.mxu0 %v3040
    %3241 = vmatpush1.msra.mxu0 %v3039
    %3242 = vmatprep.subr.mxu0 %v3036
    %3243 = vmatpush1.msra.mxu0 %v3035
    %3244 = vmatprep.subr.mxu0 %v3032
    %3245 = vmatpush1.msra.mxu0 %v3031
    %3246 = vmatprep.subr.mxu0 %v3028
    %3247 = vmatpush1.msra.mxu0 %v3027
    %3248 = vmatprep.subr.mxu0 %v3024
    %3249 = vmatpush1.msra.mxu0 %v3023
    %3250 = vmatprep.subr.mxu0 %v3020
    %3251 = vmatpush1.msra.mxu0 %v3019
    %3252 = vmatprep.subr.mxu0 %v3016
    %3253 = vmatpush1.msra.mxu0 %v3015
    %3254 = vmatprep.subr.mxu0 %v3012
    %3255 = vmatpush1.msra.mxu0 %v3011
    %3256 = vmatprep.subr.mxu0 %v3008
    %3257 = vmatpush1.msra.mxu0 %v3007
    %3258 = vmatprep.subr.mxu0 %v3132
    %3259 = vmatpush2.msra.mxu0 %v3131
    %3260 = vmatprep.subr.mxu0 %v3128
    %3261 = vmatpush2.msra.mxu0 %v3127
    %3262 = vmatprep.subr.mxu0 %v3124
    %3263 = vmatpush2.msra.mxu0 %v3123
    %3264 = vmatprep.subr.mxu0 %v3120
    %3265 = vmatpush2.msra.mxu0 %v3119
    %3266 = vmatprep.subr.mxu0 %v3116
    %3267 = vmatpush2.msra.mxu0 %v3115
    %3268 = vmatprep.subr.mxu0 %v3112
    %3269 = vmatpush2.msra.mxu0 %v3111
    %3270 = vmatprep.subr.mxu0 %v3108
    %3271 = vmatpush2.msra.mxu0 %v3107
    %3272 = vmatprep.subr.mxu0 %v3104
    %3273 = vmatpush2.msra.mxu0 %v3103
    %3274 = vmatprep.subr.mxu0 %v3100
    %3275 = vmatpush2.msra.mxu0 %v3099
    %3276 = vmatprep.subr.mxu0 %v3096
    %3277 = vmatpush2.msra.mxu0 %v3095
    %3278 = vmatprep.subr.mxu0 %v3092
    %3279 = vmatpush2.msra.mxu0 %v3091
    %3280 = vmatprep.subr.mxu0 %v3088
    %3281 = vmatpush2.msra.mxu0 %v3087
    %3282 = vmatprep.subr.mxu0 %v3084
    %3283 = vmatpush2.msra.mxu0 %v3083
    %3284 = vmatprep.subr.mxu0 %v3080
    %3285 = vmatpush2.msra.mxu0 %v3079
    %3286 = vmatprep.subr.mxu0 %v3076
    %3287 = vmatpush2.msra.mxu0 %v3075
    %3288 = vmatprep.subr.mxu0 %v3072
    %3289 = vmatpush2.msra.mxu0 %v3071
    %3290 = vmatprep.mubr.f32.mxu0 %v3004
    %3291 = vmatmul.mubr.f32.gmra.mxu0 %v3003
    %v3292 = vpop.f32.mrf.mxu0
    %v3293 = vadd.f32 %v3146, %v3292
    %v3294 = vpop.f32.mrf.mxu0
    %v3295 = vadd.f32 %v3150, %v3294
    %3296 = vdwg.mxu0
    %v3297 = vxor.u32 %v3222, 2147483648
    %v3298 = vmul.f32 %v3297, 1.442695
    %v3299 = vpow.pop %v3298
    %v3300 = vadd.f32 %v3299, 1.0
    %v3301 = vrcp.pop %v3300
    %v3302 = vmul.f32 1.0, %v3301
    %v3303 = vxor.u32 %v3224, 2147483648
    %v3304 = vmul.f32 %v3303, 1.442695
    %v3305 = vpow.pop %v3304
    %v3306 = vadd.f32 %v3305, 1.0
    %v3307 = vrcp.pop %v3306
    %v3308 = vmul.f32 1.0, %v3307
    %v3309 = vtanh.pop %v3293
    %v3310 = vxor.u32 %v3295, 2147483648
    %v3311 = vmul.f32 %v3310, 1.442695
    %v3312 = vpow.pop %v3311
    %v3313 = vadd.f32 %v3312, 1.0
    %v3314 = vrcp.pop %v3313
    %v3315 = vmul.f32 1.0, %v3314
    %v3316 = vld [vmem:[%s708] sm:$0xff]
    %v3317 = vmul.f32 %v3308, %v3316
    %v3318 = vmul.f32 %v3302, %v3309
    %v3319 = vadd.f32 %v3317, %v3318
    %v3320 = vtanh.pop %v3319
    %v3321 = vmul.f32 %v3315, %v3320
    %3322 = vst [vmem:[%s708] sm:$0xff] %v3319
    %3323 = vst [vmem:[%s390] sm:$0xff] %v3321
    %s3324 = scalar_lea.vmem [#allocation11], 32
    %3325 = vst [vmem:[%s3324] sm:$0xff] %v3321
    %s3326 = scalar_lea.vmem [#allocation5], 40
    %v3327 = vld [vmem:[%s3326] sm:$0xff]
    %3328 = vst [vmem:[#allocation4] sm:$0xff] %v3327
    %v3329 = vld [vmem:[#allocation2] sm:$0xff]
    %3330 = vst [vmem:[#allocation4 + $0x8] sm:$0xff] %v3329
    %v3331 = vld [vmem:[#allocation4] sm:$0xff]
    %v3332 = vld [vmem:[#allocation4 + $0x8] sm:$0xff]
    %v3333 = vld [vmem:[#allocation8] sm:$0xff]
    %v3334 = vld [vmem:[#allocation8 + $0x8] sm:$0xff]
    %v3335 = vld [vmem:[#allocation8 + $0x10] sm:$0xff]
    %v3336 = vld [vmem:[#allocation8 + $0x18] sm:$0xff]
    %v3337 = vld [vmem:[#allocation8 + $0x20] sm:$0xff]
    %v3338 = vld [vmem:[#allocation8 + $0x28] sm:$0xff]
    %v3339 = vld [vmem:[#allocation8 + $0x30] sm:$0xff]
    %v3340 = vld [vmem:[#allocation8 + $0x38] sm:$0xff]
    %v3341 = vld [vmem:[#allocation8 + $0x40] sm:$0xff]
    %v3342 = vld [vmem:[#allocation8 + $0x48] sm:$0xff]
    %v3343 = vld [vmem:[#allocation8 + $0x50] sm:$0xff]
    %v3344 = vld [vmem:[#allocation8 + $0x58] sm:$0xff]
    %v3345 = vld [vmem:[#allocation8 + $0x60] sm:$0xff]
    %v3346 = vld [vmem:[#allocation8 + $0x68] sm:$0xff]
    %v3347 = vld [vmem:[#allocation8 + $0x70] sm:$0xff]
    %v3348 = vld [vmem:[#allocation8 + $0x78] sm:$0xff]
    %v3349 = vld [vmem:[#allocation8 + $0x80] sm:$0xff]
    %v3350 = vld [vmem:[#allocation8 + $0x88] sm:$0xff]
    %v3351 = vld [vmem:[#allocation8 + $0x90] sm:$0xff]
    %v3352 = vld [vmem:[#allocation8 + $0x98] sm:$0xff]
    %v3353 = vld [vmem:[#allocation8 + $0xa0] sm:$0xff]
    %v3354 = vld [vmem:[#allocation8 + $0xa8] sm:$0xff]
    %v3355 = vld [vmem:[#allocation8 + $0xb0] sm:$0xff]
    %v3356 = vld [vmem:[#allocation8 + $0xb8] sm:$0xff]
    %v3357 = vld [vmem:[#allocation8 + $0xc0] sm:$0xff]
    %v3358 = vld [vmem:[#allocation8 + $0xc8] sm:$0xff]
    %v3359 = vld [vmem:[#allocation8 + $0xd0] sm:$0xff]
    %v3360 = vld [vmem:[#allocation8 + $0xd8] sm:$0xff]
    %v3361 = vld [vmem:[#allocation8 + $0xe0] sm:$0xff]
    %v3362 = vld [vmem:[#allocation8 + $0xe8] sm:$0xff]
    %v3363 = vld [vmem:[#allocation8 + $0xf0] sm:$0xff]
    %v3364 = vld [vmem:[#allocation8 + $0xf8] sm:$0xff]
    %v3365 = vld [vmem:[#allocation8 + $0x100] sm:$0xff]
    %v3366 = vld [vmem:[#allocation8 + $0x108] sm:$0xff]
    %v3367 = vld [vmem:[#allocation8 + $0x110] sm:$0xff]
    %v3368 = vld [vmem:[#allocation8 + $0x118] sm:$0xff]
    %v3369 = vld [vmem:[#allocation8 + $0x120] sm:$0xff]
    %v3370 = vld [vmem:[#allocation8 + $0x128] sm:$0xff]
    %v3371 = vld [vmem:[#allocation8 + $0x130] sm:$0xff]
    %v3372 = vld [vmem:[#allocation8 + $0x138] sm:$0xff]
    %v3373 = vld [vmem:[#allocation8 + $0x140] sm:$0xff]
    %v3374 = vld [vmem:[#allocation8 + $0x148] sm:$0xff]
    %v3375 = vld [vmem:[#allocation8 + $0x150] sm:$0xff]
    %v3376 = vld [vmem:[#allocation8 + $0x158] sm:$0xff]
    %v3377 = vld [vmem:[#allocation8 + $0x160] sm:$0xff]
    %v3378 = vld [vmem:[#allocation8 + $0x168] sm:$0xff]
    %v3379 = vld [vmem:[#allocation8 + $0x170] sm:$0xff]
    %v3380 = vld [vmem:[#allocation8 + $0x178] sm:$0xff]
    %v3381 = vld [vmem:[#allocation8 + $0x180] sm:$0xff]
    %v3382 = vld [vmem:[#allocation8 + $0x188] sm:$0xff]
    %v3383 = vld [vmem:[#allocation8 + $0x190] sm:$0xff]
    %v3384 = vld [vmem:[#allocation8 + $0x198] sm:$0xff]
    %v3385 = vld [vmem:[#allocation8 + $0x1a0] sm:$0xff]
    %v3386 = vld [vmem:[#allocation8 + $0x1a8] sm:$0xff]
    %v3387 = vld [vmem:[#allocation8 + $0x1b0] sm:$0xff]
    %v3388 = vld [vmem:[#allocation8 + $0x1b8] sm:$0xff]
    %v3389 = vld [vmem:[#allocation8 + $0x1c0] sm:$0xff]
    %v3390 = vld [vmem:[#allocation8 + $0x1c8] sm:$0xff]
    %v3391 = vld [vmem:[#allocation8 + $0x1d0] sm:$0xff]
    %v3392 = vld [vmem:[#allocation8 + $0x1d8] sm:$0xff]
    %v3393 = vld [vmem:[#allocation8 + $0x1e0] sm:$0xff]
    %v3394 = vld [vmem:[#allocation8 + $0x1e8] sm:$0xff]
    %v3395 = vld [vmem:[#allocation8 + $0x1f0] sm:$0xff]
    %v3396 = vld [vmem:[#allocation8 + $0x1f8] sm:$0xff]
    %v3397 = vld [vmem:[#allocation8 + $0x200] sm:$0xff]
    %v3398 = vld [vmem:[#allocation8 + $0x208] sm:$0xff]
    %v3399 = vld [vmem:[#allocation8 + $0x210] sm:$0xff]
    %v3400 = vld [vmem:[#allocation8 + $0x218] sm:$0xff]
    %v3401 = vld [vmem:[#allocation8 + $0x220] sm:$0xff]
    %v3402 = vld [vmem:[#allocation8 + $0x228] sm:$0xff]
    %v3403 = vld [vmem:[#allocation8 + $0x230] sm:$0xff]
    %v3404 = vld [vmem:[#allocation8 + $0x238] sm:$0xff]
    %v3405 = vld [vmem:[#allocation8 + $0x240] sm:$0xff]
    %v3406 = vld [vmem:[#allocation8 + $0x248] sm:$0xff]
    %v3407 = vld [vmem:[#allocation8 + $0x250] sm:$0xff]
    %v3408 = vld [vmem:[#allocation8 + $0x258] sm:$0xff]
    %v3409 = vld [vmem:[#allocation8 + $0x260] sm:$0xff]
    %v3410 = vld [vmem:[#allocation8 + $0x268] sm:$0xff]
    %v3411 = vld [vmem:[#allocation8 + $0x270] sm:$0xff]
    %v3412 = vld [vmem:[#allocation8 + $0x278] sm:$0xff]
    %v3413 = vld [vmem:[#allocation8 + $0x280] sm:$0xff]
    %v3414 = vld [vmem:[#allocation8 + $0x288] sm:$0xff]
    %v3415 = vld [vmem:[#allocation8 + $0x290] sm:$0xff]
    %v3416 = vld [vmem:[#allocation8 + $0x298] sm:$0xff]
    %v3417 = vld [vmem:[#allocation8 + $0x2a0] sm:$0xff]
    %v3418 = vld [vmem:[#allocation8 + $0x2a8] sm:$0xff]
    %v3419 = vld [vmem:[#allocation8 + $0x2b0] sm:$0xff]
    %v3420 = vld [vmem:[#allocation8 + $0x2b8] sm:$0xff]
    %v3421 = vld [vmem:[#allocation8 + $0x2c0] sm:$0xff]
    %v3422 = vld [vmem:[#allocation8 + $0x2c8] sm:$0xff]
    %v3423 = vld [vmem:[#allocation8 + $0x2d0] sm:$0xff]
    %v3424 = vld [vmem:[#allocation8 + $0x2d8] sm:$0xff]
    %v3425 = vld [vmem:[#allocation8 + $0x2e0] sm:$0xff]
    %v3426 = vld [vmem:[#allocation8 + $0x2e8] sm:$0xff]
    %v3427 = vld [vmem:[#allocation8 + $0x2f0] sm:$0xff]
    %v3428 = vld [vmem:[#allocation8 + $0x2f8] sm:$0xff]
    %v3429 = vld [vmem:[#allocation8 + $0x300] sm:$0xff]
    %v3430 = vld [vmem:[#allocation8 + $0x308] sm:$0xff]
    %v3431 = vld [vmem:[#allocation8 + $0x310] sm:$0xff]
    %v3432 = vld [vmem:[#allocation8 + $0x318] sm:$0xff]
    %v3433 = vld [vmem:[#allocation8 + $0x320] sm:$0xff]
    %v3434 = vld [vmem:[#allocation8 + $0x328] sm:$0xff]
    %v3435 = vld [vmem:[#allocation8 + $0x330] sm:$0xff]
    %v3436 = vld [vmem:[#allocation8 + $0x338] sm:$0xff]
    %v3437 = vld [vmem:[#allocation8 + $0x340] sm:$0xff]
    %v3438 = vld [vmem:[#allocation8 + $0x348] sm:$0xff]
    %v3439 = vld [vmem:[#allocation8 + $0x350] sm:$0xff]
    %v3440 = vld [vmem:[#allocation8 + $0x358] sm:$0xff]
    %v3441 = vld [vmem:[#allocation8 + $0x360] sm:$0xff]
    %v3442 = vld [vmem:[#allocation8 + $0x368] sm:$0xff]
    %v3443 = vld [vmem:[#allocation8 + $0x370] sm:$0xff]
    %v3444 = vld [vmem:[#allocation8 + $0x378] sm:$0xff]
    %v3445 = vld [vmem:[#allocation8 + $0x380] sm:$0xff]
    %v3446 = vld [vmem:[#allocation8 + $0x388] sm:$0xff]
    %v3447 = vld [vmem:[#allocation8 + $0x390] sm:$0xff]
    %v3448 = vld [vmem:[#allocation8 + $0x398] sm:$0xff]
    %v3449 = vld [vmem:[#allocation8 + $0x3a0] sm:$0xff]
    %v3450 = vld [vmem:[#allocation8 + $0x3a8] sm:$0xff]
    %v3451 = vld [vmem:[#allocation8 + $0x3b0] sm:$0xff]
    %v3452 = vld [vmem:[#allocation8 + $0x3b8] sm:$0xff]
    %v3453 = vld [vmem:[#allocation8 + $0x3c0] sm:$0xff]
    %v3454 = vld [vmem:[#allocation8 + $0x3c8] sm:$0xff]
    %v3455 = vld [vmem:[#allocation8 + $0x3d0] sm:$0xff]
    %v3456 = vld [vmem:[#allocation8 + $0x3d8] sm:$0xff]
    %v3457 = vld [vmem:[#allocation8 + $0x3e0] sm:$0xff]
    %v3458 = vld [vmem:[#allocation8 + $0x3e8] sm:$0xff]
    %v3459 = vld [vmem:[#allocation8 + $0x3f0] sm:$0xff]
    %v3460 = vld [vmem:[#allocation8 + $0x3f8] sm:$0xff]
    %v3461 = vld [vmem:[#allocation10] sm:$0xf]
    %v3463 = vlaneseq
    %v3464 = vshrl.u32 %v3463, 7
    %v3465 = vsub.s32 0, %v3464
    %v3466 = vrot.slane %v3461, %v3465
    %v3467 = vlaneseq
    %v3468 = vshrl.u32 %v3467, 7
    %v3469 = vsub.s32 1, %v3468
    %v3470 = vrot.slane %v3461, %v3469
    %v3471 = vlaneseq
    %v3472 = vshrl.u32 %v3471, 7
    %v3473 = vsub.s32 2, %v3472
    %v3474 = vrot.slane %v3461, %v3473
    %v3475 = vlaneseq
    %v3476 = vshrl.u32 %v3475, 7
    %v3477 = vsub.s32 3, %v3476
    %v3478 = vrot.slane %v3461, %v3477
    %3483 = vmatprep.subr.mxu0 %v3394
    %3484 = vmatpush1.msra.mxu0 %v3393
    %3485 = vmatprep.subr.mxu0 %v3390
    %3486 = vmatpush1.msra.mxu0 %v3389
    %3487 = vmatprep.subr.mxu0 %v3386
    %3488 = vmatpush1.msra.mxu0 %v3385
    %3489 = vmatprep.subr.mxu0 %v3382
    %3490 = vmatpush1.msra.mxu0 %v3381
    %3491 = vmatprep.subr.mxu0 %v3378
    %3492 = vmatpush1.msra.mxu0 %v3377
    %3493 = vmatprep.subr.mxu0 %v3374
    %3494 = vmatpush1.msra.mxu0 %v3373
    %3495 = vmatprep.subr.mxu0 %v3370
    %3496 = vmatpush1.msra.mxu0 %v3369
    %3497 = vmatprep.subr.mxu0 %v3366
    %3498 = vmatpush1.msra.mxu0 %v3365
    %3499 = vmatprep.subr.mxu0 %v3362
    %3500 = vmatpush1.msra.mxu0 %v3361
    %3501 = vmatprep.subr.mxu0 %v3358
    %3502 = vmatpush1.msra.mxu0 %v3357
    %3503 = vmatprep.subr.mxu0 %v3354
    %3504 = vmatpush1.msra.mxu0 %v3353
    %3505 = vmatprep.subr.mxu0 %v3350
    %3506 = vmatpush1.msra.mxu0 %v3349
    %3507 = vmatprep.subr.mxu0 %v3346
    %3508 = vmatpush1.msra.mxu0 %v3345
    %3509 = vmatprep.subr.mxu0 %v3342
    %3510 = vmatpush1.msra.mxu0 %v3341
    %3511 = vmatprep.subr.mxu0 %v3338
    %3512 = vmatpush1.msra.mxu0 %v3337
    %3513 = vmatprep.subr.mxu0 %v3334
    %3514 = vmatpush1.msra.mxu0 %v3333
    %3515 = vmatprep.subr.mxu0 %v3458
    %3516 = vmatpush2.msra.mxu0 %v3457
    %3517 = vmatprep.subr.mxu0 %v3454
    %3518 = vmatpush2.msra.mxu0 %v3453
    %3519 = vmatprep.subr.mxu0 %v3450
    %3520 = vmatpush2.msra.mxu0 %v3449
    %3521 = vmatprep.subr.mxu0 %v3446
    %3522 = vmatpush2.msra.mxu0 %v3445
    %3523 = vmatprep.subr.mxu0 %v3442
    %3524 = vmatpush2.msra.mxu0 %v3441
    %3525 = vmatprep.subr.mxu0 %v3438
    %3526 = vmatpush2.msra.mxu0 %v3437
    %3527 = vmatprep.subr.mxu0 %v3434
    %3528 = vmatpush2.msra.mxu0 %v3433
    %3529 = vmatprep.subr.mxu0 %v3430
    %3530 = vmatpush2.msra.mxu0 %v3429
    %3531 = vmatprep.subr.mxu0 %v3426
    %3532 = vmatpush2.msra.mxu0 %v3425
    %3533 = vmatprep.subr.mxu0 %v3422
    %3534 = vmatpush2.msra.mxu0 %v3421
    %3535 = vmatprep.subr.mxu0 %v3418
    %3536 = vmatpush2.msra.mxu0 %v3417
    %3537 = vmatprep.subr.mxu0 %v3414
    %3538 = vmatpush2.msra.mxu0 %v3413
    %3539 = vmatprep.subr.mxu0 %v3410
    %3540 = vmatpush2.msra.mxu0 %v3409
    %3541 = vmatprep.subr.mxu0 %v3406
    %3542 = vmatpush2.msra.mxu0 %v3405
    %3543 = vmatprep.subr.mxu0 %v3402
    %3544 = vmatpush2.msra.mxu0 %v3401
    %3545 = vmatprep.subr.mxu0 %v3398
    %3546 = vmatpush2.msra.mxu0 %v3397
    %3547 = vmatprep.mubr.f32.mxu0 %v3332
    %3548 = vmatmul.mubr.f32.gmra.mxu0 %v3331
    %v3549 = vpop.f32.mrf.mxu0
    %v3550 = vadd.f32 %v3466, %v3549
    %v3551 = vpop.f32.mrf.mxu0
    %v3552 = vadd.f32 %v3470, %v3551
    %3553 = vdwg.mxu0
    %3554 = vmatprep.subr.mxu0 %v3396
    %3555 = vmatpush1.msra.mxu0 %v3395
    %3556 = vmatprep.subr.mxu0 %v3392
    %3557 = vmatpush1.msra.mxu0 %v3391
    %3558 = vmatprep.subr.mxu0 %v3388
    %3559 = vmatpush1.msra.mxu0 %v3387
    %3560 = vmatprep.subr.mxu0 %v3384
    %3561 = vmatpush1.msra.mxu0 %v3383
    %3562 = vmatprep.subr.mxu0 %v3380
    %3563 = vmatpush1.msra.mxu0 %v3379
    %3564 = vmatprep.subr.mxu0 %v3376
    %3565 = vmatpush1.msra.mxu0 %v3375
    %3566 = vmatprep.subr.mxu0 %v3372
    %3567 = vmatpush1.msra.mxu0 %v3371
    %3568 = vmatprep.subr.mxu0 %v3368
    %3569 = vmatpush1.msra.mxu0 %v3367
    %3570 = vmatprep.subr.mxu0 %v3364
    %3571 = vmatpush1.msra.mxu0 %v3363
    %3572 = vmatprep.subr.mxu0 %v3360
    %3573 = vmatpush1.msra.mxu0 %v3359
    %3574 = vmatprep.subr.mxu0 %v3356
    %3575 = vmatpush1.msra.mxu0 %v3355
    %3576 = vmatprep.subr.mxu0 %v3352
    %3577 = vmatpush1.msra.mxu0 %v3351
    %3578 = vmatprep.subr.mxu0 %v3348
    %3579 = vmatpush1.msra.mxu0 %v3347
    %3580 = vmatprep.subr.mxu0 %v3344
    %3581 = vmatpush1.msra.mxu0 %v3343
    %3582 = vmatprep.subr.mxu0 %v3340
    %3583 = vmatpush1.msra.mxu0 %v3339
    %3584 = vmatprep.subr.mxu0 %v3336
    %3585 = vmatpush1.msra.mxu0 %v3335
    %3586 = vmatprep.subr.mxu0 %v3460
    %3587 = vmatpush2.msra.mxu0 %v3459
    %3588 = vmatprep.subr.mxu0 %v3456
    %3589 = vmatpush2.msra.mxu0 %v3455
    %3590 = vmatprep.subr.mxu0 %v3452
    %3591 = vmatpush2.msra.mxu0 %v3451
    %3592 = vmatprep.subr.mxu0 %v3448
    %3593 = vmatpush2.msra.mxu0 %v3447
    %3594 = vmatprep.subr.mxu0 %v3444
    %3595 = vmatpush2.msra.mxu0 %v3443
    %3596 = vmatprep.subr.mxu0 %v3440
    %3597 = vmatpush2.msra.mxu0 %v3439
    %3598 = vmatprep.subr.mxu0 %v3436
    %3599 = vmatpush2.msra.mxu0 %v3435
    %3600 = vmatprep.subr.mxu0 %v3432
    %3601 = vmatpush2.msra.mxu0 %v3431
    %3602 = vmatprep.subr.mxu0 %v3428
    %3603 = vmatpush2.msra.mxu0 %v3427
    %3604 = vmatprep.subr.mxu0 %v3424
    %3605 = vmatpush2.msra.mxu0 %v3423
    %3606 = vmatprep.subr.mxu0 %v3420
    %3607 = vmatpush2.msra.mxu0 %v3419
    %3608 = vmatprep.subr.mxu0 %v3416
    %3609 = vmatpush2.msra.mxu0 %v3415
    %3610 = vmatprep.subr.mxu0 %v3412
    %3611 = vmatpush2.msra.mxu0 %v3411
    %3612 = vmatprep.subr.mxu0 %v3408
    %3613 = vmatpush2.msra.mxu0 %v3407
    %3614 = vmatprep.subr.mxu0 %v3404
    %3615 = vmatpush2.msra.mxu0 %v3403
    %3616 = vmatprep.subr.mxu0 %v3400
    %3617 = vmatpush2.msra.mxu0 %v3399
    %3618 = vmatprep.mubr.f32.mxu0 %v3332
    %3619 = vmatmul.mubr.f32.gmra.mxu0 %v3331
    %v3620 = vpop.f32.mrf.mxu0
    %v3621 = vadd.f32 %v3474, %v3620
    %v3622 = vpop.f32.mrf.mxu0
    %v3623 = vadd.f32 %v3478, %v3622
    %3624 = vdwg.mxu0
    %v3625 = vxor.u32 %v3550, 2147483648
    %v3626 = vmul.f32 %v3625, 1.442695
    %v3627 = vpow.pop %v3626
    %v3628 = vadd.f32 %v3627, 1.0
    %v3629 = vrcp.pop %v3628
    %v3630 = vmul.f32 1.0, %v3629
    %v3631 = vxor.u32 %v3552, 2147483648
    %v3632 = vmul.f32 %v3631, 1.442695
    %v3633 = vpow.pop %v3632
    %v3634 = vadd.f32 %v3633, 1.0
    %v3635 = vrcp.pop %v3634
    %v3636 = vmul.f32 1.0, %v3635
    %v3637 = vtanh.pop %v3621
    %v3638 = vxor.u32 %v3623, 2147483648
    %v3639 = vmul.f32 %v3638, 1.442695
    %v3640 = vpow.pop %v3639
    %v3641 = vadd.f32 %v3640, 1.0
    %v3642 = vrcp.pop %v3641
    %v3643 = vmul.f32 1.0, %v3642
    %v3644 = vld [vmem:[#allocation3] sm:$0xff]
    %v3645 = vmul.f32 %v3636, %v3644
    %v3646 = vmul.f32 %v3630, %v3637
    %v3647 = vadd.f32 %v3645, %v3646
    %v3648 = vtanh.pop %v3647
    %v3649 = vmul.f32 %v3643, %v3648
    %3650 = vst [vmem:[#allocation3] sm:$0xff] %v3647
    %3651 = vst [vmem:[#allocation2] sm:$0xff] %v3649
    %3652 = vst [vmem:[#allocation4] sm:$0xff] %v3649
    %v3653 = vld [vmem:[%s390] sm:$0xff]
    %3654 = vst [vmem:[#allocation4 + $0x8] sm:$0xff] %v3653
    %v3655 = vld [vmem:[#allocation4] sm:$0xff]
    %v3656 = vld [vmem:[#allocation4 + $0x8] sm:$0xff]
    %v3657 = vld [vmem:[%s395] sm:$0xff]
    %v3658 = vld [vmem:[%s395 + $0x8] sm:$0xff]
    %v3659 = vld [vmem:[%s395 + $0x10] sm:$0xff]
    %v3660 = vld [vmem:[%s395 + $0x18] sm:$0xff]
    %v3661 = vld [vmem:[%s395 + $0x20] sm:$0xff]
    %v3662 = vld [vmem:[%s395 + $0x28] sm:$0xff]
    %v3663 = vld [vmem:[%s395 + $0x30] sm:$0xff]
    %v3664 = vld [vmem:[%s395 + $0x38] sm:$0xff]
    %v3665 = vld [vmem:[%s395 + $0x40] sm:$0xff]
    %v3666 = vld [vmem:[%s395 + $0x48] sm:$0xff]
    %v3667 = vld [vmem:[%s395 + $0x50] sm:$0xff]
    %v3668 = vld [vmem:[%s395 + $0x58] sm:$0xff]
    %v3669 = vld [vmem:[%s395 + $0x60] sm:$0xff]
    %v3670 = vld [vmem:[%s395 + $0x68] sm:$0xff]
    %v3671 = vld [vmem:[%s395 + $0x70] sm:$0xff]
    %v3672 = vld [vmem:[%s395 + $0x78] sm:$0xff]
    %v3673 = vld [vmem:[%s395 + $0x80] sm:$0xff]
    %v3674 = vld [vmem:[%s395 + $0x88] sm:$0xff]
    %v3675 = vld [vmem:[%s395 + $0x90] sm:$0xff]
    %v3676 = vld [vmem:[%s395 + $0x98] sm:$0xff]
    %v3677 = vld [vmem:[%s395 + $0xa0] sm:$0xff]
    %v3678 = vld [vmem:[%s395 + $0xa8] sm:$0xff]
    %v3679 = vld [vmem:[%s395 + $0xb0] sm:$0xff]
    %v3680 = vld [vmem:[%s395 + $0xb8] sm:$0xff]
    %v3681 = vld [vmem:[%s395 + $0xc0] sm:$0xff]
    %v3682 = vld [vmem:[%s395 + $0xc8] sm:$0xff]
    %v3683 = vld [vmem:[%s395 + $0xd0] sm:$0xff]
    %v3684 = vld [vmem:[%s395 + $0xd8] sm:$0xff]
    %v3685 = vld [vmem:[%s395 + $0xe0] sm:$0xff]
    %v3686 = vld [vmem:[%s395 + $0xe8] sm:$0xff]
    %v3687 = vld [vmem:[%s395 + $0xf0] sm:$0xff]
    %v3688 = vld [vmem:[%s395 + $0xf8] sm:$0xff]
    %v3689 = vld [vmem:[%s395 + $0x100] sm:$0xff]
    %v3690 = vld [vmem:[%s395 + $0x108] sm:$0xff]
    %v3691 = vld [vmem:[%s395 + $0x110] sm:$0xff]
    %v3692 = vld [vmem:[%s395 + $0x118] sm:$0xff]
    %v3693 = vld [vmem:[%s395 + $0x120] sm:$0xff]
    %v3694 = vld [vmem:[%s395 + $0x128] sm:$0xff]
    %v3695 = vld [vmem:[%s395 + $0x130] sm:$0xff]
    %v3696 = vld [vmem:[%s395 + $0x138] sm:$0xff]
    %v3697 = vld [vmem:[%s395 + $0x140] sm:$0xff]
    %v3698 = vld [vmem:[%s395 + $0x148] sm:$0xff]
    %v3699 = vld [vmem:[%s395 + $0x150] sm:$0xff]
    %v3700 = vld [vmem:[%s395 + $0x158] sm:$0xff]
    %v3701 = vld [vmem:[%s395 + $0x160] sm:$0xff]
    %v3702 = vld [vmem:[%s395 + $0x168] sm:$0xff]
    %v3703 = vld [vmem:[%s395 + $0x170] sm:$0xff]
    %v3704 = vld [vmem:[%s395 + $0x178] sm:$0xff]
    %v3705 = vld [vmem:[%s395 + $0x180] sm:$0xff]
    %v3706 = vld [vmem:[%s395 + $0x188] sm:$0xff]
    %v3707 = vld [vmem:[%s395 + $0x190] sm:$0xff]
    %v3708 = vld [vmem:[%s395 + $0x198] sm:$0xff]
    %v3709 = vld [vmem:[%s395 + $0x1a0] sm:$0xff]
    %v3710 = vld [vmem:[%s395 + $0x1a8] sm:$0xff]
    %v3711 = vld [vmem:[%s395 + $0x1b0] sm:$0xff]
    %v3712 = vld [vmem:[%s395 + $0x1b8] sm:$0xff]
    %v3713 = vld [vmem:[%s395 + $0x1c0] sm:$0xff]
    %v3714 = vld [vmem:[%s395 + $0x1c8] sm:$0xff]
    %v3715 = vld [vmem:[%s395 + $0x1d0] sm:$0xff]
    %v3716 = vld [vmem:[%s395 + $0x1d8] sm:$0xff]
    %v3717 = vld [vmem:[%s395 + $0x1e0] sm:$0xff]
    %v3718 = vld [vmem:[%s395 + $0x1e8] sm:$0xff]
    %v3719 = vld [vmem:[%s395 + $0x1f0] sm:$0xff]
    %v3720 = vld [vmem:[%s395 + $0x1f8] sm:$0xff]
    %v3721 = vld [vmem:[%s395 + $0x200] sm:$0xff]
    %v3722 = vld [vmem:[%s395 + $0x208] sm:$0xff]
    %v3723 = vld [vmem:[%s395 + $0x210] sm:$0xff]
    %v3724 = vld [vmem:[%s395 + $0x218] sm:$0xff]
    %v3725 = vld [vmem:[%s395 + $0x220] sm:$0xff]
    %v3726 = vld [vmem:[%s395 + $0x228] sm:$0xff]
    %v3727 = vld [vmem:[%s395 + $0x230] sm:$0xff]
    %v3728 = vld [vmem:[%s395 + $0x238] sm:$0xff]
    %v3729 = vld [vmem:[%s395 + $0x240] sm:$0xff]
    %v3730 = vld [vmem:[%s395 + $0x248] sm:$0xff]
    %v3731 = vld [vmem:[%s395 + $0x250] sm:$0xff]
    %v3732 = vld [vmem:[%s395 + $0x258] sm:$0xff]
    %v3733 = vld [vmem:[%s395 + $0x260] sm:$0xff]
    %v3734 = vld [vmem:[%s395 + $0x268] sm:$0xff]
    %v3735 = vld [vmem:[%s395 + $0x270] sm:$0xff]
    %v3736 = vld [vmem:[%s395 + $0x278] sm:$0xff]
    %v3737 = vld [vmem:[%s395 + $0x280] sm:$0xff]
    %v3738 = vld [vmem:[%s395 + $0x288] sm:$0xff]
    %v3739 = vld [vmem:[%s395 + $0x290] sm:$0xff]
    %v3740 = vld [vmem:[%s395 + $0x298] sm:$0xff]
    %v3741 = vld [vmem:[%s395 + $0x2a0] sm:$0xff]
    %v3742 = vld [vmem:[%s395 + $0x2a8] sm:$0xff]
    %v3743 = vld [vmem:[%s395 + $0x2b0] sm:$0xff]
    %v3744 = vld [vmem:[%s395 + $0x2b8] sm:$0xff]
    %v3745 = vld [vmem:[%s395 + $0x2c0] sm:$0xff]
    %v3746 = vld [vmem:[%s395 + $0x2c8] sm:$0xff]
    %v3747 = vld [vmem:[%s395 + $0x2d0] sm:$0xff]
    %v3748 = vld [vmem:[%s395 + $0x2d8] sm:$0xff]
    %v3749 = vld [vmem:[%s395 + $0x2e0] sm:$0xff]
    %v3750 = vld [vmem:[%s395 + $0x2e8] sm:$0xff]
    %v3751 = vld [vmem:[%s395 + $0x2f0] sm:$0xff]
    %v3752 = vld [vmem:[%s395 + $0x2f8] sm:$0xff]
    %v3753 = vld [vmem:[%s395 + $0x300] sm:$0xff]
    %v3754 = vld [vmem:[%s395 + $0x308] sm:$0xff]
    %v3755 = vld [vmem:[%s395 + $0x310] sm:$0xff]
    %v3756 = vld [vmem:[%s395 + $0x318] sm:$0xff]
    %v3757 = vld [vmem:[%s395 + $0x320] sm:$0xff]
    %v3758 = vld [vmem:[%s395 + $0x328] sm:$0xff]
    %v3759 = vld [vmem:[%s395 + $0x330] sm:$0xff]
    %v3760 = vld [vmem:[%s395 + $0x338] sm:$0xff]
    %v3761 = vld [vmem:[%s395 + $0x340] sm:$0xff]
    %v3762 = vld [vmem:[%s395 + $0x348] sm:$0xff]
    %v3763 = vld [vmem:[%s395 + $0x350] sm:$0xff]
    %v3764 = vld [vmem:[%s395 + $0x358] sm:$0xff]
    %v3765 = vld [vmem:[%s395 + $0x360] sm:$0xff]
    %v3766 = vld [vmem:[%s395 + $0x368] sm:$0xff]
    %v3767 = vld [vmem:[%s395 + $0x370] sm:$0xff]
    %v3768 = vld [vmem:[%s395 + $0x378] sm:$0xff]
    %v3769 = vld [vmem:[%s395 + $0x380] sm:$0xff]
    %v3770 = vld [vmem:[%s395 + $0x388] sm:$0xff]
    %v3771 = vld [vmem:[%s395 + $0x390] sm:$0xff]
    %v3772 = vld [vmem:[%s395 + $0x398] sm:$0xff]
    %v3773 = vld [vmem:[%s395 + $0x3a0] sm:$0xff]
    %v3774 = vld [vmem:[%s395 + $0x3a8] sm:$0xff]
    %v3775 = vld [vmem:[%s395 + $0x3b0] sm:$0xff]
    %v3776 = vld [vmem:[%s395 + $0x3b8] sm:$0xff]
    %v3777 = vld [vmem:[%s395 + $0x3c0] sm:$0xff]
    %v3778 = vld [vmem:[%s395 + $0x3c8] sm:$0xff]
    %v3779 = vld [vmem:[%s395 + $0x3d0] sm:$0xff]
    %v3780 = vld [vmem:[%s395 + $0x3d8] sm:$0xff]
    %v3781 = vld [vmem:[%s395 + $0x3e0] sm:$0xff]
    %v3782 = vld [vmem:[%s395 + $0x3e8] sm:$0xff]
    %v3783 = vld [vmem:[%s395 + $0x3f0] sm:$0xff]
    %v3784 = vld [vmem:[%s395 + $0x3f8] sm:$0xff]
    %v3785 = vld [vmem:[%s524] sm:$0xf]
    %v3787 = vlaneseq
    %v3788 = vshrl.u32 %v3787, 7
    %v3789 = vsub.s32 0, %v3788
    %v3790 = vrot.slane %v3785, %v3789
    %v3791 = vlaneseq
    %v3792 = vshrl.u32 %v3791, 7
    %v3793 = vsub.s32 1, %v3792
    %v3794 = vrot.slane %v3785, %v3793
    %v3795 = vlaneseq
    %v3796 = vshrl.u32 %v3795, 7
    %v3797 = vsub.s32 2, %v3796
    %v3798 = vrot.slane %v3785, %v3797
    %v3799 = vlaneseq
    %v3800 = vshrl.u32 %v3799, 7
    %v3801 = vsub.s32 3, %v3800
    %v3802 = vrot.slane %v3785, %v3801
    %3807 = vmatprep.subr.mxu0 %v3718
    %3808 = vmatpush1.msra.mxu0 %v3717
    %3809 = vmatprep.subr.mxu0 %v3714
    %3810 = vmatpush1.msra.mxu0 %v3713
    %3811 = vmatprep.subr.mxu0 %v3710
    %3812 = vmatpush1.msra.mxu0 %v3709
    %3813 = vmatprep.subr.mxu0 %v3706
    %3814 = vmatpush1.msra.mxu0 %v3705
    %3815 = vmatprep.subr.mxu0 %v3702
    %3816 = vmatpush1.msra.mxu0 %v3701
    %3817 = vmatprep.subr.mxu0 %v3698
    %3818 = vmatpush1.msra.mxu0 %v3697
    %3819 = vmatprep.subr.mxu0 %v3694
    %3820 = vmatpush1.msra.mxu0 %v3693
    %3821 = vmatprep.subr.mxu0 %v3690
    %3822 = vmatpush1.msra.mxu0 %v3689
    %3823 = vmatprep.subr.mxu0 %v3686
    %3824 = vmatpush1.msra.mxu0 %v3685
    %3825 = vmatprep.subr.mxu0 %v3682
    %3826 = vmatpush1.msra.mxu0 %v3681
    %3827 = vmatprep.subr.mxu0 %v3678
    %3828 = vmatpush1.msra.mxu0 %v3677
    %3829 = vmatprep.subr.mxu0 %v3674
    %3830 = vmatpush1.msra.mxu0 %v3673
    %3831 = vmatprep.subr.mxu0 %v3670
    %3832 = vmatpush1.msra.mxu0 %v3669
    %3833 = vmatprep.subr.mxu0 %v3666
    %3834 = vmatpush1.msra.mxu0 %v3665
    %3835 = vmatprep.subr.mxu0 %v3662
    %3836 = vmatpush1.msra.mxu0 %v3661
    %3837 = vmatprep.subr.mxu0 %v3658
    %3838 = vmatpush1.msra.mxu0 %v3657
    %3839 = vmatprep.subr.mxu0 %v3782
    %3840 = vmatpush2.msra.mxu0 %v3781
    %3841 = vmatprep.subr.mxu0 %v3778
    %3842 = vmatpush2.msra.mxu0 %v3777
    %3843 = vmatprep.subr.mxu0 %v3774
    %3844 = vmatpush2.msra.mxu0 %v3773
    %3845 = vmatprep.subr.mxu0 %v3770
    %3846 = vmatpush2.msra.mxu0 %v3769
    %3847 = vmatprep.subr.mxu0 %v3766
    %3848 = vmatpush2.msra.mxu0 %v3765
    %3849 = vmatprep.subr.mxu0 %v3762
    %3850 = vmatpush2.msra.mxu0 %v3761
    %3851 = vmatprep.subr.mxu0 %v3758
    %3852 = vmatpush2.msra.mxu0 %v3757
    %3853 = vmatprep.subr.mxu0 %v3754
    %3854 = vmatpush2.msra.mxu0 %v3753
    %3855 = vmatprep.subr.mxu0 %v3750
    %3856 = vmatpush2.msra.mxu0 %v3749
    %3857 = vmatprep.subr.mxu0 %v3746
    %3858 = vmatpush2.msra.mxu0 %v3745
    %3859 = vmatprep.subr.mxu0 %v3742
    %3860 = vmatpush2.msra.mxu0 %v3741
    %3861 = vmatprep.subr.mxu0 %v3738
    %3862 = vmatpush2.msra.mxu0 %v3737
    %3863 = vmatprep.subr.mxu0 %v3734
    %3864 = vmatpush2.msra.mxu0 %v3733
    %3865 = vmatprep.subr.mxu0 %v3730
    %3866 = vmatpush2.msra.mxu0 %v3729
    %3867 = vmatprep.subr.mxu0 %v3726
    %3868 = vmatpush2.msra.mxu0 %v3725
    %3869 = vmatprep.subr.mxu0 %v3722
    %3870 = vmatpush2.msra.mxu0 %v3721
    %3871 = vmatprep.mubr.f32.mxu0 %v3656
    %3872 = vmatmul.mubr.f32.gmra.mxu0 %v3655
    %v3873 = vpop.f32.mrf.mxu0
    %v3874 = vadd.f32 %v3790, %v3873
    %v3875 = vpop.f32.mrf.mxu0
    %v3876 = vadd.f32 %v3794, %v3875
    %3877 = vdwg.mxu0
    %3878 = vmatprep.subr.mxu0 %v3720
    %3879 = vmatpush1.msra.mxu0 %v3719
    %3880 = vmatprep.subr.mxu0 %v3716
    %3881 = vmatpush1.msra.mxu0 %v3715
    %3882 = vmatprep.subr.mxu0 %v3712
    %3883 = vmatpush1.msra.mxu0 %v3711
    %3884 = vmatprep.subr.mxu0 %v3708
    %3885 = vmatpush1.msra.mxu0 %v3707
    %3886 = vmatprep.subr.mxu0 %v3704
    %3887 = vmatpush1.msra.mxu0 %v3703
    %3888 = vmatprep.subr.mxu0 %v3700
    %3889 = vmatpush1.msra.mxu0 %v3699
    %3890 = vmatprep.subr.mxu0 %v3696
    %3891 = vmatpush1.msra.mxu0 %v3695
    %3892 = vmatprep.subr.mxu0 %v3692
    %3893 = vmatpush1.msra.mxu0 %v3691
    %3894 = vmatprep.subr.mxu0 %v3688
    %3895 = vmatpush1.msra.mxu0 %v3687
    %3896 = vmatprep.subr.mxu0 %v3684
    %3897 = vmatpush1.msra.mxu0 %v3683
    %3898 = vmatprep.subr.mxu0 %v3680
    %3899 = vmatpush1.msra.mxu0 %v3679
    %3900 = vmatprep.subr.mxu0 %v3676
    %3901 = vmatpush1.msra.mxu0 %v3675
    %3902 = vmatprep.subr.mxu0 %v3672
    %3903 = vmatpush1.msra.mxu0 %v3671
    %3904 = vmatprep.subr.mxu0 %v3668
    %3905 = vmatpush1.msra.mxu0 %v3667
    %3906 = vmatprep.subr.mxu0 %v3664
    %3907 = vmatpush1.msra.mxu0 %v3663
    %3908 = vmatprep.subr.mxu0 %v3660
    %3909 = vmatpush1.msra.mxu0 %v3659
    %3910 = vmatprep.subr.mxu0 %v3784
    %3911 = vmatpush2.msra.mxu0 %v3783
    %3912 = vmatprep.subr.mxu0 %v3780
    %3913 = vmatpush2.msra.mxu0 %v3779
    %3914 = vmatprep.subr.mxu0 %v3776
    %3915 = vmatpush2.msra.mxu0 %v3775
    %3916 = vmatprep.subr.mxu0 %v3772
    %3917 = vmatpush2.msra.mxu0 %v3771
    %3918 = vmatprep.subr.mxu0 %v3768
    %3919 = vmatpush2.msra.mxu0 %v3767
    %3920 = vmatprep.subr.mxu0 %v3764
    %3921 = vmatpush2.msra.mxu0 %v3763
    %3922 = vmatprep.subr.mxu0 %v3760
    %3923 = vmatpush2.msra.mxu0 %v3759
    %3924 = vmatprep.subr.mxu0 %v3756
    %3925 = vmatpush2.msra.mxu0 %v3755
    %3926 = vmatprep.subr.mxu0 %v3752
    %3927 = vmatpush2.msra.mxu0 %v3751
    %3928 = vmatprep.subr.mxu0 %v3748
    %3929 = vmatpush2.msra.mxu0 %v3747
    %3930 = vmatprep.subr.mxu0 %v3744
    %3931 = vmatpush2.msra.mxu0 %v3743
    %3932 = vmatprep.subr.mxu0 %v3740
    %3933 = vmatpush2.msra.mxu0 %v3739
    %3934 = vmatprep.subr.mxu0 %v3736
    %3935 = vmatpush2.msra.mxu0 %v3735
    %3936 = vmatprep.subr.mxu0 %v3732
    %3937 = vmatpush2.msra.mxu0 %v3731
    %3938 = vmatprep.subr.mxu0 %v3728
    %3939 = vmatpush2.msra.mxu0 %v3727
    %3940 = vmatprep.subr.mxu0 %v3724
    %3941 = vmatpush2.msra.mxu0 %v3723
    %3942 = vmatprep.mubr.f32.mxu0 %v3656
    %3943 = vmatmul.mubr.f32.gmra.mxu0 %v3655
    %v3944 = vpop.f32.mrf.mxu0
    %v3945 = vadd.f32 %v3798, %v3944
    %v3946 = vpop.f32.mrf.mxu0
    %v3947 = vadd.f32 %v3802, %v3946
    %3948 = vdwg.mxu0
    %v3949 = vxor.u32 %v3874, 2147483648
    %v3950 = vmul.f32 %v3949, 1.442695
    %v3951 = vpow.pop %v3950
    %v3952 = vadd.f32 %v3951, 1.0
    %v3953 = vrcp.pop %v3952
    %v3954 = vmul.f32 1.0, %v3953
    %v3955 = vxor.u32 %v3876, 2147483648
    %v3956 = vmul.f32 %v3955, 1.442695
    %v3957 = vpow.pop %v3956
    %v3958 = vadd.f32 %v3957, 1.0
    %v3959 = vrcp.pop %v3958
    %v3960 = vmul.f32 1.0, %v3959
    %v3961 = vtanh.pop %v3945
    %v3962 = vxor.u32 %v3947, 2147483648
    %v3963 = vmul.f32 %v3962, 1.442695
    %v3964 = vpow.pop %v3963
    %v3965 = vadd.f32 %v3964, 1.0
    %v3966 = vrcp.pop %v3965
    %v3967 = vmul.f32 1.0, %v3966
    %v3968 = vld [vmem:[%s708] sm:$0xff]
    %v3969 = vmul.f32 %v3960, %v3968
    %v3970 = vmul.f32 %v3954, %v3961
    %v3971 = vadd.f32 %v3969, %v3970
    %v3972 = vtanh.pop %v3971
    %v3973 = vmul.f32 %v3967, %v3972
    %3974 = vst [vmem:[%s708] sm:$0xff] %v3971
    %3975 = vst [vmem:[%s390] sm:$0xff] %v3973
    %s3976 = scalar_lea.vmem [#allocation11], 40
    %3977 = vst [vmem:[%s3976] sm:$0xff] %v3973
    %s3978 = scalar_lea.vmem [#allocation5], 48
    %v3979 = vld [vmem:[%s3978] sm:$0xff]
    %3980 = vst [vmem:[#allocation4] sm:$0xff] %v3979
    %v3981 = vld [vmem:[#allocation2] sm:$0xff]
    %3982 = vst [vmem:[#allocation4 + $0x8] sm:$0xff] %v3981
    %v3983 = vld [vmem:[#allocation4] sm:$0xff]
    %v3984 = vld [vmem:[#allocation4 + $0x8] sm:$0xff]
    %v3985 = vld [vmem:[#allocation8] sm:$0xff]
    %v3986 = vld [vmem:[#allocation8 + $0x8] sm:$0xff]
    %v3987 = vld [vmem:[#allocation8 + $0x10] sm:$0xff]
    %v3988 = vld [vmem:[#allocation8 + $0x18] sm:$0xff]
    %v3989 = vld [vmem:[#allocation8 + $0x20] sm:$0xff]
    %v3990 = vld [vmem:[#allocation8 + $0x28] sm:$0xff]
    %v3991 = vld [vmem:[#allocation8 + $0x30] sm:$0xff]
    %v3992 = vld [vmem:[#allocation8 + $0x38] sm:$0xff]
    %v3993 = vld [vmem:[#allocation8 + $0x40] sm:$0xff]
    %v3994 = vld [vmem:[#allocation8 + $0x48] sm:$0xff]
    %v3995 = vld [vmem:[#allocation8 + $0x50] sm:$0xff]
    %v3996 = vld [vmem:[#allocation8 + $0x58] sm:$0xff]
    %v3997 = vld [vmem:[#allocation8 + $0x60] sm:$0xff]
    %v3998 = vld [vmem:[#allocation8 + $0x68] sm:$0xff]
    %v3999 = vld [vmem:[#allocation8 + $0x70] sm:$0xff]
    %v4000 = vld [vmem:[#allocation8 + $0x78] sm:$0xff]
    %v4001 = vld [vmem:[#allocation8 + $0x80] sm:$0xff]
    %v4002 = vld [vmem:[#allocation8 + $0x88] sm:$0xff]
    %v4003 = vld [vmem:[#allocation8 + $0x90] sm:$0xff]
    %v4004 = vld [vmem:[#allocation8 + $0x98] sm:$0xff]
    %v4005 = vld [vmem:[#allocation8 + $0xa0] sm:$0xff]
    %v4006 = vld [vmem:[#allocation8 + $0xa8] sm:$0xff]
    %v4007 = vld [vmem:[#allocation8 + $0xb0] sm:$0xff]
    %v4008 = vld [vmem:[#allocation8 + $0xb8] sm:$0xff]
    %v4009 = vld [vmem:[#allocation8 + $0xc0] sm:$0xff]
    %v4010 = vld [vmem:[#allocation8 + $0xc8] sm:$0xff]
    %v4011 = vld [vmem:[#allocation8 + $0xd0] sm:$0xff]
    %v4012 = vld [vmem:[#allocation8 + $0xd8] sm:$0xff]
    %v4013 = vld [vmem:[#allocation8 + $0xe0] sm:$0xff]
    %v4014 = vld [vmem:[#allocation8 + $0xe8] sm:$0xff]
    %v4015 = vld [vmem:[#allocation8 + $0xf0] sm:$0xff]
    %v4016 = vld [vmem:[#allocation8 + $0xf8] sm:$0xff]
    %v4017 = vld [vmem:[#allocation8 + $0x100] sm:$0xff]
    %v4018 = vld [vmem:[#allocation8 + $0x108] sm:$0xff]
    %v4019 = vld [vmem:[#allocation8 + $0x110] sm:$0xff]
    %v4020 = vld [vmem:[#allocation8 + $0x118] sm:$0xff]
    %v4021 = vld [vmem:[#allocation8 + $0x120] sm:$0xff]
    %v4022 = vld [vmem:[#allocation8 + $0x128] sm:$0xff]
    %v4023 = vld [vmem:[#allocation8 + $0x130] sm:$0xff]
    %v4024 = vld [vmem:[#allocation8 + $0x138] sm:$0xff]
    %v4025 = vld [vmem:[#allocation8 + $0x140] sm:$0xff]
    %v4026 = vld [vmem:[#allocation8 + $0x148] sm:$0xff]
    %v4027 = vld [vmem:[#allocation8 + $0x150] sm:$0xff]
    %v4028 = vld [vmem:[#allocation8 + $0x158] sm:$0xff]
    %v4029 = vld [vmem:[#allocation8 + $0x160] sm:$0xff]
    %v4030 = vld [vmem:[#allocation8 + $0x168] sm:$0xff]
    %v4031 = vld [vmem:[#allocation8 + $0x170] sm:$0xff]
    %v4032 = vld [vmem:[#allocation8 + $0x178] sm:$0xff]
    %v4033 = vld [vmem:[#allocation8 + $0x180] sm:$0xff]
    %v4034 = vld [vmem:[#allocation8 + $0x188] sm:$0xff]
    %v4035 = vld [vmem:[#allocation8 + $0x190] sm:$0xff]
    %v4036 = vld [vmem:[#allocation8 + $0x198] sm:$0xff]
    %v4037 = vld [vmem:[#allocation8 + $0x1a0] sm:$0xff]
    %v4038 = vld [vmem:[#allocation8 + $0x1a8] sm:$0xff]
    %v4039 = vld [vmem:[#allocation8 + $0x1b0] sm:$0xff]
    %v4040 = vld [vmem:[#allocation8 + $0x1b8] sm:$0xff]
    %v4041 = vld [vmem:[#allocation8 + $0x1c0] sm:$0xff]
    %v4042 = vld [vmem:[#allocation8 + $0x1c8] sm:$0xff]
    %v4043 = vld [vmem:[#allocation8 + $0x1d0] sm:$0xff]
    %v4044 = vld [vmem:[#allocation8 + $0x1d8] sm:$0xff]
    %v4045 = vld [vmem:[#allocation8 + $0x1e0] sm:$0xff]
    %v4046 = vld [vmem:[#allocation8 + $0x1e8] sm:$0xff]
    %v4047 = vld [vmem:[#allocation8 + $0x1f0] sm:$0xff]
    %v4048 = vld [vmem:[#allocation8 + $0x1f8] sm:$0xff]
    %v4049 = vld [vmem:[#allocation8 + $0x200] sm:$0xff]
    %v4050 = vld [vmem:[#allocation8 + $0x208] sm:$0xff]
    %v4051 = vld [vmem:[#allocation8 + $0x210] sm:$0xff]
    %v4052 = vld [vmem:[#allocation8 + $0x218] sm:$0xff]
    %v4053 = vld [vmem:[#allocation8 + $0x220] sm:$0xff]
    %v4054 = vld [vmem:[#allocation8 + $0x228] sm:$0xff]
    %v4055 = vld [vmem:[#allocation8 + $0x230] sm:$0xff]
    %v4056 = vld [vmem:[#allocation8 + $0x238] sm:$0xff]
    %v4057 = vld [vmem:[#allocation8 + $0x240] sm:$0xff]
    %v4058 = vld [vmem:[#allocation8 + $0x248] sm:$0xff]
    %v4059 = vld [vmem:[#allocation8 + $0x250] sm:$0xff]
    %v4060 = vld [vmem:[#allocation8 + $0x258] sm:$0xff]
    %v4061 = vld [vmem:[#allocation8 + $0x260] sm:$0xff]
    %v4062 = vld [vmem:[#allocation8 + $0x268] sm:$0xff]
    %v4063 = vld [vmem:[#allocation8 + $0x270] sm:$0xff]
    %v4064 = vld [vmem:[#allocation8 + $0x278] sm:$0xff]
    %v4065 = vld [vmem:[#allocation8 + $0x280] sm:$0xff]
    %v4066 = vld [vmem:[#allocation8 + $0x288] sm:$0xff]
    %v4067 = vld [vmem:[#allocation8 + $0x290] sm:$0xff]
    %v4068 = vld [vmem:[#allocation8 + $0x298] sm:$0xff]
    %v4069 = vld [vmem:[#allocation8 + $0x2a0] sm:$0xff]
    %v4070 = vld [vmem:[#allocation8 + $0x2a8] sm:$0xff]
    %v4071 = vld [vmem:[#allocation8 + $0x2b0] sm:$0xff]
    %v4072 = vld [vmem:[#allocation8 + $0x2b8] sm:$0xff]
    %v4073 = vld [vmem:[#allocation8 + $0x2c0] sm:$0xff]
    %v4074 = vld [vmem:[#allocation8 + $0x2c8] sm:$0xff]
    %v4075 = vld [vmem:[#allocation8 + $0x2d0] sm:$0xff]
    %v4076 = vld [vmem:[#allocation8 + $0x2d8] sm:$0xff]
    %v4077 = vld [vmem:[#allocation8 + $0x2e0] sm:$0xff]
    %v4078 = vld [vmem:[#allocation8 + $0x2e8] sm:$0xff]
    %v4079 = vld [vmem:[#allocation8 + $0x2f0] sm:$0xff]
    %v4080 = vld [vmem:[#allocation8 + $0x2f8] sm:$0xff]
    %v4081 = vld [vmem:[#allocation8 + $0x300] sm:$0xff]
    %v4082 = vld [vmem:[#allocation8 + $0x308] sm:$0xff]
    %v4083 = vld [vmem:[#allocation8 + $0x310] sm:$0xff]
    %v4084 = vld [vmem:[#allocation8 + $0x318] sm:$0xff]
    %v4085 = vld [vmem:[#allocation8 + $0x320] sm:$0xff]
    %v4086 = vld [vmem:[#allocation8 + $0x328] sm:$0xff]
    %v4087 = vld [vmem:[#allocation8 + $0x330] sm:$0xff]
    %v4088 = vld [vmem:[#allocation8 + $0x338] sm:$0xff]
    %v4089 = vld [vmem:[#allocation8 + $0x340] sm:$0xff]
    %v4090 = vld [vmem:[#allocation8 + $0x348] sm:$0xff]
    %v4091 = vld [vmem:[#allocation8 + $0x350] sm:$0xff]
    %v4092 = vld [vmem:[#allocation8 + $0x358] sm:$0xff]
    %v4093 = vld [vmem:[#allocation8 + $0x360] sm:$0xff]
    %v4094 = vld [vmem:[#allocation8 + $0x368] sm:$0xff]
    %v4095 = vld [vmem:[#allocation8 + $0x370] sm:$0xff]
    %v4096 = vld [vmem:[#allocation8 + $0x378] sm:$0xff]
    %v4097 = vld [vmem:[#allocation8 + $0x380] sm:$0xff]
    %v4098 = vld [vmem:[#allocation8 + $0x388] sm:$0xff]
    %v4099 = vld [vmem:[#allocation8 + $0x390] sm:$0xff]
    %v4100 = vld [vmem:[#allocation8 + $0x398] sm:$0xff]
    %v4101 = vld [vmem:[#allocation8 + $0x3a0] sm:$0xff]
    %v4102 = vld [vmem:[#allocation8 + $0x3a8] sm:$0xff]
    %v4103 = vld [vmem:[#allocation8 + $0x3b0] sm:$0xff]
    %v4104 = vld [vmem:[#allocation8 + $0x3b8] sm:$0xff]
    %v4105 = vld [vmem:[#allocation8 + $0x3c0] sm:$0xff]
    %v4106 = vld [vmem:[#allocation8 + $0x3c8] sm:$0xff]
    %v4107 = vld [vmem:[#allocation8 + $0x3d0] sm:$0xff]
    %v4108 = vld [vmem:[#allocation8 + $0x3d8] sm:$0xff]
    %v4109 = vld [vmem:[#allocation8 + $0x3e0] sm:$0xff]
    %v4110 = vld [vmem:[#allocation8 + $0x3e8] sm:$0xff]
    %v4111 = vld [vmem:[#allocation8 + $0x3f0] sm:$0xff]
    %v4112 = vld [vmem:[#allocation8 + $0x3f8] sm:$0xff]
    %v4113 = vld [vmem:[#allocation10] sm:$0xf]
    %v4115 = vlaneseq
    %v4116 = vshrl.u32 %v4115, 7
    %v4117 = vsub.s32 0, %v4116
    %v4118 = vrot.slane %v4113, %v4117
    %v4119 = vlaneseq
    %v4120 = vshrl.u32 %v4119, 7
    %v4121 = vsub.s32 1, %v4120
    %v4122 = vrot.slane %v4113, %v4121
    %v4123 = vlaneseq
    %v4124 = vshrl.u32 %v4123, 7
    %v4125 = vsub.s32 2, %v4124
    %v4126 = vrot.slane %v4113, %v4125
    %v4127 = vlaneseq
    %v4128 = vshrl.u32 %v4127, 7
    %v4129 = vsub.s32 3, %v4128
    %v4130 = vrot.slane %v4113, %v4129
    %4135 = vmatprep.subr.mxu0 %v4046
    %4136 = vmatpush1.msra.mxu0 %v4045
    %4137 = vmatprep.subr.mxu0 %v4042
    %4138 = vmatpush1.msra.mxu0 %v4041
    %4139 = vmatprep.subr.mxu0 %v4038
    %4140 = vmatpush1.msra.mxu0 %v4037
    %4141 = vmatprep.subr.mxu0 %v4034
    %4142 = vmatpush1.msra.mxu0 %v4033
    %4143 = vmatprep.subr.mxu0 %v4030
    %4144 = vmatpush1.msra.mxu0 %v4029
    %4145 = vmatprep.subr.mxu0 %v4026
    %4146 = vmatpush1.msra.mxu0 %v4025
    %4147 = vmatprep.subr.mxu0 %v4022
    %4148 = vmatpush1.msra.mxu0 %v4021
    %4149 = vmatprep.subr.mxu0 %v4018
    %4150 = vmatpush1.msra.mxu0 %v4017
    %4151 = vmatprep.subr.mxu0 %v4014
    %4152 = vmatpush1.msra.mxu0 %v4013
    %4153 = vmatprep.subr.mxu0 %v4010
    %4154 = vmatpush1.msra.mxu0 %v4009
    %4155 = vmatprep.subr.mxu0 %v4006
    %4156 = vmatpush1.msra.mxu0 %v4005
    %4157 = vmatprep.subr.mxu0 %v4002
    %4158 = vmatpush1.msra.mxu0 %v4001
    %4159 = vmatprep.subr.mxu0 %v3998
    %4160 = vmatpush1.msra.mxu0 %v3997
    %4161 = vmatprep.subr.mxu0 %v3994
    %4162 = vmatpush1.msra.mxu0 %v3993
    %4163 = vmatprep.subr.mxu0 %v3990
    %4164 = vmatpush1.msra.mxu0 %v3989
    %4165 = vmatprep.subr.mxu0 %v3986
    %4166 = vmatpush1.msra.mxu0 %v3985
    %4167 = vmatprep.subr.mxu0 %v4110
    %4168 = vmatpush2.msra.mxu0 %v4109
    %4169 = vmatprep.subr.mxu0 %v4106
    %4170 = vmatpush2.msra.mxu0 %v4105
    %4171 = vmatprep.subr.mxu0 %v4102
    %4172 = vmatpush2.msra.mxu0 %v4101
    %4173 = vmatprep.subr.mxu0 %v4098
    %4174 = vmatpush2.msra.mxu0 %v4097
    %4175 = vmatprep.subr.mxu0 %v4094
    %4176 = vmatpush2.msra.mxu0 %v4093
    %4177 = vmatprep.subr.mxu0 %v4090
    %4178 = vmatpush2.msra.mxu0 %v4089
    %4179 = vmatprep.subr.mxu0 %v4086
    %4180 = vmatpush2.msra.mxu0 %v4085
    %4181 = vmatprep.subr.mxu0 %v4082
    %4182 = vmatpush2.msra.mxu0 %v4081
    %4183 = vmatprep.subr.mxu0 %v4078
    %4184 = vmatpush2.msra.mxu0 %v4077
    %4185 = vmatprep.subr.mxu0 %v4074
    %4186 = vmatpush2.msra.mxu0 %v4073
    %4187 = vmatprep.subr.mxu0 %v4070
    %4188 = vmatpush2.msra.mxu0 %v4069
    %4189 = vmatprep.subr.mxu0 %v4066
    %4190 = vmatpush2.msra.mxu0 %v4065
    %4191 = vmatprep.subr.mxu0 %v4062
    %4192 = vmatpush2.msra.mxu0 %v4061
    %4193 = vmatprep.subr.mxu0 %v4058
    %4194 = vmatpush2.msra.mxu0 %v4057
    %4195 = vmatprep.subr.mxu0 %v4054
    %4196 = vmatpush2.msra.mxu0 %v4053
    %4197 = vmatprep.subr.mxu0 %v4050
    %4198 = vmatpush2.msra.mxu0 %v4049
    %4199 = vmatprep.mubr.f32.mxu0 %v3984
    %4200 = vmatmul.mubr.f32.gmra.mxu0 %v3983
    %v4201 = vpop.f32.mrf.mxu0
    %v4202 = vadd.f32 %v4118, %v4201
    %v4203 = vpop.f32.mrf.mxu0
    %v4204 = vadd.f32 %v4122, %v4203
    %4205 = vdwg.mxu0
    %4206 = vmatprep.subr.mxu0 %v4048
    %4207 = vmatpush1.msra.mxu0 %v4047
    %4208 = vmatprep.subr.mxu0 %v4044
    %4209 = vmatpush1.msra.mxu0 %v4043
    %4210 = vmatprep.subr.mxu0 %v4040
    %4211 = vmatpush1.msra.mxu0 %v4039
    %4212 = vmatprep.subr.mxu0 %v4036
    %4213 = vmatpush1.msra.mxu0 %v4035
    %4214 = vmatprep.subr.mxu0 %v4032
    %4215 = vmatpush1.msra.mxu0 %v4031
    %4216 = vmatprep.subr.mxu0 %v4028
    %4217 = vmatpush1.msra.mxu0 %v4027
    %4218 = vmatprep.subr.mxu0 %v4024
    %4219 = vmatpush1.msra.mxu0 %v4023
    %4220 = vmatprep.subr.mxu0 %v4020
    %4221 = vmatpush1.msra.mxu0 %v4019
    %4222 = vmatprep.subr.mxu0 %v4016
    %4223 = vmatpush1.msra.mxu0 %v4015
    %4224 = vmatprep.subr.mxu0 %v4012
    %4225 = vmatpush1.msra.mxu0 %v4011
    %4226 = vmatprep.subr.mxu0 %v4008
    %4227 = vmatpush1.msra.mxu0 %v4007
    %4228 = vmatprep.subr.mxu0 %v4004
    %4229 = vmatpush1.msra.mxu0 %v4003
    %4230 = vmatprep.subr.mxu0 %v4000
    %4231 = vmatpush1.msra.mxu0 %v3999
    %4232 = vmatprep.subr.mxu0 %v3996
    %4233 = vmatpush1.msra.mxu0 %v3995
    %4234 = vmatprep.subr.mxu0 %v3992
    %4235 = vmatpush1.msra.mxu0 %v3991
    %4236 = vmatprep.subr.mxu0 %v3988
    %4237 = vmatpush1.msra.mxu0 %v3987
    %4238 = vmatprep.subr.mxu0 %v4112
    %4239 = vmatpush2.msra.mxu0 %v4111
    %4240 = vmatprep.subr.mxu0 %v4108
    %4241 = vmatpush2.msra.mxu0 %v4107
    %4242 = vmatprep.subr.mxu0 %v4104
    %4243 = vmatpush2.msra.mxu0 %v4103
    %4244 = vmatprep.subr.mxu0 %v4100
    %4245 = vmatpush2.msra.mxu0 %v4099
    %4246 = vmatprep.subr.mxu0 %v4096
    %4247 = vmatpush2.msra.mxu0 %v4095
    %4248 = vmatprep.subr.mxu0 %v4092
    %4249 = vmatpush2.msra.mxu0 %v4091
    %4250 = vmatprep.subr.mxu0 %v4088
    %4251 = vmatpush2.msra.mxu0 %v4087
    %4252 = vmatprep.subr.mxu0 %v4084
    %4253 = vmatpush2.msra.mxu0 %v4083
    %4254 = vmatprep.subr.mxu0 %v4080
    %4255 = vmatpush2.msra.mxu0 %v4079
    %4256 = vmatprep.subr.mxu0 %v4076
    %4257 = vmatpush2.msra.mxu0 %v4075
    %4258 = vmatprep.subr.mxu0 %v4072
    %4259 = vmatpush2.msra.mxu0 %v4071
    %4260 = vmatprep.subr.mxu0 %v4068
    %4261 = vmatpush2.msra.mxu0 %v4067
    %4262 = vmatprep.subr.mxu0 %v4064
    %4263 = vmatpush2.msra.mxu0 %v4063
    %4264 = vmatprep.subr.mxu0 %v4060
    %4265 = vmatpush2.msra.mxu0 %v4059
    %4266 = vmatprep.subr.mxu0 %v4056
    %4267 = vmatpush2.msra.mxu0 %v4055
    %4268 = vmatprep.subr.mxu0 %v4052
    %4269 = vmatpush2.msra.mxu0 %v4051
    %4270 = vmatprep.mubr.f32.mxu0 %v3984
    %4271 = vmatmul.mubr.f32.gmra.mxu0 %v3983
    %v4272 = vpop.f32.mrf.mxu0
    %v4273 = vadd.f32 %v4126, %v4272
    %v4274 = vpop.f32.mrf.mxu0
    %v4275 = vadd.f32 %v4130, %v4274
    %4276 = vdwg.mxu0
    %v4277 = vxor.u32 %v4202, 2147483648
    %v4278 = vmul.f32 %v4277, 1.442695
    %v4279 = vpow.pop %v4278
    %v4280 = vadd.f32 %v4279, 1.0
    %v4281 = vrcp.pop %v4280
    %v4282 = vmul.f32 1.0, %v4281
    %v4283 = vxor.u32 %v4204, 2147483648
    %v4284 = vmul.f32 %v4283, 1.442695
    %v4285 = vpow.pop %v4284
    %v4286 = vadd.f32 %v4285, 1.0
    %v4287 = vrcp.pop %v4286
    %v4288 = vmul.f32 1.0, %v4287
    %v4289 = vtanh.pop %v4273
    %v4290 = vxor.u32 %v4275, 2147483648
    %v4291 = vmul.f32 %v4290, 1.442695
    %v4292 = vpow.pop %v4291
    %v4293 = vadd.f32 %v4292, 1.0
    %v4294 = vrcp.pop %v4293
    %v4295 = vmul.f32 1.0, %v4294
    %v4296 = vld [vmem:[#allocation3] sm:$0xff]
    %v4297 = vmul.f32 %v4288, %v4296
    %v4298 = vmul.f32 %v4282, %v4289
    %v4299 = vadd.f32 %v4297, %v4298
    %v4300 = vtanh.pop %v4299
    %v4301 = vmul.f32 %v4295, %v4300
    %4302 = vst [vmem:[#allocation3] sm:$0xff] %v4299
    %4303 = vst [vmem:[#allocation2] sm:$0xff] %v4301
    %4304 = vst [vmem:[#allocation4] sm:$0xff] %v4301
    %v4305 = vld [vmem:[%s390] sm:$0xff]
    %4306 = vst [vmem:[#allocation4 + $0x8] sm:$0xff] %v4305
    %v4307 = vld [vmem:[#allocation4] sm:$0xff]
    %v4308 = vld [vmem:[#allocation4 + $0x8] sm:$0xff]
    %v4309 = vld [vmem:[%s395] sm:$0xff]
    %v4310 = vld [vmem:[%s395 + $0x8] sm:$0xff]
    %v4311 = vld [vmem:[%s395 + $0x10] sm:$0xff]
    %v4312 = vld [vmem:[%s395 + $0x18] sm:$0xff]
    %v4313 = vld [vmem:[%s395 + $0x20] sm:$0xff]
    %v4314 = vld [vmem:[%s395 + $0x28] sm:$0xff]
    %v4315 = vld [vmem:[%s395 + $0x30] sm:$0xff]
    %v4316 = vld [vmem:[%s395 + $0x38] sm:$0xff]
    %v4317 = vld [vmem:[%s395 + $0x40] sm:$0xff]
    %v4318 = vld [vmem:[%s395 + $0x48] sm:$0xff]
    %v4319 = vld [vmem:[%s395 + $0x50] sm:$0xff]
    %v4320 = vld [vmem:[%s395 + $0x58] sm:$0xff]
    %v4321 = vld [vmem:[%s395 + $0x60] sm:$0xff]
    %v4322 = vld [vmem:[%s395 + $0x68] sm:$0xff]
    %v4323 = vld [vmem:[%s395 + $0x70] sm:$0xff]
    %v4324 = vld [vmem:[%s395 + $0x78] sm:$0xff]
    %v4325 = vld [vmem:[%s395 + $0x80] sm:$0xff]
    %v4326 = vld [vmem:[%s395 + $0x88] sm:$0xff]
    %v4327 = vld [vmem:[%s395 + $0x90] sm:$0xff]
    %v4328 = vld [vmem:[%s395 + $0x98] sm:$0xff]
    %v4329 = vld [vmem:[%s395 + $0xa0] sm:$0xff]
    %v4330 = vld [vmem:[%s395 + $0xa8] sm:$0xff]
    %v4331 = vld [vmem:[%s395 + $0xb0] sm:$0xff]
    %v4332 = vld [vmem:[%s395 + $0xb8] sm:$0xff]
    %v4333 = vld [vmem:[%s395 + $0xc0] sm:$0xff]
    %v4334 = vld [vmem:[%s395 + $0xc8] sm:$0xff]
    %v4335 = vld [vmem:[%s395 + $0xd0] sm:$0xff]
    %v4336 = vld [vmem:[%s395 + $0xd8] sm:$0xff]
    %v4337 = vld [vmem:[%s395 + $0xe0] sm:$0xff]
    %v4338 = vld [vmem:[%s395 + $0xe8] sm:$0xff]
    %v4339 = vld [vmem:[%s395 + $0xf0] sm:$0xff]
    %v4340 = vld [vmem:[%s395 + $0xf8] sm:$0xff]
    %v4341 = vld [vmem:[%s395 + $0x100] sm:$0xff]
    %v4342 = vld [vmem:[%s395 + $0x108] sm:$0xff]
    %v4343 = vld [vmem:[%s395 + $0x110] sm:$0xff]
    %v4344 = vld [vmem:[%s395 + $0x118] sm:$0xff]
    %v4345 = vld [vmem:[%s395 + $0x120] sm:$0xff]
    %v4346 = vld [vmem:[%s395 + $0x128] sm:$0xff]
    %v4347 = vld [vmem:[%s395 + $0x130] sm:$0xff]
    %v4348 = vld [vmem:[%s395 + $0x138] sm:$0xff]
    %v4349 = vld [vmem:[%s395 + $0x140] sm:$0xff]
    %v4350 = vld [vmem:[%s395 + $0x148] sm:$0xff]
    %v4351 = vld [vmem:[%s395 + $0x150] sm:$0xff]
    %v4352 = vld [vmem:[%s395 + $0x158] sm:$0xff]
    %v4353 = vld [vmem:[%s395 + $0x160] sm:$0xff]
    %v4354 = vld [vmem:[%s395 + $0x168] sm:$0xff]
    %v4355 = vld [vmem:[%s395 + $0x170] sm:$0xff]
    %v4356 = vld [vmem:[%s395 + $0x178] sm:$0xff]
    %v4357 = vld [vmem:[%s395 + $0x180] sm:$0xff]
    %v4358 = vld [vmem:[%s395 + $0x188] sm:$0xff]
    %v4359 = vld [vmem:[%s395 + $0x190] sm:$0xff]
    %v4360 = vld [vmem:[%s395 + $0x198] sm:$0xff]
    %v4361 = vld [vmem:[%s395 + $0x1a0] sm:$0xff]
    %v4362 = vld [vmem:[%s395 + $0x1a8] sm:$0xff]
    %v4363 = vld [vmem:[%s395 + $0x1b0] sm:$0xff]
    %v4364 = vld [vmem:[%s395 + $0x1b8] sm:$0xff]
    %v4365 = vld [vmem:[%s395 + $0x1c0] sm:$0xff]
    %v4366 = vld [vmem:[%s395 + $0x1c8] sm:$0xff]
    %v4367 = vld [vmem:[%s395 + $0x1d0] sm:$0xff]
    %v4368 = vld [vmem:[%s395 + $0x1d8] sm:$0xff]
    %v4369 = vld [vmem:[%s395 + $0x1e0] sm:$0xff]
    %v4370 = vld [vmem:[%s395 + $0x1e8] sm:$0xff]
    %v4371 = vld [vmem:[%s395 + $0x1f0] sm:$0xff]
    %v4372 = vld [vmem:[%s395 + $0x1f8] sm:$0xff]
    %v4373 = vld [vmem:[%s395 + $0x200] sm:$0xff]
    %v4374 = vld [vmem:[%s395 + $0x208] sm:$0xff]
    %v4375 = vld [vmem:[%s395 + $0x210] sm:$0xff]
    %v4376 = vld [vmem:[%s395 + $0x218] sm:$0xff]
    %v4377 = vld [vmem:[%s395 + $0x220] sm:$0xff]
    %v4378 = vld [vmem:[%s395 + $0x228] sm:$0xff]
    %v4379 = vld [vmem:[%s395 + $0x230] sm:$0xff]
    %v4380 = vld [vmem:[%s395 + $0x238] sm:$0xff]
    %v4381 = vld [vmem:[%s395 + $0x240] sm:$0xff]
    %v4382 = vld [vmem:[%s395 + $0x248] sm:$0xff]
    %v4383 = vld [vmem:[%s395 + $0x250] sm:$0xff]
    %v4384 = vld [vmem:[%s395 + $0x258] sm:$0xff]
    %v4385 = vld [vmem:[%s395 + $0x260] sm:$0xff]
    %v4386 = vld [vmem:[%s395 + $0x268] sm:$0xff]
    %v4387 = vld [vmem:[%s395 + $0x270] sm:$0xff]
    %v4388 = vld [vmem:[%s395 + $0x278] sm:$0xff]
    %v4389 = vld [vmem:[%s395 + $0x280] sm:$0xff]
    %v4390 = vld [vmem:[%s395 + $0x288] sm:$0xff]
    %v4391 = vld [vmem:[%s395 + $0x290] sm:$0xff]
    %v4392 = vld [vmem:[%s395 + $0x298] sm:$0xff]
    %v4393 = vld [vmem:[%s395 + $0x2a0] sm:$0xff]
    %v4394 = vld [vmem:[%s395 + $0x2a8] sm:$0xff]
    %v4395 = vld [vmem:[%s395 + $0x2b0] sm:$0xff]
    %v4396 = vld [vmem:[%s395 + $0x2b8] sm:$0xff]
    %v4397 = vld [vmem:[%s395 + $0x2c0] sm:$0xff]
    %v4398 = vld [vmem:[%s395 + $0x2c8] sm:$0xff]
    %v4399 = vld [vmem:[%s395 + $0x2d0] sm:$0xff]
    %v4400 = vld [vmem:[%s395 + $0x2d8] sm:$0xff]
    %v4401 = vld [vmem:[%s395 + $0x2e0] sm:$0xff]
    %v4402 = vld [vmem:[%s395 + $0x2e8] sm:$0xff]
    %v4403 = vld [vmem:[%s395 + $0x2f0] sm:$0xff]
    %v4404 = vld [vmem:[%s395 + $0x2f8] sm:$0xff]
    %v4405 = vld [vmem:[%s395 + $0x300] sm:$0xff]
    %v4406 = vld [vmem:[%s395 + $0x308] sm:$0xff]
    %v4407 = vld [vmem:[%s395 + $0x310] sm:$0xff]
    %v4408 = vld [vmem:[%s395 + $0x318] sm:$0xff]
    %v4409 = vld [vmem:[%s395 + $0x320] sm:$0xff]
    %v4410 = vld [vmem:[%s395 + $0x328] sm:$0xff]
    %v4411 = vld [vmem:[%s395 + $0x330] sm:$0xff]
    %v4412 = vld [vmem:[%s395 + $0x338] sm:$0xff]
    %v4413 = vld [vmem:[%s395 + $0x340] sm:$0xff]
    %v4414 = vld [vmem:[%s395 + $0x348] sm:$0xff]
    %v4415 = vld [vmem:[%s395 + $0x350] sm:$0xff]
    %v4416 = vld [vmem:[%s395 + $0x358] sm:$0xff]
    %v4417 = vld [vmem:[%s395 + $0x360] sm:$0xff]
    %v4418 = vld [vmem:[%s395 + $0x368] sm:$0xff]
    %v4419 = vld [vmem:[%s395 + $0x370] sm:$0xff]
    %v4420 = vld [vmem:[%s395 + $0x378] sm:$0xff]
    %v4421 = vld [vmem:[%s395 + $0x380] sm:$0xff]
    %v4422 = vld [vmem:[%s395 + $0x388] sm:$0xff]
    %v4423 = vld [vmem:[%s395 + $0x390] sm:$0xff]
    %v4424 = vld [vmem:[%s395 + $0x398] sm:$0xff]
    %v4425 = vld [vmem:[%s395 + $0x3a0] sm:$0xff]
    %v4426 = vld [vmem:[%s395 + $0x3a8] sm:$0xff]
    %v4427 = vld [vmem:[%s395 + $0x3b0] sm:$0xff]
    %v4428 = vld [vmem:[%s395 + $0x3b8] sm:$0xff]
    %v4429 = vld [vmem:[%s395 + $0x3c0] sm:$0xff]
    %v4430 = vld [vmem:[%s395 + $0x3c8] sm:$0xff]
    %v4431 = vld [vmem:[%s395 + $0x3d0] sm:$0xff]
    %v4432 = vld [vmem:[%s395 + $0x3d8] sm:$0xff]
    %v4433 = vld [vmem:[%s395 + $0x3e0] sm:$0xff]
    %v4434 = vld [vmem:[%s395 + $0x3e8] sm:$0xff]
    %v4435 = vld [vmem:[%s395 + $0x3f0] sm:$0xff]
    %v4436 = vld [vmem:[%s395 + $0x3f8] sm:$0xff]
    %v4437 = vld [vmem:[%s524] sm:$0xf]
    %v4439 = vlaneseq
    %v4440 = vshrl.u32 %v4439, 7
    %v4441 = vsub.s32 0, %v4440
    %v4442 = vrot.slane %v4437, %v4441
    %v4443 = vlaneseq
    %v4444 = vshrl.u32 %v4443, 7
    %v4445 = vsub.s32 1, %v4444
    %v4446 = vrot.slane %v4437, %v4445
    %v4447 = vlaneseq
    %v4448 = vshrl.u32 %v4447, 7
    %v4449 = vsub.s32 2, %v4448
    %v4450 = vrot.slane %v4437, %v4449
    %v4451 = vlaneseq
    %v4452 = vshrl.u32 %v4451, 7
    %v4453 = vsub.s32 3, %v4452
    %v4454 = vrot.slane %v4437, %v4453
    %4459 = vmatprep.subr.mxu0 %v4370
    %4460 = vmatpush1.msra.mxu0 %v4369
    %4461 = vmatprep.subr.mxu0 %v4366
    %4462 = vmatpush1.msra.mxu0 %v4365
    %4463 = vmatprep.subr.mxu0 %v4362
    %4464 = vmatpush1.msra.mxu0 %v4361
    %4465 = vmatprep.subr.mxu0 %v4358
    %4466 = vmatpush1.msra.mxu0 %v4357
    %4467 = vmatprep.subr.mxu0 %v4354
    %4468 = vmatpush1.msra.mxu0 %v4353
    %4469 = vmatprep.subr.mxu0 %v4350
    %4470 = vmatpush1.msra.mxu0 %v4349
    %4471 = vmatprep.subr.mxu0 %v4346
    %4472 = vmatpush1.msra.mxu0 %v4345
    %4473 = vmatprep.subr.mxu0 %v4342
    %4474 = vmatpush1.msra.mxu0 %v4341
    %4475 = vmatprep.subr.mxu0 %v4338
    %4476 = vmatpush1.msra.mxu0 %v4337
    %4477 = vmatprep.subr.mxu0 %v4334
    %4478 = vmatpush1.msra.mxu0 %v4333
    %4479 = vmatprep.subr.mxu0 %v4330
    %4480 = vmatpush1.msra.mxu0 %v4329
    %4481 = vmatprep.subr.mxu0 %v4326
    %4482 = vmatpush1.msra.mxu0 %v4325
    %4483 = vmatprep.subr.mxu0 %v4322
    %4484 = vmatpush1.msra.mxu0 %v4321
    %4485 = vmatprep.subr.mxu0 %v4318
    %4486 = vmatpush1.msra.mxu0 %v4317
    %4487 = vmatprep.subr.mxu0 %v4314
    %4488 = vmatpush1.msra.mxu0 %v4313
    %4489 = vmatprep.subr.mxu0 %v4310
    %4490 = vmatpush1.msra.mxu0 %v4309
    %4491 = vmatprep.subr.mxu0 %v4434
    %4492 = vmatpush2.msra.mxu0 %v4433
    %4493 = vmatprep.subr.mxu0 %v4430
    %4494 = vmatpush2.msra.mxu0 %v4429
    %4495 = vmatprep.subr.mxu0 %v4426
    %4496 = vmatpush2.msra.mxu0 %v4425
    %4497 = vmatprep.subr.mxu0 %v4422
    %4498 = vmatpush2.msra.mxu0 %v4421
    %4499 = vmatprep.subr.mxu0 %v4418
    %4500 = vmatpush2.msra.mxu0 %v4417
    %4501 = vmatprep.subr.mxu0 %v4414
    %4502 = vmatpush2.msra.mxu0 %v4413
    %4503 = vmatprep.subr.mxu0 %v4410
    %4504 = vmatpush2.msra.mxu0 %v4409
    %4505 = vmatprep.subr.mxu0 %v4406
    %4506 = vmatpush2.msra.mxu0 %v4405
    %4507 = vmatprep.subr.mxu0 %v4402
    %4508 = vmatpush2.msra.mxu0 %v4401
    %4509 = vmatprep.subr.mxu0 %v4398
    %4510 = vmatpush2.msra.mxu0 %v4397
    %4511 = vmatprep.subr.mxu0 %v4394
    %4512 = vmatpush2.msra.mxu0 %v4393
    %4513 = vmatprep.subr.mxu0 %v4390
    %4514 = vmatpush2.msra.mxu0 %v4389
    %4515 = vmatprep.subr.mxu0 %v4386
    %4516 = vmatpush2.msra.mxu0 %v4385
    %4517 = vmatprep.subr.mxu0 %v4382
    %4518 = vmatpush2.msra.mxu0 %v4381
    %4519 = vmatprep.subr.mxu0 %v4378
    %4520 = vmatpush2.msra.mxu0 %v4377
    %4521 = vmatprep.subr.mxu0 %v4374
    %4522 = vmatpush2.msra.mxu0 %v4373
    %4523 = vmatprep.mubr.f32.mxu0 %v4308
    %4524 = vmatmul.mubr.f32.gmra.mxu0 %v4307
    %v4525 = vpop.f32.mrf.mxu0
    %v4526 = vadd.f32 %v4442, %v4525
    %v4527 = vpop.f32.mrf.mxu0
    %v4528 = vadd.f32 %v4446, %v4527
    %4529 = vdwg.mxu0
    %4530 = vmatprep.subr.mxu0 %v4372
    %4531 = vmatpush1.msra.mxu0 %v4371
    %4532 = vmatprep.subr.mxu0 %v4368
    %4533 = vmatpush1.msra.mxu0 %v4367
    %4534 = vmatprep.subr.mxu0 %v4364
    %4535 = vmatpush1.msra.mxu0 %v4363
    %4536 = vmatprep.subr.mxu0 %v4360
    %4537 = vmatpush1.msra.mxu0 %v4359
    %4538 = vmatprep.subr.mxu0 %v4356
    %4539 = vmatpush1.msra.mxu0 %v4355
    %4540 = vmatprep.subr.mxu0 %v4352
    %4541 = vmatpush1.msra.mxu0 %v4351
    %4542 = vmatprep.subr.mxu0 %v4348
    %4543 = vmatpush1.msra.mxu0 %v4347
    %4544 = vmatprep.subr.mxu0 %v4344
    %4545 = vmatpush1.msra.mxu0 %v4343
    %4546 = vmatprep.subr.mxu0 %v4340
    %4547 = vmatpush1.msra.mxu0 %v4339
    %4548 = vmatprep.subr.mxu0 %v4336
    %4549 = vmatpush1.msra.mxu0 %v4335
    %4550 = vmatprep.subr.mxu0 %v4332
    %4551 = vmatpush1.msra.mxu0 %v4331
    %4552 = vmatprep.subr.mxu0 %v4328
    %4553 = vmatpush1.msra.mxu0 %v4327
    %4554 = vmatprep.subr.mxu0 %v4324
    %4555 = vmatpush1.msra.mxu0 %v4323
    %4556 = vmatprep.subr.mxu0 %v4320
    %4557 = vmatpush1.msra.mxu0 %v4319
    %4558 = vmatprep.subr.mxu0 %v4316
    %4559 = vmatpush1.msra.mxu0 %v4315
    %4560 = vmatprep.subr.mxu0 %v4312
    %4561 = vmatpush1.msra.mxu0 %v4311
    %4562 = vmatprep.subr.mxu0 %v4436
    %4563 = vmatpush2.msra.mxu0 %v4435
    %4564 = vmatprep.subr.mxu0 %v4432
    %4565 = vmatpush2.msra.mxu0 %v4431
    %4566 = vmatprep.subr.mxu0 %v4428
    %4567 = vmatpush2.msra.mxu0 %v4427
    %4568 = vmatprep.subr.mxu0 %v4424
    %4569 = vmatpush2.msra.mxu0 %v4423
    %4570 = vmatprep.subr.mxu0 %v4420
    %4571 = vmatpush2.msra.mxu0 %v4419
    %4572 = vmatprep.subr.mxu0 %v4416
    %4573 = vmatpush2.msra.mxu0 %v4415
    %4574 = vmatprep.subr.mxu0 %v4412
    %4575 = vmatpush2.msra.mxu0 %v4411
    %4576 = vmatprep.subr.mxu0 %v4408
    %4577 = vmatpush2.msra.mxu0 %v4407
    %4578 = vmatprep.subr.mxu0 %v4404
    %4579 = vmatpush2.msra.mxu0 %v4403
    %4580 = vmatprep.subr.mxu0 %v4400
    %4581 = vmatpush2.msra.mxu0 %v4399
    %4582 = vmatprep.subr.mxu0 %v4396
    %4583 = vmatpush2.msra.mxu0 %v4395
    %4584 = vmatprep.subr.mxu0 %v4392
    %4585 = vmatpush2.msra.mxu0 %v4391
    %4586 = vmatprep.subr.mxu0 %v4388
    %4587 = vmatpush2.msra.mxu0 %v4387
    %4588 = vmatprep.subr.mxu0 %v4384
    %4589 = vmatpush2.msra.mxu0 %v4383
    %4590 = vmatprep.subr.mxu0 %v4380
    %4591 = vmatpush2.msra.mxu0 %v4379
    %4592 = vmatprep.subr.mxu0 %v4376
    %4593 = vmatpush2.msra.mxu0 %v4375
    %4594 = vmatprep.mubr.f32.mxu0 %v4308
    %4595 = vmatmul.mubr.f32.gmra.mxu0 %v4307
    %v4596 = vpop.f32.mrf.mxu0
    %v4597 = vadd.f32 %v4450, %v4596
    %v4598 = vpop.f32.mrf.mxu0
    %v4599 = vadd.f32 %v4454, %v4598
    %4600 = vdwg.mxu0
    %v4601 = vxor.u32 %v4526, 2147483648
    %v4602 = vmul.f32 %v4601, 1.442695
    %v4603 = vpow.pop %v4602
    %v4604 = vadd.f32 %v4603, 1.0
    %v4605 = vrcp.pop %v4604
    %v4606 = vmul.f32 1.0, %v4605
    %v4607 = vxor.u32 %v4528, 2147483648
    %v4608 = vmul.f32 %v4607, 1.442695
    %v4609 = vpow.pop %v4608
    %v4610 = vadd.f32 %v4609, 1.0
    %v4611 = vrcp.pop %v4610
    %v4612 = vmul.f32 1.0, %v4611
    %v4613 = vtanh.pop %v4597
    %v4614 = vxor.u32 %v4599, 2147483648
    %v4615 = vmul.f32 %v4614, 1.442695
    %v4616 = vpow.pop %v4615
    %v4617 = vadd.f32 %v4616, 1.0
    %v4618 = vrcp.pop %v4617
    %v4619 = vmul.f32 1.0, %v4618
    %v4620 = vld [vmem:[%s708] sm:$0xff]
    %v4621 = vmul.f32 %v4612, %v4620
    %v4622 = vmul.f32 %v4606, %v4613
    %v4623 = vadd.f32 %v4621, %v4622
    %v4624 = vtanh.pop %v4623
    %v4625 = vmul.f32 %v4619, %v4624
    %4626 = vst [vmem:[%s708] sm:$0xff] %v4623
    %4627 = vst [vmem:[%s390] sm:$0xff] %v4625
    %s4628 = scalar_lea.vmem [#allocation11], 48
    %4629 = vst [vmem:[%s4628] sm:$0xff] %v4625
    %s4630 = scalar_lea.vmem [#allocation5], 56
    %v4631 = vld [vmem:[%s4630] sm:$0xff]
    %4632 = vst [vmem:[#allocation4] sm:$0xff] %v4631
    %v4633 = vld [vmem:[#allocation2] sm:$0xff]
    %4634 = vst [vmem:[#allocation4 + $0x8] sm:$0xff] %v4633
    %v4635 = vld [vmem:[#allocation4] sm:$0xff]
    %v4636 = vld [vmem:[#allocation4 + $0x8] sm:$0xff]
    %v4637 = vld [vmem:[#allocation8] sm:$0xff]
    %v4638 = vld [vmem:[#allocation8 + $0x8] sm:$0xff]
    %v4639 = vld [vmem:[#allocation8 + $0x10] sm:$0xff]
    %v4640 = vld [vmem:[#allocation8 + $0x18] sm:$0xff]
    %v4641 = vld [vmem:[#allocation8 + $0x20] sm:$0xff]
    %v4642 = vld [vmem:[#allocation8 + $0x28] sm:$0xff]
    %v4643 = vld [vmem:[#allocation8 + $0x30] sm:$0xff]
    %v4644 = vld [vmem:[#allocation8 + $0x38] sm:$0xff]
    %v4645 = vld [vmem:[#allocation8 + $0x40] sm:$0xff]
    %v4646 = vld [vmem:[#allocation8 + $0x48] sm:$0xff]
    %v4647 = vld [vmem:[#allocation8 + $0x50] sm:$0xff]
    %v4648 = vld [vmem:[#allocation8 + $0x58] sm:$0xff]
    %v4649 = vld [vmem:[#allocation8 + $0x60] sm:$0xff]
    %v4650 = vld [vmem:[#allocation8 + $0x68] sm:$0xff]
    %v4651 = vld [vmem:[#allocation8 + $0x70] sm:$0xff]
    %v4652 = vld [vmem:[#allocation8 + $0x78] sm:$0xff]
    %v4653 = vld [vmem:[#allocation8 + $0x80] sm:$0xff]
    %v4654 = vld [vmem:[#allocation8 + $0x88] sm:$0xff]
    %v4655 = vld [vmem:[#allocation8 + $0x90] sm:$0xff]
    %v4656 = vld [vmem:[#allocation8 + $0x98] sm:$0xff]
    %v4657 = vld [vmem:[#allocation8 + $0xa0] sm:$0xff]
    %v4658 = vld [vmem:[#allocation8 + $0xa8] sm:$0xff]
    %v4659 = vld [vmem:[#allocation8 + $0xb0] sm:$0xff]
    %v4660 = vld [vmem:[#allocation8 + $0xb8] sm:$0xff]
    %v4661 = vld [vmem:[#allocation8 + $0xc0] sm:$0xff]
    %v4662 = vld [vmem:[#allocation8 + $0xc8] sm:$0xff]
    %v4663 = vld [vmem:[#allocation8 + $0xd0] sm:$0xff]
    %v4664 = vld [vmem:[#allocation8 + $0xd8] sm:$0xff]
    %v4665 = vld [vmem:[#allocation8 + $0xe0] sm:$0xff]
    %v4666 = vld [vmem:[#allocation8 + $0xe8] sm:$0xff]
    %v4667 = vld [vmem:[#allocation8 + $0xf0] sm:$0xff]
    %v4668 = vld [vmem:[#allocation8 + $0xf8] sm:$0xff]
    %v4669 = vld [vmem:[#allocation8 + $0x100] sm:$0xff]
    %v4670 = vld [vmem:[#allocation8 + $0x108] sm:$0xff]
    %v4671 = vld [vmem:[#allocation8 + $0x110] sm:$0xff]
    %v4672 = vld [vmem:[#allocation8 + $0x118] sm:$0xff]
    %v4673 = vld [vmem:[#allocation8 + $0x120] sm:$0xff]
    %v4674 = vld [vmem:[#allocation8 + $0x128] sm:$0xff]
    %v4675 = vld [vmem:[#allocation8 + $0x130] sm:$0xff]
    %v4676 = vld [vmem:[#allocation8 + $0x138] sm:$0xff]
    %v4677 = vld [vmem:[#allocation8 + $0x140] sm:$0xff]
    %v4678 = vld [vmem:[#allocation8 + $0x148] sm:$0xff]
    %v4679 = vld [vmem:[#allocation8 + $0x150] sm:$0xff]
    %v4680 = vld [vmem:[#allocation8 + $0x158] sm:$0xff]
    %v4681 = vld [vmem:[#allocation8 + $0x160] sm:$0xff]
    %v4682 = vld [vmem:[#allocation8 + $0x168] sm:$0xff]
    %v4683 = vld [vmem:[#allocation8 + $0x170] sm:$0xff]
    %v4684 = vld [vmem:[#allocation8 + $0x178] sm:$0xff]
    %v4685 = vld [vmem:[#allocation8 + $0x180] sm:$0xff]
    %v4686 = vld [vmem:[#allocation8 + $0x188] sm:$0xff]
    %v4687 = vld [vmem:[#allocation8 + $0x190] sm:$0xff]
    %v4688 = vld [vmem:[#allocation8 + $0x198] sm:$0xff]
    %v4689 = vld [vmem:[#allocation8 + $0x1a0] sm:$0xff]
    %v4690 = vld [vmem:[#allocation8 + $0x1a8] sm:$0xff]
    %v4691 = vld [vmem:[#allocation8 + $0x1b0] sm:$0xff]
    %v4692 = vld [vmem:[#allocation8 + $0x1b8] sm:$0xff]
    %v4693 = vld [vmem:[#allocation8 + $0x1c0] sm:$0xff]
    %v4694 = vld [vmem:[#allocation8 + $0x1c8] sm:$0xff]
    %v4695 = vld [vmem:[#allocation8 + $0x1d0] sm:$0xff]
    %v4696 = vld [vmem:[#allocation8 + $0x1d8] sm:$0xff]
    %v4697 = vld [vmem:[#allocation8 + $0x1e0] sm:$0xff]
    %v4698 = vld [vmem:[#allocation8 + $0x1e8] sm:$0xff]
    %v4699 = vld [vmem:[#allocation8 + $0x1f0] sm:$0xff]
    %v4700 = vld [vmem:[#allocation8 + $0x1f8] sm:$0xff]
    %v4701 = vld [vmem:[#allocation8 + $0x200] sm:$0xff]
    %v4702 = vld [vmem:[#allocation8 + $0x208] sm:$0xff]
    %v4703 = vld [vmem:[#allocation8 + $0x210] sm:$0xff]
    %v4704 = vld [vmem:[#allocation8 + $0x218] sm:$0xff]
    %v4705 = vld [vmem:[#allocation8 + $0x220] sm:$0xff]
    %v4706 = vld [vmem:[#allocation8 + $0x228] sm:$0xff]
    %v4707 = vld [vmem:[#allocation8 + $0x230] sm:$0xff]
    %v4708 = vld [vmem:[#allocation8 + $0x238] sm:$0xff]
    %v4709 = vld [vmem:[#allocation8 + $0x240] sm:$0xff]
    %v4710 = vld [vmem:[#allocation8 + $0x248] sm:$0xff]
    %v4711 = vld [vmem:[#allocation8 + $0x250] sm:$0xff]
    %v4712 = vld [vmem:[#allocation8 + $0x258] sm:$0xff]
    %v4713 = vld [vmem:[#allocation8 + $0x260] sm:$0xff]
    %v4714 = vld [vmem:[#allocation8 + $0x268] sm:$0xff]
    %v4715 = vld [vmem:[#allocation8 + $0x270] sm:$0xff]
    %v4716 = vld [vmem:[#allocation8 + $0x278] sm:$0xff]
    %v4717 = vld [vmem:[#allocation8 + $0x280] sm:$0xff]
    %v4718 = vld [vmem:[#allocation8 + $0x288] sm:$0xff]
    %v4719 = vld [vmem:[#allocation8 + $0x290] sm:$0xff]
    %v4720 = vld [vmem:[#allocation8 + $0x298] sm:$0xff]
    %v4721 = vld [vmem:[#allocation8 + $0x2a0] sm:$0xff]
    %v4722 = vld [vmem:[#allocation8 + $0x2a8] sm:$0xff]
    %v4723 = vld [vmem:[#allocation8 + $0x2b0] sm:$0xff]
    %v4724 = vld [vmem:[#allocation8 + $0x2b8] sm:$0xff]
    %v4725 = vld [vmem:[#allocation8 + $0x2c0] sm:$0xff]
    %v4726 = vld [vmem:[#allocation8 + $0x2c8] sm:$0xff]
    %v4727 = vld [vmem:[#allocation8 + $0x2d0] sm:$0xff]
    %v4728 = vld [vmem:[#allocation8 + $0x2d8] sm:$0xff]
    %v4729 = vld [vmem:[#allocation8 + $0x2e0] sm:$0xff]
    %v4730 = vld [vmem:[#allocation8 + $0x2e8] sm:$0xff]
    %v4731 = vld [vmem:[#allocation8 + $0x2f0] sm:$0xff]
    %v4732 = vld [vmem:[#allocation8 + $0x2f8] sm:$0xff]
    %v4733 = vld [vmem:[#allocation8 + $0x300] sm:$0xff]
    %v4734 = vld [vmem:[#allocation8 + $0x308] sm:$0xff]
    %v4735 = vld [vmem:[#allocation8 + $0x310] sm:$0xff]
    %v4736 = vld [vmem:[#allocation8 + $0x318] sm:$0xff]
    %v4737 = vld [vmem:[#allocation8 + $0x320] sm:$0xff]
    %v4738 = vld [vmem:[#allocation8 + $0x328] sm:$0xff]
    %v4739 = vld [vmem:[#allocation8 + $0x330] sm:$0xff]
    %v4740 = vld [vmem:[#allocation8 + $0x338] sm:$0xff]
    %v4741 = vld [vmem:[#allocation8 + $0x340] sm:$0xff]
    %v4742 = vld [vmem:[#allocation8 + $0x348] sm:$0xff]
    %v4743 = vld [vmem:[#allocation8 + $0x350] sm:$0xff]
    %v4744 = vld [vmem:[#allocation8 + $0x358] sm:$0xff]
    %v4745 = vld [vmem:[#allocation8 + $0x360] sm:$0xff]
    %v4746 = vld [vmem:[#allocation8 + $0x368] sm:$0xff]
    %v4747 = vld [vmem:[#allocation8 + $0x370] sm:$0xff]
    %v4748 = vld [vmem:[#allocation8 + $0x378] sm:$0xff]
    %v4749 = vld [vmem:[#allocation8 + $0x380] sm:$0xff]
    %v4750 = vld [vmem:[#allocation8 + $0x388] sm:$0xff]
    %v4751 = vld [vmem:[#allocation8 + $0x390] sm:$0xff]
    %v4752 = vld [vmem:[#allocation8 + $0x398] sm:$0xff]
    %v4753 = vld [vmem:[#allocation8 + $0x3a0] sm:$0xff]
    %v4754 = vld [vmem:[#allocation8 + $0x3a8] sm:$0xff]
    %v4755 = vld [vmem:[#allocation8 + $0x3b0] sm:$0xff]
    %v4756 = vld [vmem:[#allocation8 + $0x3b8] sm:$0xff]
    %v4757 = vld [vmem:[#allocation8 + $0x3c0] sm:$0xff]
    %v4758 = vld [vmem:[#allocation8 + $0x3c8] sm:$0xff]
    %v4759 = vld [vmem:[#allocation8 + $0x3d0] sm:$0xff]
    %v4760 = vld [vmem:[#allocation8 + $0x3d8] sm:$0xff]
    %v4761 = vld [vmem:[#allocation8 + $0x3e0] sm:$0xff]
    %v4762 = vld [vmem:[#allocation8 + $0x3e8] sm:$0xff]
    %v4763 = vld [vmem:[#allocation8 + $0x3f0] sm:$0xff]
    %v4764 = vld [vmem:[#allocation8 + $0x3f8] sm:$0xff]
    %v4765 = vld [vmem:[#allocation10] sm:$0xf]
    %v4767 = vlaneseq
    %v4768 = vshrl.u32 %v4767, 7
    %v4769 = vsub.s32 0, %v4768
    %v4770 = vrot.slane %v4765, %v4769
    %v4771 = vlaneseq
    %v4772 = vshrl.u32 %v4771, 7
    %v4773 = vsub.s32 1, %v4772
    %v4774 = vrot.slane %v4765, %v4773
    %v4775 = vlaneseq
    %v4776 = vshrl.u32 %v4775, 7
    %v4777 = vsub.s32 2, %v4776
    %v4778 = vrot.slane %v4765, %v4777
    %v4779 = vlaneseq
    %v4780 = vshrl.u32 %v4779, 7
    %v4781 = vsub.s32 3, %v4780
    %v4782 = vrot.slane %v4765, %v4781
    %4787 = vmatprep.subr.mxu0 %v4698
    %4788 = vmatpush1.msra.mxu0 %v4697
    %4789 = vmatprep.subr.mxu0 %v4694
    %4790 = vmatpush1.msra.mxu0 %v4693
    %4791 = vmatprep.subr.mxu0 %v4690
    %4792 = vmatpush1.msra.mxu0 %v4689
    %4793 = vmatprep.subr.mxu0 %v4686
    %4794 = vmatpush1.msra.mxu0 %v4685
    %4795 = vmatprep.subr.mxu0 %v4682
    %4796 = vmatpush1.msra.mxu0 %v4681
    %4797 = vmatprep.subr.mxu0 %v4678
    %4798 = vmatpush1.msra.mxu0 %v4677
    %4799 = vmatprep.subr.mxu0 %v4674
    %4800 = vmatpush1.msra.mxu0 %v4673
    %4801 = vmatprep.subr.mxu0 %v4670
    %4802 = vmatpush1.msra.mxu0 %v4669
    %4803 = vmatprep.subr.mxu0 %v4666
    %4804 = vmatpush1.msra.mxu0 %v4665
    %4805 = vmatprep.subr.mxu0 %v4662
    %4806 = vmatpush1.msra.mxu0 %v4661
    %4807 = vmatprep.subr.mxu0 %v4658
    %4808 = vmatpush1.msra.mxu0 %v4657
    %4809 = vmatprep.subr.mxu0 %v4654
    %4810 = vmatpush1.msra.mxu0 %v4653
    %4811 = vmatprep.subr.mxu0 %v4650
    %4812 = vmatpush1.msra.mxu0 %v4649
    %4813 = vmatprep.subr.mxu0 %v4646
    %4814 = vmatpush1.msra.mxu0 %v4645
    %4815 = vmatprep.subr.mxu0 %v4642
    %4816 = vmatpush1.msra.mxu0 %v4641
    %4817 = vmatprep.subr.mxu0 %v4638
    %4818 = vmatpush1.msra.mxu0 %v4637
    %4819 = vmatprep.subr.mxu0 %v4762
    %4820 = vmatpush2.msra.mxu0 %v4761
    %4821 = vmatprep.subr.mxu0 %v4758
    %4822 = vmatpush2.msra.mxu0 %v4757
    %4823 = vmatprep.subr.mxu0 %v4754
    %4824 = vmatpush2.msra.mxu0 %v4753
    %4825 = vmatprep.subr.mxu0 %v4750
    %4826 = vmatpush2.msra.mxu0 %v4749
    %4827 = vmatprep.subr.mxu0 %v4746
    %4828 = vmatpush2.msra.mxu0 %v4745
    %4829 = vmatprep.subr.mxu0 %v4742
    %4830 = vmatpush2.msra.mxu0 %v4741
    %4831 = vmatprep.subr.mxu0 %v4738
    %4832 = vmatpush2.msra.mxu0 %v4737
    %4833 = vmatprep.subr.mxu0 %v4734
    %4834 = vmatpush2.msra.mxu0 %v4733
    %4835 = vmatprep.subr.mxu0 %v4730
    %4836 = vmatpush2.msra.mxu0 %v4729
    %4837 = vmatprep.subr.mxu0 %v4726
    %4838 = vmatpush2.msra.mxu0 %v4725
    %4839 = vmatprep.subr.mxu0 %v4722
    %4840 = vmatpush2.msra.mxu0 %v4721
    %4841 = vmatprep.subr.mxu0 %v4718
    %4842 = vmatpush2.msra.mxu0 %v4717
    %4843 = vmatprep.subr.mxu0 %v4714
    %4844 = vmatpush2.msra.mxu0 %v4713
    %4845 = vmatprep.subr.mxu0 %v4710
    %4846 = vmatpush2.msra.mxu0 %v4709
    %4847 = vmatprep.subr.mxu0 %v4706
    %4848 = vmatpush2.msra.mxu0 %v4705
    %4849 = vmatprep.subr.mxu0 %v4702
    %4850 = vmatpush2.msra.mxu0 %v4701
    %4851 = vmatprep.mubr.f32.mxu0 %v4636
    %4852 = vmatmul.mubr.f32.gmra.mxu0 %v4635
    %v4853 = vpop.f32.mrf.mxu0
    %v4854 = vadd.f32 %v4770, %v4853
    %v4855 = vpop.f32.mrf.mxu0
    %v4856 = vadd.f32 %v4774, %v4855
    %4857 = vdwg.mxu0
    %4858 = vmatprep.subr.mxu0 %v4700
    %4859 = vmatpush1.msra.mxu0 %v4699
    %4860 = vmatprep.subr.mxu0 %v4696
    %4861 = vmatpush1.msra.mxu0 %v4695
    %4862 = vmatprep.subr.mxu0 %v4692
    %4863 = vmatpush1.msra.mxu0 %v4691
    %4864 = vmatprep.subr.mxu0 %v4688
    %4865 = vmatpush1.msra.mxu0 %v4687
    %4866 = vmatprep.subr.mxu0 %v4684
    %4867 = vmatpush1.msra.mxu0 %v4683
    %4868 = vmatprep.subr.mxu0 %v4680
    %4869 = vmatpush1.msra.mxu0 %v4679
    %4870 = vmatprep.subr.mxu0 %v4676
    %4871 = vmatpush1.msra.mxu0 %v4675
    %4872 = vmatprep.subr.mxu0 %v4672
    %4873 = vmatpush1.msra.mxu0 %v4671
    %4874 = vmatprep.subr.mxu0 %v4668
    %4875 = vmatpush1.msra.mxu0 %v4667
    %4876 = vmatprep.subr.mxu0 %v4664
    %4877 = vmatpush1.msra.mxu0 %v4663
    %4878 = vmatprep.subr.mxu0 %v4660
    %4879 = vmatpush1.msra.mxu0 %v4659
    %4880 = vmatprep.subr.mxu0 %v4656
    %4881 = vmatpush1.msra.mxu0 %v4655
    %4882 = vmatprep.subr.mxu0 %v4652
    %4883 = vmatpush1.msra.mxu0 %v4651
    %4884 = vmatprep.subr.mxu0 %v4648
    %4885 = vmatpush1.msra.mxu0 %v4647
    %4886 = vmatprep.subr.mxu0 %v4644
    %4887 = vmatpush1.msra.mxu0 %v4643
    %4888 = vmatprep.subr.mxu0 %v4640
    %4889 = vmatpush1.msra.mxu0 %v4639
    %4890 = vmatprep.subr.mxu0 %v4764
    %4891 = vmatpush2.msra.mxu0 %v4763
    %4892 = vmatprep.subr.mxu0 %v4760
    %4893 = vmatpush2.msra.mxu0 %v4759
    %4894 = vmatprep.subr.mxu0 %v4756
    %4895 = vmatpush2.msra.mxu0 %v4755
    %4896 = vmatprep.subr.mxu0 %v4752
    %4897 = vmatpush2.msra.mxu0 %v4751
    %4898 = vmatprep.subr.mxu0 %v4748
    %4899 = vmatpush2.msra.mxu0 %v4747
    %4900 = vmatprep.subr.mxu0 %v4744
    %4901 = vmatpush2.msra.mxu0 %v4743
    %4902 = vmatprep.subr.mxu0 %v4740
    %4903 = vmatpush2.msra.mxu0 %v4739
    %4904 = vmatprep.subr.mxu0 %v4736
    %4905 = vmatpush2.msra.mxu0 %v4735
    %4906 = vmatprep.subr.mxu0 %v4732
    %4907 = vmatpush2.msra.mxu0 %v4731
    %4908 = vmatprep.subr.mxu0 %v4728
    %4909 = vmatpush2.msra.mxu0 %v4727
    %4910 = vmatprep.subr.mxu0 %v4724
    %4911 = vmatpush2.msra.mxu0 %v4723
    %4912 = vmatprep.subr.mxu0 %v4720
    %4913 = vmatpush2.msra.mxu0 %v4719
    %4914 = vmatprep.subr.mxu0 %v4716
    %4915 = vmatpush2.msra.mxu0 %v4715
    %4916 = vmatprep.subr.mxu0 %v4712
    %4917 = vmatpush2.msra.mxu0 %v4711
    %4918 = vmatprep.subr.mxu0 %v4708
    %4919 = vmatpush2.msra.mxu0 %v4707
    %4920 = vmatprep.subr.mxu0 %v4704
    %4921 = vmatpush2.msra.mxu0 %v4703
    %4922 = vmatprep.mubr.f32.mxu0 %v4636
    %4923 = vmatmul.mubr.f32.gmra.mxu0 %v4635
    %v4924 = vpop.f32.mrf.mxu0
    %v4925 = vadd.f32 %v4778, %v4924
    %v4926 = vpop.f32.mrf.mxu0
    %v4927 = vadd.f32 %v4782, %v4926
    %4928 = vdwg.mxu0
    %v4929 = vxor.u32 %v4854, 2147483648
    %v4930 = vmul.f32 %v4929, 1.442695
    %v4931 = vpow.pop %v4930
    %v4932 = vadd.f32 %v4931, 1.0
    %v4933 = vrcp.pop %v4932
    %v4934 = vmul.f32 1.0, %v4933
    %v4935 = vxor.u32 %v4856, 2147483648
    %v4936 = vmul.f32 %v4935, 1.442695
    %v4937 = vpow.pop %v4936
    %v4938 = vadd.f32 %v4937, 1.0
    %v4939 = vrcp.pop %v4938
    %v4940 = vmul.f32 1.0, %v4939
    %v4941 = vtanh.pop %v4925
    %v4942 = vxor.u32 %v4927, 2147483648
    %v4943 = vmul.f32 %v4942, 1.442695
    %v4944 = vpow.pop %v4943
    %v4945 = vadd.f32 %v4944, 1.0
    %v4946 = vrcp.pop %v4945
    %v4947 = vmul.f32 1.0, %v4946
    %v4948 = vld [vmem:[#allocation3] sm:$0xff]
    %v4949 = vmul.f32 %v4940, %v4948
    %v4950 = vmul.f32 %v4934, %v4941
    %v4951 = vadd.f32 %v4949, %v4950
    %v4952 = vtanh.pop %v4951
    %v4953 = vmul.f32 %v4947, %v4952
    %4954 = vst [vmem:[#allocation3] sm:$0xff] %v4951
    %4955 = vst [vmem:[#allocation2] sm:$0xff] %v4953
    %4956 = vst [vmem:[#allocation4] sm:$0xff] %v4953
    %v4957 = vld [vmem:[%s390] sm:$0xff]
    %4958 = vst [vmem:[#allocation4 + $0x8] sm:$0xff] %v4957
    %v4959 = vld [vmem:[#allocation4] sm:$0xff]
    %v4960 = vld [vmem:[#allocation4 + $0x8] sm:$0xff]
    %v4961 = vld [vmem:[%s395] sm:$0xff]
    %v4962 = vld [vmem:[%s395 + $0x8] sm:$0xff]
    %v4963 = vld [vmem:[%s395 + $0x10] sm:$0xff]
    %v4964 = vld [vmem:[%s395 + $0x18] sm:$0xff]
    %v4965 = vld [vmem:[%s395 + $0x20] sm:$0xff]
    %v4966 = vld [vmem:[%s395 + $0x28] sm:$0xff]
    %v4967 = vld [vmem:[%s395 + $0x30] sm:$0xff]
    %v4968 = vld [vmem:[%s395 + $0x38] sm:$0xff]
    %v4969 = vld [vmem:[%s395 + $0x40] sm:$0xff]
    %v4970 = vld [vmem:[%s395 + $0x48] sm:$0xff]
    %v4971 = vld [vmem:[%s395 + $0x50] sm:$0xff]
    %v4972 = vld [vmem:[%s395 + $0x58] sm:$0xff]
    %v4973 = vld [vmem:[%s395 + $0x60] sm:$0xff]
    %v4974 = vld [vmem:[%s395 + $0x68] sm:$0xff]
    %v4975 = vld [vmem:[%s395 + $0x70] sm:$0xff]
    %v4976 = vld [vmem:[%s395 + $0x78] sm:$0xff]
    %v4977 = vld [vmem:[%s395 + $0x80] sm:$0xff]
    %v4978 = vld [vmem:[%s395 + $0x88] sm:$0xff]
    %v4979 = vld [vmem:[%s395 + $0x90] sm:$0xff]
    %v4980 = vld [vmem:[%s395 + $0x98] sm:$0xff]
    %v4981 = vld [vmem:[%s395 + $0xa0] sm:$0xff]
    %v4982 = vld [vmem:[%s395 + $0xa8] sm:$0xff]
    %v4983 = vld [vmem:[%s395 + $0xb0] sm:$0xff]
    %v4984 = vld [vmem:[%s395 + $0xb8] sm:$0xff]
    %v4985 = vld [vmem:[%s395 + $0xc0] sm:$0xff]
    %v4986 = vld [vmem:[%s395 + $0xc8] sm:$0xff]
    %v4987 = vld [vmem:[%s395 + $0xd0] sm:$0xff]
    %v4988 = vld [vmem:[%s395 + $0xd8] sm:$0xff]
    %v4989 = vld [vmem:[%s395 + $0xe0] sm:$0xff]
    %v4990 = vld [vmem:[%s395 + $0xe8] sm:$0xff]
    %v4991 = vld [vmem:[%s395 + $0xf0] sm:$0xff]
    %v4992 = vld [vmem:[%s395 + $0xf8] sm:$0xff]
    %v4993 = vld [vmem:[%s395 + $0x100] sm:$0xff]
    %v4994 = vld [vmem:[%s395 + $0x108] sm:$0xff]
    %v4995 = vld [vmem:[%s395 + $0x110] sm:$0xff]
    %v4996 = vld [vmem:[%s395 + $0x118] sm:$0xff]
    %v4997 = vld [vmem:[%s395 + $0x120] sm:$0xff]
    %v4998 = vld [vmem:[%s395 + $0x128] sm:$0xff]
    %v4999 = vld [vmem:[%s395 + $0x130] sm:$0xff]
    %v5000 = vld [vmem:[%s395 + $0x138] sm:$0xff]
    %v5001 = vld [vmem:[%s395 + $0x140] sm:$0xff]
    %v5002 = vld [vmem:[%s395 + $0x148] sm:$0xff]
    %v5003 = vld [vmem:[%s395 + $0x150] sm:$0xff]
    %v5004 = vld [vmem:[%s395 + $0x158] sm:$0xff]
    %v5005 = vld [vmem:[%s395 + $0x160] sm:$0xff]
    %v5006 = vld [vmem:[%s395 + $0x168] sm:$0xff]
    %v5007 = vld [vmem:[%s395 + $0x170] sm:$0xff]
    %v5008 = vld [vmem:[%s395 + $0x178] sm:$0xff]
    %v5009 = vld [vmem:[%s395 + $0x180] sm:$0xff]
    %v5010 = vld [vmem:[%s395 + $0x188] sm:$0xff]
    %v5011 = vld [vmem:[%s395 + $0x190] sm:$0xff]
    %v5012 = vld [vmem:[%s395 + $0x198] sm:$0xff]
    %v5013 = vld [vmem:[%s395 + $0x1a0] sm:$0xff]
    %v5014 = vld [vmem:[%s395 + $0x1a8] sm:$0xff]
    %v5015 = vld [vmem:[%s395 + $0x1b0] sm:$0xff]
    %v5016 = vld [vmem:[%s395 + $0x1b8] sm:$0xff]
    %v5017 = vld [vmem:[%s395 + $0x1c0] sm:$0xff]
    %v5018 = vld [vmem:[%s395 + $0x1c8] sm:$0xff]
    %v5019 = vld [vmem:[%s395 + $0x1d0] sm:$0xff]
    %v5020 = vld [vmem:[%s395 + $0x1d8] sm:$0xff]
    %v5021 = vld [vmem:[%s395 + $0x1e0] sm:$0xff]
    %v5022 = vld [vmem:[%s395 + $0x1e8] sm:$0xff]
    %v5023 = vld [vmem:[%s395 + $0x1f0] sm:$0xff]
    %v5024 = vld [vmem:[%s395 + $0x1f8] sm:$0xff]
    %v5025 = vld [vmem:[%s395 + $0x200] sm:$0xff]
    %v5026 = vld [vmem:[%s395 + $0x208] sm:$0xff]
    %v5027 = vld [vmem:[%s395 + $0x210] sm:$0xff]
    %v5028 = vld [vmem:[%s395 + $0x218] sm:$0xff]
    %v5029 = vld [vmem:[%s395 + $0x220] sm:$0xff]
    %v5030 = vld [vmem:[%s395 + $0x228] sm:$0xff]
    %v5031 = vld [vmem:[%s395 + $0x230] sm:$0xff]
    %v5032 = vld [vmem:[%s395 + $0x238] sm:$0xff]
    %v5033 = vld [vmem:[%s395 + $0x240] sm:$0xff]
    %v5034 = vld [vmem:[%s395 + $0x248] sm:$0xff]
    %v5035 = vld [vmem:[%s395 + $0x250] sm:$0xff]
    %v5036 = vld [vmem:[%s395 + $0x258] sm:$0xff]
    %v5037 = vld [vmem:[%s395 + $0x260] sm:$0xff]
    %v5038 = vld [vmem:[%s395 + $0x268] sm:$0xff]
    %v5039 = vld [vmem:[%s395 + $0x270] sm:$0xff]
    %v5040 = vld [vmem:[%s395 + $0x278] sm:$0xff]
    %v5041 = vld [vmem:[%s395 + $0x280] sm:$0xff]
    %v5042 = vld [vmem:[%s395 + $0x288] sm:$0xff]
    %v5043 = vld [vmem:[%s395 + $0x290] sm:$0xff]
    %v5044 = vld [vmem:[%s395 + $0x298] sm:$0xff]
    %v5045 = vld [vmem:[%s395 + $0x2a0] sm:$0xff]
    %v5046 = vld [vmem:[%s395 + $0x2a8] sm:$0xff]
    %v5047 = vld [vmem:[%s395 + $0x2b0] sm:$0xff]
    %v5048 = vld [vmem:[%s395 + $0x2b8] sm:$0xff]
    %v5049 = vld [vmem:[%s395 + $0x2c0] sm:$0xff]
    %v5050 = vld [vmem:[%s395 + $0x2c8] sm:$0xff]
    %v5051 = vld [vmem:[%s395 + $0x2d0] sm:$0xff]
    %v5052 = vld [vmem:[%s395 + $0x2d8] sm:$0xff]
    %v5053 = vld [vmem:[%s395 + $0x2e0] sm:$0xff]
    %v5054 = vld [vmem:[%s395 + $0x2e8] sm:$0xff]
    %v5055 = vld [vmem:[%s395 + $0x2f0] sm:$0xff]
    %v5056 = vld [vmem:[%s395 + $0x2f8] sm:$0xff]
    %v5057 = vld [vmem:[%s395 + $0x300] sm:$0xff]
    %v5058 = vld [vmem:[%s395 + $0x308] sm:$0xff]
    %v5059 = vld [vmem:[%s395 + $0x310] sm:$0xff]
    %v5060 = vld [vmem:[%s395 + $0x318] sm:$0xff]
    %v5061 = vld [vmem:[%s395 + $0x320] sm:$0xff]
    %v5062 = vld [vmem:[%s395 + $0x328] sm:$0xff]
    %v5063 = vld [vmem:[%s395 + $0x330] sm:$0xff]
    %v5064 = vld [vmem:[%s395 + $0x338] sm:$0xff]
    %v5065 = vld [vmem:[%s395 + $0x340] sm:$0xff]
    %v5066 = vld [vmem:[%s395 + $0x348] sm:$0xff]
    %v5067 = vld [vmem:[%s395 + $0x350] sm:$0xff]
    %v5068 = vld [vmem:[%s395 + $0x358] sm:$0xff]
    %v5069 = vld [vmem:[%s395 + $0x360] sm:$0xff]
    %v5070 = vld [vmem:[%s395 + $0x368] sm:$0xff]
    %v5071 = vld [vmem:[%s395 + $0x370] sm:$0xff]
    %v5072 = vld [vmem:[%s395 + $0x378] sm:$0xff]
    %v5073 = vld [vmem:[%s395 + $0x380] sm:$0xff]
    %v5074 = vld [vmem:[%s395 + $0x388] sm:$0xff]
    %v5075 = vld [vmem:[%s395 + $0x390] sm:$0xff]
    %v5076 = vld [vmem:[%s395 + $0x398] sm:$0xff]
    %v5077 = vld [vmem:[%s395 + $0x3a0] sm:$0xff]
    %v5078 = vld [vmem:[%s395 + $0x3a8] sm:$0xff]
    %v5079 = vld [vmem:[%s395 + $0x3b0] sm:$0xff]
    %v5080 = vld [vmem:[%s395 + $0x3b8] sm:$0xff]
    %v5081 = vld [vmem:[%s395 + $0x3c0] sm:$0xff]
    %v5082 = vld [vmem:[%s395 + $0x3c8] sm:$0xff]
    %v5083 = vld [vmem:[%s395 + $0x3d0] sm:$0xff]
    %v5084 = vld [vmem:[%s395 + $0x3d8] sm:$0xff]
    %v5085 = vld [vmem:[%s395 + $0x3e0] sm:$0xff]
    %v5086 = vld [vmem:[%s395 + $0x3e8] sm:$0xff]
    %v5087 = vld [vmem:[%s395 + $0x3f0] sm:$0xff]
    %v5088 = vld [vmem:[%s395 + $0x3f8] sm:$0xff]
    %v5089 = vld [vmem:[%s524] sm:$0xf]
    %v5091 = vlaneseq
    %v5092 = vshrl.u32 %v5091, 7
    %v5093 = vsub.s32 0, %v5092
    %v5094 = vrot.slane %v5089, %v5093
    %v5095 = vlaneseq
    %v5096 = vshrl.u32 %v5095, 7
    %v5097 = vsub.s32 1, %v5096
    %v5098 = vrot.slane %v5089, %v5097
    %v5099 = vlaneseq
    %v5100 = vshrl.u32 %v5099, 7
    %v5101 = vsub.s32 2, %v5100
    %v5102 = vrot.slane %v5089, %v5101
    %v5103 = vlaneseq
    %v5104 = vshrl.u32 %v5103, 7
    %v5105 = vsub.s32 3, %v5104
    %v5106 = vrot.slane %v5089, %v5105
    %5111 = vmatprep.subr.mxu0 %v5022
    %5112 = vmatpush1.msra.mxu0 %v5021
    %5113 = vmatprep.subr.mxu0 %v5018
    %5114 = vmatpush1.msra.mxu0 %v5017
    %5115 = vmatprep.subr.mxu0 %v5014
    %5116 = vmatpush1.msra.mxu0 %v5013
    %5117 = vmatprep.subr.mxu0 %v5010
    %5118 = vmatpush1.msra.mxu0 %v5009
    %5119 = vmatprep.subr.mxu0 %v5006
    %5120 = vmatpush1.msra.mxu0 %v5005
    %5121 = vmatprep.subr.mxu0 %v5002
    %5122 = vmatpush1.msra.mxu0 %v5001
    %5123 = vmatprep.subr.mxu0 %v4998
    %5124 = vmatpush1.msra.mxu0 %v4997
    %5125 = vmatprep.subr.mxu0 %v4994
    %5126 = vmatpush1.msra.mxu0 %v4993
    %5127 = vmatprep.subr.mxu0 %v4990
    %5128 = vmatpush1.msra.mxu0 %v4989
    %5129 = vmatprep.subr.mxu0 %v4986
    %5130 = vmatpush1.msra.mxu0 %v4985
    %5131 = vmatprep.subr.mxu0 %v4982
    %5132 = vmatpush1.msra.mxu0 %v4981
    %5133 = vmatprep.subr.mxu0 %v4978
    %5134 = vmatpush1.msra.mxu0 %v4977
    %5135 = vmatprep.subr.mxu0 %v4974
    %5136 = vmatpush1.msra.mxu0 %v4973
    %5137 = vmatprep.subr.mxu0 %v4970
    %5138 = vmatpush1.msra.mxu0 %v4969
    %5139 = vmatprep.subr.mxu0 %v4966
    %5140 = vmatpush1.msra.mxu0 %v4965
    %5141 = vmatprep.subr.mxu0 %v4962
    %5142 = vmatpush1.msra.mxu0 %v4961
    %5143 = vmatprep.subr.mxu0 %v5086
    %5144 = vmatpush2.msra.mxu0 %v5085
    %5145 = vmatprep.subr.mxu0 %v5082
    %5146 = vmatpush2.msra.mxu0 %v5081
    %5147 = vmatprep.subr.mxu0 %v5078
    %5148 = vmatpush2.msra.mxu0 %v5077
    %5149 = vmatprep.subr.mxu0 %v5074
    %5150 = vmatpush2.msra.mxu0 %v5073
    %5151 = vmatprep.subr.mxu0 %v5070
    %5152 = vmatpush2.msra.mxu0 %v5069
    %5153 = vmatprep.subr.mxu0 %v5066
    %5154 = vmatpush2.msra.mxu0 %v5065
    %5155 = vmatprep.subr.mxu0 %v5062
    %5156 = vmatpush2.msra.mxu0 %v5061
    %5157 = vmatprep.subr.mxu0 %v5058
    %5158 = vmatpush2.msra.mxu0 %v5057
    %5159 = vmatprep.subr.mxu0 %v5054
    %5160 = vmatpush2.msra.mxu0 %v5053
    %5161 = vmatprep.subr.mxu0 %v5050
    %5162 = vmatpush2.msra.mxu0 %v5049
    %5163 = vmatprep.subr.mxu0 %v5046
    %5164 = vmatpush2.msra.mxu0 %v5045
    %5165 = vmatprep.subr.mxu0 %v5042
    %5166 = vmatpush2.msra.mxu0 %v5041
    %5167 = vmatprep.subr.mxu0 %v5038
    %5168 = vmatpush2.msra.mxu0 %v5037
    %5169 = vmatprep.subr.mxu0 %v5034
    %5170 = vmatpush2.msra.mxu0 %v5033
    %5171 = vmatprep.subr.mxu0 %v5030
    %5172 = vmatpush2.msra.mxu0 %v5029
    %5173 = vmatprep.subr.mxu0 %v5026
    %5174 = vmatpush2.msra.mxu0 %v5025
    %5175 = vmatprep.mubr.f32.mxu0 %v4960
    %5176 = vmatmul.mubr.f32.gmra.mxu0 %v4959
    %v5177 = vpop.f32.mrf.mxu0
    %v5178 = vadd.f32 %v5094, %v5177
    %v5179 = vpop.f32.mrf.mxu0
    %v5180 = vadd.f32 %v5098, %v5179
    %5181 = vdwg.mxu0
    %5182 = vmatprep.subr.mxu0 %v5024
    %5183 = vmatpush1.msra.mxu0 %v5023
    %5184 = vmatprep.subr.mxu0 %v5020
    %5185 = vmatpush1.msra.mxu0 %v5019
    %5186 = vmatprep.subr.mxu0 %v5016
    %5187 = vmatpush1.msra.mxu0 %v5015
    %5188 = vmatprep.subr.mxu0 %v5012
    %5189 = vmatpush1.msra.mxu0 %v5011
    %5190 = vmatprep.subr.mxu0 %v5008
    %5191 = vmatpush1.msra.mxu0 %v5007
    %5192 = vmatprep.subr.mxu0 %v5004
    %5193 = vmatpush1.msra.mxu0 %v5003
    %5194 = vmatprep.subr.mxu0 %v5000
    %5195 = vmatpush1.msra.mxu0 %v4999
    %5196 = vmatprep.subr.mxu0 %v4996
    %5197 = vmatpush1.msra.mxu0 %v4995
    %5198 = vmatprep.subr.mxu0 %v4992
    %5199 = vmatpush1.msra.mxu0 %v4991
    %5200 = vmatprep.subr.mxu0 %v4988
    %5201 = vmatpush1.msra.mxu0 %v4987
    %5202 = vmatprep.subr.mxu0 %v4984
    %5203 = vmatpush1.msra.mxu0 %v4983
    %5204 = vmatprep.subr.mxu0 %v4980
    %5205 = vmatpush1.msra.mxu0 %v4979
    %5206 = vmatprep.subr.mxu0 %v4976
    %5207 = vmatpush1.msra.mxu0 %v4975
    %5208 = vmatprep.subr.mxu0 %v4972
    %5209 = vmatpush1.msra.mxu0 %v4971
    %5210 = vmatprep.subr.mxu0 %v4968
    %5211 = vmatpush1.msra.mxu0 %v4967
    %5212 = vmatprep.subr.mxu0 %v4964
    %5213 = vmatpush1.msra.mxu0 %v4963
    %5214 = vmatprep.subr.mxu0 %v5088
    %5215 = vmatpush2.msra.mxu0 %v5087
    %5216 = vmatprep.subr.mxu0 %v5084
    %5217 = vmatpush2.msra.mxu0 %v5083
    %5218 = vmatprep.subr.mxu0 %v5080
    %5219 = vmatpush2.msra.mxu0 %v5079
    %5220 = vmatprep.subr.mxu0 %v5076
    %5221 = vmatpush2.msra.mxu0 %v5075
    %5222 = vmatprep.subr.mxu0 %v5072
    %5223 = vmatpush2.msra.mxu0 %v5071
    %5224 = vmatprep.subr.mxu0 %v5068
    %5225 = vmatpush2.msra.mxu0 %v5067
    %5226 = vmatprep.subr.mxu0 %v5064
    %5227 = vmatpush2.msra.mxu0 %v5063
    %5228 = vmatprep.subr.mxu0 %v5060
    %5229 = vmatpush2.msra.mxu0 %v5059
    %5230 = vmatprep.subr.mxu0 %v5056
    %5231 = vmatpush2.msra.mxu0 %v5055
    %5232 = vmatprep.subr.mxu0 %v5052
    %5233 = vmatpush2.msra.mxu0 %v5051
    %5234 = vmatprep.subr.mxu0 %v5048
    %5235 = vmatpush2.msra.mxu0 %v5047
    %5236 = vmatprep.subr.mxu0 %v5044
    %5237 = vmatpush2.msra.mxu0 %v5043
    %5238 = vmatprep.subr.mxu0 %v5040
    %5239 = vmatpush2.msra.mxu0 %v5039
    %5240 = vmatprep.subr.mxu0 %v5036
    %5241 = vmatpush2.msra.mxu0 %v5035
    %5242 = vmatprep.subr.mxu0 %v5032
    %5243 = vmatpush2.msra.mxu0 %v5031
    %5244 = vmatprep.subr.mxu0 %v5028
    %5245 = vmatpush2.msra.mxu0 %v5027
    %5246 = vmatprep.mubr.f32.mxu0 %v4960
    %5247 = vmatmul.mubr.f32.gmra.mxu0 %v4959
    %v5248 = vpop.f32.mrf.mxu0
    %v5249 = vadd.f32 %v5102, %v5248
    %v5250 = vpop.f32.mrf.mxu0
    %v5251 = vadd.f32 %v5106, %v5250
    %5252 = vdwg.mxu0
    %v5253 = vxor.u32 %v5178, 2147483648
    %v5254 = vmul.f32 %v5253, 1.442695
    %v5255 = vpow.pop %v5254
    %v5256 = vadd.f32 %v5255, 1.0
    %v5257 = vrcp.pop %v5256
    %v5258 = vmul.f32 1.0, %v5257
    %v5259 = vxor.u32 %v5180, 2147483648
    %v5260 = vmul.f32 %v5259, 1.442695
    %v5261 = vpow.pop %v5260
    %v5262 = vadd.f32 %v5261, 1.0
    %v5263 = vrcp.pop %v5262
    %v5264 = vmul.f32 1.0, %v5263
    %v5265 = vtanh.pop %v5249
    %v5266 = vxor.u32 %v5251, 2147483648
    %v5267 = vmul.f32 %v5266, 1.442695
    %v5268 = vpow.pop %v5267
    %v5269 = vadd.f32 %v5268, 1.0
    %v5270 = vrcp.pop %v5269
    %v5271 = vmul.f32 1.0, %v5270
    %v5272 = vld [vmem:[%s708] sm:$0xff]
    %v5273 = vmul.f32 %v5264, %v5272
    %v5274 = vmul.f32 %v5258, %v5265
    %v5275 = vadd.f32 %v5273, %v5274
    %v5276 = vtanh.pop %v5275
    %v5277 = vmul.f32 %v5271, %v5276
    %5278 = vst [vmem:[%s708] sm:$0xff] %v5275
    %5279 = vst [vmem:[%s390] sm:$0xff] %v5277
    %s5280 = scalar_lea.vmem [#allocation11], 56
    %5281 = vst [vmem:[%s5280] sm:$0xff] %v5277
    %s5282 = scalar_lea.vmem [#allocation5], 64
    %v5283 = vld [vmem:[%s5282] sm:$0xff]
    %5284 = vst [vmem:[#allocation4] sm:$0xff] %v5283
    %v5285 = vld [vmem:[#allocation2] sm:$0xff]
    %5286 = vst [vmem:[#allocation4 + $0x8] sm:$0xff] %v5285
    %v5287 = vld [vmem:[#allocation4] sm:$0xff]
    %v5288 = vld [vmem:[#allocation4 + $0x8] sm:$0xff]
    %v5289 = vld [vmem:[#allocation8] sm:$0xff]
    %v5290 = vld [vmem:[#allocation8 + $0x8] sm:$0xff]
    %v5291 = vld [vmem:[#allocation8 + $0x10] sm:$0xff]
    %v5292 = vld [vmem:[#allocation8 + $0x18] sm:$0xff]
    %v5293 = vld [vmem:[#allocation8 + $0x20] sm:$0xff]
    %v5294 = vld [vmem:[#allocation8 + $0x28] sm:$0xff]
    %v5295 = vld [vmem:[#allocation8 + $0x30] sm:$0xff]
    %v5296 = vld [vmem:[#allocation8 + $0x38] sm:$0xff]
    %v5297 = vld [vmem:[#allocation8 + $0x40] sm:$0xff]
    %v5298 = vld [vmem:[#allocation8 + $0x48] sm:$0xff]
    %v5299 = vld [vmem:[#allocation8 + $0x50] sm:$0xff]
    %v5300 = vld [vmem:[#allocation8 + $0x58] sm:$0xff]
    %v5301 = vld [vmem:[#allocation8 + $0x60] sm:$0xff]
    %v5302 = vld [vmem:[#allocation8 + $0x68] sm:$0xff]
    %v5303 = vld [vmem:[#allocation8 + $0x70] sm:$0xff]
    %v5304 = vld [vmem:[#allocation8 + $0x78] sm:$0xff]
    %v5305 = vld [vmem:[#allocation8 + $0x80] sm:$0xff]
    %v5306 = vld [vmem:[#allocation8 + $0x88] sm:$0xff]
    %v5307 = vld [vmem:[#allocation8 + $0x90] sm:$0xff]
    %v5308 = vld [vmem:[#allocation8 + $0x98] sm:$0xff]
    %v5309 = vld [vmem:[#allocation8 + $0xa0] sm:$0xff]
    %v5310 = vld [vmem:[#allocation8 + $0xa8] sm:$0xff]
    %v5311 = vld [vmem:[#allocation8 + $0xb0] sm:$0xff]
    %v5312 = vld [vmem:[#allocation8 + $0xb8] sm:$0xff]
    %v5313 = vld [vmem:[#allocation8 + $0xc0] sm:$0xff]
    %v5314 = vld [vmem:[#allocation8 + $0xc8] sm:$0xff]
    %v5315 = vld [vmem:[#allocation8 + $0xd0] sm:$0xff]
    %v5316 = vld [vmem:[#allocation8 + $0xd8] sm:$0xff]
    %v5317 = vld [vmem:[#allocation8 + $0xe0] sm:$0xff]
    %v5318 = vld [vmem:[#allocation8 + $0xe8] sm:$0xff]
    %v5319 = vld [vmem:[#allocation8 + $0xf0] sm:$0xff]
    %v5320 = vld [vmem:[#allocation8 + $0xf8] sm:$0xff]
    %v5321 = vld [vmem:[#allocation8 + $0x100] sm:$0xff]
    %v5322 = vld [vmem:[#allocation8 + $0x108] sm:$0xff]
    %v5323 = vld [vmem:[#allocation8 + $0x110] sm:$0xff]
    %v5324 = vld [vmem:[#allocation8 + $0x118] sm:$0xff]
    %v5325 = vld [vmem:[#allocation8 + $0x120] sm:$0xff]
    %v5326 = vld [vmem:[#allocation8 + $0x128] sm:$0xff]
    %v5327 = vld [vmem:[#allocation8 + $0x130] sm:$0xff]
    %v5328 = vld [vmem:[#allocation8 + $0x138] sm:$0xff]
    %v5329 = vld [vmem:[#allocation8 + $0x140] sm:$0xff]
    %v5330 = vld [vmem:[#allocation8 + $0x148] sm:$0xff]
    %v5331 = vld [vmem:[#allocation8 + $0x150] sm:$0xff]
    %v5332 = vld [vmem:[#allocation8 + $0x158] sm:$0xff]
    %v5333 = vld [vmem:[#allocation8 + $0x160] sm:$0xff]
    %v5334 = vld [vmem:[#allocation8 + $0x168] sm:$0xff]
    %v5335 = vld [vmem:[#allocation8 + $0x170] sm:$0xff]
    %v5336 = vld [vmem:[#allocation8 + $0x178] sm:$0xff]
    %v5337 = vld [vmem:[#allocation8 + $0x180] sm:$0xff]
    %v5338 = vld [vmem:[#allocation8 + $0x188] sm:$0xff]
    %v5339 = vld [vmem:[#allocation8 + $0x190] sm:$0xff]
    %v5340 = vld [vmem:[#allocation8 + $0x198] sm:$0xff]
    %v5341 = vld [vmem:[#allocation8 + $0x1a0] sm:$0xff]
    %v5342 = vld [vmem:[#allocation8 + $0x1a8] sm:$0xff]
    %v5343 = vld [vmem:[#allocation8 + $0x1b0] sm:$0xff]
    %v5344 = vld [vmem:[#allocation8 + $0x1b8] sm:$0xff]
    %v5345 = vld [vmem:[#allocation8 + $0x1c0] sm:$0xff]
    %v5346 = vld [vmem:[#allocation8 + $0x1c8] sm:$0xff]
    %v5347 = vld [vmem:[#allocation8 + $0x1d0] sm:$0xff]
    %v5348 = vld [vmem:[#allocation8 + $0x1d8] sm:$0xff]
    %v5349 = vld [vmem:[#allocation8 + $0x1e0] sm:$0xff]
    %v5350 = vld [vmem:[#allocation8 + $0x1e8] sm:$0xff]
    %v5351 = vld [vmem:[#allocation8 + $0x1f0] sm:$0xff]
    %v5352 = vld [vmem:[#allocation8 + $0x1f8] sm:$0xff]
    %v5353 = vld [vmem:[#allocation8 + $0x200] sm:$0xff]
    %v5354 = vld [vmem:[#allocation8 + $0x208] sm:$0xff]
    %v5355 = vld [vmem:[#allocation8 + $0x210] sm:$0xff]
    %v5356 = vld [vmem:[#allocation8 + $0x218] sm:$0xff]
    %v5357 = vld [vmem:[#allocation8 + $0x220] sm:$0xff]
    %v5358 = vld [vmem:[#allocation8 + $0x228] sm:$0xff]
    %v5359 = vld [vmem:[#allocation8 + $0x230] sm:$0xff]
    %v5360 = vld [vmem:[#allocation8 + $0x238] sm:$0xff]
    %v5361 = vld [vmem:[#allocation8 + $0x240] sm:$0xff]
    %v5362 = vld [vmem:[#allocation8 + $0x248] sm:$0xff]
    %v5363 = vld [vmem:[#allocation8 + $0x250] sm:$0xff]
    %v5364 = vld [vmem:[#allocation8 + $0x258] sm:$0xff]
    %v5365 = vld [vmem:[#allocation8 + $0x260] sm:$0xff]
    %v5366 = vld [vmem:[#allocation8 + $0x268] sm:$0xff]
    %v5367 = vld [vmem:[#allocation8 + $0x270] sm:$0xff]
    %v5368 = vld [vmem:[#allocation8 + $0x278] sm:$0xff]
    %v5369 = vld [vmem:[#allocation8 + $0x280] sm:$0xff]
    %v5370 = vld [vmem:[#allocation8 + $0x288] sm:$0xff]
    %v5371 = vld [vmem:[#allocation8 + $0x290] sm:$0xff]
    %v5372 = vld [vmem:[#allocation8 + $0x298] sm:$0xff]
    %v5373 = vld [vmem:[#allocation8 + $0x2a0] sm:$0xff]
    %v5374 = vld [vmem:[#allocation8 + $0x2a8] sm:$0xff]
    %v5375 = vld [vmem:[#allocation8 + $0x2b0] sm:$0xff]
    %v5376 = vld [vmem:[#allocation8 + $0x2b8] sm:$0xff]
    %v5377 = vld [vmem:[#allocation8 + $0x2c0] sm:$0xff]
    %v5378 = vld [vmem:[#allocation8 + $0x2c8] sm:$0xff]
    %v5379 = vld [vmem:[#allocation8 + $0x2d0] sm:$0xff]
    %v5380 = vld [vmem:[#allocation8 + $0x2d8] sm:$0xff]
    %v5381 = vld [vmem:[#allocation8 + $0x2e0] sm:$0xff]
    %v5382 = vld [vmem:[#allocation8 + $0x2e8] sm:$0xff]
    %v5383 = vld [vmem:[#allocation8 + $0x2f0] sm:$0xff]
    %v5384 = vld [vmem:[#allocation8 + $0x2f8] sm:$0xff]
    %v5385 = vld [vmem:[#allocation8 + $0x300] sm:$0xff]
    %v5386 = vld [vmem:[#allocation8 + $0x308] sm:$0xff]
    %v5387 = vld [vmem:[#allocation8 + $0x310] sm:$0xff]
    %v5388 = vld [vmem:[#allocation8 + $0x318] sm:$0xff]
    %v5389 = vld [vmem:[#allocation8 + $0x320] sm:$0xff]
    %v5390 = vld [vmem:[#allocation8 + $0x328] sm:$0xff]
    %v5391 = vld [vmem:[#allocation8 + $0x330] sm:$0xff]
    %v5392 = vld [vmem:[#allocation8 + $0x338] sm:$0xff]
    %v5393 = vld [vmem:[#allocation8 + $0x340] sm:$0xff]
    %v5394 = vld [vmem:[#allocation8 + $0x348] sm:$0xff]
    %v5395 = vld [vmem:[#allocation8 + $0x350] sm:$0xff]
    %v5396 = vld [vmem:[#allocation8 + $0x358] sm:$0xff]
    %v5397 = vld [vmem:[#allocation8 + $0x360] sm:$0xff]
    %v5398 = vld [vmem:[#allocation8 + $0x368] sm:$0xff]
    %v5399 = vld [vmem:[#allocation8 + $0x370] sm:$0xff]
    %v5400 = vld [vmem:[#allocation8 + $0x378] sm:$0xff]
    %v5401 = vld [vmem:[#allocation8 + $0x380] sm:$0xff]
    %v5402 = vld [vmem:[#allocation8 + $0x388] sm:$0xff]
    %v5403 = vld [vmem:[#allocation8 + $0x390] sm:$0xff]
    %v5404 = vld [vmem:[#allocation8 + $0x398] sm:$0xff]
    %v5405 = vld [vmem:[#allocation8 + $0x3a0] sm:$0xff]
    %v5406 = vld [vmem:[#allocation8 + $0x3a8] sm:$0xff]
    %v5407 = vld [vmem:[#allocation8 + $0x3b0] sm:$0xff]
    %v5408 = vld [vmem:[#allocation8 + $0x3b8] sm:$0xff]
    %v5409 = vld [vmem:[#allocation8 + $0x3c0] sm:$0xff]
    %v5410 = vld [vmem:[#allocation8 + $0x3c8] sm:$0xff]
    %v5411 = vld [vmem:[#allocation8 + $0x3d0] sm:$0xff]
    %v5412 = vld [vmem:[#allocation8 + $0x3d8] sm:$0xff]
    %v5413 = vld [vmem:[#allocation8 + $0x3e0] sm:$0xff]
    %v5414 = vld [vmem:[#allocation8 + $0x3e8] sm:$0xff]
    %v5415 = vld [vmem:[#allocation8 + $0x3f0] sm:$0xff]
    %v5416 = vld [vmem:[#allocation8 + $0x3f8] sm:$0xff]
    %v5417 = vld [vmem:[#allocation10] sm:$0xf]
    %v5419 = vlaneseq
    %v5420 = vshrl.u32 %v5419, 7
    %v5421 = vsub.s32 0, %v5420
    %v5422 = vrot.slane %v5417, %v5421
    %v5423 = vlaneseq
    %v5424 = vshrl.u32 %v5423, 7
    %v5425 = vsub.s32 1, %v5424
    %v5426 = vrot.slane %v5417, %v5425
    %v5427 = vlaneseq
    %v5428 = vshrl.u32 %v5427, 7
    %v5429 = vsub.s32 2, %v5428
    %v5430 = vrot.slane %v5417, %v5429
    %v5431 = vlaneseq
    %v5432 = vshrl.u32 %v5431, 7
    %v5433 = vsub.s32 3, %v5432
    %v5434 = vrot.slane %v5417, %v5433
    %5439 = vmatprep.subr.mxu0 %v5350
    %5440 = vmatpush1.msra.mxu0 %v5349
    %5441 = vmatprep.subr.mxu0 %v5346
    %5442 = vmatpush1.msra.mxu0 %v5345
    %5443 = vmatprep.subr.mxu0 %v5342
    %5444 = vmatpush1.msra.mxu0 %v5341
    %5445 = vmatprep.subr.mxu0 %v5338
    %5446 = vmatpush1.msra.mxu0 %v5337
    %5447 = vmatprep.subr.mxu0 %v5334
    %5448 = vmatpush1.msra.mxu0 %v5333
    %5449 = vmatprep.subr.mxu0 %v5330
    %5450 = vmatpush1.msra.mxu0 %v5329
    %5451 = vmatprep.subr.mxu0 %v5326
    %5452 = vmatpush1.msra.mxu0 %v5325
    %5453 = vmatprep.subr.mxu0 %v5322
    %5454 = vmatpush1.msra.mxu0 %v5321
    %5455 = vmatprep.subr.mxu0 %v5318
    %5456 = vmatpush1.msra.mxu0 %v5317
    %5457 = vmatprep.subr.mxu0 %v5314
    %5458 = vmatpush1.msra.mxu0 %v5313
    %5459 = vmatprep.subr.mxu0 %v5310
    %5460 = vmatpush1.msra.mxu0 %v5309
    %5461 = vmatprep.subr.mxu0 %v5306
    %5462 = vmatpush1.msra.mxu0 %v5305
    %5463 = vmatprep.subr.mxu0 %v5302
    %5464 = vmatpush1.msra.mxu0 %v5301
    %5465 = vmatprep.subr.mxu0 %v5298
    %5466 = vmatpush1.msra.mxu0 %v5297
    %5467 = vmatprep.subr.mxu0 %v5294
    %5468 = vmatpush1.msra.mxu0 %v5293
    %5469 = vmatprep.subr.mxu0 %v5290
    %5470 = vmatpush1.msra.mxu0 %v5289
    %5471 = vmatprep.subr.mxu0 %v5414
    %5472 = vmatpush2.msra.mxu0 %v5413
    %5473 = vmatprep.subr.mxu0 %v5410
    %5474 = vmatpush2.msra.mxu0 %v5409
    %5475 = vmatprep.subr.mxu0 %v5406
    %5476 = vmatpush2.msra.mxu0 %v5405
    %5477 = vmatprep.subr.mxu0 %v5402
    %5478 = vmatpush2.msra.mxu0 %v5401
    %5479 = vmatprep.subr.mxu0 %v5398
    %5480 = vmatpush2.msra.mxu0 %v5397
    %5481 = vmatprep.subr.mxu0 %v5394
    %5482 = vmatpush2.msra.mxu0 %v5393
    %5483 = vmatprep.subr.mxu0 %v5390
    %5484 = vmatpush2.msra.mxu0 %v5389
    %5485 = vmatprep.subr.mxu0 %v5386
    %5486 = vmatpush2.msra.mxu0 %v5385
    %5487 = vmatprep.subr.mxu0 %v5382
    %5488 = vmatpush2.msra.mxu0 %v5381
    %5489 = vmatprep.subr.mxu0 %v5378
    %5490 = vmatpush2.msra.mxu0 %v5377
    %5491 = vmatprep.subr.mxu0 %v5374
    %5492 = vmatpush2.msra.mxu0 %v5373
    %5493 = vmatprep.subr.mxu0 %v5370
    %5494 = vmatpush2.msra.mxu0 %v5369
    %5495 = vmatprep.subr.mxu0 %v5366
    %5496 = vmatpush2.msra.mxu0 %v5365
    %5497 = vmatprep.subr.mxu0 %v5362
    %5498 = vmatpush2.msra.mxu0 %v5361
    %5499 = vmatprep.subr.mxu0 %v5358
    %5500 = vmatpush2.msra.mxu0 %v5357
    %5501 = vmatprep.subr.mxu0 %v5354
    %5502 = vmatpush2.msra.mxu0 %v5353
    %5503 = vmatprep.mubr.f32.mxu0 %v5288
    %5504 = vmatmul.mubr.f32.gmra.mxu0 %v5287
    %v5505 = vpop.f32.mrf.mxu0
    %v5506 = vadd.f32 %v5422, %v5505
    %v5507 = vpop.f32.mrf.mxu0
    %v5508 = vadd.f32 %v5426, %v5507
    %5509 = vdwg.mxu0
    %5510 = vmatprep.subr.mxu0 %v5352
    %5511 = vmatpush1.msra.mxu0 %v5351
    %5512 = vmatprep.subr.mxu0 %v5348
    %5513 = vmatpush1.msra.mxu0 %v5347
    %5514 = vmatprep.subr.mxu0 %v5344
    %5515 = vmatpush1.msra.mxu0 %v5343
    %5516 = vmatprep.subr.mxu0 %v5340
    %5517 = vmatpush1.msra.mxu0 %v5339
    %5518 = vmatprep.subr.mxu0 %v5336
    %5519 = vmatpush1.msra.mxu0 %v5335
    %5520 = vmatprep.subr.mxu0 %v5332
    %5521 = vmatpush1.msra.mxu0 %v5331
    %5522 = vmatprep.subr.mxu0 %v5328
    %5523 = vmatpush1.msra.mxu0 %v5327
    %5524 = vmatprep.subr.mxu0 %v5324
    %5525 = vmatpush1.msra.mxu0 %v5323
    %5526 = vmatprep.subr.mxu0 %v5320
    %5527 = vmatpush1.msra.mxu0 %v5319
    %5528 = vmatprep.subr.mxu0 %v5316
    %5529 = vmatpush1.msra.mxu0 %v5315
    %5530 = vmatprep.subr.mxu0 %v5312
    %5531 = vmatpush1.msra.mxu0 %v5311
    %5532 = vmatprep.subr.mxu0 %v5308
    %5533 = vmatpush1.msra.mxu0 %v5307
    %5534 = vmatprep.subr.mxu0 %v5304
    %5535 = vmatpush1.msra.mxu0 %v5303
    %5536 = vmatprep.subr.mxu0 %v5300
    %5537 = vmatpush1.msra.mxu0 %v5299
    %5538 = vmatprep.subr.mxu0 %v5296
    %5539 = vmatpush1.msra.mxu0 %v5295
    %5540 = vmatprep.subr.mxu0 %v5292
    %5541 = vmatpush1.msra.mxu0 %v5291
    %5542 = vmatprep.subr.mxu0 %v5416
    %5543 = vmatpush2.msra.mxu0 %v5415
    %5544 = vmatprep.subr.mxu0 %v5412
    %5545 = vmatpush2.msra.mxu0 %v5411
    %5546 = vmatprep.subr.mxu0 %v5408
    %5547 = vmatpush2.msra.mxu0 %v5407
    %5548 = vmatprep.subr.mxu0 %v5404
    %5549 = vmatpush2.msra.mxu0 %v5403
    %5550 = vmatprep.subr.mxu0 %v5400
    %5551 = vmatpush2.msra.mxu0 %v5399
    %5552 = vmatprep.subr.mxu0 %v5396
    %5553 = vmatpush2.msra.mxu0 %v5395
    %5554 = vmatprep.subr.mxu0 %v5392
    %5555 = vmatpush2.msra.mxu0 %v5391
    %5556 = vmatprep.subr.mxu0 %v5388
    %5557 = vmatpush2.msra.mxu0 %v5387
    %5558 = vmatprep.subr.mxu0 %v5384
    %5559 = vmatpush2.msra.mxu0 %v5383
    %5560 = vmatprep.subr.mxu0 %v5380
    %5561 = vmatpush2.msra.mxu0 %v5379
    %5562 = vmatprep.subr.mxu0 %v5376
    %5563 = vmatpush2.msra.mxu0 %v5375
    %5564 = vmatprep.subr.mxu0 %v5372
    %5565 = vmatpush2.msra.mxu0 %v5371
    %5566 = vmatprep.subr.mxu0 %v5368
    %5567 = vmatpush2.msra.mxu0 %v5367
    %5568 = vmatprep.subr.mxu0 %v5364
    %5569 = vmatpush2.msra.mxu0 %v5363
    %5570 = vmatprep.subr.mxu0 %v5360
    %5571 = vmatpush2.msra.mxu0 %v5359
    %5572 = vmatprep.subr.mxu0 %v5356
    %5573 = vmatpush2.msra.mxu0 %v5355
    %5574 = vmatprep.mubr.f32.mxu0 %v5288
    %5575 = vmatmul.mubr.f32.gmra.mxu0 %v5287
    %v5576 = vpop.f32.mrf.mxu0
    %v5577 = vadd.f32 %v5430, %v5576
    %v5578 = vpop.f32.mrf.mxu0
    %v5579 = vadd.f32 %v5434, %v5578
    %5580 = vdwg.mxu0
    %v5581 = vxor.u32 %v5506, 2147483648
    %v5582 = vmul.f32 %v5581, 1.442695
    %v5583 = vpow.pop %v5582
    %v5584 = vadd.f32 %v5583, 1.0
    %v5585 = vrcp.pop %v5584
    %v5586 = vmul.f32 1.0, %v5585
    %v5587 = vxor.u32 %v5508, 2147483648
    %v5588 = vmul.f32 %v5587, 1.442695
    %v5589 = vpow.pop %v5588
    %v5590 = vadd.f32 %v5589, 1.0
    %v5591 = vrcp.pop %v5590
    %v5592 = vmul.f32 1.0, %v5591
    %v5593 = vtanh.pop %v5577
    %v5594 = vxor.u32 %v5579, 2147483648
    %v5595 = vmul.f32 %v5594, 1.442695
    %v5596 = vpow.pop %v5595
    %v5597 = vadd.f32 %v5596, 1.0
    %v5598 = vrcp.pop %v5597
    %v5599 = vmul.f32 1.0, %v5598
    %v5600 = vld [vmem:[#allocation3] sm:$0xff]
    %v5601 = vmul.f32 %v5592, %v5600
    %v5602 = vmul.f32 %v5586, %v5593
    %v5603 = vadd.f32 %v5601, %v5602
    %v5604 = vtanh.pop %v5603
    %v5605 = vmul.f32 %v5599, %v5604
    %5606 = vst [vmem:[#allocation3] sm:$0xff] %v5603
    %5607 = vst [vmem:[#allocation2] sm:$0xff] %v5605
    %5608 = vst [vmem:[#allocation4] sm:$0xff] %v5605
    %v5609 = vld [vmem:[%s390] sm:$0xff]
    %5610 = vst [vmem:[#allocation4 + $0x8] sm:$0xff] %v5609
    %v5611 = vld [vmem:[#allocation4] sm:$0xff]
    %v5612 = vld [vmem:[#allocation4 + $0x8] sm:$0xff]
    %v5613 = vld [vmem:[%s395] sm:$0xff]
    %v5614 = vld [vmem:[%s395 + $0x8] sm:$0xff]
    %v5615 = vld [vmem:[%s395 + $0x10] sm:$0xff]
    %v5616 = vld [vmem:[%s395 + $0x18] sm:$0xff]
    %v5617 = vld [vmem:[%s395 + $0x20] sm:$0xff]
    %v5618 = vld [vmem:[%s395 + $0x28] sm:$0xff]
    %v5619 = vld [vmem:[%s395 + $0x30] sm:$0xff]
    %v5620 = vld [vmem:[%s395 + $0x38] sm:$0xff]
    %v5621 = vld [vmem:[%s395 + $0x40] sm:$0xff]
    %v5622 = vld [vmem:[%s395 + $0x48] sm:$0xff]
    %v5623 = vld [vmem:[%s395 + $0x50] sm:$0xff]
    %v5624 = vld [vmem:[%s395 + $0x58] sm:$0xff]
    %v5625 = vld [vmem:[%s395 + $0x60] sm:$0xff]
    %v5626 = vld [vmem:[%s395 + $0x68] sm:$0xff]
    %v5627 = vld [vmem:[%s395 + $0x70] sm:$0xff]
    %v5628 = vld [vmem:[%s395 + $0x78] sm:$0xff]
    %v5629 = vld [vmem:[%s395 + $0x80] sm:$0xff]
    %v5630 = vld [vmem:[%s395 + $0x88] sm:$0xff]
    %v5631 = vld [vmem:[%s395 + $0x90] sm:$0xff]
    %v5632 = vld [vmem:[%s395 + $0x98] sm:$0xff]
    %v5633 = vld [vmem:[%s395 + $0xa0] sm:$0xff]
    %v5634 = vld [vmem:[%s395 + $0xa8] sm:$0xff]
    %v5635 = vld [vmem:[%s395 + $0xb0] sm:$0xff]
    %v5636 = vld [vmem:[%s395 + $0xb8] sm:$0xff]
    %v5637 = vld [vmem:[%s395 + $0xc0] sm:$0xff]
    %v5638 = vld [vmem:[%s395 + $0xc8] sm:$0xff]
    %v5639 = vld [vmem:[%s395 + $0xd0] sm:$0xff]
    %v5640 = vld [vmem:[%s395 + $0xd8] sm:$0xff]
    %v5641 = vld [vmem:[%s395 + $0xe0] sm:$0xff]
    %v5642 = vld [vmem:[%s395 + $0xe8] sm:$0xff]
    %v5643 = vld [vmem:[%s395 + $0xf0] sm:$0xff]
    %v5644 = vld [vmem:[%s395 + $0xf8] sm:$0xff]
    %v5645 = vld [vmem:[%s395 + $0x100] sm:$0xff]
    %v5646 = vld [vmem:[%s395 + $0x108] sm:$0xff]
    %v5647 = vld [vmem:[%s395 + $0x110] sm:$0xff]
    %v5648 = vld [vmem:[%s395 + $0x118] sm:$0xff]
    %v5649 = vld [vmem:[%s395 + $0x120] sm:$0xff]
    %v5650 = vld [vmem:[%s395 + $0x128] sm:$0xff]
    %v5651 = vld [vmem:[%s395 + $0x130] sm:$0xff]
    %v5652 = vld [vmem:[%s395 + $0x138] sm:$0xff]
    %v5653 = vld [vmem:[%s395 + $0x140] sm:$0xff]
    %v5654 = vld [vmem:[%s395 + $0x148] sm:$0xff]
    %v5655 = vld [vmem:[%s395 + $0x150] sm:$0xff]
    %v5656 = vld [vmem:[%s395 + $0x158] sm:$0xff]
    %v5657 = vld [vmem:[%s395 + $0x160] sm:$0xff]
    %v5658 = vld [vmem:[%s395 + $0x168] sm:$0xff]
    %v5659 = vld [vmem:[%s395 + $0x170] sm:$0xff]
    %v5660 = vld [vmem:[%s395 + $0x178] sm:$0xff]
    %v5661 = vld [vmem:[%s395 + $0x180] sm:$0xff]
    %v5662 = vld [vmem:[%s395 + $0x188] sm:$0xff]
    %v5663 = vld [vmem:[%s395 + $0x190] sm:$0xff]
    %v5664 = vld [vmem:[%s395 + $0x198] sm:$0xff]
    %v5665 = vld [vmem:[%s395 + $0x1a0] sm:$0xff]
    %v5666 = vld [vmem:[%s395 + $0x1a8] sm:$0xff]
    %v5667 = vld [vmem:[%s395 + $0x1b0] sm:$0xff]
    %v5668 = vld [vmem:[%s395 + $0x1b8] sm:$0xff]
    %v5669 = vld [vmem:[%s395 + $0x1c0] sm:$0xff]
    %v5670 = vld [vmem:[%s395 + $0x1c8] sm:$0xff]
    %v5671 = vld [vmem:[%s395 + $0x1d0] sm:$0xff]
    %v5672 = vld [vmem:[%s395 + $0x1d8] sm:$0xff]
    %v5673 = vld [vmem:[%s395 + $0x1e0] sm:$0xff]
    %v5674 = vld [vmem:[%s395 + $0x1e8] sm:$0xff]
    %v5675 = vld [vmem:[%s395 + $0x1f0] sm:$0xff]
    %v5676 = vld [vmem:[%s395 + $0x1f8] sm:$0xff]
    %v5677 = vld [vmem:[%s395 + $0x200] sm:$0xff]
    %v5678 = vld [vmem:[%s395 + $0x208] sm:$0xff]
    %v5679 = vld [vmem:[%s395 + $0x210] sm:$0xff]
    %v5680 = vld [vmem:[%s395 + $0x218] sm:$0xff]
    %v5681 = vld [vmem:[%s395 + $0x220] sm:$0xff]
    %v5682 = vld [vmem:[%s395 + $0x228] sm:$0xff]
    %v5683 = vld [vmem:[%s395 + $0x230] sm:$0xff]
    %v5684 = vld [vmem:[%s395 + $0x238] sm:$0xff]
    %v5685 = vld [vmem:[%s395 + $0x240] sm:$0xff]
    %v5686 = vld [vmem:[%s395 + $0x248] sm:$0xff]
    %v5687 = vld [vmem:[%s395 + $0x250] sm:$0xff]
    %v5688 = vld [vmem:[%s395 + $0x258] sm:$0xff]
    %v5689 = vld [vmem:[%s395 + $0x260] sm:$0xff]
    %v5690 = vld [vmem:[%s395 + $0x268] sm:$0xff]
    %v5691 = vld [vmem:[%s395 + $0x270] sm:$0xff]
    %v5692 = vld [vmem:[%s395 + $0x278] sm:$0xff]
    %v5693 = vld [vmem:[%s395 + $0x280] sm:$0xff]
    %v5694 = vld [vmem:[%s395 + $0x288] sm:$0xff]
    %v5695 = vld [vmem:[%s395 + $0x290] sm:$0xff]
    %v5696 = vld [vmem:[%s395 + $0x298] sm:$0xff]
    %v5697 = vld [vmem:[%s395 + $0x2a0] sm:$0xff]
    %v5698 = vld [vmem:[%s395 + $0x2a8] sm:$0xff]
    %v5699 = vld [vmem:[%s395 + $0x2b0] sm:$0xff]
    %v5700 = vld [vmem:[%s395 + $0x2b8] sm:$0xff]
    %v5701 = vld [vmem:[%s395 + $0x2c0] sm:$0xff]
    %v5702 = vld [vmem:[%s395 + $0x2c8] sm:$0xff]
    %v5703 = vld [vmem:[%s395 + $0x2d0] sm:$0xff]
    %v5704 = vld [vmem:[%s395 + $0x2d8] sm:$0xff]
    %v5705 = vld [vmem:[%s395 + $0x2e0] sm:$0xff]
    %v5706 = vld [vmem:[%s395 + $0x2e8] sm:$0xff]
    %v5707 = vld [vmem:[%s395 + $0x2f0] sm:$0xff]
    %v5708 = vld [vmem:[%s395 + $0x2f8] sm:$0xff]
    %v5709 = vld [vmem:[%s395 + $0x300] sm:$0xff]
    %v5710 = vld [vmem:[%s395 + $0x308] sm:$0xff]
    %v5711 = vld [vmem:[%s395 + $0x310] sm:$0xff]
    %v5712 = vld [vmem:[%s395 + $0x318] sm:$0xff]
    %v5713 = vld [vmem:[%s395 + $0x320] sm:$0xff]
    %v5714 = vld [vmem:[%s395 + $0x328] sm:$0xff]
    %v5715 = vld [vmem:[%s395 + $0x330] sm:$0xff]
    %v5716 = vld [vmem:[%s395 + $0x338] sm:$0xff]
    %v5717 = vld [vmem:[%s395 + $0x340] sm:$0xff]
    %v5718 = vld [vmem:[%s395 + $0x348] sm:$0xff]
    %v5719 = vld [vmem:[%s395 + $0x350] sm:$0xff]
    %v5720 = vld [vmem:[%s395 + $0x358] sm:$0xff]
    %v5721 = vld [vmem:[%s395 + $0x360] sm:$0xff]
    %v5722 = vld [vmem:[%s395 + $0x368] sm:$0xff]
    %v5723 = vld [vmem:[%s395 + $0x370] sm:$0xff]
    %v5724 = vld [vmem:[%s395 + $0x378] sm:$0xff]
    %v5725 = vld [vmem:[%s395 + $0x380] sm:$0xff]
    %v5726 = vld [vmem:[%s395 + $0x388] sm:$0xff]
    %v5727 = vld [vmem:[%s395 + $0x390] sm:$0xff]
    %v5728 = vld [vmem:[%s395 + $0x398] sm:$0xff]
    %v5729 = vld [vmem:[%s395 + $0x3a0] sm:$0xff]
    %v5730 = vld [vmem:[%s395 + $0x3a8] sm:$0xff]
    %v5731 = vld [vmem:[%s395 + $0x3b0] sm:$0xff]
    %v5732 = vld [vmem:[%s395 + $0x3b8] sm:$0xff]
    %v5733 = vld [vmem:[%s395 + $0x3c0] sm:$0xff]
    %v5734 = vld [vmem:[%s395 + $0x3c8] sm:$0xff]
    %v5735 = vld [vmem:[%s395 + $0x3d0] sm:$0xff]
    %v5736 = vld [vmem:[%s395 + $0x3d8] sm:$0xff]
    %v5737 = vld [vmem:[%s395 + $0x3e0] sm:$0xff]
    %v5738 = vld [vmem:[%s395 + $0x3e8] sm:$0xff]
    %v5739 = vld [vmem:[%s395 + $0x3f0] sm:$0xff]
    %v5740 = vld [vmem:[%s395 + $0x3f8] sm:$0xff]
    %v5741 = vld [vmem:[%s524] sm:$0xf]
    %v5743 = vlaneseq
    %v5744 = vshrl.u32 %v5743, 7
    %v5745 = vsub.s32 0, %v5744
    %v5746 = vrot.slane %v5741, %v5745
    %v5747 = vlaneseq
    %v5748 = vshrl.u32 %v5747, 7
    %v5749 = vsub.s32 1, %v5748
    %v5750 = vrot.slane %v5741, %v5749
    %v5751 = vlaneseq
    %v5752 = vshrl.u32 %v5751, 7
    %v5753 = vsub.s32 2, %v5752
    %v5754 = vrot.slane %v5741, %v5753
    %v5755 = vlaneseq
    %v5756 = vshrl.u32 %v5755, 7
    %v5757 = vsub.s32 3, %v5756
    %v5758 = vrot.slane %v5741, %v5757
    %5763 = vmatprep.subr.mxu0 %v5674
    %5764 = vmatpush1.msra.mxu0 %v5673
    %5765 = vmatprep.subr.mxu0 %v5670
    %5766 = vmatpush1.msra.mxu0 %v5669
    %5767 = vmatprep.subr.mxu0 %v5666
    %5768 = vmatpush1.msra.mxu0 %v5665
    %5769 = vmatprep.subr.mxu0 %v5662
    %5770 = vmatpush1.msra.mxu0 %v5661
    %5771 = vmatprep.subr.mxu0 %v5658
    %5772 = vmatpush1.msra.mxu0 %v5657
    %5773 = vmatprep.subr.mxu0 %v5654
    %5774 = vmatpush1.msra.mxu0 %v5653
    %5775 = vmatprep.subr.mxu0 %v5650
    %5776 = vmatpush1.msra.mxu0 %v5649
    %5777 = vmatprep.subr.mxu0 %v5646
    %5778 = vmatpush1.msra.mxu0 %v5645
    %5779 = vmatprep.subr.mxu0 %v5642
    %5780 = vmatpush1.msra.mxu0 %v5641
    %5781 = vmatprep.subr.mxu0 %v5638
    %5782 = vmatpush1.msra.mxu0 %v5637
    %5783 = vmatprep.subr.mxu0 %v5634
    %5784 = vmatpush1.msra.mxu0 %v5633
    %5785 = vmatprep.subr.mxu0 %v5630
    %5786 = vmatpush1.msra.mxu0 %v5629
    %5787 = vmatprep.subr.mxu0 %v5626
    %5788 = vmatpush1.msra.mxu0 %v5625
    %5789 = vmatprep.subr.mxu0 %v5622
    %5790 = vmatpush1.msra.mxu0 %v5621
    %5791 = vmatprep.subr.mxu0 %v5618
    %5792 = vmatpush1.msra.mxu0 %v5617
    %5793 = vmatprep.subr.mxu0 %v5614
    %5794 = vmatpush1.msra.mxu0 %v5613
    %5795 = vmatprep.subr.mxu0 %v5738
    %5796 = vmatpush2.msra.mxu0 %v5737
    %5797 = vmatprep.subr.mxu0 %v5734
    %5798 = vmatpush2.msra.mxu0 %v5733
    %5799 = vmatprep.subr.mxu0 %v5730
    %5800 = vmatpush2.msra.mxu0 %v5729
    %5801 = vmatprep.subr.mxu0 %v5726
    %5802 = vmatpush2.msra.mxu0 %v5725
    %5803 = vmatprep.subr.mxu0 %v5722
    %5804 = vmatpush2.msra.mxu0 %v5721
    %5805 = vmatprep.subr.mxu0 %v5718
    %5806 = vmatpush2.msra.mxu0 %v5717
    %5807 = vmatprep.subr.mxu0 %v5714
    %5808 = vmatpush2.msra.mxu0 %v5713
    %5809 = vmatprep.subr.mxu0 %v5710
    %5810 = vmatpush2.msra.mxu0 %v5709
    %5811 = vmatprep.subr.mxu0 %v5706
    %5812 = vmatpush2.msra.mxu0 %v5705
    %5813 = vmatprep.subr.mxu0 %v5702
    %5814 = vmatpush2.msra.mxu0 %v5701
    %5815 = vmatprep.subr.mxu0 %v5698
    %5816 = vmatpush2.msra.mxu0 %v5697
    %5817 = vmatprep.subr.mxu0 %v5694
    %5818 = vmatpush2.msra.mxu0 %v5693
    %5819 = vmatprep.subr.mxu0 %v5690
    %5820 = vmatpush2.msra.mxu0 %v5689
    %5821 = vmatprep.subr.mxu0 %v5686
    %5822 = vmatpush2.msra.mxu0 %v5685
    %5823 = vmatprep.subr.mxu0 %v5682
    %5824 = vmatpush2.msra.mxu0 %v5681
    %5825 = vmatprep.subr.mxu0 %v5678
    %5826 = vmatpush2.msra.mxu0 %v5677
    %5827 = vmatprep.mubr.f32.mxu0 %v5612
    %5828 = vmatmul.mubr.f32.gmra.mxu0 %v5611
    %v5829 = vpop.f32.mrf.mxu0
    %v5830 = vadd.f32 %v5746, %v5829
    %v5831 = vpop.f32.mrf.mxu0
    %v5832 = vadd.f32 %v5750, %v5831
    %5833 = vdwg.mxu0
    %5834 = vmatprep.subr.mxu0 %v5676
    %5835 = vmatpush1.msra.mxu0 %v5675
    %5836 = vmatprep.subr.mxu0 %v5672
    %5837 = vmatpush1.msra.mxu0 %v5671
    %5838 = vmatprep.subr.mxu0 %v5668
    %5839 = vmatpush1.msra.mxu0 %v5667
    %5840 = vmatprep.subr.mxu0 %v5664
    %5841 = vmatpush1.msra.mxu0 %v5663
    %5842 = vmatprep.subr.mxu0 %v5660
    %5843 = vmatpush1.msra.mxu0 %v5659
    %5844 = vmatprep.subr.mxu0 %v5656
    %5845 = vmatpush1.msra.mxu0 %v5655
    %5846 = vmatprep.subr.mxu0 %v5652
    %5847 = vmatpush1.msra.mxu0 %v5651
    %5848 = vmatprep.subr.mxu0 %v5648
    %5849 = vmatpush1.msra.mxu0 %v5647
    %5850 = vmatprep.subr.mxu0 %v5644
    %5851 = vmatpush1.msra.mxu0 %v5643
    %5852 = vmatprep.subr.mxu0 %v5640
    %5853 = vmatpush1.msra.mxu0 %v5639
    %5854 = vmatprep.subr.mxu0 %v5636
    %5855 = vmatpush1.msra.mxu0 %v5635
    %5856 = vmatprep.subr.mxu0 %v5632
    %5857 = vmatpush1.msra.mxu0 %v5631
    %5858 = vmatprep.subr.mxu0 %v5628
    %5859 = vmatpush1.msra.mxu0 %v5627
    %5860 = vmatprep.subr.mxu0 %v5624
    %5861 = vmatpush1.msra.mxu0 %v5623
    %5862 = vmatprep.subr.mxu0 %v5620
    %5863 = vmatpush1.msra.mxu0 %v5619
    %5864 = vmatprep.subr.mxu0 %v5616
    %5865 = vmatpush1.msra.mxu0 %v5615
    %5866 = vmatprep.subr.mxu0 %v5740
    %5867 = vmatpush2.msra.mxu0 %v5739
    %5868 = vmatprep.subr.mxu0 %v5736
    %5869 = vmatpush2.msra.mxu0 %v5735
    %5870 = vmatprep.subr.mxu0 %v5732
    %5871 = vmatpush2.msra.mxu0 %v5731
    %5872 = vmatprep.subr.mxu0 %v5728
    %5873 = vmatpush2.msra.mxu0 %v5727
    %5874 = vmatprep.subr.mxu0 %v5724
    %5875 = vmatpush2.msra.mxu0 %v5723
    %5876 = vmatprep.subr.mxu0 %v5720
    %5877 = vmatpush2.msra.mxu0 %v5719
    %5878 = vmatprep.subr.mxu0 %v5716
    %5879 = vmatpush2.msra.mxu0 %v5715
    %5880 = vmatprep.subr.mxu0 %v5712
    %5881 = vmatpush2.msra.mxu0 %v5711
    %5882 = vmatprep.subr.mxu0 %v5708
    %5883 = vmatpush2.msra.mxu0 %v5707
    %5884 = vmatprep.subr.mxu0 %v5704
    %5885 = vmatpush2.msra.mxu0 %v5703
    %5886 = vmatprep.subr.mxu0 %v5700
    %5887 = vmatpush2.msra.mxu0 %v5699
    %5888 = vmatprep.subr.mxu0 %v5696
    %5889 = vmatpush2.msra.mxu0 %v5695
    %5890 = vmatprep.subr.mxu0 %v5692
    %5891 = vmatpush2.msra.mxu0 %v5691
    %5892 = vmatprep.subr.mxu0 %v5688
    %5893 = vmatpush2.msra.mxu0 %v5687
    %5894 = vmatprep.subr.mxu0 %v5684
    %5895 = vmatpush2.msra.mxu0 %v5683
    %5896 = vmatprep.subr.mxu0 %v5680
    %5897 = vmatpush2.msra.mxu0 %v5679
    %5898 = vmatprep.mubr.f32.mxu0 %v5612
    %5899 = vmatmul.mubr.f32.gmra.mxu0 %v5611
    %v5900 = vpop.f32.mrf.mxu0
    %v5901 = vadd.f32 %v5754, %v5900
    %v5902 = vpop.f32.mrf.mxu0
    %v5903 = vadd.f32 %v5758, %v5902
    %5904 = vdwg.mxu0
    %v5905 = vxor.u32 %v5830, 2147483648
    %v5906 = vmul.f32 %v5905, 1.442695
    %v5907 = vpow.pop %v5906
    %v5908 = vadd.f32 %v5907, 1.0
    %v5909 = vrcp.pop %v5908
    %v5910 = vmul.f32 1.0, %v5909
    %v5911 = vxor.u32 %v5832, 2147483648
    %v5912 = vmul.f32 %v5911, 1.442695
    %v5913 = vpow.pop %v5912
    %v5914 = vadd.f32 %v5913, 1.0
    %v5915 = vrcp.pop %v5914
    %v5916 = vmul.f32 1.0, %v5915
    %v5917 = vtanh.pop %v5901
    %v5918 = vxor.u32 %v5903, 2147483648
    %v5919 = vmul.f32 %v5918, 1.442695
    %v5920 = vpow.pop %v5919
    %v5921 = vadd.f32 %v5920, 1.0
    %v5922 = vrcp.pop %v5921
    %v5923 = vmul.f32 1.0, %v5922
    %v5924 = vld [vmem:[%s708] sm:$0xff]
    %v5925 = vmul.f32 %v5916, %v5924
    %v5926 = vmul.f32 %v5910, %v5917
    %v5927 = vadd.f32 %v5925, %v5926
    %v5928 = vtanh.pop %v5927
    %v5929 = vmul.f32 %v5923, %v5928
    %5930 = vst [vmem:[%s708] sm:$0xff] %v5927
    %5931 = vst [vmem:[%s390] sm:$0xff] %v5929
    %s5932 = scalar_lea.vmem [#allocation11], 64
    %5933 = vst [vmem:[%s5932] sm:$0xff] %v5929
    // Predicated region
    $region30: #{tpu_custom_call.1} parent=1 // pred_check
      _
    $region31: #{tpu_custom_call.1} parent=1 // pred_check_branch
      %5935 = sbr.rel (0) target = $region33
    $region32: #{tpu_custom_call.1} parent=1 // pred_region
      %s5937 = ssub.s32 1152, 1152
      %5938 = vsyncadd [#allocation7], %s5937
      %s5939 = sshll.u32 [#allocation11], 4
      %s5940 = int_to_ptr.vmem [resolvable:$true] %s5939
      %5945 = dma.vmem_to_hbm [thread:$0]  %s5940, 1152, %s3, [#allocation7], 128, 128, 8
    $region33: #{tpu_custom_call.1} parent=1 // pred_fallthru
      _
    // Predicated region
    $region34: #{tpu_custom_call.1} parent=1 // pred_check
      _
    $region35: #{tpu_custom_call.1} parent=1 // pred_check_branch
      %5947 = sbr.rel (0) target = $region37
    $region36: #{tpu_custom_call.1} parent=1 // pred_region
      %5948 = dma.done [#allocation7], 1152
    $region37: #{tpu_custom_call.1} parent=1 // pred_fallthru
      _
    %5949 = vsyncpa [#allocation6], 1
    %5950 = vsyncpa [#allocation9], 1
    %5951 = vsyncpa [#allocation7], 1

</llo_original>
